<compile_context>
chip_gen: v7x
topology: tpu7x:2x2x1
jax: 0.10.0
libtpu: 0.0.40
codegen_flags: <defaults>
</compile_context>

<pallas_src>
import math

import jax
import jax.numpy as jnp
from jax.experimental import pallas as pl
from jax.experimental.pallas import tpu as pltpu

IN_DIM = 784                          # 1 * 28 * 28 == embed_dim
PAD_DIM = 896                         # 7 * 128 — lane-dense feature dim
HIDDEN = (512, 256, 256, 512, 784)    # output dims of l1..l5


def _round_up(a: int, m: int) -> int:
    return (a + m - 1) // m * m


def sinusoidal_embeddings(time_steps: int, embed_dim: int) -> jnp.ndarray:
    """Exact JAX port of the PyTorch sinusoidalEmbeddings helper."""
    position = jnp.arange(time_steps, dtype=jnp.float32)[:, None]          # (T, 1)
    div = jnp.exp(jnp.arange(0, embed_dim, 2, dtype=jnp.float32)
                  * (-(math.log(10000.0) / embed_dim)))                    # (E/2,)
    emb = jnp.zeros((time_steps, embed_dim), dtype=jnp.float32)
    emb = emb.at[:, 0::2].set(jnp.sin(position * div))
    emb = emb.at[:, 1::2].set(jnp.cos(position * div))
    return emb


def _init_linear(key, fan_in, fan_out):
    """Deterministic init mimicking torch.nn.Linear's default (uniform +/- 1/sqrt(fan_in))."""
    kw, kb = jax.random.split(key)
    bound = 1.0 / math.sqrt(fan_in)
    # Stored already transposed: (in, out) so the kernel computes x @ W + b.
    w = jax.random.uniform(kw, (fan_in, fan_out), jnp.float32, -bound, bound)
    b = jax.random.uniform(kb, (fan_out,), jnp.float32, -bound, bound)
    return w, b


def init_params(key):
    dims = (IN_DIM,) + HIDDEN          # 784 -> 512 -> 256 -> 256 -> 512 -> 784
    keys = jax.random.split(key, len(dims) - 1)
    return [_init_linear(k, dims[i], dims[i + 1]) for i, k in enumerate(keys)]


def prepare_params(params_f32, embeddings_f32):
    """Pad 784->896 on the boundary layers, cast weights to bf16, keep biases f32 (1, N)."""
    pad = PAD_DIM - IN_DIM
    prepped = []
    n = len(params_f32)
    for i, (w, b) in enumerate(params_f32):
        if i == 0:                                      # l1: pad K rows (zeros -> no effect)
            w = jnp.pad(w, ((0, pad), (0, 0)))
        if i == n - 1:                                  # l5: pad N cols + bias (sliced off later)
            w = jnp.pad(w, ((0, 0), (0, pad)))
            b = jnp.pad(b, (0, pad))
        prepped.append((w.astype(jnp.bfloat16),
                        b.reshape(1, -1).astype(jnp.float32)))
    emb_table = jnp.pad(embeddings_f32, ((0, 0), (0, pad)))   # (T, 896)
    return prepped, emb_table


# ------------------------------ Pallas kernel ------------------------------

def ddpm_mlp_kernel(x_ref, emb_ref,
                    w1_ref, b1_ref, w2_ref, b2_ref, w3_ref, b3_ref,
                    w4_ref, b4_ref, w5_ref, b5_ref,
                    out_ref):
    # Hot path: embedding add + 5 MXU matmuls (bf16 x bf16 -> f32 acc) + f32 bias/ReLU,
    # everything resident in VMEM for the current batch tile.
    def dense(h, w_ref, b_ref, relu):
        y = jnp.dot(h.astype(jnp.bfloat16), w_ref[...],
                    preferred_element_type=jnp.float32) + b_ref[...]
        return jnp.maximum(y, 0.0) if relu else y

    h = x_ref[...] + emb_ref[...]                       # f32 (TM, 896)
    h = dense(h, w1_ref, b1_ref, True)
    h = dense(h, w2_ref, b2_ref, True)
    h = dense(h, w3_ref, b3_ref, True)
    h = dense(h, w4_ref, b4_ref, True)
    out_ref[...] = dense(h, w5_ref, b5_ref, False)


def _build_pallas_call(Bp, TM, weight_args, single_buffer_weights):
    """Construct the pallas_call; weights use constant index_maps (VMEM-resident)."""
    weight_mode = pl.Buffered(1) if single_buffer_weights else None

    def resident_spec(a):
        nd = a.ndim
        idx = lambda i, _n=nd: (0,) * _n
        if weight_mode is None:
            return pl.BlockSpec(a.shape, idx)
        # Constant block index + grid=(N,) -> fetched once; single-buffer it to halve
        # the weight VMEM footprint (double-buffering a constant block buys nothing).
        return pl.BlockSpec(a.shape, idx, pipeline_mode=weight_mode)

    tile_spec = pl.BlockSpec((TM, PAD_DIM), lambda i: (i, 0))

    return pl.pallas_call(
        ddpm_mlp_kernel,
        out_shape=jax.ShapeDtypeStruct((Bp, PAD_DIM), jnp.float32),
        grid=(Bp // TM,),
        in_specs=[tile_spec, tile_spec] + [resident_spec(a) for a in weight_args],
        out_specs=pl.BlockSpec((TM, PAD_DIM), lambda i: (i, 0)),
        compiler_params=pltpu.CompilerParams(
            dimension_semantics=("parallel",),          # batch tiles are independent
            vmem_limit_bytes=24 << 20,                  # real footprint ~5-10 MiB;
        ),                                              # headroom on v7x (64 MiB VMEM)
    )


def ddpm_simple_forward(x, t, params, emb_table, max_batch_tile=256):
    """x: (B, 1, 28, 28) float32 NCHW, t: (B,) int32 timestep indices.

    `params` / `emb_table` must come from prepare_params (bf16 weights, 896-padded).
    """
    B = x.shape[0]
    Bp8 = _round_up(B, 8)
    TM = min(max_batch_tile, Bp8)       # 8-row tiles for tiny batches, up to 256 (MXU depth)
    Bp = _round_up(B, TM)

    pad_f = PAD_DIM - IN_DIM
    x_flat = x.reshape(B, IN_DIM)                                        # b c h w -> b (c h w)
    x_pad = jnp.pad(x_flat, ((0, Bp - B), (0, pad_f)))                   # (Bp, 896)
    # Row gather of the (T, 896) embedding table stays in the wrapper (see header note).
    emb = jnp.take(emb_table, t, axis=0)                                 # (B, 896)
    emb_pad = jnp.pad(emb, ((0, Bp - B), (0, 0)))                        # (Bp, 896)

    weight_args = []
    for w, b in params:
        weight_args.append(w)
        weight_args.append(b)
    args = [x_pad, emb_pad] + weight_args

    try:
        out_pad = _build_pallas_call(Bp, TM, weight_args, True)(*args)
        out_pad = jax.block_until_ready(out_pad)
    except Exception:
        # pl.Buffered(1) not supported by this jax version -> fall back to the default
        # (double-buffered) resident weight specs; numerically identical.
        out_pad = _build_pallas_call(Bp, TM, weight_args, False)(*args)

    return out_pad[:B, :IN_DIM].reshape(B, 1, 28, 28)                    # b (c h w) -> b c h w


# ------------------------------ reference (pure JAX) ------------------------------

def ddpm_simple_reference(x, t, params, emb_table):
    """Mirrors the kernel math exactly (bf16 weights/activations, f32 accumulation)."""
    B = x.shape[0]
    h = jnp.pad(x.reshape(B, IN_DIM), ((0, 0), (0, PAD_DIM - IN_DIM))) + emb_table[t]
    for i, (w, b) in enumerate(params):
        h = jnp.dot(h.astype(jnp.bfloat16), w, preferred_element_type=jnp.float32) + b
        if i < len(params) - 1:
            h = jnp.maximum(h, 0.0)
    return h[:, :IN_DIM].reshape(B, 1, 28, 28)


if __name__ == "__main__":
    TIME_STEPS = 100
    B = 2

    key = jax.random.PRNGKey(0)
    k_params, k_x, k_t = jax.random.split(key, 3)

    params_f32 = init_params(k_params)
    embeddings = sinusoidal_embeddings(TIME_STEPS, IN_DIM)
    params, emb_table = prepare_params(params_f32, embeddings)

    x = jax.random.normal(k_x, (B, 1, 28, 28), jnp.float32)
    t = jax.random.randint(k_t, (B,), 0, TIME_STEPS, jnp.int32)

    out = ddpm_simple_forward(x, t, params, emb_table)
    out = jax.block_until_ready(out)

    ref = ddpm_simple_reference(x, t, params, emb_table)
    assert out.shape == (B, 1, 28, 28)
    assert jnp.allclose(out, ref, atol=2e-3, rtol=2e-3), "mismatch vs JAX reference"

    print("KERNEL_OK")
</pallas_src>

<mosaic_0001>
module attributes {stable_mosaic.version = 11 : i64} {
  func.func @ddpm_mlp_kernel(%arg0: i32, %arg1: memref<8x896xf32, #tpu.memory_space<vmem>>, %arg2: memref<8x896xf32, #tpu.memory_space<vmem>>, %arg3: memref<896x512xbf16, #tpu.memory_space<vmem>>, %arg4: memref<1x512xf32, #tpu.memory_space<vmem>>, %arg5: memref<512x256xbf16, #tpu.memory_space<vmem>>, %arg6: memref<1x256xf32, #tpu.memory_space<vmem>>, %arg7: memref<256x256xbf16, #tpu.memory_space<vmem>>, %arg8: memref<1x256xf32, #tpu.memory_space<vmem>>, %arg9: memref<256x512xbf16, #tpu.memory_space<vmem>>, %arg10: memref<1x512xf32, #tpu.memory_space<vmem>>, %arg11: memref<512x896xbf16, #tpu.memory_space<vmem>>, %arg12: memref<1x896xf32, #tpu.memory_space<vmem>>, %arg13: memref<8x896xf32, #tpu.memory_space<vmem>>) attributes {dimension_semantics = [#tpu.dimension_semantics<parallel>], iteration_bounds = array<i64: 1>, scalar_prefetch = 0 : i64, scratch_operands = 0 : i64, tpu.core_type = #tpu.core_type<tc>, window_params = [{transform_indices = @transform_0, window_bounds = array<i64: 8, 896>}, {transform_indices = @transform_1, window_bounds = array<i64: 8, 896>}, {pipeline_mode = #tpu.pipeline_mode<synchronous>, transform_indices = @transform_2, window_bounds = array<i64: 896, 512>}, {pipeline_mode = #tpu.pipeline_mode<synchronous>, transform_indices = @transform_3, window_bounds = array<i64: 1, 512>}, {pipeline_mode = #tpu.pipeline_mode<synchronous>, transform_indices = @transform_4, window_bounds = array<i64: 512, 256>}, {pipeline_mode = #tpu.pipeline_mode<synchronous>, transform_indices = @transform_5, window_bounds = array<i64: 1, 256>}, {pipeline_mode = #tpu.pipeline_mode<synchronous>, transform_indices = @transform_6, window_bounds = array<i64: 256, 256>}, {pipeline_mode = #tpu.pipeline_mode<synchronous>, transform_indices = @transform_7, window_bounds = array<i64: 1, 256>}, {pipeline_mode = #tpu.pipeline_mode<synchronous>, transform_indices = @transform_8, window_bounds = array<i64: 256, 512>}, {pipeline_mode = #tpu.pipeline_mode<synchronous>, transform_indices = @transform_9, window_bounds = array<i64: 1, 512>}, {pipeline_mode = #tpu.pipeline_mode<synchronous>, transform_indices = @transform_10, window_bounds = array<i64: 512, 896>}, {pipeline_mode = #tpu.pipeline_mode<synchronous>, transform_indices = @transform_11, window_bounds = array<i64: 1, 896>}, {transform_indices = @transform_12, window_bounds = array<i64: 8, 896>}]} {
    %c0 = arith.constant 0 : index
    %c0_0 = arith.constant 0 : index
    %0 = vector.load %arg1[%c0, %c0_0] : memref<8x896xf32, #tpu.memory_space<vmem>>, vector<8x896xf32>
    %c0_1 = arith.constant 0 : index
    %c0_2 = arith.constant 0 : index
    %1 = vector.load %arg2[%c0_1, %c0_2] : memref<8x896xf32, #tpu.memory_space<vmem>>, vector<8x896xf32>
    %2 = arith.addf %0, %1 : vector<8x896xf32>
    %3 = arith.truncf %2 : vector<8x896xf32> to vector<8x896xbf16>
    %c0_3 = arith.constant 0 : index
    %c0_4 = arith.constant 0 : index
    %4 = vector.load %arg3[%c0_3, %c0_4] : memref<896x512xbf16, #tpu.memory_space<vmem>>, vector<896x512xbf16>
    %cst = arith.constant dense<0.000000e+00> : vector<8x512xf32>
    %5 = tpu.matmul %3, %4, %cst {dimension_numbers = #tpu.dot_dimension_numbers<[1], [0], [0], [1], [0, 0, 1, 1], [], []>} : vector<8x896xbf16>, vector<896x512xbf16>, vector<8x512xf32> -> vector<8x512xf32>
    %c0_5 = arith.constant 0 : index
    %c0_6 = arith.constant 0 : index
    %6 = vector.load %arg4[%c0_5, %c0_6] : memref<1x512xf32, #tpu.memory_space<vmem>>, vector<1x512xf32>
    %7 = vector.broadcast %6 : vector<1x512xf32> to vector<8x512xf32>
    %8 = arith.addf %5, %7 : vector<8x512xf32>
    %cst_7 = arith.constant 0.000000e+00 : f32
    %9 = vector.broadcast %cst_7 : f32 to vector<8x512xf32>
    %10 = arith.maximumf %8, %9 : vector<8x512xf32>
    %11 = arith.truncf %10 : vector<8x512xf32> to vector<8x512xbf16>
    %c0_8 = arith.constant 0 : index
    %c0_9 = arith.constant 0 : index
    %12 = vector.load %arg5[%c0_8, %c0_9] : memref<512x256xbf16, #tpu.memory_space<vmem>>, vector<512x256xbf16>
    %cst_10 = arith.constant dense<0.000000e+00> : vector<8x256xf32>
    %13 = tpu.matmul %11, %12, %cst_10 {dimension_numbers = #tpu.dot_dimension_numbers<[1], [0], [0], [1], [0, 0, 1, 1], [], []>} : vector<8x512xbf16>, vector<512x256xbf16>, vector<8x256xf32> -> vector<8x256xf32>
    %c0_11 = arith.constant 0 : index
    %c0_12 = arith.constant 0 : index
    %14 = vector.load %arg6[%c0_11, %c0_12] : memref<1x256xf32, #tpu.memory_space<vmem>>, vector<1x256xf32>
    %15 = vector.broadcast %14 : vector<1x256xf32> to vector<8x256xf32>
    %16 = arith.addf %13, %15 : vector<8x256xf32>
    %cst_13 = arith.constant 0.000000e+00 : f32
    %17 = vector.broadcast %cst_13 : f32 to vector<8x256xf32>
    %18 = arith.maximumf %16, %17 : vector<8x256xf32>
    %19 = arith.truncf %18 : vector<8x256xf32> to vector<8x256xbf16>
    %c0_14 = arith.constant 0 : index
    %c0_15 = arith.constant 0 : index
    %20 = vector.load %arg7[%c0_14, %c0_15] : memref<256x256xbf16, #tpu.memory_space<vmem>>, vector<256x256xbf16>
    %cst_16 = arith.constant dense<0.000000e+00> : vector<8x256xf32>
    %21 = tpu.matmul %19, %20, %cst_16 {dimension_numbers = #tpu.dot_dimension_numbers<[1], [0], [0], [1], [0, 0, 1, 1], [], []>} : vector<8x256xbf16>, vector<256x256xbf16>, vector<8x256xf32> -> vector<8x256xf32>
    %c0_17 = arith.constant 0 : index
    %c0_18 = arith.constant 0 : index
    %22 = vector.load %arg8[%c0_17, %c0_18] : memref<1x256xf32, #tpu.memory_space<vmem>>, vector<1x256xf32>
    %23 = vector.broadcast %22 : vector<1x256xf32> to vector<8x256xf32>
    %24 = arith.addf %21, %23 : vector<8x256xf32>
    %cst_19 = arith.constant 0.000000e+00 : f32
    %25 = vector.broadcast %cst_19 : f32 to vector<8x256xf32>
    %26 = arith.maximumf %24, %25 : vector<8x256xf32>
    %27 = arith.truncf %26 : vector<8x256xf32> to vector<8x256xbf16>
    %c0_20 = arith.constant 0 : index
    %c0_21 = arith.constant 0 : index
    %28 = vector.load %arg9[%c0_20, %c0_21] : memref<256x512xbf16, #tpu.memory_space<vmem>>, vector<256x512xbf16>
    %cst_22 = arith.constant dense<0.000000e+00> : vector<8x512xf32>
    %29 = tpu.matmul %27, %28, %cst_22 {dimension_numbers = #tpu.dot_dimension_numbers<[1], [0], [0], [1], [0, 0, 1, 1], [], []>} : vector<8x256xbf16>, vector<256x512xbf16>, vector<8x512xf32> -> vector<8x512xf32>
    %c0_23 = arith.constant 0 : index
    %c0_24 = arith.constant 0 : index
    %30 = vector.load %arg10[%c0_23, %c0_24] : memref<1x512xf32, #tpu.memory_space<vmem>>, vector<1x512xf32>
    %31 = vector.broadcast %30 : vector<1x512xf32> to vector<8x512xf32>
    %32 = arith.addf %29, %31 : vector<8x512xf32>
    %cst_25 = arith.constant 0.000000e+00 : f32
    %33 = vector.broadcast %cst_25 : f32 to vector<8x512xf32>
    %34 = arith.maximumf %32, %33 : vector<8x512xf32>
    %35 = arith.truncf %34 : vector<8x512xf32> to vector<8x512xbf16>
    %c0_26 = arith.constant 0 : index
    %c0_27 = arith.constant 0 : index
    %36 = vector.load %arg11[%c0_26, %c0_27] : memref<512x896xbf16, #tpu.memory_space<vmem>>, vector<512x896xbf16>
    %cst_28 = arith.constant dense<0.000000e+00> : vector<8x896xf32>
    %37 = tpu.matmul %35, %36, %cst_28 {dimension_numbers = #tpu.dot_dimension_numbers<[1], [0], [0], [1], [0, 0, 1, 1], [], []>} : vector<8x512xbf16>, vector<512x896xbf16>, vector<8x896xf32> -> vector<8x896xf32>
    %c0_29 = arith.constant 0 : index
    %c0_30 = arith.constant 0 : index
    %38 = vector.load %arg12[%c0_29, %c0_30] : memref<1x896xf32, #tpu.memory_space<vmem>>, vector<1x896xf32>
    %39 = vector.broadcast %38 : vector<1x896xf32> to vector<8x896xf32>
    %40 = arith.addf %37, %39 : vector<8x896xf32>
    %c0_31 = arith.constant 0 : index
    %c0_32 = arith.constant 0 : index
    %41 = vector.load %arg13[%c0_31, %c0_32] : memref<8x896xf32, #tpu.memory_space<vmem>>, vector<8x896xf32>
    tpu.vector_store %arg13[%c0_31, %c0_32], %40 {strides = array<i32>} : memref<8x896xf32, #tpu.memory_space<vmem>>, vector<8x896xf32>,
    return
  }
  func.func @transform_0(%arg0: i32) -> (i32, i32) {
    %c0_i32 = arith.constant 0 : i32
    %c0_i32_0 = arith.constant 0 : i32
    return %arg0, %c0_i32 : i32, i32
  }
  func.func @transform_1(%arg0: i32) -> (i32, i32) {
    %c0_i32 = arith.constant 0 : i32
    %c0_i32_0 = arith.constant 0 : i32
    return %arg0, %c0_i32 : i32, i32
  }
  func.func @transform_2(%arg0: i32) -> (i32, i32) {
    %c0_i32 = arith.constant 0 : i32
    %c0_i32_0 = arith.constant 0 : i32
    %c0_i32_1 = arith.constant 0 : i32
    return %c0_i32, %c0_i32_0 : i32, i32
  }
  func.func @transform_3(%arg0: i32) -> (i32, i32) {
    %c0_i32 = arith.constant 0 : i32
    %c0_i32_0 = arith.constant 0 : i32
    %c0_i32_1 = arith.constant 0 : i32
    return %c0_i32, %c0_i32_0 : i32, i32
  }
  func.func @transform_4(%arg0: i32) -> (i32, i32) {
    %c0_i32 = arith.constant 0 : i32
    %c0_i32_0 = arith.constant 0 : i32
    %c0_i32_1 = arith.constant 0 : i32
    return %c0_i32, %c0_i32_0 : i32, i32
  }
  func.func @transform_5(%arg0: i32) -> (i32, i32) {
    %c0_i32 = arith.constant 0 : i32
    %c0_i32_0 = arith.constant 0 : i32
    %c0_i32_1 = arith.constant 0 : i32
    return %c0_i32, %c0_i32_0 : i32, i32
  }
  func.func @transform_6(%arg0: i32) -> (i32, i32) {
    %c0_i32 = arith.constant 0 : i32
    %c0_i32_0 = arith.constant 0 : i32
    %c0_i32_1 = arith.constant 0 : i32
    return %c0_i32, %c0_i32_0 : i32, i32
  }
  func.func @transform_7(%arg0: i32) -> (i32, i32) {
    %c0_i32 = arith.constant 0 : i32
    %c0_i32_0 = arith.constant 0 : i32
    %c0_i32_1 = arith.constant 0 : i32
    return %c0_i32, %c0_i32_0 : i32, i32
  }
  func.func @transform_8(%arg0: i32) -> (i32, i32) {
    %c0_i32 = arith.constant 0 : i32
    %c0_i32_0 = arith.constant 0 : i32
    %c0_i32_1 = arith.constant 0 : i32
    return %c0_i32, %c0_i32_0 : i32, i32
  }
  func.func @transform_9(%arg0: i32) -> (i32, i32) {
    %c0_i32 = arith.constant 0 : i32
    %c0_i32_0 = arith.constant 0 : i32
    %c0_i32_1 = arith.constant 0 : i32
    return %c0_i32, %c0_i32_0 : i32, i32
  }
  func.func @transform_10(%arg0: i32) -> (i32, i32) {
    %c0_i32 = arith.constant 0 : i32
    %c0_i32_0 = arith.constant 0 : i32
    %c0_i32_1 = arith.constant 0 : i32
    return %c0_i32, %c0_i32_0 : i32, i32
  }
  func.func @transform_11(%arg0: i32) -> (i32, i32) {
    %c0_i32 = arith.constant 0 : i32
    %c0_i32_0 = arith.constant 0 : i32
    %c0_i32_1 = arith.constant 0 : i32
    return %c0_i32, %c0_i32_0 : i32, i32
  }
  func.func @transform_12(%arg0: i32) -> (i32, i32) {
    %c0_i32 = arith.constant 0 : i32
    %c0_i32_0 = arith.constant 0 : i32
    return %arg0, %c0_i32 : i32, i32
  }
}

module attributes {stable_mosaic.version = 11 : i64} {
  func.func @ddpm_mlp_kernel(%arg0: i32, %arg1: memref<8x896xf32, #tpu.memory_space<vmem>>, %arg2: memref<8x896xf32, #tpu.memory_space<vmem>>, %arg3: memref<896x512xbf16, #tpu.memory_space<vmem>>, %arg4: memref<1x512xf32, #tpu.memory_space<vmem>>, %arg5: memref<512x256xbf16, #tpu.memory_space<vmem>>, %arg6: memref<1x256xf32, #tpu.memory_space<vmem>>, %arg7: memref<256x256xbf16, #tpu.memory_space<vmem>>, %arg8: memref<1x256xf32, #tpu.memory_space<vmem>>, %arg9: memref<256x512xbf16, #tpu.memory_space<vmem>>, %arg10: memref<1x512xf32, #tpu.memory_space<vmem>>, %arg11: memref<512x896xbf16, #tpu.memory_space<vmem>>, %arg12: memref<1x896xf32, #tpu.memory_space<vmem>>, %arg13: memref<8x896xf32, #tpu.memory_space<vmem>>) attributes {dimension_semantics = [#tpu.dimension_semantics<parallel>], iteration_bounds = array<i64: 1>, scalar_prefetch = 0 : i64, scratch_operands = 0 : i64, tpu.core_type = #tpu.core_type<tc>, window_params = [{transform_indices = @transform_0, window_bounds = array<i64: 8, 896>}, {transform_indices = @transform_1, window_bounds = array<i64: 8, 896>}, {pipeline_mode = #tpu.pipeline_mode<synchronous>, transform_indices = @transform_2, window_bounds = array<i64: 896, 512>}, {pipeline_mode = #tpu.pipeline_mode<synchronous>, transform_indices = @transform_3, window_bounds = array<i64: 1, 512>}, {pipeline_mode = #tpu.pipeline_mode<synchronous>, transform_indices = @transform_4, window_bounds = array<i64: 512, 256>}, {pipeline_mode = #tpu.pipeline_mode<synchronous>, transform_indices = @transform_5, window_bounds = array<i64: 1, 256>}, {pipeline_mode = #tpu.pipeline_mode<synchronous>, transform_indices = @transform_6, window_bounds = array<i64: 256, 256>}, {pipeline_mode = #tpu.pipeline_mode<synchronous>, transform_indices = @transform_7, window_bounds = array<i64: 1, 256>}, {pipeline_mode = #tpu.pipeline_mode<synchronous>, transform_indices = @transform_8, window_bounds = array<i64: 256, 512>}, {pipeline_mode = #tpu.pipeline_mode<synchronous>, transform_indices = @transform_9, window_bounds = array<i64: 1, 512>}, {pipeline_mode = #tpu.pipeline_mode<synchronous>, transform_indices = @transform_10, window_bounds = array<i64: 512, 896>}, {pipeline_mode = #tpu.pipeline_mode<synchronous>, transform_indices = @transform_11, window_bounds = array<i64: 1, 896>}, {transform_indices = @transform_12, window_bounds = array<i64: 8, 896>}]} {
    %c0 = arith.constant 0 : index
    %c0_0 = arith.constant 0 : index
    %0 = vector.load %arg1[%c0, %c0_0] : memref<8x896xf32, #tpu.memory_space<vmem>>, vector<8x896xf32>
    %c0_1 = arith.constant 0 : index
    %c0_2 = arith.constant 0 : index
    %1 = vector.load %arg2[%c0_1, %c0_2] : memref<8x896xf32, #tpu.memory_space<vmem>>, vector<8x896xf32>
    %2 = arith.addf %0, %1 : vector<8x896xf32>
    %3 = arith.truncf %2 : vector<8x896xf32> to vector<8x896xbf16>
    %c0_3 = arith.constant 0 : index
    %c0_4 = arith.constant 0 : index
    %4 = vector.load %arg3[%c0_3, %c0_4] : memref<896x512xbf16, #tpu.memory_space<vmem>>, vector<896x512xbf16>
    %cst = arith.constant dense<0.000000e+00> : vector<8x512xf32>
    %5 = tpu.matmul %3, %4, %cst {dimension_numbers = #tpu.dot_dimension_numbers<[1], [0], [0], [1], [0, 0, 1, 1], [], []>} : vector<8x896xbf16>, vector<896x512xbf16>, vector<8x512xf32> -> vector<8x512xf32>
    %c0_5 = arith.constant 0 : index
    %c0_6 = arith.constant 0 : index
    %6 = vector.load %arg4[%c0_5, %c0_6] : memref<1x512xf32, #tpu.memory_space<vmem>>, vector<1x512xf32>
    %7 = vector.broadcast %6 : vector<1x512xf32> to vector<8x512xf32>
    %8 = arith.addf %5, %7 : vector<8x512xf32>
    %cst_7 = arith.constant 0.000000e+00 : f32
    %9 = vector.broadcast %cst_7 : f32 to vector<8x512xf32>
    %10 = arith.maximumf %8, %9 : vector<8x512xf32>
    %11 = arith.truncf %10 : vector<8x512xf32> to vector<8x512xbf16>
    %c0_8 = arith.constant 0 : index
    %c0_9 = arith.constant 0 : index
    %12 = vector.load %arg5[%c0_8, %c0_9] : memref<512x256xbf16, #tpu.memory_space<vmem>>, vector<512x256xbf16>
    %cst_10 = arith.constant dense<0.000000e+00> : vector<8x256xf32>
    %13 = tpu.matmul %11, %12, %cst_10 {dimension_numbers = #tpu.dot_dimension_numbers<[1], [0], [0], [1], [0, 0, 1, 1], [], []>} : vector<8x512xbf16>, vector<512x256xbf16>, vector<8x256xf32> -> vector<8x256xf32>
    %c0_11 = arith.constant 0 : index
    %c0_12 = arith.constant 0 : index
    %14 = vector.load %arg6[%c0_11, %c0_12] : memref<1x256xf32, #tpu.memory_space<vmem>>, vector<1x256xf32>
    %15 = vector.broadcast %14 : vector<1x256xf32> to vector<8x256xf32>
    %16 = arith.addf %13, %15 : vector<8x256xf32>
    %cst_13 = arith.constant 0.000000e+00 : f32
    %17 = vector.broadcast %cst_13 : f32 to vector<8x256xf32>
    %18 = arith.maximumf %16, %17 : vector<8x256xf32>
    %19 = arith.truncf %18 : vector<8x256xf32> to vector<8x256xbf16>
    %c0_14 = arith.constant 0 : index
    %c0_15 = arith.constant 0 : index
    %20 = vector.load %arg7[%c0_14, %c0_15] : memref<256x256xbf16, #tpu.memory_space<vmem>>, vector<256x256xbf16>
    %cst_16 = arith.constant dense<0.000000e+00> : vector<8x256xf32>
    %21 = tpu.matmul %19, %20, %cst_16 {dimension_numbers = #tpu.dot_dimension_numbers<[1], [0], [0], [1], [0, 0, 1, 1], [], []>} : vector<8x256xbf16>, vector<256x256xbf16>, vector<8x256xf32> -> vector<8x256xf32>
    %c0_17 = arith.constant 0 : index
    %c0_18 = arith.constant 0 : index
    %22 = vector.load %arg8[%c0_17, %c0_18] : memref<1x256xf32, #tpu.memory_space<vmem>>, vector<1x256xf32>
    %23 = vector.broadcast %22 : vector<1x256xf32> to vector<8x256xf32>
    %24 = arith.addf %21, %23 : vector<8x256xf32>
    %cst_19 = arith.constant 0.000000e+00 : f32
    %25 = vector.broadcast %cst_19 : f32 to vector<8x256xf32>
    %26 = arith.maximumf %24, %25 : vector<8x256xf32>
    %27 = arith.truncf %26 : vector<8x256xf32> to vector<8x256xbf16>
    %c0_20 = arith.constant 0 : index
    %c0_21 = arith.constant 0 : index
    %28 = vector.load %arg9[%c0_20, %c0_21] : memref<256x512xbf16, #tpu.memory_space<vmem>>, vector<256x512xbf16>
    %cst_22 = arith.constant dense<0.000000e+00> : vector<8x512xf32>
    %29 = tpu.matmul %27, %28, %cst_22 {dimension_numbers = #tpu.dot_dimension_numbers<[1], [0], [0], [1], [0, 0, 1, 1], [], []>} : vector<8x256xbf16>, vector<256x512xbf16>, vector<8x512xf32> -> vector<8x512xf32>
    %c0_23 = arith.constant 0 : index
    %c0_24 = arith.constant 0 : index
    %30 = vector.load %arg10[%c0_23, %c0_24] : memref<1x512xf32, #tpu.memory_space<vmem>>, vector<1x512xf32>
    %31 = vector.broadcast %30 : vector<1x512xf32> to vector<8x512xf32>
    %32 = arith.addf %29, %31 : vector<8x512xf32>
    %cst_25 = arith.constant 0.000000e+00 : f32
    %33 = vector.broadcast %cst_25 : f32 to vector<8x512xf32>
    %34 = arith.maximumf %32, %33 : vector<8x512xf32>
    %35 = arith.truncf %34 : vector<8x512xf32> to vector<8x512xbf16>
    %c0_26 = arith.constant 0 : index
    %c0_27 = arith.constant 0 : index
    %36 = vector.load %arg11[%c0_26, %c0_27] : memref<512x896xbf16, #tpu.memory_space<vmem>>, vector<512x896xbf16>
    %cst_28 = arith.constant dense<0.000000e+00> : vector<8x896xf32>
    %37 = tpu.matmul %35, %36, %cst_28 {dimension_numbers = #tpu.dot_dimension_numbers<[1], [0], [0], [1], [0, 0, 1, 1], [], []>} : vector<8x512xbf16>, vector<512x896xbf16>, vector<8x896xf32> -> vector<8x896xf32>
    %c0_29 = arith.constant 0 : index
    %c0_30 = arith.constant 0 : index
    %38 = vector.load %arg12[%c0_29, %c0_30] : memref<1x896xf32, #tpu.memory_space<vmem>>, vector<1x896xf32>
    %39 = vector.broadcast %38 : vector<1x896xf32> to vector<8x896xf32>
    %40 = arith.addf %37, %39 : vector<8x896xf32>
    %c0_31 = arith.constant 0 : index
    %c0_32 = arith.constant 0 : index
    %41 = vector.load %arg13[%c0_31, %c0_32] : memref<8x896xf32, #tpu.memory_space<vmem>>, vector<8x896xf32>
    tpu.vector_store %arg13[%c0_31, %c0_32], %40 {strides = array<i32>} : memref<8x896xf32, #tpu.memory_space<vmem>>, vector<8x896xf32>,
    return
  }
  func.func @transform_0(%arg0: i32) -> (i32, i32) {
    %c0_i32 = arith.constant 0 : i32
    %c0_i32_0 = arith.constant 0 : i32
    return %arg0, %c0_i32 : i32, i32
  }
  func.func @transform_1(%arg0: i32) -> (i32, i32) {
    %c0_i32 = arith.constant 0 : i32
    %c0_i32_0 = arith.constant 0 : i32
    return %arg0, %c0_i32 : i32, i32
  }
  func.func @transform_2(%arg0: i32) -> (i32, i32) {
    %c0_i32 = arith.constant 0 : i32
    %c0_i32_0 = arith.constant 0 : i32
    %c0_i32_1 = arith.constant 0 : i32
    return %c0_i32, %c0_i32_0 : i32, i32
  }
  func.func @transform_3(%arg0: i32) -> (i32, i32) {
    %c0_i32 = arith.constant 0 : i32
    %c0_i32_0 = arith.constant 0 : i32
    %c0_i32_1 = arith.constant 0 : i32
    return %c0_i32, %c0_i32_0 : i32, i32
  }
  func.func @transform_4(%arg0: i32) -> (i32, i32) {
    %c0_i32 = arith.constant 0 : i32
    %c0_i32_0 = arith.constant 0 : i32
    %c0_i32_1 = arith.constant 0 : i32
    return %c0_i32, %c0_i32_0 : i32, i32
  }
  func.func @transform_5(%arg0: i32) -> (i32, i32) {
    %c0_i32 = arith.constant 0 : i32
    %c0_i32_0 = arith.constant 0 : i32
    %c0_i32_1 = arith.constant 0 : i32
    return %c0_i32, %c0_i32_0 : i32, i32
  }
  func.func @transform_6(%arg0: i32) -> (i32, i32) {
    %c0_i32 = arith.constant 0 : i32
    %c0_i32_0 = arith.constant 0 : i32
    %c0_i32_1 = arith.constant 0 : i32
    return %c0_i32, %c0_i32_0 : i32, i32
  }
  func.func @transform_7(%arg0: i32) -> (i32, i32) {
    %c0_i32 = arith.constant 0 : i32
    %c0_i32_0 = arith.constant 0 : i32
    %c0_i32_1 = arith.constant 0 : i32
    return %c0_i32, %c0_i32_0 : i32, i32
  }
  func.func @transform_8(%arg0: i32) -> (i32, i32) {
    %c0_i32 = arith.constant 0 : i32
    %c0_i32_0 = arith.constant 0 : i32
    %c0_i32_1 = arith.constant 0 : i32
    return %c0_i32, %c0_i32_0 : i32, i32
  }
  func.func @transform_9(%arg0: i32) -> (i32, i32) {
    %c0_i32 = arith.constant 0 : i32
    %c0_i32_0 = arith.constant 0 : i32
    %c0_i32_1 = arith.constant 0 : i32
    return %c0_i32, %c0_i32_0 : i32, i32
  }
  func.func @transform_10(%arg0: i32) -> (i32, i32) {
    %c0_i32 = arith.constant 0 : i32
    %c0_i32_0 = arith.constant 0 : i32
    %c0_i32_1 = arith.constant 0 : i32
    return %c0_i32, %c0_i32_0 : i32, i32
  }
  func.func @transform_11(%arg0: i32) -> (i32, i32) {
    %c0_i32 = arith.constant 0 : i32
    %c0_i32_0 = arith.constant 0 : i32
    %c0_i32_1 = arith.constant 0 : i32
    return %c0_i32, %c0_i32_0 : i32, i32
  }
  func.func @transform_12(%arg0: i32) -> (i32, i32) {
    %c0_i32 = arith.constant 0 : i32
    %c0_i32_0 = arith.constant 0 : i32
    return %arg0, %c0_i32 : i32, i32
  }
}

</mosaic_0001>

<llo_original>
// kernel: tpu_custom_call.1
$region0: #{tpu_custom_call.1}
  #allocation0 [shape = 'u32[]', space=smem, size = 0x4, offset = 0x4, fixed_abs, tag = 'smem constant byte address 0x4 - core index']
  #allocation1 [shape = 'u32[144,128]{1,0:T(1,128)}', space=vmem, size = 0x12000, scoped, tag = 'internal scratch']
  %s0 = inlined_call_operand.hbm [shape: f32[8,896], index: 0, kind: input, shape index: {}]
  %s1 = inlined_call_operand.hbm [shape: f32[8,896], index: 1, kind: input, shape index: {}]
  %s2 = inlined_call_operand.hbm [shape: bf16[896,512], index: 2, kind: input, shape index: {}]
  %s3 = inlined_call_operand.vmem [shape: f32[1,512], index: 3, kind: input, shape index: {}]
  %s4 = inlined_call_operand.hbm [shape: bf16[512,256], index: 4, kind: input, shape index: {}]
  %s5 = inlined_call_operand.vmem [shape: f32[1,256], index: 5, kind: input, shape index: {}]
  %s6 = inlined_call_operand.hbm [shape: bf16[256,256], index: 6, kind: input, shape index: {}]
  %s7 = inlined_call_operand.vmem [shape: f32[1,256], index: 7, kind: input, shape index: {}]
  %s8 = inlined_call_operand.hbm [shape: bf16[256,512], index: 8, kind: input, shape index: {}]
  %s9 = inlined_call_operand.vmem [shape: f32[1,512], index: 9, kind: input, shape index: {}]
  %s10 = inlined_call_operand.hbm [shape: bf16[512,896], index: 10, kind: input, shape index: {}]
  %s11 = inlined_call_operand.vmem [shape: f32[1,896], index: 11, kind: input, shape index: {}]
  %s12 = inlined_call_operand.hbm [shape: f32[8,896], index: 12, kind: output, shape index: {}]
  %s13 = sld [smem:[#allocation0]]
  $region86: #{tpu_custom_call.1} parent=0
    _
  %s15 = ssub.s32 1, %s13
  %s16 = scalar_select 0, %s15, %s13
  $region1: #{tpu_custom_call.1} parent=0
    #allocation2 [shape = 'u8[28672]{0}', space=vmem, size = 0x7000, scoped, tag = 'input window, operand 0, single buffered']
    #allocation3 [shape = 's32[1]{0}', space=sflag, size = 0x4, scoped, tag = 'scoped memory for tpu_custom_call.1']
    #allocation4 [shape = 's32[1]{0}', space=sflag, size = 0x4, scoped, tag = 'scoped memory for tpu_custom_call.1']
    #allocation5 [shape = 'u8[28672]{0}', space=vmem, size = 0x7000, scoped, tag = 'input window, operand 1, single buffered']
    #allocation6 [shape = 's32[1]{0}', space=sflag, size = 0x4, scoped, tag = 'scoped memory for tpu_custom_call.1']
    #allocation7 [shape = 'u8[917504]{0}', space=vmem, size = 0xe0000, scoped, tag = 'input window, operand 2, single buffered']
    #allocation8 [shape = 'u8[262144]{0}', space=vmem, size = 0x40000, scoped, tag = 'input window, operand 4, single buffered']
    #allocation9 [shape = 's32[1]{0}', space=sflag, size = 0x4, scoped, tag = 'scoped memory for tpu_custom_call.1']
    #allocation10 [shape = 'u8[131072]{0}', space=vmem, size = 0x20000, scoped, tag = 'input window, operand 6, single buffered']
    #allocation11 [shape = 'u8[262144]{0}', space=vmem, size = 0x40000, scoped, tag = 'input window, operand 8, single buffered']
    #allocation12 [shape = 's32[1]{0}', space=sflag, size = 0x4, scoped, tag = 'scoped memory for tpu_custom_call.1']
    #allocation13 [shape = 'u8[917504]{0}', space=vmem, size = 0xe0000, scoped, tag = 'input window, operand 10, single buffered']
    #allocation14 [shape = 'u8[28672]{0}', space=vmem, size = 0x7000, scoped, tag = 'output window, operand 0, single buffered']
    %17 = vsyncpa [#allocation3], 0
    %18 = vsyncpa [#allocation6], 0
    %19 = vsyncpa [#allocation9], 0
    %20 = vsyncpa [#allocation12], 0
    %21 = vsyncpa [#allocation4], 0
    // Predicated region
    $region2: #{tpu_custom_call.1} parent=1 // pred_check
      _
    $region3: #{tpu_custom_call.1} parent=1 // pred_check_branch
      %23 = sbr.rel (0) target = $region5
    $region4: #{tpu_custom_call.1} parent=1 // pred_region
      %s25 = ssub.s32 896, 896
      %26 = vsyncadd [#allocation3], %s25
      %s28 = sshll.u32 [#allocation2], 4
      %s29 = int_to_ptr.vmem [resolvable:$true] %s28
      %31 = dma.hbm_to_vmem [thread:$0]  %s0, 896, %s29, [#allocation3]
    $region5: #{tpu_custom_call.1} parent=1 // pred_fallthru
      _
    // Predicated region
    $region6: #{tpu_custom_call.1} parent=1 // pred_check
      _
    $region7: #{tpu_custom_call.1} parent=1 // pred_check_branch
      %33 = sbr.rel (0) target = $region9
    $region8: #{tpu_custom_call.1} parent=1 // pred_region
      %s35 = ssub.s32 896, 896
      %36 = vsyncadd [#allocation6], %s35
      %s38 = sshll.u32 [#allocation5], 4
      %s39 = int_to_ptr.vmem [resolvable:$true] %s38
      %41 = dma.hbm_to_vmem [thread:$0]  %s1, 896, %s39, [#allocation6]
    $region9: #{tpu_custom_call.1} parent=1 // pred_fallthru
      _
    // Predicated region
    $region10: #{tpu_custom_call.1} parent=1 // pred_check
      _
    $region11: #{tpu_custom_call.1} parent=1 // pred_check_branch
      %43 = sbr.rel (0) target = $region13
    $region12: #{tpu_custom_call.1} parent=1 // pred_region
      %s45 = ssub.s32 28672, 28672
      %46 = vsyncadd [#allocation6], %s45
      %s47 = sshll.u32 [#allocation7], 4
      %s48 = int_to_ptr.vmem [resolvable:$true] %s47
      %53 = dma.hbm_to_vmem [thread:$0]  %s2, 28672, %s48, [#allocation6], 256, 256, 16
    $region13: #{tpu_custom_call.1} parent=1 // pred_fallthru
      _
    // Predicated region
    $region14: #{tpu_custom_call.1} parent=1 // pred_check
      _
    $region15: #{tpu_custom_call.1} parent=1 // pred_check_branch
      %55 = sbr.rel (0) target = $region17
    $region16: #{tpu_custom_call.1} parent=1 // pred_region
      _
    $region17: #{tpu_custom_call.1} parent=1 // pred_fallthru
      _
    // Predicated region
    $region18: #{tpu_custom_call.1} parent=1 // pred_check
      _
    $region19: #{tpu_custom_call.1} parent=1 // pred_check_branch
      %57 = sbr.rel (0) target = $region21
    $region20: #{tpu_custom_call.1} parent=1 // pred_region
      %s59 = ssub.s32 8192, 8192
      %60 = vsyncadd [#allocation9], %s59
      %s61 = sshll.u32 [#allocation8], 4
      %s62 = int_to_ptr.vmem [resolvable:$true] %s61
      %67 = dma.hbm_to_vmem [thread:$0]  %s4, 8192, %s62, [#allocation9], 128, 128, 8
    $region21: #{tpu_custom_call.1} parent=1 // pred_fallthru
      _
    // Predicated region
    $region22: #{tpu_custom_call.1} parent=1 // pred_check
      _
    $region23: #{tpu_custom_call.1} parent=1 // pred_check_branch
      %69 = sbr.rel (0) target = $region25
    $region24: #{tpu_custom_call.1} parent=1 // pred_region
      _
    $region25: #{tpu_custom_call.1} parent=1 // pred_fallthru
      _
    // Predicated region
    $region26: #{tpu_custom_call.1} parent=1 // pred_check
      _
    $region27: #{tpu_custom_call.1} parent=1 // pred_check_branch
      %71 = sbr.rel (0) target = $region29
    $region28: #{tpu_custom_call.1} parent=1 // pred_region
      %s73 = ssub.s32 4096, 4096
      %74 = vsyncadd [#allocation9], %s73
      %s75 = sshll.u32 [#allocation10], 4
      %s76 = int_to_ptr.vmem [resolvable:$true] %s75
      %81 = dma.hbm_to_vmem [thread:$0]  %s6, 4096, %s76, [#allocation9], 128, 128, 8
    $region29: #{tpu_custom_call.1} parent=1 // pred_fallthru
      _
    // Predicated region
    $region30: #{tpu_custom_call.1} parent=1 // pred_check
      _
    $region31: #{tpu_custom_call.1} parent=1 // pred_check_branch
      %83 = sbr.rel (0) target = $region33
    $region32: #{tpu_custom_call.1} parent=1 // pred_region
      _
    $region33: #{tpu_custom_call.1} parent=1 // pred_fallthru
      _
    // Predicated region
    $region34: #{tpu_custom_call.1} parent=1 // pred_check
      _
    $region35: #{tpu_custom_call.1} parent=1 // pred_check_branch
      %85 = sbr.rel (0) target = $region37
    $region36: #{tpu_custom_call.1} parent=1 // pred_region
      %s87 = ssub.s32 8192, 8192
      %88 = vsyncadd [#allocation12], %s87
      %s89 = sshll.u32 [#allocation11], 4
      %s90 = int_to_ptr.vmem [resolvable:$true] %s89
      %95 = dma.hbm_to_vmem [thread:$0]  %s8, 8192, %s90, [#allocation12], 256, 256, 16
    $region37: #{tpu_custom_call.1} parent=1 // pred_fallthru
      _
    // Predicated region
    $region38: #{tpu_custom_call.1} parent=1 // pred_check
      _
    $region39: #{tpu_custom_call.1} parent=1 // pred_check_branch
      %97 = sbr.rel (0) target = $region41
    $region40: #{tpu_custom_call.1} parent=1 // pred_region
      _
    $region41: #{tpu_custom_call.1} parent=1 // pred_fallthru
      _
    // Predicated region
    $region42: #{tpu_custom_call.1} parent=1 // pred_check
      _
    $region43: #{tpu_custom_call.1} parent=1 // pred_check_branch
      %99 = sbr.rel (0) target = $region45
    $region44: #{tpu_custom_call.1} parent=1 // pred_region
      %s101 = ssub.s32 28672, 28672
      %102 = vsyncadd [#allocation12], %s101
      %s103 = sshll.u32 [#allocation13], 4
      %s104 = int_to_ptr.vmem [resolvable:$true] %s103
      %109 = dma.hbm_to_vmem [thread:$0]  %s10, 28672, %s104, [#allocation12], 448, 448, 28
    $region45: #{tpu_custom_call.1} parent=1 // pred_fallthru
      _
    // Predicated region
    $region46: #{tpu_custom_call.1} parent=1 // pred_check
      _
    $region47: #{tpu_custom_call.1} parent=1 // pred_check_branch
      %111 = sbr.rel (0) target = $region49
    $region48: #{tpu_custom_call.1} parent=1 // pred_region
      _
    $region49: #{tpu_custom_call.1} parent=1 // pred_fallthru
      _
    // Predicated region
    $region50: #{tpu_custom_call.1} parent=1 // pred_check
      _
    $region51: #{tpu_custom_call.1} parent=1 // pred_check_branch
      %113 = sbr.rel (0) target = $region53
    $region52: #{tpu_custom_call.1} parent=1 // pred_region
      %114 = dma.done [#allocation3], 896
    $region53: #{tpu_custom_call.1} parent=1 // pred_fallthru
      _
    // Predicated region
    $region54: #{tpu_custom_call.1} parent=1 // pred_check
      _
    $region55: #{tpu_custom_call.1} parent=1 // pred_check_branch
      %116 = sbr.rel (0) target = $region57
    $region56: #{tpu_custom_call.1} parent=1 // pred_region
      %117 = dma.done [#allocation6], 896
    $region57: #{tpu_custom_call.1} parent=1 // pred_fallthru
      _
    // Predicated region
    $region58: #{tpu_custom_call.1} parent=1 // pred_check
      _
    $region59: #{tpu_custom_call.1} parent=1 // pred_check_branch
      %119 = sbr.rel (0) target = $region61
    $region60: #{tpu_custom_call.1} parent=1 // pred_region
      %120 = dma.done [#allocation6], 28672
    $region61: #{tpu_custom_call.1} parent=1 // pred_fallthru
      _
    // Predicated region
    $region62: #{tpu_custom_call.1} parent=1 // pred_check
      _
    $region63: #{tpu_custom_call.1} parent=1 // pred_check_branch
      %122 = sbr.rel (0) target = $region65
    $region64: #{tpu_custom_call.1} parent=1 // pred_region
      %123 = dma.done [#allocation9], 8192
    $region65: #{tpu_custom_call.1} parent=1 // pred_fallthru
      _
    // Predicated region
    $region66: #{tpu_custom_call.1} parent=1 // pred_check
      _
    $region67: #{tpu_custom_call.1} parent=1 // pred_check_branch
      %125 = sbr.rel (0) target = $region69
    $region68: #{tpu_custom_call.1} parent=1 // pred_region
      %126 = dma.done [#allocation9], 4096
    $region69: #{tpu_custom_call.1} parent=1 // pred_fallthru
      _
    // Predicated region
    $region70: #{tpu_custom_call.1} parent=1 // pred_check
      _
    $region71: #{tpu_custom_call.1} parent=1 // pred_check_branch
      %128 = sbr.rel (0) target = $region73
    $region72: #{tpu_custom_call.1} parent=1 // pred_region
      %129 = dma.done [#allocation12], 8192
    $region73: #{tpu_custom_call.1} parent=1 // pred_fallthru
      _
    // Predicated region
    $region74: #{tpu_custom_call.1} parent=1 // pred_check
      _
    $region75: #{tpu_custom_call.1} parent=1 // pred_check_branch
      %131 = sbr.rel (0) target = $region77
    $region76: #{tpu_custom_call.1} parent=1 // pred_region
      %132 = dma.done [#allocation12], 28672
    $region77: #{tpu_custom_call.1} parent=1 // pred_fallthru
      _
    %v134 = vld [vmem:[#allocation2] sm:$0xff]
    %v135 = vld [vmem:[#allocation2 + $0x8] sm:$0xff]
    %v136 = vld [vmem:[#allocation2 + $0x10] sm:$0xff]
    %v137 = vld [vmem:[#allocation2 + $0x18] sm:$0xff]
    %v138 = vld [vmem:[#allocation2 + $0x20] sm:$0xff]
    %v139 = vld [vmem:[#allocation2 + $0x28] sm:$0xff]
    %v140 = vld [vmem:[#allocation2 + $0x30] sm:$0xff]
    %v141 = vld [vmem:[#allocation5] sm:$0xff]
    %v142 = vld [vmem:[#allocation5 + $0x8] sm:$0xff]
    %v143 = vld [vmem:[#allocation5 + $0x10] sm:$0xff]
    %v144 = vld [vmem:[#allocation5 + $0x18] sm:$0xff]
    %v145 = vld [vmem:[#allocation5 + $0x20] sm:$0xff]
    %v146 = vld [vmem:[#allocation5 + $0x28] sm:$0xff]
    %v147 = vld [vmem:[#allocation5 + $0x30] sm:$0xff]
    %v148 = vadd.f32 %v134, %v141
    %v149 = vadd.f32 %v135, %v142
    %v150 = vadd.f32 %v136, %v143
    %v151 = vadd.f32 %v137, %v144
    %v152 = vadd.f32 %v138, %v145
    %v153 = vadd.f32 %v139, %v146
    %v154 = vadd.f32 %v140, %v147
    %v155 = vpack.c.bf16 %v148, %v148
    %v156 = vpack.c.bf16 %v149, %v149
    %v157 = vpack.c.bf16 %v150, %v150
    %v158 = vpack.c.bf16 %v151, %v151
    %v159 = vpack.c.bf16 %v152, %v152
    %v160 = vpack.c.bf16 %v153, %v153
    %v161 = vpack.c.bf16 %v154, %v154
    %v162 = vld [vmem:[#allocation7] sm:$0xff]
    %v163 = vld [vmem:[#allocation7 + $0x8] sm:$0xff]
    %v164 = vld [vmem:[#allocation7 + $0x10] sm:$0xff]
    %v165 = vld [vmem:[#allocation7 + $0x18] sm:$0xff]
    %v166 = vld [vmem:[#allocation7 + $0x20] sm:$0xff]
    %v167 = vld [vmem:[#allocation7 + $0x28] sm:$0xff]
    %v168 = vld [vmem:[#allocation7 + $0x30] sm:$0xff]
    %v169 = vld [vmem:[#allocation7 + $0x38] sm:$0xff]
    %v170 = vld [vmem:[#allocation7 + $0x40] sm:$0xff]
    %v171 = vld [vmem:[#allocation7 + $0x48] sm:$0xff]
    %v172 = vld [vmem:[#allocation7 + $0x50] sm:$0xff]
    %v173 = vld [vmem:[#allocation7 + $0x58] sm:$0xff]
    %v174 = vld [vmem:[#allocation7 + $0x60] sm:$0xff]
    %v175 = vld [vmem:[#allocation7 + $0x68] sm:$0xff]
    %v176 = vld [vmem:[#allocation7 + $0x70] sm:$0xff]
    %v177 = vld [vmem:[#allocation7 + $0x78] sm:$0xff]
    %v178 = vld [vmem:[#allocation7 + $0x80] sm:$0xff]
    %v179 = vld [vmem:[#allocation7 + $0x88] sm:$0xff]
    %v180 = vld [vmem:[#allocation7 + $0x90] sm:$0xff]
    %v181 = vld [vmem:[#allocation7 + $0x98] sm:$0xff]
    %v182 = vld [vmem:[#allocation7 + $0xa0] sm:$0xff]
    %v183 = vld [vmem:[#allocation7 + $0xa8] sm:$0xff]
    %v184 = vld [vmem:[#allocation7 + $0xb0] sm:$0xff]
    %v185 = vld [vmem:[#allocation7 + $0xb8] sm:$0xff]
    %v186 = vld [vmem:[#allocation7 + $0xc0] sm:$0xff]
    %v187 = vld [vmem:[#allocation7 + $0xc8] sm:$0xff]
    %v188 = vld [vmem:[#allocation7 + $0xd0] sm:$0xff]
    %v189 = vld [vmem:[#allocation7 + $0xd8] sm:$0xff]
    %v190 = vld [vmem:[#allocation7 + $0xe0] sm:$0xff]
    %v191 = vld [vmem:[#allocation7 + $0xe8] sm:$0xff]
    %v192 = vld [vmem:[#allocation7 + $0xf0] sm:$0xff]
    %v193 = vld [vmem:[#allocation7 + $0xf8] sm:$0xff]
    %v194 = vld [vmem:[#allocation7 + $0x100] sm:$0xff]
    %v195 = vld [vmem:[#allocation7 + $0x108] sm:$0xff]
    %v196 = vld [vmem:[#allocation7 + $0x110] sm:$0xff]
    %v197 = vld [vmem:[#allocation7 + $0x118] sm:$0xff]
    %v198 = vld [vmem:[#allocation7 + $0x120] sm:$0xff]
    %v199 = vld [vmem:[#allocation7 + $0x128] sm:$0xff]
    %v200 = vld [vmem:[#allocation7 + $0x130] sm:$0xff]
    %v201 = vld [vmem:[#allocation7 + $0x138] sm:$0xff]
    %v202 = vld [vmem:[#allocation7 + $0x140] sm:$0xff]
    %v203 = vld [vmem:[#allocation7 + $0x148] sm:$0xff]
    %v204 = vld [vmem:[#allocation7 + $0x150] sm:$0xff]
    %v205 = vld [vmem:[#allocation7 + $0x158] sm:$0xff]
    %v206 = vld [vmem:[#allocation7 + $0x160] sm:$0xff]
    %v207 = vld [vmem:[#allocation7 + $0x168] sm:$0xff]
    %v208 = vld [vmem:[#allocation7 + $0x170] sm:$0xff]
    %v209 = vld [vmem:[#allocation7 + $0x178] sm:$0xff]
    %v210 = vld [vmem:[#allocation7 + $0x180] sm:$0xff]
    %v211 = vld [vmem:[#allocation7 + $0x188] sm:$0xff]
    %v212 = vld [vmem:[#allocation7 + $0x190] sm:$0xff]
    %v213 = vld [vmem:[#allocation7 + $0x198] sm:$0xff]
    %v214 = vld [vmem:[#allocation7 + $0x1a0] sm:$0xff]
    %v215 = vld [vmem:[#allocation7 + $0x1a8] sm:$0xff]
    %v216 = vld [vmem:[#allocation7 + $0x1b0] sm:$0xff]
    %v217 = vld [vmem:[#allocation7 + $0x1b8] sm:$0xff]
    %v218 = vld [vmem:[#allocation7 + $0x1c0] sm:$0xff]
    %v219 = vld [vmem:[#allocation7 + $0x1c8] sm:$0xff]
    %v220 = vld [vmem:[#allocation7 + $0x1d0] sm:$0xff]
    %v221 = vld [vmem:[#allocation7 + $0x1d8] sm:$0xff]
    %v222 = vld [vmem:[#allocation7 + $0x1e0] sm:$0xff]
    %v223 = vld [vmem:[#allocation7 + $0x1e8] sm:$0xff]
    %v224 = vld [vmem:[#allocation7 + $0x1f0] sm:$0xff]
    %v225 = vld [vmem:[#allocation7 + $0x1f8] sm:$0xff]
    %v226 = vld [vmem:[#allocation7 + $0x200] sm:$0xff]
    %v227 = vld [vmem:[#allocation7 + $0x208] sm:$0xff]
    %v228 = vld [vmem:[#allocation7 + $0x210] sm:$0xff]
    %v229 = vld [vmem:[#allocation7 + $0x218] sm:$0xff]
    %v230 = vld [vmem:[#allocation7 + $0x220] sm:$0xff]
    %v231 = vld [vmem:[#allocation7 + $0x228] sm:$0xff]
    %v232 = vld [vmem:[#allocation7 + $0x230] sm:$0xff]
    %v233 = vld [vmem:[#allocation7 + $0x238] sm:$0xff]
    %v234 = vld [vmem:[#allocation7 + $0x240] sm:$0xff]
    %v235 = vld [vmem:[#allocation7 + $0x248] sm:$0xff]
    %v236 = vld [vmem:[#allocation7 + $0x250] sm:$0xff]
    %v237 = vld [vmem:[#allocation7 + $0x258] sm:$0xff]
    %v238 = vld [vmem:[#allocation7 + $0x260] sm:$0xff]
    %v239 = vld [vmem:[#allocation7 + $0x268] sm:$0xff]
    %v240 = vld [vmem:[#allocation7 + $0x270] sm:$0xff]
    %v241 = vld [vmem:[#allocation7 + $0x278] sm:$0xff]
    %v242 = vld [vmem:[#allocation7 + $0x280] sm:$0xff]
    %v243 = vld [vmem:[#allocation7 + $0x288] sm:$0xff]
    %v244 = vld [vmem:[#allocation7 + $0x290] sm:$0xff]
    %v245 = vld [vmem:[#allocation7 + $0x298] sm:$0xff]
    %v246 = vld [vmem:[#allocation7 + $0x2a0] sm:$0xff]
    %v247 = vld [vmem:[#allocation7 + $0x2a8] sm:$0xff]
    %v248 = vld [vmem:[#allocation7 + $0x2b0] sm:$0xff]
    %v249 = vld [vmem:[#allocation7 + $0x2b8] sm:$0xff]
    %v250 = vld [vmem:[#allocation7 + $0x2c0] sm:$0xff]
    %v251 = vld [vmem:[#allocation7 + $0x2c8] sm:$0xff]
    %v252 = vld [vmem:[#allocation7 + $0x2d0] sm:$0xff]
    %v253 = vld [vmem:[#allocation7 + $0x2d8] sm:$0xff]
    %v254 = vld [vmem:[#allocation7 + $0x2e0] sm:$0xff]
    %v255 = vld [vmem:[#allocation7 + $0x2e8] sm:$0xff]
    %v256 = vld [vmem:[#allocation7 + $0x2f0] sm:$0xff]
    %v257 = vld [vmem:[#allocation7 + $0x2f8] sm:$0xff]
    %v258 = vld [vmem:[#allocation7 + $0x300] sm:$0xff]
    %v259 = vld [vmem:[#allocation7 + $0x308] sm:$0xff]
    %v260 = vld [vmem:[#allocation7 + $0x310] sm:$0xff]
    %v261 = vld [vmem:[#allocation7 + $0x318] sm:$0xff]
    %v262 = vld [vmem:[#allocation7 + $0x320] sm:$0xff]
    %v263 = vld [vmem:[#allocation7 + $0x328] sm:$0xff]
    %v264 = vld [vmem:[#allocation7 + $0x330] sm:$0xff]
    %v265 = vld [vmem:[#allocation7 + $0x338] sm:$0xff]
    %v266 = vld [vmem:[#allocation7 + $0x340] sm:$0xff]
    %v267 = vld [vmem:[#allocation7 + $0x348] sm:$0xff]
    %v268 = vld [vmem:[#allocation7 + $0x350] sm:$0xff]
    %v269 = vld [vmem:[#allocation7 + $0x358] sm:$0xff]
    %v270 = vld [vmem:[#allocation7 + $0x360] sm:$0xff]
    %v271 = vld [vmem:[#allocation7 + $0x368] sm:$0xff]
    %v272 = vld [vmem:[#allocation7 + $0x370] sm:$0xff]
    %v273 = vld [vmem:[#allocation7 + $0x378] sm:$0xff]
    %v274 = vld [vmem:[#allocation7 + $0x380] sm:$0xff]
    %v275 = vld [vmem:[#allocation7 + $0x388] sm:$0xff]
    %v276 = vld [vmem:[#allocation7 + $0x390] sm:$0xff]
    %v277 = vld [vmem:[#allocation7 + $0x398] sm:$0xff]
    %v278 = vld [vmem:[#allocation7 + $0x3a0] sm:$0xff]
    %v279 = vld [vmem:[#allocation7 + $0x3a8] sm:$0xff]
    %v280 = vld [vmem:[#allocation7 + $0x3b0] sm:$0xff]
    %v281 = vld [vmem:[#allocation7 + $0x3b8] sm:$0xff]
    %v282 = vld [vmem:[#allocation7 + $0x3c0] sm:$0xff]
    %v283 = vld [vmem:[#allocation7 + $0x3c8] sm:$0xff]
    %v284 = vld [vmem:[#allocation7 + $0x3d0] sm:$0xff]
    %v285 = vld [vmem:[#allocation7 + $0x3d8] sm:$0xff]
    %v286 = vld [vmem:[#allocation7 + $0x3e0] sm:$0xff]
    %v287 = vld [vmem:[#allocation7 + $0x3e8] sm:$0xff]
    %v288 = vld [vmem:[#allocation7 + $0x3f0] sm:$0xff]
    %v289 = vld [vmem:[#allocation7 + $0x3f8] sm:$0xff]
    %v290 = vld [vmem:[#allocation7 + $0x400] sm:$0xff]
    %v291 = vld [vmem:[#allocation7 + $0x408] sm:$0xff]
    %v292 = vld [vmem:[#allocation7 + $0x410] sm:$0xff]
    %v293 = vld [vmem:[#allocation7 + $0x418] sm:$0xff]
    %v294 = vld [vmem:[#allocation7 + $0x420] sm:$0xff]
    %v295 = vld [vmem:[#allocation7 + $0x428] sm:$0xff]
    %v296 = vld [vmem:[#allocation7 + $0x430] sm:$0xff]
    %v297 = vld [vmem:[#allocation7 + $0x438] sm:$0xff]
    %v298 = vld [vmem:[#allocation7 + $0x440] sm:$0xff]
    %v299 = vld [vmem:[#allocation7 + $0x448] sm:$0xff]
    %v300 = vld [vmem:[#allocation7 + $0x450] sm:$0xff]
    %v301 = vld [vmem:[#allocation7 + $0x458] sm:$0xff]
    %v302 = vld [vmem:[#allocation7 + $0x460] sm:$0xff]
    %v303 = vld [vmem:[#allocation7 + $0x468] sm:$0xff]
    %v304 = vld [vmem:[#allocation7 + $0x470] sm:$0xff]
    %v305 = vld [vmem:[#allocation7 + $0x478] sm:$0xff]
    %v306 = vld [vmem:[#allocation7 + $0x480] sm:$0xff]
    %v307 = vld [vmem:[#allocation7 + $0x488] sm:$0xff]
    %v308 = vld [vmem:[#allocation7 + $0x490] sm:$0xff]
    %v309 = vld [vmem:[#allocation7 + $0x498] sm:$0xff]
    %v310 = vld [vmem:[#allocation7 + $0x4a0] sm:$0xff]
    %v311 = vld [vmem:[#allocation7 + $0x4a8] sm:$0xff]
    %v312 = vld [vmem:[#allocation7 + $0x4b0] sm:$0xff]
    %v313 = vld [vmem:[#allocation7 + $0x4b8] sm:$0xff]
    %v314 = vld [vmem:[#allocation7 + $0x4c0] sm:$0xff]
    %v315 = vld [vmem:[#allocation7 + $0x4c8] sm:$0xff]
    %v316 = vld [vmem:[#allocation7 + $0x4d0] sm:$0xff]
    %v317 = vld [vmem:[#allocation7 + $0x4d8] sm:$0xff]
    %v318 = vld [vmem:[#allocation7 + $0x4e0] sm:$0xff]
    %v319 = vld [vmem:[#allocation7 + $0x4e8] sm:$0xff]
    %v320 = vld [vmem:[#allocation7 + $0x4f0] sm:$0xff]
    %v321 = vld [vmem:[#allocation7 + $0x4f8] sm:$0xff]
    %v322 = vld [vmem:[#allocation7 + $0x500] sm:$0xff]
    %v323 = vld [vmem:[#allocation7 + $0x508] sm:$0xff]
    %v324 = vld [vmem:[#allocation7 + $0x510] sm:$0xff]
    %v325 = vld [vmem:[#allocation7 + $0x518] sm:$0xff]
    %v326 = vld [vmem:[#allocation7 + $0x520] sm:$0xff]
    %v327 = vld [vmem:[#allocation7 + $0x528] sm:$0xff]
    %v328 = vld [vmem:[#allocation7 + $0x530] sm:$0xff]
    %v329 = vld [vmem:[#allocation7 + $0x538] sm:$0xff]
    %v330 = vld [vmem:[#allocation7 + $0x540] sm:$0xff]
    %v331 = vld [vmem:[#allocation7 + $0x548] sm:$0xff]
    %v332 = vld [vmem:[#allocation7 + $0x550] sm:$0xff]
    %v333 = vld [vmem:[#allocation7 + $0x558] sm:$0xff]
    %v334 = vld [vmem:[#allocation7 + $0x560] sm:$0xff]
    %v335 = vld [vmem:[#allocation7 + $0x568] sm:$0xff]
    %v336 = vld [vmem:[#allocation7 + $0x570] sm:$0xff]
    %v337 = vld [vmem:[#allocation7 + $0x578] sm:$0xff]
    %v338 = vld [vmem:[#allocation7 + $0x580] sm:$0xff]
    %v339 = vld [vmem:[#allocation7 + $0x588] sm:$0xff]
    %v340 = vld [vmem:[#allocation7 + $0x590] sm:$0xff]
    %v341 = vld [vmem:[#allocation7 + $0x598] sm:$0xff]
    %v342 = vld [vmem:[#allocation7 + $0x5a0] sm:$0xff]
    %v343 = vld [vmem:[#allocation7 + $0x5a8] sm:$0xff]
    %v344 = vld [vmem:[#allocation7 + $0x5b0] sm:$0xff]
    %v345 = vld [vmem:[#allocation7 + $0x5b8] sm:$0xff]
    %v346 = vld [vmem:[#allocation7 + $0x5c0] sm:$0xff]
    %v347 = vld [vmem:[#allocation7 + $0x5c8] sm:$0xff]
    %v348 = vld [vmem:[#allocation7 + $0x5d0] sm:$0xff]
    %v349 = vld [vmem:[#allocation7 + $0x5d8] sm:$0xff]
    %v350 = vld [vmem:[#allocation7 + $0x5e0] sm:$0xff]
    %v351 = vld [vmem:[#allocation7 + $0x5e8] sm:$0xff]
    %v352 = vld [vmem:[#allocation7 + $0x5f0] sm:$0xff]
    %v353 = vld [vmem:[#allocation7 + $0x5f8] sm:$0xff]
    %v354 = vld [vmem:[#allocation7 + $0x600] sm:$0xff]
    %v355 = vld [vmem:[#allocation7 + $0x608] sm:$0xff]
    %v356 = vld [vmem:[#allocation7 + $0x610] sm:$0xff]
    %v357 = vld [vmem:[#allocation7 + $0x618] sm:$0xff]
    %v358 = vld [vmem:[#allocation7 + $0x620] sm:$0xff]
    %v359 = vld [vmem:[#allocation7 + $0x628] sm:$0xff]
    %v360 = vld [vmem:[#allocation7 + $0x630] sm:$0xff]
    %v361 = vld [vmem:[#allocation7 + $0x638] sm:$0xff]
    %v362 = vld [vmem:[#allocation7 + $0x640] sm:$0xff]
    %v363 = vld [vmem:[#allocation7 + $0x648] sm:$0xff]
    %v364 = vld [vmem:[#allocation7 + $0x650] sm:$0xff]
    %v365 = vld [vmem:[#allocation7 + $0x658] sm:$0xff]
    %v366 = vld [vmem:[#allocation7 + $0x660] sm:$0xff]
    %v367 = vld [vmem:[#allocation7 + $0x668] sm:$0xff]
    %v368 = vld [vmem:[#allocation7 + $0x670] sm:$0xff]
    %v369 = vld [vmem:[#allocation7 + $0x678] sm:$0xff]
    %v370 = vld [vmem:[#allocation7 + $0x680] sm:$0xff]
    %v371 = vld [vmem:[#allocation7 + $0x688] sm:$0xff]
    %v372 = vld [vmem:[#allocation7 + $0x690] sm:$0xff]
    %v373 = vld [vmem:[#allocation7 + $0x698] sm:$0xff]
    %v374 = vld [vmem:[#allocation7 + $0x6a0] sm:$0xff]
    %v375 = vld [vmem:[#allocation7 + $0x6a8] sm:$0xff]
    %v376 = vld [vmem:[#allocation7 + $0x6b0] sm:$0xff]
    %v377 = vld [vmem:[#allocation7 + $0x6b8] sm:$0xff]
    %v378 = vld [vmem:[#allocation7 + $0x6c0] sm:$0xff]
    %v379 = vld [vmem:[#allocation7 + $0x6c8] sm:$0xff]
    %v380 = vld [vmem:[#allocation7 + $0x6d0] sm:$0xff]
    %v381 = vld [vmem:[#allocation7 + $0x6d8] sm:$0xff]
    %v382 = vld [vmem:[#allocation7 + $0x6e0] sm:$0xff]
    %v383 = vld [vmem:[#allocation7 + $0x6e8] sm:$0xff]
    %v384 = vld [vmem:[#allocation7 + $0x6f0] sm:$0xff]
    %v385 = vld [vmem:[#allocation7 + $0x6f8] sm:$0xff]
    %v386 = vld [vmem:[%s3] sm:$0xf]
    %v388 = vlaneseq
    %v389 = vshrl.u32 %v388, 7
    %v390 = vsub.s32 0, %v389
    %v391 = vrot.slane %v386, %v390
    %v392 = vlaneseq
    %v393 = vshrl.u32 %v392, 7
    %v394 = vsub.s32 1, %v393
    %v395 = vrot.slane %v386, %v394
    %v396 = vlaneseq
    %v397 = vshrl.u32 %v396, 7
    %v398 = vsub.s32 2, %v397
    %v399 = vrot.slane %v386, %v398
    %v400 = vlaneseq
    %v401 = vshrl.u32 %v400, 7
    %v402 = vsub.s32 3, %v401
    %v403 = vrot.slane %v386, %v402
    %v632 = vunpack.c.l.b16 %v162
    %v633 = vunpack.c.h.b16 %v162
    %v634 = vunpack.c.l.b16 %v163
    %v635 = vunpack.c.h.b16 %v163
    %v636 = vunpack.c.l.b16 %v164
    %v637 = vunpack.c.h.b16 %v164
    %v638 = vunpack.c.l.b16 %v165
    %v639 = vunpack.c.h.b16 %v165
    %v640 = vunpack.c.l.b16 %v166
    %v641 = vunpack.c.h.b16 %v166
    %v642 = vunpack.c.l.b16 %v167
    %v643 = vunpack.c.h.b16 %v167
    %v644 = vunpack.c.l.b16 %v168
    %v645 = vunpack.c.h.b16 %v168
    %v646 = vunpack.c.l.b16 %v169
    %v647 = vunpack.c.h.b16 %v169
    %v648 = vunpack.c.l.b16 %v170
    %v649 = vunpack.c.h.b16 %v170
    %v650 = vunpack.c.l.b16 %v171
    %v651 = vunpack.c.h.b16 %v171
    %v652 = vunpack.c.l.b16 %v172
    %v653 = vunpack.c.h.b16 %v172
    %v654 = vunpack.c.l.b16 %v173
    %v655 = vunpack.c.h.b16 %v173
    %v656 = vunpack.c.l.b16 %v174
    %v657 = vunpack.c.h.b16 %v174
    %v658 = vunpack.c.l.b16 %v175
    %v659 = vunpack.c.h.b16 %v175
    %v660 = vunpack.c.l.b16 %v176
    %v661 = vunpack.c.h.b16 %v176
    %v662 = vunpack.c.l.b16 %v177
    %v663 = vunpack.c.h.b16 %v177
    %v664 = vunpack.c.l.b16 %v178
    %v665 = vunpack.c.h.b16 %v178
    %v666 = vunpack.c.l.b16 %v179
    %v667 = vunpack.c.h.b16 %v179
    %v668 = vunpack.c.l.b16 %v180
    %v669 = vunpack.c.h.b16 %v180
    %v670 = vunpack.c.l.b16 %v181
    %v671 = vunpack.c.h.b16 %v181
    %v672 = vunpack.c.l.b16 %v182
    %v673 = vunpack.c.h.b16 %v182
    %v674 = vunpack.c.l.b16 %v183
    %v675 = vunpack.c.h.b16 %v183
    %v676 = vunpack.c.l.b16 %v184
    %v677 = vunpack.c.h.b16 %v184
    %v678 = vunpack.c.l.b16 %v185
    %v679 = vunpack.c.h.b16 %v185
    %v680 = vunpack.c.l.b16 %v186
    %v681 = vunpack.c.h.b16 %v186
    %v682 = vunpack.c.l.b16 %v187
    %v683 = vunpack.c.h.b16 %v187
    %v684 = vunpack.c.l.b16 %v188
    %v685 = vunpack.c.h.b16 %v188
    %v686 = vunpack.c.l.b16 %v189
    %v687 = vunpack.c.h.b16 %v189
    %v688 = vunpack.c.l.b16 %v190
    %v689 = vunpack.c.h.b16 %v190
    %v690 = vunpack.c.l.b16 %v191
    %v691 = vunpack.c.h.b16 %v191
    %v692 = vunpack.c.l.b16 %v192
    %v693 = vunpack.c.h.b16 %v192
    %v694 = vunpack.c.l.b16 %v193
    %v695 = vunpack.c.h.b16 %v193
    %v696 = vunpack.c.l.b16 %v194
    %v697 = vunpack.c.h.b16 %v194
    %v698 = vunpack.c.l.b16 %v195
    %v699 = vunpack.c.h.b16 %v195
    %v700 = vunpack.c.l.b16 %v196
    %v701 = vunpack.c.h.b16 %v196
    %v702 = vunpack.c.l.b16 %v197
    %v703 = vunpack.c.h.b16 %v197
    %v704 = vunpack.c.l.b16 %v198
    %v705 = vunpack.c.h.b16 %v198
    %v706 = vunpack.c.l.b16 %v199
    %v707 = vunpack.c.h.b16 %v199
    %v708 = vunpack.c.l.b16 %v200
    %v709 = vunpack.c.h.b16 %v200
    %v710 = vunpack.c.l.b16 %v201
    %v711 = vunpack.c.h.b16 %v201
    %v712 = vunpack.c.l.b16 %v202
    %v713 = vunpack.c.h.b16 %v202
    %v714 = vunpack.c.l.b16 %v203
    %v715 = vunpack.c.h.b16 %v203
    %v716 = vunpack.c.l.b16 %v204
    %v717 = vunpack.c.h.b16 %v204
    %v718 = vunpack.c.l.b16 %v205
    %v719 = vunpack.c.h.b16 %v205
    %v720 = vunpack.c.l.b16 %v206
    %v721 = vunpack.c.h.b16 %v206
    %v722 = vunpack.c.l.b16 %v207
    %v723 = vunpack.c.h.b16 %v207
    %v724 = vunpack.c.l.b16 %v208
    %v725 = vunpack.c.h.b16 %v208
    %v726 = vunpack.c.l.b16 %v209
    %v727 = vunpack.c.h.b16 %v209
    %v728 = vunpack.c.l.b16 %v210
    %v729 = vunpack.c.h.b16 %v210
    %v730 = vunpack.c.l.b16 %v211
    %v731 = vunpack.c.h.b16 %v211
    %v732 = vunpack.c.l.b16 %v212
    %v733 = vunpack.c.h.b16 %v212
    %v734 = vunpack.c.l.b16 %v213
    %v735 = vunpack.c.h.b16 %v213
    %v736 = vunpack.c.l.b16 %v214
    %v737 = vunpack.c.h.b16 %v214
    %v738 = vunpack.c.l.b16 %v215
    %v739 = vunpack.c.h.b16 %v215
    %v740 = vunpack.c.l.b16 %v216
    %v741 = vunpack.c.h.b16 %v216
    %v742 = vunpack.c.l.b16 %v217
    %v743 = vunpack.c.h.b16 %v217
    %v744 = vunpack.c.l.b16 %v218
    %v745 = vunpack.c.h.b16 %v218
    %v746 = vunpack.c.l.b16 %v219
    %v747 = vunpack.c.h.b16 %v219
    %v748 = vunpack.c.l.b16 %v220
    %v749 = vunpack.c.h.b16 %v220
    %v750 = vunpack.c.l.b16 %v221
    %v751 = vunpack.c.h.b16 %v221
    %v752 = vunpack.c.l.b16 %v222
    %v753 = vunpack.c.h.b16 %v222
    %v754 = vunpack.c.l.b16 %v223
    %v755 = vunpack.c.h.b16 %v223
    %v756 = vunpack.c.l.b16 %v224
    %v757 = vunpack.c.h.b16 %v224
    %v758 = vunpack.c.l.b16 %v225
    %v759 = vunpack.c.h.b16 %v225
    %v760 = vunpack.c.l.b16 %v226
    %v761 = vunpack.c.h.b16 %v226
    %v762 = vunpack.c.l.b16 %v227
    %v763 = vunpack.c.h.b16 %v227
    %v764 = vunpack.c.l.b16 %v228
    %v765 = vunpack.c.h.b16 %v228
    %v766 = vunpack.c.l.b16 %v229
    %v767 = vunpack.c.h.b16 %v229
    %v768 = vunpack.c.l.b16 %v230
    %v769 = vunpack.c.h.b16 %v230
    %v770 = vunpack.c.l.b16 %v231
    %v771 = vunpack.c.h.b16 %v231
    %v772 = vunpack.c.l.b16 %v232
    %v773 = vunpack.c.h.b16 %v232
    %v774 = vunpack.c.l.b16 %v233
    %v775 = vunpack.c.h.b16 %v233
    %v776 = vunpack.c.l.b16 %v234
    %v777 = vunpack.c.h.b16 %v234
    %v778 = vunpack.c.l.b16 %v235
    %v779 = vunpack.c.h.b16 %v235
    %v780 = vunpack.c.l.b16 %v236
    %v781 = vunpack.c.h.b16 %v236
    %v782 = vunpack.c.l.b16 %v237
    %v783 = vunpack.c.h.b16 %v237
    %v784 = vunpack.c.l.b16 %v238
    %v785 = vunpack.c.h.b16 %v238
    %v786 = vunpack.c.l.b16 %v239
    %v787 = vunpack.c.h.b16 %v239
    %v788 = vunpack.c.l.b16 %v240
    %v789 = vunpack.c.h.b16 %v240
    %v790 = vunpack.c.l.b16 %v241
    %v791 = vunpack.c.h.b16 %v241
    %v792 = vunpack.c.l.b16 %v242
    %v793 = vunpack.c.h.b16 %v242
    %v794 = vunpack.c.l.b16 %v243
    %v795 = vunpack.c.h.b16 %v243
    %v796 = vunpack.c.l.b16 %v244
    %v797 = vunpack.c.h.b16 %v244
    %v798 = vunpack.c.l.b16 %v245
    %v799 = vunpack.c.h.b16 %v245
    %v800 = vunpack.c.l.b16 %v246
    %v801 = vunpack.c.h.b16 %v246
    %v802 = vunpack.c.l.b16 %v247
    %v803 = vunpack.c.h.b16 %v247
    %v804 = vunpack.c.l.b16 %v248
    %v805 = vunpack.c.h.b16 %v248
    %v806 = vunpack.c.l.b16 %v249
    %v807 = vunpack.c.h.b16 %v249
    %v808 = vunpack.c.l.b16 %v250
    %v809 = vunpack.c.h.b16 %v250
    %v810 = vunpack.c.l.b16 %v251
    %v811 = vunpack.c.h.b16 %v251
    %v812 = vunpack.c.l.b16 %v252
    %v813 = vunpack.c.h.b16 %v252
    %v814 = vunpack.c.l.b16 %v253
    %v815 = vunpack.c.h.b16 %v253
    %v816 = vunpack.c.l.b16 %v254
    %v817 = vunpack.c.h.b16 %v254
    %v818 = vunpack.c.l.b16 %v255
    %v819 = vunpack.c.h.b16 %v255
    %v820 = vunpack.c.l.b16 %v256
    %v821 = vunpack.c.h.b16 %v256
    %v822 = vunpack.c.l.b16 %v257
    %v823 = vunpack.c.h.b16 %v257
    %v824 = vunpack.c.l.b16 %v258
    %v825 = vunpack.c.h.b16 %v258
    %v826 = vunpack.c.l.b16 %v259
    %v827 = vunpack.c.h.b16 %v259
    %v828 = vunpack.c.l.b16 %v260
    %v829 = vunpack.c.h.b16 %v260
    %v830 = vunpack.c.l.b16 %v261
    %v831 = vunpack.c.h.b16 %v261
    %v832 = vunpack.c.l.b16 %v262
    %v833 = vunpack.c.h.b16 %v262
    %v834 = vunpack.c.l.b16 %v263
    %v835 = vunpack.c.h.b16 %v263
    %v836 = vunpack.c.l.b16 %v264
    %v837 = vunpack.c.h.b16 %v264
    %v838 = vunpack.c.l.b16 %v265
    %v839 = vunpack.c.h.b16 %v265
    %v840 = vunpack.c.l.b16 %v266
    %v841 = vunpack.c.h.b16 %v266
    %v842 = vunpack.c.l.b16 %v267
    %v843 = vunpack.c.h.b16 %v267
    %v844 = vunpack.c.l.b16 %v268
    %v845 = vunpack.c.h.b16 %v268
    %v846 = vunpack.c.l.b16 %v269
    %v847 = vunpack.c.h.b16 %v269
    %v848 = vunpack.c.l.b16 %v270
    %v849 = vunpack.c.h.b16 %v270
    %v850 = vunpack.c.l.b16 %v271
    %v851 = vunpack.c.h.b16 %v271
    %v852 = vunpack.c.l.b16 %v272
    %v853 = vunpack.c.h.b16 %v272
    %v854 = vunpack.c.l.b16 %v273
    %v855 = vunpack.c.h.b16 %v273
    %v856 = vunpack.c.l.b16 %v274
    %v857 = vunpack.c.h.b16 %v274
    %v858 = vunpack.c.l.b16 %v275
    %v859 = vunpack.c.h.b16 %v275
    %v860 = vunpack.c.l.b16 %v276
    %v861 = vunpack.c.h.b16 %v276
    %v862 = vunpack.c.l.b16 %v277
    %v863 = vunpack.c.h.b16 %v277
    %v864 = vunpack.c.l.b16 %v278
    %v865 = vunpack.c.h.b16 %v278
    %v866 = vunpack.c.l.b16 %v279
    %v867 = vunpack.c.h.b16 %v279
    %v868 = vunpack.c.l.b16 %v280
    %v869 = vunpack.c.h.b16 %v280
    %v870 = vunpack.c.l.b16 %v281
    %v871 = vunpack.c.h.b16 %v281
    %v872 = vunpack.c.l.b16 %v282
    %v873 = vunpack.c.h.b16 %v282
    %v874 = vunpack.c.l.b16 %v283
    %v875 = vunpack.c.h.b16 %v283
    %v876 = vunpack.c.l.b16 %v284
    %v877 = vunpack.c.h.b16 %v284
    %v878 = vunpack.c.l.b16 %v285
    %v879 = vunpack.c.h.b16 %v285
    %v880 = vunpack.c.l.b16 %v286
    %v881 = vunpack.c.h.b16 %v286
    %v882 = vunpack.c.l.b16 %v287
    %v883 = vunpack.c.h.b16 %v287
    %v884 = vunpack.c.l.b16 %v288
    %v885 = vunpack.c.h.b16 %v288
    %v886 = vunpack.c.l.b16 %v289
    %v887 = vunpack.c.h.b16 %v289
    %v888 = vunpack.c.l.b16 %v290
    %v889 = vunpack.c.h.b16 %v290
    %v890 = vunpack.c.l.b16 %v291
    %v891 = vunpack.c.h.b16 %v291
    %v892 = vunpack.c.l.b16 %v292
    %v893 = vunpack.c.h.b16 %v292
    %v894 = vunpack.c.l.b16 %v293
    %v895 = vunpack.c.h.b16 %v293
    %v896 = vunpack.c.l.b16 %v294
    %v897 = vunpack.c.h.b16 %v294
    %v898 = vunpack.c.l.b16 %v295
    %v899 = vunpack.c.h.b16 %v295
    %v900 = vunpack.c.l.b16 %v296
    %v901 = vunpack.c.h.b16 %v296
    %v902 = vunpack.c.l.b16 %v297
    %v903 = vunpack.c.h.b16 %v297
    %v904 = vunpack.c.l.b16 %v298
    %v905 = vunpack.c.h.b16 %v298
    %v906 = vunpack.c.l.b16 %v299
    %v907 = vunpack.c.h.b16 %v299
    %v908 = vunpack.c.l.b16 %v300
    %v909 = vunpack.c.h.b16 %v300
    %v910 = vunpack.c.l.b16 %v301
    %v911 = vunpack.c.h.b16 %v301
    %v912 = vunpack.c.l.b16 %v302
    %v913 = vunpack.c.h.b16 %v302
    %v914 = vunpack.c.l.b16 %v303
    %v915 = vunpack.c.h.b16 %v303
    %v916 = vunpack.c.l.b16 %v304
    %v917 = vunpack.c.h.b16 %v304
    %v918 = vunpack.c.l.b16 %v305
    %v919 = vunpack.c.h.b16 %v305
    %v920 = vunpack.c.l.b16 %v306
    %v921 = vunpack.c.h.b16 %v306
    %v922 = vunpack.c.l.b16 %v307
    %v923 = vunpack.c.h.b16 %v307
    %v924 = vunpack.c.l.b16 %v308
    %v925 = vunpack.c.h.b16 %v308
    %v926 = vunpack.c.l.b16 %v309
    %v927 = vunpack.c.h.b16 %v309
    %v928 = vunpack.c.l.b16 %v310
    %v929 = vunpack.c.h.b16 %v310
    %v930 = vunpack.c.l.b16 %v311
    %v931 = vunpack.c.h.b16 %v311
    %v932 = vunpack.c.l.b16 %v312
    %v933 = vunpack.c.h.b16 %v312
    %v934 = vunpack.c.l.b16 %v313
    %v935 = vunpack.c.h.b16 %v313
    %v936 = vunpack.c.l.b16 %v314
    %v937 = vunpack.c.h.b16 %v314
    %v938 = vunpack.c.l.b16 %v315
    %v939 = vunpack.c.h.b16 %v315
    %v940 = vunpack.c.l.b16 %v316
    %v941 = vunpack.c.h.b16 %v316
    %v942 = vunpack.c.l.b16 %v317
    %v943 = vunpack.c.h.b16 %v317
    %v944 = vunpack.c.l.b16 %v318
    %v945 = vunpack.c.h.b16 %v318
    %v946 = vunpack.c.l.b16 %v319
    %v947 = vunpack.c.h.b16 %v319
    %v948 = vunpack.c.l.b16 %v320
    %v949 = vunpack.c.h.b16 %v320
    %v950 = vunpack.c.l.b16 %v321
    %v951 = vunpack.c.h.b16 %v321
    %v952 = vunpack.c.l.b16 %v322
    %v953 = vunpack.c.h.b16 %v322
    %v954 = vunpack.c.l.b16 %v323
    %v955 = vunpack.c.h.b16 %v323
    %v956 = vunpack.c.l.b16 %v324
    %v957 = vunpack.c.h.b16 %v324
    %v958 = vunpack.c.l.b16 %v325
    %v959 = vunpack.c.h.b16 %v325
    %v960 = vunpack.c.l.b16 %v326
    %v961 = vunpack.c.h.b16 %v326
    %v962 = vunpack.c.l.b16 %v327
    %v963 = vunpack.c.h.b16 %v327
    %v964 = vunpack.c.l.b16 %v328
    %v965 = vunpack.c.h.b16 %v328
    %v966 = vunpack.c.l.b16 %v329
    %v967 = vunpack.c.h.b16 %v329
    %v968 = vunpack.c.l.b16 %v330
    %v969 = vunpack.c.h.b16 %v330
    %v970 = vunpack.c.l.b16 %v331
    %v971 = vunpack.c.h.b16 %v331
    %v972 = vunpack.c.l.b16 %v332
    %v973 = vunpack.c.h.b16 %v332
    %v974 = vunpack.c.l.b16 %v333
    %v975 = vunpack.c.h.b16 %v333
    %v976 = vunpack.c.l.b16 %v334
    %v977 = vunpack.c.h.b16 %v334
    %v978 = vunpack.c.l.b16 %v335
    %v979 = vunpack.c.h.b16 %v335
    %v980 = vunpack.c.l.b16 %v336
    %v981 = vunpack.c.h.b16 %v336
    %v982 = vunpack.c.l.b16 %v337
    %v983 = vunpack.c.h.b16 %v337
    %v984 = vunpack.c.l.b16 %v338
    %v985 = vunpack.c.h.b16 %v338
    %v986 = vunpack.c.l.b16 %v339
    %v987 = vunpack.c.h.b16 %v339
    %v988 = vunpack.c.l.b16 %v340
    %v989 = vunpack.c.h.b16 %v340
    %v990 = vunpack.c.l.b16 %v341
    %v991 = vunpack.c.h.b16 %v341
    %v992 = vunpack.c.l.b16 %v342
    %v993 = vunpack.c.h.b16 %v342
    %v994 = vunpack.c.l.b16 %v343
    %v995 = vunpack.c.h.b16 %v343
    %v996 = vunpack.c.l.b16 %v344
    %v997 = vunpack.c.h.b16 %v344
    %v998 = vunpack.c.l.b16 %v345
    %v999 = vunpack.c.h.b16 %v345
    %v1000 = vunpack.c.l.b16 %v346
    %v1001 = vunpack.c.h.b16 %v346
    %v1002 = vunpack.c.l.b16 %v347
    %v1003 = vunpack.c.h.b16 %v347
    %v1004 = vunpack.c.l.b16 %v348
    %v1005 = vunpack.c.h.b16 %v348
    %v1006 = vunpack.c.l.b16 %v349
    %v1007 = vunpack.c.h.b16 %v349
    %v1008 = vunpack.c.l.b16 %v350
    %v1009 = vunpack.c.h.b16 %v350
    %v1010 = vunpack.c.l.b16 %v351
    %v1011 = vunpack.c.h.b16 %v351
    %v1012 = vunpack.c.l.b16 %v352
    %v1013 = vunpack.c.h.b16 %v352
    %v1014 = vunpack.c.l.b16 %v353
    %v1015 = vunpack.c.h.b16 %v353
    %v1016 = vunpack.c.l.b16 %v354
    %v1017 = vunpack.c.h.b16 %v354
    %v1018 = vunpack.c.l.b16 %v355
    %v1019 = vunpack.c.h.b16 %v355
    %v1020 = vunpack.c.l.b16 %v356
    %v1021 = vunpack.c.h.b16 %v356
    %v1022 = vunpack.c.l.b16 %v357
    %v1023 = vunpack.c.h.b16 %v357
    %v1024 = vunpack.c.l.b16 %v358
    %v1025 = vunpack.c.h.b16 %v358
    %v1026 = vunpack.c.l.b16 %v359
    %v1027 = vunpack.c.h.b16 %v359
    %v1028 = vunpack.c.l.b16 %v360
    %v1029 = vunpack.c.h.b16 %v360
    %v1030 = vunpack.c.l.b16 %v361
    %v1031 = vunpack.c.h.b16 %v361
    %v1032 = vunpack.c.l.b16 %v362
    %v1033 = vunpack.c.h.b16 %v362
    %v1034 = vunpack.c.l.b16 %v363
    %v1035 = vunpack.c.h.b16 %v363
    %v1036 = vunpack.c.l.b16 %v364
    %v1037 = vunpack.c.h.b16 %v364
    %v1038 = vunpack.c.l.b16 %v365
    %v1039 = vunpack.c.h.b16 %v365
    %v1040 = vunpack.c.l.b16 %v366
    %v1041 = vunpack.c.h.b16 %v366
    %v1042 = vunpack.c.l.b16 %v367
    %v1043 = vunpack.c.h.b16 %v367
    %v1044 = vunpack.c.l.b16 %v368
    %v1045 = vunpack.c.h.b16 %v368
    %v1046 = vunpack.c.l.b16 %v369
    %v1047 = vunpack.c.h.b16 %v369
    %v1048 = vunpack.c.l.b16 %v370
    %v1049 = vunpack.c.h.b16 %v370
    %v1050 = vunpack.c.l.b16 %v371
    %v1051 = vunpack.c.h.b16 %v371
    %v1052 = vunpack.c.l.b16 %v372
    %v1053 = vunpack.c.h.b16 %v372
    %v1054 = vunpack.c.l.b16 %v373
    %v1055 = vunpack.c.h.b16 %v373
    %v1056 = vunpack.c.l.b16 %v374
    %v1057 = vunpack.c.h.b16 %v374
    %v1058 = vunpack.c.l.b16 %v375
    %v1059 = vunpack.c.h.b16 %v375
    %v1060 = vunpack.c.l.b16 %v376
    %v1061 = vunpack.c.h.b16 %v376
    %v1062 = vunpack.c.l.b16 %v377
    %v1063 = vunpack.c.h.b16 %v377
    %v1064 = vunpack.c.l.b16 %v378
    %v1065 = vunpack.c.h.b16 %v378
    %v1066 = vunpack.c.l.b16 %v379
    %v1067 = vunpack.c.h.b16 %v379
    %v1068 = vunpack.c.l.b16 %v380
    %v1069 = vunpack.c.h.b16 %v380
    %v1070 = vunpack.c.l.b16 %v381
    %v1071 = vunpack.c.h.b16 %v381
    %v1072 = vunpack.c.l.b16 %v382
    %v1073 = vunpack.c.h.b16 %v382
    %v1074 = vunpack.c.l.b16 %v383
    %v1075 = vunpack.c.h.b16 %v383
    %v1076 = vunpack.c.l.b16 %v384
    %v1077 = vunpack.c.h.b16 %v384
    %v1078 = vunpack.c.l.b16 %v385
    %v1079 = vunpack.c.h.b16 %v385
    %v1080 = vpack.c.b16 %v636, %v632
    %v1081 = vpack.c.b16 %v637, %v633
    %v1082 = vpack.c.b16 %v638, %v634
    %v1083 = vpack.c.b16 %v639, %v635
    %v1084 = vpack.c.b16 %v644, %v640
    %v1085 = vpack.c.b16 %v645, %v641
    %v1086 = vpack.c.b16 %v646, %v642
    %v1087 = vpack.c.b16 %v647, %v643
    %v1088 = vpack.c.b16 %v652, %v648
    %v1089 = vpack.c.b16 %v653, %v649
    %v1090 = vpack.c.b16 %v654, %v650
    %v1091 = vpack.c.b16 %v655, %v651
    %v1092 = vpack.c.b16 %v660, %v656
    %v1093 = vpack.c.b16 %v661, %v657
    %v1094 = vpack.c.b16 %v662, %v658
    %v1095 = vpack.c.b16 %v663, %v659
    %v1096 = vpack.c.b16 %v668, %v664
    %v1097 = vpack.c.b16 %v669, %v665
    %v1098 = vpack.c.b16 %v670, %v666
    %v1099 = vpack.c.b16 %v671, %v667
    %v1100 = vpack.c.b16 %v676, %v672
    %v1101 = vpack.c.b16 %v677, %v673
    %v1102 = vpack.c.b16 %v678, %v674
    %v1103 = vpack.c.b16 %v679, %v675
    %v1104 = vpack.c.b16 %v684, %v680
    %v1105 = vpack.c.b16 %v685, %v681
    %v1106 = vpack.c.b16 %v686, %v682
    %v1107 = vpack.c.b16 %v687, %v683
    %v1108 = vpack.c.b16 %v692, %v688
    %v1109 = vpack.c.b16 %v693, %v689
    %v1110 = vpack.c.b16 %v694, %v690
    %v1111 = vpack.c.b16 %v695, %v691
    %v1112 = vpack.c.b16 %v700, %v696
    %v1113 = vpack.c.b16 %v701, %v697
    %v1114 = vpack.c.b16 %v702, %v698
    %v1115 = vpack.c.b16 %v703, %v699
    %v1116 = vpack.c.b16 %v708, %v704
    %v1117 = vpack.c.b16 %v709, %v705
    %v1118 = vpack.c.b16 %v710, %v706
    %v1119 = vpack.c.b16 %v711, %v707
    %v1120 = vpack.c.b16 %v716, %v712
    %v1121 = vpack.c.b16 %v717, %v713
    %v1122 = vpack.c.b16 %v718, %v714
    %v1123 = vpack.c.b16 %v719, %v715
    %v1124 = vpack.c.b16 %v724, %v720
    %v1125 = vpack.c.b16 %v725, %v721
    %v1126 = vpack.c.b16 %v726, %v722
    %v1127 = vpack.c.b16 %v727, %v723
    %v1128 = vpack.c.b16 %v732, %v728
    %v1129 = vpack.c.b16 %v733, %v729
    %v1130 = vpack.c.b16 %v734, %v730
    %v1131 = vpack.c.b16 %v735, %v731
    %v1132 = vpack.c.b16 %v740, %v736
    %v1133 = vpack.c.b16 %v741, %v737
    %v1134 = vpack.c.b16 %v742, %v738
    %v1135 = vpack.c.b16 %v743, %v739
    %v1136 = vpack.c.b16 %v748, %v744
    %v1137 = vpack.c.b16 %v749, %v745
    %v1138 = vpack.c.b16 %v750, %v746
    %v1139 = vpack.c.b16 %v751, %v747
    %v1140 = vpack.c.b16 %v756, %v752
    %v1141 = vpack.c.b16 %v757, %v753
    %v1142 = vpack.c.b16 %v758, %v754
    %v1143 = vpack.c.b16 %v759, %v755
    %v1144 = vpack.c.b16 %v764, %v760
    %v1145 = vpack.c.b16 %v765, %v761
    %v1146 = vpack.c.b16 %v766, %v762
    %v1147 = vpack.c.b16 %v767, %v763
    %v1148 = vpack.c.b16 %v772, %v768
    %v1149 = vpack.c.b16 %v773, %v769
    %v1150 = vpack.c.b16 %v774, %v770
    %v1151 = vpack.c.b16 %v775, %v771
    %v1152 = vpack.c.b16 %v780, %v776
    %v1153 = vpack.c.b16 %v781, %v777
    %v1154 = vpack.c.b16 %v782, %v778
    %v1155 = vpack.c.b16 %v783, %v779
    %v1156 = vpack.c.b16 %v788, %v784
    %v1157 = vpack.c.b16 %v789, %v785
    %v1158 = vpack.c.b16 %v790, %v786
    %v1159 = vpack.c.b16 %v791, %v787
    %v1160 = vpack.c.b16 %v796, %v792
    %v1161 = vpack.c.b16 %v797, %v793
    %v1162 = vpack.c.b16 %v798, %v794
    %v1163 = vpack.c.b16 %v799, %v795
    %v1164 = vpack.c.b16 %v804, %v800
    %v1165 = vpack.c.b16 %v805, %v801
    %v1166 = vpack.c.b16 %v806, %v802
    %v1167 = vpack.c.b16 %v807, %v803
    %v1168 = vpack.c.b16 %v812, %v808
    %v1169 = vpack.c.b16 %v813, %v809
    %v1170 = vpack.c.b16 %v814, %v810
    %v1171 = vpack.c.b16 %v815, %v811
    %v1172 = vpack.c.b16 %v820, %v816
    %v1173 = vpack.c.b16 %v821, %v817
    %v1174 = vpack.c.b16 %v822, %v818
    %v1175 = vpack.c.b16 %v823, %v819
    %v1176 = vpack.c.b16 %v828, %v824
    %v1177 = vpack.c.b16 %v829, %v825
    %v1178 = vpack.c.b16 %v830, %v826
    %v1179 = vpack.c.b16 %v831, %v827
    %v1180 = vpack.c.b16 %v836, %v832
    %v1181 = vpack.c.b16 %v837, %v833
    %v1182 = vpack.c.b16 %v838, %v834
    %v1183 = vpack.c.b16 %v839, %v835
    %v1184 = vpack.c.b16 %v844, %v840
    %v1185 = vpack.c.b16 %v845, %v841
    %v1186 = vpack.c.b16 %v846, %v842
    %v1187 = vpack.c.b16 %v847, %v843
    %v1188 = vpack.c.b16 %v852, %v848
    %v1189 = vpack.c.b16 %v853, %v849
    %v1190 = vpack.c.b16 %v854, %v850
    %v1191 = vpack.c.b16 %v855, %v851
    %v1192 = vpack.c.b16 %v860, %v856
    %v1193 = vpack.c.b16 %v861, %v857
    %v1194 = vpack.c.b16 %v862, %v858
    %v1195 = vpack.c.b16 %v863, %v859
    %v1196 = vpack.c.b16 %v868, %v864
    %v1197 = vpack.c.b16 %v869, %v865
    %v1198 = vpack.c.b16 %v870, %v866
    %v1199 = vpack.c.b16 %v871, %v867
    %v1200 = vpack.c.b16 %v876, %v872
    %v1201 = vpack.c.b16 %v877, %v873
    %v1202 = vpack.c.b16 %v878, %v874
    %v1203 = vpack.c.b16 %v879, %v875
    %v1204 = vpack.c.b16 %v884, %v880
    %v1205 = vpack.c.b16 %v885, %v881
    %v1206 = vpack.c.b16 %v886, %v882
    %v1207 = vpack.c.b16 %v887, %v883
    %v1208 = vpack.c.b16 %v892, %v888
    %v1209 = vpack.c.b16 %v893, %v889
    %v1210 = vpack.c.b16 %v894, %v890
    %v1211 = vpack.c.b16 %v895, %v891
    %v1212 = vpack.c.b16 %v900, %v896
    %v1213 = vpack.c.b16 %v901, %v897
    %v1214 = vpack.c.b16 %v902, %v898
    %v1215 = vpack.c.b16 %v903, %v899
    %v1216 = vpack.c.b16 %v908, %v904
    %v1217 = vpack.c.b16 %v909, %v905
    %v1218 = vpack.c.b16 %v910, %v906
    %v1219 = vpack.c.b16 %v911, %v907
    %v1220 = vpack.c.b16 %v916, %v912
    %v1221 = vpack.c.b16 %v917, %v913
    %v1222 = vpack.c.b16 %v918, %v914
    %v1223 = vpack.c.b16 %v919, %v915
    %v1224 = vpack.c.b16 %v924, %v920
    %v1225 = vpack.c.b16 %v925, %v921
    %v1226 = vpack.c.b16 %v926, %v922
    %v1227 = vpack.c.b16 %v927, %v923
    %v1228 = vpack.c.b16 %v932, %v928
    %v1229 = vpack.c.b16 %v933, %v929
    %v1230 = vpack.c.b16 %v934, %v930
    %v1231 = vpack.c.b16 %v935, %v931
    %v1232 = vpack.c.b16 %v940, %v936
    %v1233 = vpack.c.b16 %v941, %v937
    %v1234 = vpack.c.b16 %v942, %v938
    %v1235 = vpack.c.b16 %v943, %v939
    %v1236 = vpack.c.b16 %v948, %v944
    %v1237 = vpack.c.b16 %v949, %v945
    %v1238 = vpack.c.b16 %v950, %v946
    %v1239 = vpack.c.b16 %v951, %v947
    %v1240 = vpack.c.b16 %v956, %v952
    %v1241 = vpack.c.b16 %v957, %v953
    %v1242 = vpack.c.b16 %v958, %v954
    %v1243 = vpack.c.b16 %v959, %v955
    %v1244 = vpack.c.b16 %v964, %v960
    %v1245 = vpack.c.b16 %v965, %v961
    %v1246 = vpack.c.b16 %v966, %v962
    %v1247 = vpack.c.b16 %v967, %v963
    %v1248 = vpack.c.b16 %v972, %v968
    %v1249 = vpack.c.b16 %v973, %v969
    %v1250 = vpack.c.b16 %v974, %v970
    %v1251 = vpack.c.b16 %v975, %v971
    %v1252 = vpack.c.b16 %v980, %v976
    %v1253 = vpack.c.b16 %v981, %v977
    %v1254 = vpack.c.b16 %v982, %v978
    %v1255 = vpack.c.b16 %v983, %v979
    %v1256 = vpack.c.b16 %v988, %v984
    %v1257 = vpack.c.b16 %v989, %v985
    %v1258 = vpack.c.b16 %v990, %v986
    %v1259 = vpack.c.b16 %v991, %v987
    %v1260 = vpack.c.b16 %v996, %v992
    %v1261 = vpack.c.b16 %v997, %v993
    %v1262 = vpack.c.b16 %v998, %v994
    %v1263 = vpack.c.b16 %v999, %v995
    %v1264 = vpack.c.b16 %v1004, %v1000
    %v1265 = vpack.c.b16 %v1005, %v1001
    %v1266 = vpack.c.b16 %v1006, %v1002
    %v1267 = vpack.c.b16 %v1007, %v1003
    %v1268 = vpack.c.b16 %v1012, %v1008
    %v1269 = vpack.c.b16 %v1013, %v1009
    %v1270 = vpack.c.b16 %v1014, %v1010
    %v1271 = vpack.c.b16 %v1015, %v1011
    %v1272 = vpack.c.b16 %v1020, %v1016
    %v1273 = vpack.c.b16 %v1021, %v1017
    %v1274 = vpack.c.b16 %v1022, %v1018
    %v1275 = vpack.c.b16 %v1023, %v1019
    %v1276 = vpack.c.b16 %v1028, %v1024
    %v1277 = vpack.c.b16 %v1029, %v1025
    %v1278 = vpack.c.b16 %v1030, %v1026
    %v1279 = vpack.c.b16 %v1031, %v1027
    %v1280 = vpack.c.b16 %v1036, %v1032
    %v1281 = vpack.c.b16 %v1037, %v1033
    %v1282 = vpack.c.b16 %v1038, %v1034
    %v1283 = vpack.c.b16 %v1039, %v1035
    %v1284 = vpack.c.b16 %v1044, %v1040
    %v1285 = vpack.c.b16 %v1045, %v1041
    %v1286 = vpack.c.b16 %v1046, %v1042
    %v1287 = vpack.c.b16 %v1047, %v1043
    %v1288 = vpack.c.b16 %v1052, %v1048
    %v1289 = vpack.c.b16 %v1053, %v1049
    %v1290 = vpack.c.b16 %v1054, %v1050
    %v1291 = vpack.c.b16 %v1055, %v1051
    %v1292 = vpack.c.b16 %v1060, %v1056
    %v1293 = vpack.c.b16 %v1061, %v1057
    %v1294 = vpack.c.b16 %v1062, %v1058
    %v1295 = vpack.c.b16 %v1063, %v1059
    %v1296 = vpack.c.b16 %v1068, %v1064
    %v1297 = vpack.c.b16 %v1069, %v1065
    %v1298 = vpack.c.b16 %v1070, %v1066
    %v1299 = vpack.c.b16 %v1071, %v1067
    %v1300 = vpack.c.b16 %v1076, %v1072
    %v1301 = vpack.c.b16 %v1077, %v1073
    %v1302 = vpack.c.b16 %v1078, %v1074
    %v1303 = vpack.c.b16 %v1079, %v1075
    %1528 = vmatprep.subr.bf16.mxu0 %v1081
    %1529 = vmatpush1.bf16.msra.mxu0 %v1080
    %1530 = vmatprep.subr.bf16.mxu0 %v1085
    %1531 = vmatpush1.bf16.msra.mxu0 %v1084
    %1532 = vmatprep.subr.bf16.mxu0 %v1089
    %1533 = vmatpush1.bf16.msra.mxu0 %v1088
    %1534 = vmatprep.subr.bf16.mxu0 %v1093
    %1535 = vmatpush1.bf16.msra.mxu0 %v1092
    %1536 = vmatprep.subr.bf16.mxu0 %v1097
    %1537 = vmatpush1.bf16.msra.mxu0 %v1096
    %1538 = vmatprep.subr.bf16.mxu0 %v1101
    %1539 = vmatpush1.bf16.msra.mxu0 %v1100
    %1540 = vmatprep.subr.bf16.mxu0 %v1105
    %1541 = vmatpush1.bf16.msra.mxu0 %v1104
    %1542 = vmatprep.subr.bf16.mxu0 %v1109
    %1543 = vmatpush1.bf16.msra.mxu0 %v1108
    %1544 = vmatprep.subr.bf16.mxu0 %v1113
    %1545 = vmatpush1.bf16.msra.mxu0 %v1112
    %1546 = vmatprep.subr.bf16.mxu0 %v1117
    %1547 = vmatpush1.bf16.msra.mxu0 %v1116
    %1548 = vmatprep.subr.bf16.mxu0 %v1121
    %1549 = vmatpush1.bf16.msra.mxu0 %v1120
    %1550 = vmatprep.subr.bf16.mxu0 %v1125
    %1551 = vmatpush1.bf16.msra.mxu0 %v1124
    %1552 = vmatprep.subr.bf16.mxu0 %v1129
    %1553 = vmatpush1.bf16.msra.mxu0 %v1128
    %1554 = vmatprep.subr.bf16.mxu0 %v1133
    %1555 = vmatpush1.bf16.msra.mxu0 %v1132
    %1556 = vmatprep.subr.bf16.mxu0 %v1137
    %1557 = vmatpush1.bf16.msra.mxu0 %v1136
    %1558 = vmatprep.subr.bf16.mxu0 %v1141
    %1559 = vmatpush1.bf16.msra.mxu0 %v1140
    %1560 = vmatprep.mubr.bf16.mxu0 %v156
    %1561 = vmatmul.mubr.bf16.gmra.mrb[0].mxu0 %v155
    %v1562 = vpop.f32.mrb[0].mxu0
    %v1563 = vadd.f32 %v391, %v1562
    %v1564 = vpop.f32.mrb[0].mxu0
    %v1565 = vadd.f32 %v395, %v1564
    %v1566 = vpop.f32.mrb[0].mxu0
    %v1567 = vpop.f32.mrb[0].mxu0
    %1568 = vdwg.mxu0
    %1569 = vmatprep.subr.bf16.mxu0 %v1145
    %1570 = vmatpush1.bf16.msra.mxu0 %v1144
    %1571 = vmatprep.subr.bf16.mxu0 %v1149
    %1572 = vmatpush1.bf16.msra.mxu0 %v1148
    %1573 = vmatprep.subr.bf16.mxu0 %v1153
    %1574 = vmatpush1.bf16.msra.mxu0 %v1152
    %1575 = vmatprep.subr.bf16.mxu0 %v1157
    %1576 = vmatpush1.bf16.msra.mxu0 %v1156
    %1577 = vmatprep.subr.bf16.mxu0 %v1161
    %1578 = vmatpush1.bf16.msra.mxu0 %v1160
    %1579 = vmatprep.subr.bf16.mxu0 %v1165
    %1580 = vmatpush1.bf16.msra.mxu0 %v1164
    %1581 = vmatprep.subr.bf16.mxu0 %v1169
    %1582 = vmatpush1.bf16.msra.mxu0 %v1168
    %1583 = vmatprep.subr.bf16.mxu0 %v1173
    %1584 = vmatpush1.bf16.msra.mxu0 %v1172
    %1585 = vmatprep.subr.bf16.mxu0 %v1177
    %1586 = vmatpush1.bf16.msra.mxu0 %v1176
    %1587 = vmatprep.subr.bf16.mxu0 %v1181
    %1588 = vmatpush1.bf16.msra.mxu0 %v1180
    %1589 = vmatprep.subr.bf16.mxu0 %v1185
    %1590 = vmatpush1.bf16.msra.mxu0 %v1184
    %1591 = vmatprep.subr.bf16.mxu0 %v1189
    %1592 = vmatpush1.bf16.msra.mxu0 %v1188
    %1593 = vmatprep.subr.bf16.mxu0 %v1193
    %1594 = vmatpush1.bf16.msra.mxu0 %v1192
    %1595 = vmatprep.subr.bf16.mxu0 %v1197
    %1596 = vmatpush1.bf16.msra.mxu0 %v1196
    %1597 = vmatprep.subr.bf16.mxu0 %v1201
    %1598 = vmatpush1.bf16.msra.mxu0 %v1200
    %1599 = vmatprep.subr.bf16.mxu0 %v1205
    %1600 = vmatpush1.bf16.msra.mxu0 %v1204
    %1601 = vmatprep.mubr.bf16.mxu0 %v158
    %1602 = vmatmul.mubr.bf16.gmra.mrb[0].mxu0 %v157
    %v1603 = vpop.f32.mrb[0].mxu0
    %v1604 = vadd.f32 %v1563, %v1603
    %v1605 = vpop.f32.mrb[0].mxu0
    %v1606 = vadd.f32 %v1565, %v1605
    %v1607 = vpop.f32.mrb[0].mxu0
    %v1608 = vpop.f32.mrb[0].mxu0
    %1609 = vdwg.mxu0
    %1610 = vmatprep.subr.bf16.mxu0 %v1209
    %1611 = vmatpush1.bf16.msra.mxu0 %v1208
    %1612 = vmatprep.subr.bf16.mxu0 %v1213
    %1613 = vmatpush1.bf16.msra.mxu0 %v1212
    %1614 = vmatprep.subr.bf16.mxu0 %v1217
    %1615 = vmatpush1.bf16.msra.mxu0 %v1216
    %1616 = vmatprep.subr.bf16.mxu0 %v1221
    %1617 = vmatpush1.bf16.msra.mxu0 %v1220
    %1618 = vmatprep.subr.bf16.mxu0 %v1225
    %1619 = vmatpush1.bf16.msra.mxu0 %v1224
    %1620 = vmatprep.subr.bf16.mxu0 %v1229
    %1621 = vmatpush1.bf16.msra.mxu0 %v1228
    %1622 = vmatprep.subr.bf16.mxu0 %v1233
    %1623 = vmatpush1.bf16.msra.mxu0 %v1232
    %1624 = vmatprep.subr.bf16.mxu0 %v1237
    %1625 = vmatpush1.bf16.msra.mxu0 %v1236
    %1626 = vmatprep.subr.bf16.mxu0 %v1241
    %1627 = vmatpush1.bf16.msra.mxu0 %v1240
    %1628 = vmatprep.subr.bf16.mxu0 %v1245
    %1629 = vmatpush1.bf16.msra.mxu0 %v1244
    %1630 = vmatprep.subr.bf16.mxu0 %v1249
    %1631 = vmatpush1.bf16.msra.mxu0 %v1248
    %1632 = vmatprep.subr.bf16.mxu0 %v1253
    %1633 = vmatpush1.bf16.msra.mxu0 %v1252
    %1634 = vmatprep.subr.bf16.mxu0 %v1257
    %1635 = vmatpush1.bf16.msra.mxu0 %v1256
    %1636 = vmatprep.subr.bf16.mxu0 %v1261
    %1637 = vmatpush1.bf16.msra.mxu0 %v1260
    %1638 = vmatprep.subr.bf16.mxu0 %v1265
    %1639 = vmatpush1.bf16.msra.mxu0 %v1264
    %1640 = vmatprep.subr.bf16.mxu0 %v1269
    %1641 = vmatpush1.bf16.msra.mxu0 %v1268
    %1642 = vmatprep.mubr.bf16.mxu0 %v160
    %1643 = vmatmul.mubr.bf16.gmra.mrb[0].mxu0 %v159
    %v1644 = vpop.f32.mrb[0].mxu0
    %v1645 = vadd.f32 %v1604, %v1644
    %v1646 = vpop.f32.mrb[0].mxu0
    %v1647 = vadd.f32 %v1606, %v1646
    %v1648 = vpop.f32.mrb[0].mxu0
    %v1649 = vpop.f32.mrb[0].mxu0
    %1650 = vdwg.mxu0
    %1651 = vmatprep.subr.bf16.mxu0 %v1273
    %1652 = vmatpush1.bf16.msra.mxu0 %v1272
    %1653 = vmatprep.subr.bf16.mxu0 %v1277
    %1654 = vmatpush1.bf16.msra.mxu0 %v1276
    %1655 = vmatprep.subr.bf16.mxu0 %v1281
    %1656 = vmatpush1.bf16.msra.mxu0 %v1280
    %1657 = vmatprep.subr.bf16.mxu0 %v1285
    %1658 = vmatpush1.bf16.msra.mxu0 %v1284
    %1659 = vmatprep.subr.bf16.mxu0 %v1289
    %1660 = vmatpush1.bf16.msra.mxu0 %v1288
    %1661 = vmatprep.subr.bf16.mxu0 %v1293
    %1662 = vmatpush1.bf16.msra.mxu0 %v1292
    %1663 = vmatprep.subr.bf16.mxu0 %v1297
    %1664 = vmatpush1.bf16.msra.mxu0 %v1296
    %1665 = vmatprep.subr.bf16.mxu0 %v1301
    %1666 = vmatpush1.bf16.msra.mxu0 %v1300
    %1667 = vmatprep.subr.bf16.mxu0 0
    %1668 = vmatpush1.bf16.msra.mxu0 0
    %1669 = vmatprep.subr.bf16.mxu0 0
    %1670 = vmatpush1.bf16.msra.mxu0 0
    %1671 = vmatprep.subr.bf16.mxu0 0
    %1672 = vmatpush1.bf16.msra.mxu0 0
    %1673 = vmatprep.subr.bf16.mxu0 0
    %1674 = vmatpush1.bf16.msra.mxu0 0
    %1675 = vmatprep.subr.bf16.mxu0 0
    %1676 = vmatpush1.bf16.msra.mxu0 0
    %1677 = vmatprep.subr.bf16.mxu0 0
    %1678 = vmatpush1.bf16.msra.mxu0 0
    %1679 = vmatprep.subr.bf16.mxu0 0
    %1680 = vmatpush1.bf16.msra.mxu0 0
    %1681 = vmatprep.subr.bf16.mxu0 0
    %1682 = vmatpush1.bf16.msra.mxu0 0
    %1683 = vmatprep.mubr.bf16.mxu0 0
    %1684 = vmatmul.mubr.bf16.gmra.mrb[0].mxu0 %v161
    %v1685 = vpop.f32.mrb[0].mxu0
    %v1686 = vadd.f32 %v1645, %v1685
    %v1687 = vpop.f32.mrb[0].mxu0
    %v1688 = vadd.f32 %v1647, %v1687
    %v1689 = vpop.f32.mrb[0].mxu0
    %v1690 = vpop.f32.mrb[0].mxu0
    %1691 = vdwg.mxu0
    %1692 = vmatprep.subr.bf16.mxu0 %v1083
    %1693 = vmatpush1.bf16.msra.mxu0 %v1082
    %1694 = vmatprep.subr.bf16.mxu0 %v1087
    %1695 = vmatpush1.bf16.msra.mxu0 %v1086
    %1696 = vmatprep.subr.bf16.mxu0 %v1091
    %1697 = vmatpush1.bf16.msra.mxu0 %v1090
    %1698 = vmatprep.subr.bf16.mxu0 %v1095
    %1699 = vmatpush1.bf16.msra.mxu0 %v1094
    %1700 = vmatprep.subr.bf16.mxu0 %v1099
    %1701 = vmatpush1.bf16.msra.mxu0 %v1098
    %1702 = vmatprep.subr.bf16.mxu0 %v1103
    %1703 = vmatpush1.bf16.msra.mxu0 %v1102
    %1704 = vmatprep.subr.bf16.mxu0 %v1107
    %1705 = vmatpush1.bf16.msra.mxu0 %v1106
    %1706 = vmatprep.subr.bf16.mxu0 %v1111
    %1707 = vmatpush1.bf16.msra.mxu0 %v1110
    %1708 = vmatprep.subr.bf16.mxu0 %v1115
    %1709 = vmatpush1.bf16.msra.mxu0 %v1114
    %1710 = vmatprep.subr.bf16.mxu0 %v1119
    %1711 = vmatpush1.bf16.msra.mxu0 %v1118
    %1712 = vmatprep.subr.bf16.mxu0 %v1123
    %1713 = vmatpush1.bf16.msra.mxu0 %v1122
    %1714 = vmatprep.subr.bf16.mxu0 %v1127
    %1715 = vmatpush1.bf16.msra.mxu0 %v1126
    %1716 = vmatprep.subr.bf16.mxu0 %v1131
    %1717 = vmatpush1.bf16.msra.mxu0 %v1130
    %1718 = vmatprep.subr.bf16.mxu0 %v1135
    %1719 = vmatpush1.bf16.msra.mxu0 %v1134
    %1720 = vmatprep.subr.bf16.mxu0 %v1139
    %1721 = vmatpush1.bf16.msra.mxu0 %v1138
    %1722 = vmatprep.subr.bf16.mxu0 %v1143
    %1723 = vmatpush1.bf16.msra.mxu0 %v1142
    %1724 = vmatprep.mubr.bf16.mxu0 %v156
    %1725 = vmatmul.mubr.bf16.gmra.mrb[0].mxu0 %v155
    %v1726 = vpop.f32.mrb[0].mxu0
    %v1727 = vadd.f32 %v399, %v1726
    %v1728 = vpop.f32.mrb[0].mxu0
    %v1729 = vadd.f32 %v403, %v1728
    %v1730 = vpop.f32.mrb[0].mxu0
    %v1731 = vpop.f32.mrb[0].mxu0
    %1732 = vdwg.mxu0
    %1733 = vmatprep.subr.bf16.mxu0 %v1147
    %1734 = vmatpush1.bf16.msra.mxu0 %v1146
    %1735 = vmatprep.subr.bf16.mxu0 %v1151
    %1736 = vmatpush1.bf16.msra.mxu0 %v1150
    %1737 = vmatprep.subr.bf16.mxu0 %v1155
    %1738 = vmatpush1.bf16.msra.mxu0 %v1154
    %1739 = vmatprep.subr.bf16.mxu0 %v1159
    %1740 = vmatpush1.bf16.msra.mxu0 %v1158
    %1741 = vmatprep.subr.bf16.mxu0 %v1163
    %1742 = vmatpush1.bf16.msra.mxu0 %v1162
    %1743 = vmatprep.subr.bf16.mxu0 %v1167
    %1744 = vmatpush1.bf16.msra.mxu0 %v1166
    %1745 = vmatprep.subr.bf16.mxu0 %v1171
    %1746 = vmatpush1.bf16.msra.mxu0 %v1170
    %1747 = vmatprep.subr.bf16.mxu0 %v1175
    %1748 = vmatpush1.bf16.msra.mxu0 %v1174
    %1749 = vmatprep.subr.bf16.mxu0 %v1179
    %1750 = vmatpush1.bf16.msra.mxu0 %v1178
    %1751 = vmatprep.subr.bf16.mxu0 %v1183
    %1752 = vmatpush1.bf16.msra.mxu0 %v1182
    %1753 = vmatprep.subr.bf16.mxu0 %v1187
    %1754 = vmatpush1.bf16.msra.mxu0 %v1186
    %1755 = vmatprep.subr.bf16.mxu0 %v1191
    %1756 = vmatpush1.bf16.msra.mxu0 %v1190
    %1757 = vmatprep.subr.bf16.mxu0 %v1195
    %1758 = vmatpush1.bf16.msra.mxu0 %v1194
    %1759 = vmatprep.subr.bf16.mxu0 %v1199
    %1760 = vmatpush1.bf16.msra.mxu0 %v1198
    %1761 = vmatprep.subr.bf16.mxu0 %v1203
    %1762 = vmatpush1.bf16.msra.mxu0 %v1202
    %1763 = vmatprep.subr.bf16.mxu0 %v1207
    %1764 = vmatpush1.bf16.msra.mxu0 %v1206
    %1765 = vmatprep.mubr.bf16.mxu0 %v158
    %1766 = vmatmul.mubr.bf16.gmra.mrb[0].mxu0 %v157
    %v1767 = vpop.f32.mrb[0].mxu0
    %v1768 = vadd.f32 %v1727, %v1767
    %v1769 = vpop.f32.mrb[0].mxu0
    %v1770 = vadd.f32 %v1729, %v1769
    %v1771 = vpop.f32.mrb[0].mxu0
    %v1772 = vpop.f32.mrb[0].mxu0
    %1773 = vdwg.mxu0
    %1774 = vmatprep.subr.bf16.mxu0 %v1211
    %1775 = vmatpush1.bf16.msra.mxu0 %v1210
    %1776 = vmatprep.subr.bf16.mxu0 %v1215
    %1777 = vmatpush1.bf16.msra.mxu0 %v1214
    %1778 = vmatprep.subr.bf16.mxu0 %v1219
    %1779 = vmatpush1.bf16.msra.mxu0 %v1218
    %1780 = vmatprep.subr.bf16.mxu0 %v1223
    %1781 = vmatpush1.bf16.msra.mxu0 %v1222
    %1782 = vmatprep.subr.bf16.mxu0 %v1227
    %1783 = vmatpush1.bf16.msra.mxu0 %v1226
    %1784 = vmatprep.subr.bf16.mxu0 %v1231
    %1785 = vmatpush1.bf16.msra.mxu0 %v1230
    %1786 = vmatprep.subr.bf16.mxu0 %v1235
    %1787 = vmatpush1.bf16.msra.mxu0 %v1234
    %1788 = vmatprep.subr.bf16.mxu0 %v1239
    %1789 = vmatpush1.bf16.msra.mxu0 %v1238
    %1790 = vmatprep.subr.bf16.mxu0 %v1243
    %1791 = vmatpush1.bf16.msra.mxu0 %v1242
    %1792 = vmatprep.subr.bf16.mxu0 %v1247
    %1793 = vmatpush1.bf16.msra.mxu0 %v1246
    %1794 = vmatprep.subr.bf16.mxu0 %v1251
    %1795 = vmatpush1.bf16.msra.mxu0 %v1250
    %1796 = vmatprep.subr.bf16.mxu0 %v1255
    %1797 = vmatpush1.bf16.msra.mxu0 %v1254
    %1798 = vmatprep.subr.bf16.mxu0 %v1259
    %1799 = vmatpush1.bf16.msra.mxu0 %v1258
    %1800 = vmatprep.subr.bf16.mxu0 %v1263
    %1801 = vmatpush1.bf16.msra.mxu0 %v1262
    %1802 = vmatprep.subr.bf16.mxu0 %v1267
    %1803 = vmatpush1.bf16.msra.mxu0 %v1266
    %1804 = vmatprep.subr.bf16.mxu0 %v1271
    %1805 = vmatpush1.bf16.msra.mxu0 %v1270
    %1806 = vmatprep.mubr.bf16.mxu0 %v160
    %1807 = vmatmul.mubr.bf16.gmra.mrb[0].mxu0 %v159
    %v1808 = vpop.f32.mrb[0].mxu0
    %v1809 = vadd.f32 %v1768, %v1808
    %v1810 = vpop.f32.mrb[0].mxu0
    %v1811 = vadd.f32 %v1770, %v1810
    %v1812 = vpop.f32.mrb[0].mxu0
    %v1813 = vpop.f32.mrb[0].mxu0
    %1814 = vdwg.mxu0
    %1815 = vmatprep.subr.bf16.mxu0 %v1275
    %1816 = vmatpush1.bf16.msra.mxu0 %v1274
    %1817 = vmatprep.subr.bf16.mxu0 %v1279
    %1818 = vmatpush1.bf16.msra.mxu0 %v1278
    %1819 = vmatprep.subr.bf16.mxu0 %v1283
    %1820 = vmatpush1.bf16.msra.mxu0 %v1282
    %1821 = vmatprep.subr.bf16.mxu0 %v1287
    %1822 = vmatpush1.bf16.msra.mxu0 %v1286
    %1823 = vmatprep.subr.bf16.mxu0 %v1291
    %1824 = vmatpush1.bf16.msra.mxu0 %v1290
    %1825 = vmatprep.subr.bf16.mxu0 %v1295
    %1826 = vmatpush1.bf16.msra.mxu0 %v1294
    %1827 = vmatprep.subr.bf16.mxu0 %v1299
    %1828 = vmatpush1.bf16.msra.mxu0 %v1298
    %1829 = vmatprep.subr.bf16.mxu0 %v1303
    %1830 = vmatpush1.bf16.msra.mxu0 %v1302
    %1831 = vmatprep.subr.bf16.mxu0 0
    %1832 = vmatpush1.bf16.msra.mxu0 0
    %1833 = vmatprep.subr.bf16.mxu0 0
    %1834 = vmatpush1.bf16.msra.mxu0 0
    %1835 = vmatprep.subr.bf16.mxu0 0
    %1836 = vmatpush1.bf16.msra.mxu0 0
    %1837 = vmatprep.subr.bf16.mxu0 0
    %1838 = vmatpush1.bf16.msra.mxu0 0
    %1839 = vmatprep.subr.bf16.mxu0 0
    %1840 = vmatpush1.bf16.msra.mxu0 0
    %1841 = vmatprep.subr.bf16.mxu0 0
    %1842 = vmatpush1.bf16.msra.mxu0 0
    %1843 = vmatprep.subr.bf16.mxu0 0
    %1844 = vmatpush1.bf16.msra.mxu0 0
    %1845 = vmatprep.subr.bf16.mxu0 0
    %1846 = vmatpush1.bf16.msra.mxu0 0
    %1847 = vmatprep.mubr.bf16.mxu0 0
    %1848 = vmatmul.mubr.bf16.gmra.mrb[0].mxu0 %v161
    %v1849 = vpop.f32.mrb[0].mxu0
    %v1850 = vadd.f32 %v1809, %v1849
    %v1851 = vpop.f32.mrb[0].mxu0
    %v1852 = vadd.f32 %v1811, %v1851
    %v1853 = vpop.f32.mrb[0].mxu0
    %v1854 = vpop.f32.mrb[0].mxu0
    %1855 = vdwg.mxu0
    %v1856 = vmax.f32 %v1686, 0.0
    %v1857 = vmax.f32 %v1688, 0.0
    %v1858 = vmax.f32 %v1850, 0.0
    %v1859 = vmax.f32 %v1852, 0.0
    %v1860 = vpack.c.bf16 %v1856, %v1856
    %v1861 = vpack.c.bf16 %v1857, %v1857
    %v1862 = vpack.c.bf16 %v1858, %v1858
    %v1863 = vpack.c.bf16 %v1859, %v1859
    %v1864 = vld [vmem:[#allocation8] sm:$0xff]
    %v1865 = vld [vmem:[#allocation8 + $0x8] sm:$0xff]
    %v1866 = vld [vmem:[#allocation8 + $0x10] sm:$0xff]
    %v1867 = vld [vmem:[#allocation8 + $0x18] sm:$0xff]
    %v1868 = vld [vmem:[#allocation8 + $0x20] sm:$0xff]
    %v1869 = vld [vmem:[#allocation8 + $0x28] sm:$0xff]
    %v1870 = vld [vmem:[#allocation8 + $0x30] sm:$0xff]
    %v1871 = vld [vmem:[#allocation8 + $0x38] sm:$0xff]
    %v1872 = vld [vmem:[#allocation8 + $0x40] sm:$0xff]
    %v1873 = vld [vmem:[#allocation8 + $0x48] sm:$0xff]
    %v1874 = vld [vmem:[#allocation8 + $0x50] sm:$0xff]
    %v1875 = vld [vmem:[#allocation8 + $0x58] sm:$0xff]
    %v1876 = vld [vmem:[#allocation8 + $0x60] sm:$0xff]
    %v1877 = vld [vmem:[#allocation8 + $0x68] sm:$0xff]
    %v1878 = vld [vmem:[#allocation8 + $0x70] sm:$0xff]
    %v1879 = vld [vmem:[#allocation8 + $0x78] sm:$0xff]
    %v1880 = vld [vmem:[#allocation8 + $0x80] sm:$0xff]
    %v1881 = vld [vmem:[#allocation8 + $0x88] sm:$0xff]
    %v1882 = vld [vmem:[#allocation8 + $0x90] sm:$0xff]
    %v1883 = vld [vmem:[#allocation8 + $0x98] sm:$0xff]
    %v1884 = vld [vmem:[#allocation8 + $0xa0] sm:$0xff]
    %v1885 = vld [vmem:[#allocation8 + $0xa8] sm:$0xff]
    %v1886 = vld [vmem:[#allocation8 + $0xb0] sm:$0xff]
    %v1887 = vld [vmem:[#allocation8 + $0xb8] sm:$0xff]
    %v1888 = vld [vmem:[#allocation8 + $0xc0] sm:$0xff]
    %v1889 = vld [vmem:[#allocation8 + $0xc8] sm:$0xff]
    %v1890 = vld [vmem:[#allocation8 + $0xd0] sm:$0xff]
    %v1891 = vld [vmem:[#allocation8 + $0xd8] sm:$0xff]
    %v1892 = vld [vmem:[#allocation8 + $0xe0] sm:$0xff]
    %v1893 = vld [vmem:[#allocation8 + $0xe8] sm:$0xff]
    %v1894 = vld [vmem:[#allocation8 + $0xf0] sm:$0xff]
    %v1895 = vld [vmem:[#allocation8 + $0xf8] sm:$0xff]
    %v1896 = vld [vmem:[#allocation8 + $0x100] sm:$0xff]
    %v1897 = vld [vmem:[#allocation8 + $0x108] sm:$0xff]
    %v1898 = vld [vmem:[#allocation8 + $0x110] sm:$0xff]
    %v1899 = vld [vmem:[#allocation8 + $0x118] sm:$0xff]
    %v1900 = vld [vmem:[#allocation8 + $0x120] sm:$0xff]
    %v1901 = vld [vmem:[#allocation8 + $0x128] sm:$0xff]
    %v1902 = vld [vmem:[#allocation8 + $0x130] sm:$0xff]
    %v1903 = vld [vmem:[#allocation8 + $0x138] sm:$0xff]
    %v1904 = vld [vmem:[#allocation8 + $0x140] sm:$0xff]
    %v1905 = vld [vmem:[#allocation8 + $0x148] sm:$0xff]
    %v1906 = vld [vmem:[#allocation8 + $0x150] sm:$0xff]
    %v1907 = vld [vmem:[#allocation8 + $0x158] sm:$0xff]
    %v1908 = vld [vmem:[#allocation8 + $0x160] sm:$0xff]
    %v1909 = vld [vmem:[#allocation8 + $0x168] sm:$0xff]
    %v1910 = vld [vmem:[#allocation8 + $0x170] sm:$0xff]
    %v1911 = vld [vmem:[#allocation8 + $0x178] sm:$0xff]
    %v1912 = vld [vmem:[#allocation8 + $0x180] sm:$0xff]
    %v1913 = vld [vmem:[#allocation8 + $0x188] sm:$0xff]
    %v1914 = vld [vmem:[#allocation8 + $0x190] sm:$0xff]
    %v1915 = vld [vmem:[#allocation8 + $0x198] sm:$0xff]
    %v1916 = vld [vmem:[#allocation8 + $0x1a0] sm:$0xff]
    %v1917 = vld [vmem:[#allocation8 + $0x1a8] sm:$0xff]
    %v1918 = vld [vmem:[#allocation8 + $0x1b0] sm:$0xff]
    %v1919 = vld [vmem:[#allocation8 + $0x1b8] sm:$0xff]
    %v1920 = vld [vmem:[#allocation8 + $0x1c0] sm:$0xff]
    %v1921 = vld [vmem:[#allocation8 + $0x1c8] sm:$0xff]
    %v1922 = vld [vmem:[#allocation8 + $0x1d0] sm:$0xff]
    %v1923 = vld [vmem:[#allocation8 + $0x1d8] sm:$0xff]
    %v1924 = vld [vmem:[#allocation8 + $0x1e0] sm:$0xff]
    %v1925 = vld [vmem:[#allocation8 + $0x1e8] sm:$0xff]
    %v1926 = vld [vmem:[#allocation8 + $0x1f0] sm:$0xff]
    %v1927 = vld [vmem:[#allocation8 + $0x1f8] sm:$0xff]
    %v1928 = vld [vmem:[%s5] sm:$0x3]
    %v1930 = vlaneseq
    %v1931 = vshrl.u32 %v1930, 7
    %v1932 = vsub.s32 0, %v1931
    %v1933 = vrot.slane %v1928, %v1932
    %v1934 = vlaneseq
    %v1935 = vshrl.u32 %v1934, 7
    %v1936 = vsub.s32 1, %v1935
    %v1937 = vrot.slane %v1928, %v1936
    %v2004 = vunpack.c.l.b16 %v1864
    %v2005 = vunpack.c.h.b16 %v1864
    %v2006 = vunpack.c.l.b16 %v1865
    %v2007 = vunpack.c.h.b16 %v1865
    %v2008 = vunpack.c.l.b16 %v1866
    %v2009 = vunpack.c.h.b16 %v1866
    %v2010 = vunpack.c.l.b16 %v1867
    %v2011 = vunpack.c.h.b16 %v1867
    %v2012 = vunpack.c.l.b16 %v1868
    %v2013 = vunpack.c.h.b16 %v1868
    %v2014 = vunpack.c.l.b16 %v1869
    %v2015 = vunpack.c.h.b16 %v1869
    %v2016 = vunpack.c.l.b16 %v1870
    %v2017 = vunpack.c.h.b16 %v1870
    %v2018 = vunpack.c.l.b16 %v1871
    %v2019 = vunpack.c.h.b16 %v1871
    %v2020 = vunpack.c.l.b16 %v1872
    %v2021 = vunpack.c.h.b16 %v1872
    %v2022 = vunpack.c.l.b16 %v1873
    %v2023 = vunpack.c.h.b16 %v1873
    %v2024 = vunpack.c.l.b16 %v1874
    %v2025 = vunpack.c.h.b16 %v1874
    %v2026 = vunpack.c.l.b16 %v1875
    %v2027 = vunpack.c.h.b16 %v1875
    %v2028 = vunpack.c.l.b16 %v1876
    %v2029 = vunpack.c.h.b16 %v1876
    %v2030 = vunpack.c.l.b16 %v1877
    %v2031 = vunpack.c.h.b16 %v1877
    %v2032 = vunpack.c.l.b16 %v1878
    %v2033 = vunpack.c.h.b16 %v1878
    %v2034 = vunpack.c.l.b16 %v1879
    %v2035 = vunpack.c.h.b16 %v1879
    %v2036 = vunpack.c.l.b16 %v1880
    %v2037 = vunpack.c.h.b16 %v1880
    %v2038 = vunpack.c.l.b16 %v1881
    %v2039 = vunpack.c.h.b16 %v1881
    %v2040 = vunpack.c.l.b16 %v1882
    %v2041 = vunpack.c.h.b16 %v1882
    %v2042 = vunpack.c.l.b16 %v1883
    %v2043 = vunpack.c.h.b16 %v1883
    %v2044 = vunpack.c.l.b16 %v1884
    %v2045 = vunpack.c.h.b16 %v1884
    %v2046 = vunpack.c.l.b16 %v1885
    %v2047 = vunpack.c.h.b16 %v1885
    %v2048 = vunpack.c.l.b16 %v1886
    %v2049 = vunpack.c.h.b16 %v1886
    %v2050 = vunpack.c.l.b16 %v1887
    %v2051 = vunpack.c.h.b16 %v1887
    %v2052 = vunpack.c.l.b16 %v1888
    %v2053 = vunpack.c.h.b16 %v1888
    %v2054 = vunpack.c.l.b16 %v1889
    %v2055 = vunpack.c.h.b16 %v1889
    %v2056 = vunpack.c.l.b16 %v1890
    %v2057 = vunpack.c.h.b16 %v1890
    %v2058 = vunpack.c.l.b16 %v1891
    %v2059 = vunpack.c.h.b16 %v1891
    %v2060 = vunpack.c.l.b16 %v1892
    %v2061 = vunpack.c.h.b16 %v1892
    %v2062 = vunpack.c.l.b16 %v1893
    %v2063 = vunpack.c.h.b16 %v1893
    %v2064 = vunpack.c.l.b16 %v1894
    %v2065 = vunpack.c.h.b16 %v1894
    %v2066 = vunpack.c.l.b16 %v1895
    %v2067 = vunpack.c.h.b16 %v1895
    %v2068 = vunpack.c.l.b16 %v1896
    %v2069 = vunpack.c.h.b16 %v1896
    %v2070 = vunpack.c.l.b16 %v1897
    %v2071 = vunpack.c.h.b16 %v1897
    %v2072 = vunpack.c.l.b16 %v1898
    %v2073 = vunpack.c.h.b16 %v1898
    %v2074 = vunpack.c.l.b16 %v1899
    %v2075 = vunpack.c.h.b16 %v1899
    %v2076 = vunpack.c.l.b16 %v1900
    %v2077 = vunpack.c.h.b16 %v1900
    %v2078 = vunpack.c.l.b16 %v1901
    %v2079 = vunpack.c.h.b16 %v1901
    %v2080 = vunpack.c.l.b16 %v1902
    %v2081 = vunpack.c.h.b16 %v1902
    %v2082 = vunpack.c.l.b16 %v1903
    %v2083 = vunpack.c.h.b16 %v1903
    %v2084 = vunpack.c.l.b16 %v1904
    %v2085 = vunpack.c.h.b16 %v1904
    %v2086 = vunpack.c.l.b16 %v1905
    %v2087 = vunpack.c.h.b16 %v1905
    %v2088 = vunpack.c.l.b16 %v1906
    %v2089 = vunpack.c.h.b16 %v1906
    %v2090 = vunpack.c.l.b16 %v1907
    %v2091 = vunpack.c.h.b16 %v1907
    %v2092 = vunpack.c.l.b16 %v1908
    %v2093 = vunpack.c.h.b16 %v1908
    %v2094 = vunpack.c.l.b16 %v1909
    %v2095 = vunpack.c.h.b16 %v1909
    %v2096 = vunpack.c.l.b16 %v1910
    %v2097 = vunpack.c.h.b16 %v1910
    %v2098 = vunpack.c.l.b16 %v1911
    %v2099 = vunpack.c.h.b16 %v1911
    %v2100 = vunpack.c.l.b16 %v1912
    %v2101 = vunpack.c.h.b16 %v1912
    %v2102 = vunpack.c.l.b16 %v1913
    %v2103 = vunpack.c.h.b16 %v1913
    %v2104 = vunpack.c.l.b16 %v1914
    %v2105 = vunpack.c.h.b16 %v1914
    %v2106 = vunpack.c.l.b16 %v1915
    %v2107 = vunpack.c.h.b16 %v1915
    %v2108 = vunpack.c.l.b16 %v1916
    %v2109 = vunpack.c.h.b16 %v1916
    %v2110 = vunpack.c.l.b16 %v1917
    %v2111 = vunpack.c.h.b16 %v1917
    %v2112 = vunpack.c.l.b16 %v1918
    %v2113 = vunpack.c.h.b16 %v1918
    %v2114 = vunpack.c.l.b16 %v1919
    %v2115 = vunpack.c.h.b16 %v1919
    %v2116 = vunpack.c.l.b16 %v1920
    %v2117 = vunpack.c.h.b16 %v1920
    %v2118 = vunpack.c.l.b16 %v1921
    %v2119 = vunpack.c.h.b16 %v1921
    %v2120 = vunpack.c.l.b16 %v1922
    %v2121 = vunpack.c.h.b16 %v1922
    %v2122 = vunpack.c.l.b16 %v1923
    %v2123 = vunpack.c.h.b16 %v1923
    %v2124 = vunpack.c.l.b16 %v1924
    %v2125 = vunpack.c.h.b16 %v1924
    %v2126 = vunpack.c.l.b16 %v1925
    %v2127 = vunpack.c.h.b16 %v1925
    %v2128 = vunpack.c.l.b16 %v1926
    %v2129 = vunpack.c.h.b16 %v1926
    %v2130 = vunpack.c.l.b16 %v1927
    %v2131 = vunpack.c.h.b16 %v1927
    %v2132 = vpack.c.b16 %v2006, %v2004
    %v2133 = vpack.c.b16 %v2007, %v2005
    %v2134 = vpack.c.b16 %v2010, %v2008
    %v2135 = vpack.c.b16 %v2011, %v2009
    %v2136 = vpack.c.b16 %v2014, %v2012
    %v2137 = vpack.c.b16 %v2015, %v2013
    %v2138 = vpack.c.b16 %v2018, %v2016
    %v2139 = vpack.c.b16 %v2019, %v2017
    %v2140 = vpack.c.b16 %v2022, %v2020
    %v2141 = vpack.c.b16 %v2023, %v2021
    %v2142 = vpack.c.b16 %v2026, %v2024
    %v2143 = vpack.c.b16 %v2027, %v2025
    %v2144 = vpack.c.b16 %v2030, %v2028
    %v2145 = vpack.c.b16 %v2031, %v2029
    %v2146 = vpack.c.b16 %v2034, %v2032
    %v2147 = vpack.c.b16 %v2035, %v2033
    %v2148 = vpack.c.b16 %v2038, %v2036
    %v2149 = vpack.c.b16 %v2039, %v2037
    %v2150 = vpack.c.b16 %v2042, %v2040
    %v2151 = vpack.c.b16 %v2043, %v2041
    %v2152 = vpack.c.b16 %v2046, %v2044
    %v2153 = vpack.c.b16 %v2047, %v2045
    %v2154 = vpack.c.b16 %v2050, %v2048
    %v2155 = vpack.c.b16 %v2051, %v2049
    %v2156 = vpack.c.b16 %v2054, %v2052
    %v2157 = vpack.c.b16 %v2055, %v2053
    %v2158 = vpack.c.b16 %v2058, %v2056
    %v2159 = vpack.c.b16 %v2059, %v2057
    %v2160 = vpack.c.b16 %v2062, %v2060
    %v2161 = vpack.c.b16 %v2063, %v2061
    %v2162 = vpack.c.b16 %v2066, %v2064
    %v2163 = vpack.c.b16 %v2067, %v2065
    %v2164 = vpack.c.b16 %v2070, %v2068
    %v2165 = vpack.c.b16 %v2071, %v2069
    %v2166 = vpack.c.b16 %v2074, %v2072
    %v2167 = vpack.c.b16 %v2075, %v2073
    %v2168 = vpack.c.b16 %v2078, %v2076
    %v2169 = vpack.c.b16 %v2079, %v2077
    %v2170 = vpack.c.b16 %v2082, %v2080
    %v2171 = vpack.c.b16 %v2083, %v2081
    %v2172 = vpack.c.b16 %v2086, %v2084
    %v2173 = vpack.c.b16 %v2087, %v2085
    %v2174 = vpack.c.b16 %v2090, %v2088
    %v2175 = vpack.c.b16 %v2091, %v2089
    %v2176 = vpack.c.b16 %v2094, %v2092
    %v2177 = vpack.c.b16 %v2095, %v2093
    %v2178 = vpack.c.b16 %v2098, %v2096
    %v2179 = vpack.c.b16 %v2099, %v2097
    %v2180 = vpack.c.b16 %v2102, %v2100
    %v2181 = vpack.c.b16 %v2103, %v2101
    %v2182 = vpack.c.b16 %v2106, %v2104
    %v2183 = vpack.c.b16 %v2107, %v2105
    %v2184 = vpack.c.b16 %v2110, %v2108
    %v2185 = vpack.c.b16 %v2111, %v2109
    %v2186 = vpack.c.b16 %v2114, %v2112
    %v2187 = vpack.c.b16 %v2115, %v2113
    %v2188 = vpack.c.b16 %v2118, %v2116
    %v2189 = vpack.c.b16 %v2119, %v2117
    %v2190 = vpack.c.b16 %v2122, %v2120
    %v2191 = vpack.c.b16 %v2123, %v2121
    %v2192 = vpack.c.b16 %v2126, %v2124
    %v2193 = vpack.c.b16 %v2127, %v2125
    %v2194 = vpack.c.b16 %v2130, %v2128
    %v2195 = vpack.c.b16 %v2131, %v2129
    %2260 = vmatprep.subr.bf16.mxu0 %v2133
    %2261 = vmatpush1.bf16.msra.mxu0 %v2132
    %2262 = vmatprep.subr.bf16.mxu0 %v2135
    %2263 = vmatpush1.bf16.msra.mxu0 %v2134
    %2264 = vmatprep.subr.bf16.mxu0 %v2137
    %2265 = vmatpush1.bf16.msra.mxu0 %v2136
    %2266 = vmatprep.subr.bf16.mxu0 %v2139
    %2267 = vmatpush1.bf16.msra.mxu0 %v2138
    %2268 = vmatprep.subr.bf16.mxu0 %v2141
    %2269 = vmatpush1.bf16.msra.mxu0 %v2140
    %2270 = vmatprep.subr.bf16.mxu0 %v2143
    %2271 = vmatpush1.bf16.msra.mxu0 %v2142
    %2272 = vmatprep.subr.bf16.mxu0 %v2145
    %2273 = vmatpush1.bf16.msra.mxu0 %v2144
    %2274 = vmatprep.subr.bf16.mxu0 %v2147
    %2275 = vmatpush1.bf16.msra.mxu0 %v2146
    %2276 = vmatprep.subr.bf16.mxu0 %v2149
    %2277 = vmatpush1.bf16.msra.mxu0 %v2148
    %2278 = vmatprep.subr.bf16.mxu0 %v2151
    %2279 = vmatpush1.bf16.msra.mxu0 %v2150
    %2280 = vmatprep.subr.bf16.mxu0 %v2153
    %2281 = vmatpush1.bf16.msra.mxu0 %v2152
    %2282 = vmatprep.subr.bf16.mxu0 %v2155
    %2283 = vmatpush1.bf16.msra.mxu0 %v2154
    %2284 = vmatprep.subr.bf16.mxu0 %v2157
    %2285 = vmatpush1.bf16.msra.mxu0 %v2156
    %2286 = vmatprep.subr.bf16.mxu0 %v2159
    %2287 = vmatpush1.bf16.msra.mxu0 %v2158
    %2288 = vmatprep.subr.bf16.mxu0 %v2161
    %2289 = vmatpush1.bf16.msra.mxu0 %v2160
    %2290 = vmatprep.subr.bf16.mxu0 %v2163
    %2291 = vmatpush1.bf16.msra.mxu0 %v2162
    %2292 = vmatprep.mubr.bf16.mxu0 %v1861
    %2293 = vmatmul.mubr.bf16.gmra.mrb[0].mxu0 %v1860
    %v2294 = vpop.f32.mrb[0].mxu0
    %v2295 = vadd.f32 %v1933, %v2294
    %v2296 = vpop.f32.mrb[0].mxu0
    %v2297 = vadd.f32 %v1937, %v2296
    %v2298 = vpop.f32.mrb[0].mxu0
    %v2299 = vpop.f32.mrb[0].mxu0
    %2300 = vdwg.mxu0
    %2301 = vmatprep.subr.bf16.mxu0 %v2165
    %2302 = vmatpush1.bf16.msra.mxu0 %v2164
    %2303 = vmatprep.subr.bf16.mxu0 %v2167
    %2304 = vmatpush1.bf16.msra.mxu0 %v2166
    %2305 = vmatprep.subr.bf16.mxu0 %v2169
    %2306 = vmatpush1.bf16.msra.mxu0 %v2168
    %2307 = vmatprep.subr.bf16.mxu0 %v2171
    %2308 = vmatpush1.bf16.msra.mxu0 %v2170
    %2309 = vmatprep.subr.bf16.mxu0 %v2173
    %2310 = vmatpush1.bf16.msra.mxu0 %v2172
    %2311 = vmatprep.subr.bf16.mxu0 %v2175
    %2312 = vmatpush1.bf16.msra.mxu0 %v2174
    %2313 = vmatprep.subr.bf16.mxu0 %v2177
    %2314 = vmatpush1.bf16.msra.mxu0 %v2176
    %2315 = vmatprep.subr.bf16.mxu0 %v2179
    %2316 = vmatpush1.bf16.msra.mxu0 %v2178
    %2317 = vmatprep.subr.bf16.mxu0 %v2181
    %2318 = vmatpush1.bf16.msra.mxu0 %v2180
    %2319 = vmatprep.subr.bf16.mxu0 %v2183
    %2320 = vmatpush1.bf16.msra.mxu0 %v2182
    %2321 = vmatprep.subr.bf16.mxu0 %v2185
    %2322 = vmatpush1.bf16.msra.mxu0 %v2184
    %2323 = vmatprep.subr.bf16.mxu0 %v2187
    %2324 = vmatpush1.bf16.msra.mxu0 %v2186
    %2325 = vmatprep.subr.bf16.mxu0 %v2189
    %2326 = vmatpush1.bf16.msra.mxu0 %v2188
    %2327 = vmatprep.subr.bf16.mxu0 %v2191
    %2328 = vmatpush1.bf16.msra.mxu0 %v2190
    %2329 = vmatprep.subr.bf16.mxu0 %v2193
    %2330 = vmatpush1.bf16.msra.mxu0 %v2192
    %2331 = vmatprep.subr.bf16.mxu0 %v2195
    %2332 = vmatpush1.bf16.msra.mxu0 %v2194
    %2333 = vmatprep.mubr.bf16.mxu0 %v1863
    %2334 = vmatmul.mubr.bf16.gmra.mrb[0].mxu0 %v1862
    %v2335 = vpop.f32.mrb[0].mxu0
    %v2336 = vadd.f32 %v2295, %v2335
    %v2337 = vpop.f32.mrb[0].mxu0
    %v2338 = vadd.f32 %v2297, %v2337
    %v2339 = vpop.f32.mrb[0].mxu0
    %v2340 = vpop.f32.mrb[0].mxu0
    %2341 = vdwg.mxu0
    %v2342 = vmax.f32 %v2336, 0.0
    %v2343 = vmax.f32 %v2338, 0.0
    %v2344 = vpack.c.bf16 %v2342, %v2342
    %v2345 = vpack.c.bf16 %v2343, %v2343
    %v2346 = vld [vmem:[#allocation10] sm:$0xff]
    %v2347 = vld [vmem:[#allocation10 + $0x8] sm:$0xff]
    %v2348 = vld [vmem:[#allocation10 + $0x10] sm:$0xff]
    %v2349 = vld [vmem:[#allocation10 + $0x18] sm:$0xff]
    %v2350 = vld [vmem:[#allocation10 + $0x20] sm:$0xff]
    %v2351 = vld [vmem:[#allocation10 + $0x28] sm:$0xff]
    %v2352 = vld [vmem:[#allocation10 + $0x30] sm:$0xff]
    %v2353 = vld [vmem:[#allocation10 + $0x38] sm:$0xff]
    %v2354 = vld [vmem:[#allocation10 + $0x40] sm:$0xff]
    %v2355 = vld [vmem:[#allocation10 + $0x48] sm:$0xff]
    %v2356 = vld [vmem:[#allocation10 + $0x50] sm:$0xff]
    %v2357 = vld [vmem:[#allocation10 + $0x58] sm:$0xff]
    %v2358 = vld [vmem:[#allocation10 + $0x60] sm:$0xff]
    %v2359 = vld [vmem:[#allocation10 + $0x68] sm:$0xff]
    %v2360 = vld [vmem:[#allocation10 + $0x70] sm:$0xff]
    %v2361 = vld [vmem:[#allocation10 + $0x78] sm:$0xff]
    %v2362 = vld [vmem:[#allocation10 + $0x80] sm:$0xff]
    %v2363 = vld [vmem:[#allocation10 + $0x88] sm:$0xff]
    %v2364 = vld [vmem:[#allocation10 + $0x90] sm:$0xff]
    %v2365 = vld [vmem:[#allocation10 + $0x98] sm:$0xff]
    %v2366 = vld [vmem:[#allocation10 + $0xa0] sm:$0xff]
    %v2367 = vld [vmem:[#allocation10 + $0xa8] sm:$0xff]
    %v2368 = vld [vmem:[#allocation10 + $0xb0] sm:$0xff]
    %v2369 = vld [vmem:[#allocation10 + $0xb8] sm:$0xff]
    %v2370 = vld [vmem:[#allocation10 + $0xc0] sm:$0xff]
    %v2371 = vld [vmem:[#allocation10 + $0xc8] sm:$0xff]
    %v2372 = vld [vmem:[#allocation10 + $0xd0] sm:$0xff]
    %v2373 = vld [vmem:[#allocation10 + $0xd8] sm:$0xff]
    %v2374 = vld [vmem:[#allocation10 + $0xe0] sm:$0xff]
    %v2375 = vld [vmem:[#allocation10 + $0xe8] sm:$0xff]
    %v2376 = vld [vmem:[#allocation10 + $0xf0] sm:$0xff]
    %v2377 = vld [vmem:[#allocation10 + $0xf8] sm:$0xff]
    %v2378 = vld [vmem:[%s7] sm:$0x3]
    %v2380 = vlaneseq
    %v2381 = vshrl.u32 %v2380, 7
    %v2382 = vsub.s32 0, %v2381
    %v2383 = vrot.slane %v2378, %v2382
    %v2384 = vlaneseq
    %v2385 = vshrl.u32 %v2384, 7
    %v2386 = vsub.s32 1, %v2385
    %v2387 = vrot.slane %v2378, %v2386
    %v2422 = vunpack.c.l.b16 %v2346
    %v2423 = vunpack.c.h.b16 %v2346
    %v2424 = vunpack.c.l.b16 %v2347
    %v2425 = vunpack.c.h.b16 %v2347
    %v2426 = vunpack.c.l.b16 %v2348
    %v2427 = vunpack.c.h.b16 %v2348
    %v2428 = vunpack.c.l.b16 %v2349
    %v2429 = vunpack.c.h.b16 %v2349
    %v2430 = vunpack.c.l.b16 %v2350
    %v2431 = vunpack.c.h.b16 %v2350
    %v2432 = vunpack.c.l.b16 %v2351
    %v2433 = vunpack.c.h.b16 %v2351
    %v2434 = vunpack.c.l.b16 %v2352
    %v2435 = vunpack.c.h.b16 %v2352
    %v2436 = vunpack.c.l.b16 %v2353
    %v2437 = vunpack.c.h.b16 %v2353
    %v2438 = vunpack.c.l.b16 %v2354
    %v2439 = vunpack.c.h.b16 %v2354
    %v2440 = vunpack.c.l.b16 %v2355
    %v2441 = vunpack.c.h.b16 %v2355
    %v2442 = vunpack.c.l.b16 %v2356
    %v2443 = vunpack.c.h.b16 %v2356
    %v2444 = vunpack.c.l.b16 %v2357
    %v2445 = vunpack.c.h.b16 %v2357
    %v2446 = vunpack.c.l.b16 %v2358
    %v2447 = vunpack.c.h.b16 %v2358
    %v2448 = vunpack.c.l.b16 %v2359
    %v2449 = vunpack.c.h.b16 %v2359
    %v2450 = vunpack.c.l.b16 %v2360
    %v2451 = vunpack.c.h.b16 %v2360
    %v2452 = vunpack.c.l.b16 %v2361
    %v2453 = vunpack.c.h.b16 %v2361
    %v2454 = vunpack.c.l.b16 %v2362
    %v2455 = vunpack.c.h.b16 %v2362
    %v2456 = vunpack.c.l.b16 %v2363
    %v2457 = vunpack.c.h.b16 %v2363
    %v2458 = vunpack.c.l.b16 %v2364
    %v2459 = vunpack.c.h.b16 %v2364
    %v2460 = vunpack.c.l.b16 %v2365
    %v2461 = vunpack.c.h.b16 %v2365
    %v2462 = vunpack.c.l.b16 %v2366
    %v2463 = vunpack.c.h.b16 %v2366
    %v2464 = vunpack.c.l.b16 %v2367
    %v2465 = vunpack.c.h.b16 %v2367
    %v2466 = vunpack.c.l.b16 %v2368
    %v2467 = vunpack.c.h.b16 %v2368
    %v2468 = vunpack.c.l.b16 %v2369
    %v2469 = vunpack.c.h.b16 %v2369
    %v2470 = vunpack.c.l.b16 %v2370
    %v2471 = vunpack.c.h.b16 %v2370
    %v2472 = vunpack.c.l.b16 %v2371
    %v2473 = vunpack.c.h.b16 %v2371
    %v2474 = vunpack.c.l.b16 %v2372
    %v2475 = vunpack.c.h.b16 %v2372
    %v2476 = vunpack.c.l.b16 %v2373
    %v2477 = vunpack.c.h.b16 %v2373
    %v2478 = vunpack.c.l.b16 %v2374
    %v2479 = vunpack.c.h.b16 %v2374
    %v2480 = vunpack.c.l.b16 %v2375
    %v2481 = vunpack.c.h.b16 %v2375
    %v2482 = vunpack.c.l.b16 %v2376
    %v2483 = vunpack.c.h.b16 %v2376
    %v2484 = vunpack.c.l.b16 %v2377
    %v2485 = vunpack.c.h.b16 %v2377
    %v2486 = vpack.c.b16 %v2424, %v2422
    %v2487 = vpack.c.b16 %v2425, %v2423
    %v2488 = vpack.c.b16 %v2428, %v2426
    %v2489 = vpack.c.b16 %v2429, %v2427
    %v2490 = vpack.c.b16 %v2432, %v2430
    %v2491 = vpack.c.b16 %v2433, %v2431
    %v2492 = vpack.c.b16 %v2436, %v2434
    %v2493 = vpack.c.b16 %v2437, %v2435
    %v2494 = vpack.c.b16 %v2440, %v2438
    %v2495 = vpack.c.b16 %v2441, %v2439
    %v2496 = vpack.c.b16 %v2444, %v2442
    %v2497 = vpack.c.b16 %v2445, %v2443
    %v2498 = vpack.c.b16 %v2448, %v2446
    %v2499 = vpack.c.b16 %v2449, %v2447
    %v2500 = vpack.c.b16 %v2452, %v2450
    %v2501 = vpack.c.b16 %v2453, %v2451
    %v2502 = vpack.c.b16 %v2456, %v2454
    %v2503 = vpack.c.b16 %v2457, %v2455
    %v2504 = vpack.c.b16 %v2460, %v2458
    %v2505 = vpack.c.b16 %v2461, %v2459
    %v2506 = vpack.c.b16 %v2464, %v2462
    %v2507 = vpack.c.b16 %v2465, %v2463
    %v2508 = vpack.c.b16 %v2468, %v2466
    %v2509 = vpack.c.b16 %v2469, %v2467
    %v2510 = vpack.c.b16 %v2472, %v2470
    %v2511 = vpack.c.b16 %v2473, %v2471
    %v2512 = vpack.c.b16 %v2476, %v2474
    %v2513 = vpack.c.b16 %v2477, %v2475
    %v2514 = vpack.c.b16 %v2480, %v2478
    %v2515 = vpack.c.b16 %v2481, %v2479
    %v2516 = vpack.c.b16 %v2484, %v2482
    %v2517 = vpack.c.b16 %v2485, %v2483
    %2550 = vmatprep.subr.bf16.mxu0 %v2487
    %2551 = vmatpush1.bf16.msra.mxu0 %v2486
    %2552 = vmatprep.subr.bf16.mxu0 %v2489
    %2553 = vmatpush1.bf16.msra.mxu0 %v2488
    %2554 = vmatprep.subr.bf16.mxu0 %v2491
    %2555 = vmatpush1.bf16.msra.mxu0 %v2490
    %2556 = vmatprep.subr.bf16.mxu0 %v2493
    %2557 = vmatpush1.bf16.msra.mxu0 %v2492
    %2558 = vmatprep.subr.bf16.mxu0 %v2495
    %2559 = vmatpush1.bf16.msra.mxu0 %v2494
    %2560 = vmatprep.subr.bf16.mxu0 %v2497
    %2561 = vmatpush1.bf16.msra.mxu0 %v2496
    %2562 = vmatprep.subr.bf16.mxu0 %v2499
    %2563 = vmatpush1.bf16.msra.mxu0 %v2498
    %2564 = vmatprep.subr.bf16.mxu0 %v2501
    %2565 = vmatpush1.bf16.msra.mxu0 %v2500
    %2566 = vmatprep.subr.bf16.mxu0 %v2503
    %2567 = vmatpush1.bf16.msra.mxu0 %v2502
    %2568 = vmatprep.subr.bf16.mxu0 %v2505
    %2569 = vmatpush1.bf16.msra.mxu0 %v2504
    %2570 = vmatprep.subr.bf16.mxu0 %v2507
    %2571 = vmatpush1.bf16.msra.mxu0 %v2506
    %2572 = vmatprep.subr.bf16.mxu0 %v2509
    %2573 = vmatpush1.bf16.msra.mxu0 %v2508
    %2574 = vmatprep.subr.bf16.mxu0 %v2511
    %2575 = vmatpush1.bf16.msra.mxu0 %v2510
    %2576 = vmatprep.subr.bf16.mxu0 %v2513
    %2577 = vmatpush1.bf16.msra.mxu0 %v2512
    %2578 = vmatprep.subr.bf16.mxu0 %v2515
    %2579 = vmatpush1.bf16.msra.mxu0 %v2514
    %2580 = vmatprep.subr.bf16.mxu0 %v2517
    %2581 = vmatpush1.bf16.msra.mxu0 %v2516
    %2582 = vmatprep.mubr.bf16.mxu0 %v2345
    %2583 = vmatmul.mubr.bf16.gmra.mrb[0].mxu0 %v2344
    %v2584 = vpop.f32.mrb[0].mxu0
    %v2585 = vadd.f32 %v2383, %v2584
    %v2586 = vpop.f32.mrb[0].mxu0
    %v2587 = vadd.f32 %v2387, %v2586
    %v2588 = vpop.f32.mrb[0].mxu0
    %v2589 = vpop.f32.mrb[0].mxu0
    %2590 = vdwg.mxu0
    %v2591 = vmax.f32 %v2585, 0.0
    %v2592 = vmax.f32 %v2587, 0.0
    %v2593 = vpack.c.bf16 %v2591, %v2591
    %v2594 = vpack.c.bf16 %v2592, %v2592
    %v2595 = vld [vmem:[#allocation11] sm:$0xff]
    %v2596 = vld [vmem:[#allocation11 + $0x8] sm:$0xff]
    %v2597 = vld [vmem:[#allocation11 + $0x10] sm:$0xff]
    %v2598 = vld [vmem:[#allocation11 + $0x18] sm:$0xff]
    %v2599 = vld [vmem:[#allocation11 + $0x20] sm:$0xff]
    %v2600 = vld [vmem:[#allocation11 + $0x28] sm:$0xff]
    %v2601 = vld [vmem:[#allocation11 + $0x30] sm:$0xff]
    %v2602 = vld [vmem:[#allocation11 + $0x38] sm:$0xff]
    %v2603 = vld [vmem:[#allocation11 + $0x40] sm:$0xff]
    %v2604 = vld [vmem:[#allocation11 + $0x48] sm:$0xff]
    %v2605 = vld [vmem:[#allocation11 + $0x50] sm:$0xff]
    %v2606 = vld [vmem:[#allocation11 + $0x58] sm:$0xff]
    %v2607 = vld [vmem:[#allocation11 + $0x60] sm:$0xff]
    %v2608 = vld [vmem:[#allocation11 + $0x68] sm:$0xff]
    %v2609 = vld [vmem:[#allocation11 + $0x70] sm:$0xff]
    %v2610 = vld [vmem:[#allocation11 + $0x78] sm:$0xff]
    %v2611 = vld [vmem:[#allocation11 + $0x80] sm:$0xff]
    %v2612 = vld [vmem:[#allocation11 + $0x88] sm:$0xff]
    %v2613 = vld [vmem:[#allocation11 + $0x90] sm:$0xff]
    %v2614 = vld [vmem:[#allocation11 + $0x98] sm:$0xff]
    %v2615 = vld [vmem:[#allocation11 + $0xa0] sm:$0xff]
    %v2616 = vld [vmem:[#allocation11 + $0xa8] sm:$0xff]
    %v2617 = vld [vmem:[#allocation11 + $0xb0] sm:$0xff]
    %v2618 = vld [vmem:[#allocation11 + $0xb8] sm:$0xff]
    %v2619 = vld [vmem:[#allocation11 + $0xc0] sm:$0xff]
    %v2620 = vld [vmem:[#allocation11 + $0xc8] sm:$0xff]
    %v2621 = vld [vmem:[#allocation11 + $0xd0] sm:$0xff]
    %v2622 = vld [vmem:[#allocation11 + $0xd8] sm:$0xff]
    %v2623 = vld [vmem:[#allocation11 + $0xe0] sm:$0xff]
    %v2624 = vld [vmem:[#allocation11 + $0xe8] sm:$0xff]
    %v2625 = vld [vmem:[#allocation11 + $0xf0] sm:$0xff]
    %v2626 = vld [vmem:[#allocation11 + $0xf8] sm:$0xff]
    %v2627 = vld [vmem:[#allocation11 + $0x100] sm:$0xff]
    %v2628 = vld [vmem:[#allocation11 + $0x108] sm:$0xff]
    %v2629 = vld [vmem:[#allocation11 + $0x110] sm:$0xff]
    %v2630 = vld [vmem:[#allocation11 + $0x118] sm:$0xff]
    %v2631 = vld [vmem:[#allocation11 + $0x120] sm:$0xff]
    %v2632 = vld [vmem:[#allocation11 + $0x128] sm:$0xff]
    %v2633 = vld [vmem:[#allocation11 + $0x130] sm:$0xff]
    %v2634 = vld [vmem:[#allocation11 + $0x138] sm:$0xff]
    %v2635 = vld [vmem:[#allocation11 + $0x140] sm:$0xff]
    %v2636 = vld [vmem:[#allocation11 + $0x148] sm:$0xff]
    %v2637 = vld [vmem:[#allocation11 + $0x150] sm:$0xff]
    %v2638 = vld [vmem:[#allocation11 + $0x158] sm:$0xff]
    %v2639 = vld [vmem:[#allocation11 + $0x160] sm:$0xff]
    %v2640 = vld [vmem:[#allocation11 + $0x168] sm:$0xff]
    %v2641 = vld [vmem:[#allocation11 + $0x170] sm:$0xff]
    %v2642 = vld [vmem:[#allocation11 + $0x178] sm:$0xff]
    %v2643 = vld [vmem:[#allocation11 + $0x180] sm:$0xff]
    %v2644 = vld [vmem:[#allocation11 + $0x188] sm:$0xff]
    %v2645 = vld [vmem:[#allocation11 + $0x190] sm:$0xff]
    %v2646 = vld [vmem:[#allocation11 + $0x198] sm:$0xff]
    %v2647 = vld [vmem:[#allocation11 + $0x1a0] sm:$0xff]
    %v2648 = vld [vmem:[#allocation11 + $0x1a8] sm:$0xff]
    %v2649 = vld [vmem:[#allocation11 + $0x1b0] sm:$0xff]
    %v2650 = vld [vmem:[#allocation11 + $0x1b8] sm:$0xff]
    %v2651 = vld [vmem:[#allocation11 + $0x1c0] sm:$0xff]
    %v2652 = vld [vmem:[#allocation11 + $0x1c8] sm:$0xff]
    %v2653 = vld [vmem:[#allocation11 + $0x1d0] sm:$0xff]
    %v2654 = vld [vmem:[#allocation11 + $0x1d8] sm:$0xff]
    %v2655 = vld [vmem:[#allocation11 + $0x1e0] sm:$0xff]
    %v2656 = vld [vmem:[#allocation11 + $0x1e8] sm:$0xff]
    %v2657 = vld [vmem:[#allocation11 + $0x1f0] sm:$0xff]
    %v2658 = vld [vmem:[#allocation11 + $0x1f8] sm:$0xff]
    %v2659 = vld [vmem:[%s9] sm:$0xf]
    %v2661 = vlaneseq
    %v2662 = vshrl.u32 %v2661, 7
    %v2663 = vsub.s32 0, %v2662
    %v2664 = vrot.slane %v2659, %v2663
    %v2665 = vlaneseq
    %v2666 = vshrl.u32 %v2665, 7
    %v2667 = vsub.s32 1, %v2666
    %v2668 = vrot.slane %v2659, %v2667
    %v2669 = vlaneseq
    %v2670 = vshrl.u32 %v2669, 7
    %v2671 = vsub.s32 2, %v2670
    %v2672 = vrot.slane %v2659, %v2671
    %v2673 = vlaneseq
    %v2674 = vshrl.u32 %v2673, 7
    %v2675 = vsub.s32 3, %v2674
    %v2676 = vrot.slane %v2659, %v2675
    %v2745 = vunpack.c.l.b16 %v2595
    %v2746 = vunpack.c.h.b16 %v2595
    %v2747 = vunpack.c.l.b16 %v2596
    %v2748 = vunpack.c.h.b16 %v2596
    %v2749 = vunpack.c.l.b16 %v2597
    %v2750 = vunpack.c.h.b16 %v2597
    %v2751 = vunpack.c.l.b16 %v2598
    %v2752 = vunpack.c.h.b16 %v2598
    %v2753 = vunpack.c.l.b16 %v2599
    %v2754 = vunpack.c.h.b16 %v2599
    %v2755 = vunpack.c.l.b16 %v2600
    %v2756 = vunpack.c.h.b16 %v2600
    %v2757 = vunpack.c.l.b16 %v2601
    %v2758 = vunpack.c.h.b16 %v2601
    %v2759 = vunpack.c.l.b16 %v2602
    %v2760 = vunpack.c.h.b16 %v2602
    %v2761 = vunpack.c.l.b16 %v2603
    %v2762 = vunpack.c.h.b16 %v2603
    %v2763 = vunpack.c.l.b16 %v2604
    %v2764 = vunpack.c.h.b16 %v2604
    %v2765 = vunpack.c.l.b16 %v2605
    %v2766 = vunpack.c.h.b16 %v2605
    %v2767 = vunpack.c.l.b16 %v2606
    %v2768 = vunpack.c.h.b16 %v2606
    %v2769 = vunpack.c.l.b16 %v2607
    %v2770 = vunpack.c.h.b16 %v2607
    %v2771 = vunpack.c.l.b16 %v2608
    %v2772 = vunpack.c.h.b16 %v2608
    %v2773 = vunpack.c.l.b16 %v2609
    %v2774 = vunpack.c.h.b16 %v2609
    %v2775 = vunpack.c.l.b16 %v2610
    %v2776 = vunpack.c.h.b16 %v2610
    %v2777 = vunpack.c.l.b16 %v2611
    %v2778 = vunpack.c.h.b16 %v2611
    %v2779 = vunpack.c.l.b16 %v2612
    %v2780 = vunpack.c.h.b16 %v2612
    %v2781 = vunpack.c.l.b16 %v2613
    %v2782 = vunpack.c.h.b16 %v2613
    %v2783 = vunpack.c.l.b16 %v2614
    %v2784 = vunpack.c.h.b16 %v2614
    %v2785 = vunpack.c.l.b16 %v2615
    %v2786 = vunpack.c.h.b16 %v2615
    %v2787 = vunpack.c.l.b16 %v2616
    %v2788 = vunpack.c.h.b16 %v2616
    %v2789 = vunpack.c.l.b16 %v2617
    %v2790 = vunpack.c.h.b16 %v2617
    %v2791 = vunpack.c.l.b16 %v2618
    %v2792 = vunpack.c.h.b16 %v2618
    %v2793 = vunpack.c.l.b16 %v2619
    %v2794 = vunpack.c.h.b16 %v2619
    %v2795 = vunpack.c.l.b16 %v2620
    %v2796 = vunpack.c.h.b16 %v2620
    %v2797 = vunpack.c.l.b16 %v2621
    %v2798 = vunpack.c.h.b16 %v2621
    %v2799 = vunpack.c.l.b16 %v2622
    %v2800 = vunpack.c.h.b16 %v2622
    %v2801 = vunpack.c.l.b16 %v2623
    %v2802 = vunpack.c.h.b16 %v2623
    %v2803 = vunpack.c.l.b16 %v2624
    %v2804 = vunpack.c.h.b16 %v2624
    %v2805 = vunpack.c.l.b16 %v2625
    %v2806 = vunpack.c.h.b16 %v2625
    %v2807 = vunpack.c.l.b16 %v2626
    %v2808 = vunpack.c.h.b16 %v2626
    %v2809 = vunpack.c.l.b16 %v2627
    %v2810 = vunpack.c.h.b16 %v2627
    %v2811 = vunpack.c.l.b16 %v2628
    %v2812 = vunpack.c.h.b16 %v2628
    %v2813 = vunpack.c.l.b16 %v2629
    %v2814 = vunpack.c.h.b16 %v2629
    %v2815 = vunpack.c.l.b16 %v2630
    %v2816 = vunpack.c.h.b16 %v2630
    %v2817 = vunpack.c.l.b16 %v2631
    %v2818 = vunpack.c.h.b16 %v2631
    %v2819 = vunpack.c.l.b16 %v2632
    %v2820 = vunpack.c.h.b16 %v2632
    %v2821 = vunpack.c.l.b16 %v2633
    %v2822 = vunpack.c.h.b16 %v2633
    %v2823 = vunpack.c.l.b16 %v2634
    %v2824 = vunpack.c.h.b16 %v2634
    %v2825 = vunpack.c.l.b16 %v2635
    %v2826 = vunpack.c.h.b16 %v2635
    %v2827 = vunpack.c.l.b16 %v2636
    %v2828 = vunpack.c.h.b16 %v2636
    %v2829 = vunpack.c.l.b16 %v2637
    %v2830 = vunpack.c.h.b16 %v2637
    %v2831 = vunpack.c.l.b16 %v2638
    %v2832 = vunpack.c.h.b16 %v2638
    %v2833 = vunpack.c.l.b16 %v2639
    %v2834 = vunpack.c.h.b16 %v2639
    %v2835 = vunpack.c.l.b16 %v2640
    %v2836 = vunpack.c.h.b16 %v2640
    %v2837 = vunpack.c.l.b16 %v2641
    %v2838 = vunpack.c.h.b16 %v2641
    %v2839 = vunpack.c.l.b16 %v2642
    %v2840 = vunpack.c.h.b16 %v2642
    %v2841 = vunpack.c.l.b16 %v2643
    %v2842 = vunpack.c.h.b16 %v2643
    %v2843 = vunpack.c.l.b16 %v2644
    %v2844 = vunpack.c.h.b16 %v2644
    %v2845 = vunpack.c.l.b16 %v2645
    %v2846 = vunpack.c.h.b16 %v2645
    %v2847 = vunpack.c.l.b16 %v2646
    %v2848 = vunpack.c.h.b16 %v2646
    %v2849 = vunpack.c.l.b16 %v2647
    %v2850 = vunpack.c.h.b16 %v2647
    %v2851 = vunpack.c.l.b16 %v2648
    %v2852 = vunpack.c.h.b16 %v2648
    %v2853 = vunpack.c.l.b16 %v2649
    %v2854 = vunpack.c.h.b16 %v2649
    %v2855 = vunpack.c.l.b16 %v2650
    %v2856 = vunpack.c.h.b16 %v2650
    %v2857 = vunpack.c.l.b16 %v2651
    %v2858 = vunpack.c.h.b16 %v2651
    %v2859 = vunpack.c.l.b16 %v2652
    %v2860 = vunpack.c.h.b16 %v2652
    %v2861 = vunpack.c.l.b16 %v2653
    %v2862 = vunpack.c.h.b16 %v2653
    %v2863 = vunpack.c.l.b16 %v2654
    %v2864 = vunpack.c.h.b16 %v2654
    %v2865 = vunpack.c.l.b16 %v2655
    %v2866 = vunpack.c.h.b16 %v2655
    %v2867 = vunpack.c.l.b16 %v2656
    %v2868 = vunpack.c.h.b16 %v2656
    %v2869 = vunpack.c.l.b16 %v2657
    %v2870 = vunpack.c.h.b16 %v2657
    %v2871 = vunpack.c.l.b16 %v2658
    %v2872 = vunpack.c.h.b16 %v2658
    %v2873 = vpack.c.b16 %v2749, %v2745
    %v2874 = vpack.c.b16 %v2750, %v2746
    %v2875 = vpack.c.b16 %v2751, %v2747
    %v2876 = vpack.c.b16 %v2752, %v2748
    %v2877 = vpack.c.b16 %v2757, %v2753
    %v2878 = vpack.c.b16 %v2758, %v2754
    %v2879 = vpack.c.b16 %v2759, %v2755
    %v2880 = vpack.c.b16 %v2760, %v2756
    %v2881 = vpack.c.b16 %v2765, %v2761
    %v2882 = vpack.c.b16 %v2766, %v2762
    %v2883 = vpack.c.b16 %v2767, %v2763
    %v2884 = vpack.c.b16 %v2768, %v2764
    %v2885 = vpack.c.b16 %v2773, %v2769
    %v2886 = vpack.c.b16 %v2774, %v2770
    %v2887 = vpack.c.b16 %v2775, %v2771
    %v2888 = vpack.c.b16 %v2776, %v2772
    %v2889 = vpack.c.b16 %v2781, %v2777
    %v2890 = vpack.c.b16 %v2782, %v2778
    %v2891 = vpack.c.b16 %v2783, %v2779
    %v2892 = vpack.c.b16 %v2784, %v2780
    %v2893 = vpack.c.b16 %v2789, %v2785
    %v2894 = vpack.c.b16 %v2790, %v2786
    %v2895 = vpack.c.b16 %v2791, %v2787
    %v2896 = vpack.c.b16 %v2792, %v2788
    %v2897 = vpack.c.b16 %v2797, %v2793
    %v2898 = vpack.c.b16 %v2798, %v2794
    %v2899 = vpack.c.b16 %v2799, %v2795
    %v2900 = vpack.c.b16 %v2800, %v2796
    %v2901 = vpack.c.b16 %v2805, %v2801
    %v2902 = vpack.c.b16 %v2806, %v2802
    %v2903 = vpack.c.b16 %v2807, %v2803
    %v2904 = vpack.c.b16 %v2808, %v2804
    %v2905 = vpack.c.b16 %v2813, %v2809
    %v2906 = vpack.c.b16 %v2814, %v2810
    %v2907 = vpack.c.b16 %v2815, %v2811
    %v2908 = vpack.c.b16 %v2816, %v2812
    %v2909 = vpack.c.b16 %v2821, %v2817
    %v2910 = vpack.c.b16 %v2822, %v2818
    %v2911 = vpack.c.b16 %v2823, %v2819
    %v2912 = vpack.c.b16 %v2824, %v2820
    %v2913 = vpack.c.b16 %v2829, %v2825
    %v2914 = vpack.c.b16 %v2830, %v2826
    %v2915 = vpack.c.b16 %v2831, %v2827
    %v2916 = vpack.c.b16 %v2832, %v2828
    %v2917 = vpack.c.b16 %v2837, %v2833
    %v2918 = vpack.c.b16 %v2838, %v2834
    %v2919 = vpack.c.b16 %v2839, %v2835
    %v2920 = vpack.c.b16 %v2840, %v2836
    %v2921 = vpack.c.b16 %v2845, %v2841
    %v2922 = vpack.c.b16 %v2846, %v2842
    %v2923 = vpack.c.b16 %v2847, %v2843
    %v2924 = vpack.c.b16 %v2848, %v2844
    %v2925 = vpack.c.b16 %v2853, %v2849
    %v2926 = vpack.c.b16 %v2854, %v2850
    %v2927 = vpack.c.b16 %v2855, %v2851
    %v2928 = vpack.c.b16 %v2856, %v2852
    %v2929 = vpack.c.b16 %v2861, %v2857
    %v2930 = vpack.c.b16 %v2862, %v2858
    %v2931 = vpack.c.b16 %v2863, %v2859
    %v2932 = vpack.c.b16 %v2864, %v2860
    %v2933 = vpack.c.b16 %v2869, %v2865
    %v2934 = vpack.c.b16 %v2870, %v2866
    %v2935 = vpack.c.b16 %v2871, %v2867
    %v2936 = vpack.c.b16 %v2872, %v2868
    %3001 = vmatprep.subr.bf16.mxu0 %v2874
    %3002 = vmatpush1.bf16.msra.mxu0 %v2873
    %3003 = vmatprep.subr.bf16.mxu0 %v2878
    %3004 = vmatpush1.bf16.msra.mxu0 %v2877
    %3005 = vmatprep.subr.bf16.mxu0 %v2882
    %3006 = vmatpush1.bf16.msra.mxu0 %v2881
    %3007 = vmatprep.subr.bf16.mxu0 %v2886
    %3008 = vmatpush1.bf16.msra.mxu0 %v2885
    %3009 = vmatprep.subr.bf16.mxu0 %v2890
    %3010 = vmatpush1.bf16.msra.mxu0 %v2889
    %3011 = vmatprep.subr.bf16.mxu0 %v2894
    %3012 = vmatpush1.bf16.msra.mxu0 %v2893
    %3013 = vmatprep.subr.bf16.mxu0 %v2898
    %3014 = vmatpush1.bf16.msra.mxu0 %v2897
    %3015 = vmatprep.subr.bf16.mxu0 %v2902
    %3016 = vmatpush1.bf16.msra.mxu0 %v2901
    %3017 = vmatprep.subr.bf16.mxu0 %v2906
    %3018 = vmatpush1.bf16.msra.mxu0 %v2905
    %3019 = vmatprep.subr.bf16.mxu0 %v2910
    %3020 = vmatpush1.bf16.msra.mxu0 %v2909
    %3021 = vmatprep.subr.bf16.mxu0 %v2914
    %3022 = vmatpush1.bf16.msra.mxu0 %v2913
    %3023 = vmatprep.subr.bf16.mxu0 %v2918
    %3024 = vmatpush1.bf16.msra.mxu0 %v2917
    %3025 = vmatprep.subr.bf16.mxu0 %v2922
    %3026 = vmatpush1.bf16.msra.mxu0 %v2921
    %3027 = vmatprep.subr.bf16.mxu0 %v2926
    %3028 = vmatpush1.bf16.msra.mxu0 %v2925
    %3029 = vmatprep.subr.bf16.mxu0 %v2930
    %3030 = vmatpush1.bf16.msra.mxu0 %v2929
    %3031 = vmatprep.subr.bf16.mxu0 %v2934
    %3032 = vmatpush1.bf16.msra.mxu0 %v2933
    %3033 = vmatprep.mubr.bf16.mxu0 %v2594
    %3034 = vmatmul.mubr.bf16.gmra.mrb[0].mxu0 %v2593
    %v3035 = vpop.f32.mrb[0].mxu0
    %v3036 = vadd.f32 %v2664, %v3035
    %v3037 = vpop.f32.mrb[0].mxu0
    %v3038 = vadd.f32 %v2668, %v3037
    %v3039 = vpop.f32.mrb[0].mxu0
    %v3040 = vpop.f32.mrb[0].mxu0
    %3041 = vdwg.mxu0
    %3042 = vmatprep.subr.bf16.mxu0 %v2876
    %3043 = vmatpush1.bf16.msra.mxu0 %v2875
    %3044 = vmatprep.subr.bf16.mxu0 %v2880
    %3045 = vmatpush1.bf16.msra.mxu0 %v2879
    %3046 = vmatprep.subr.bf16.mxu0 %v2884
    %3047 = vmatpush1.bf16.msra.mxu0 %v2883
    %3048 = vmatprep.subr.bf16.mxu0 %v2888
    %3049 = vmatpush1.bf16.msra.mxu0 %v2887
    %3050 = vmatprep.subr.bf16.mxu0 %v2892
    %3051 = vmatpush1.bf16.msra.mxu0 %v2891
    %3052 = vmatprep.subr.bf16.mxu0 %v2896
    %3053 = vmatpush1.bf16.msra.mxu0 %v2895
    %3054 = vmatprep.subr.bf16.mxu0 %v2900
    %3055 = vmatpush1.bf16.msra.mxu0 %v2899
    %3056 = vmatprep.subr.bf16.mxu0 %v2904
    %3057 = vmatpush1.bf16.msra.mxu0 %v2903
    %3058 = vmatprep.subr.bf16.mxu0 %v2908
    %3059 = vmatpush1.bf16.msra.mxu0 %v2907
    %3060 = vmatprep.subr.bf16.mxu0 %v2912
    %3061 = vmatpush1.bf16.msra.mxu0 %v2911
    %3062 = vmatprep.subr.bf16.mxu0 %v2916
    %3063 = vmatpush1.bf16.msra.mxu0 %v2915
    %3064 = vmatprep.subr.bf16.mxu0 %v2920
    %3065 = vmatpush1.bf16.msra.mxu0 %v2919
    %3066 = vmatprep.subr.bf16.mxu0 %v2924
    %3067 = vmatpush1.bf16.msra.mxu0 %v2923
    %3068 = vmatprep.subr.bf16.mxu0 %v2928
    %3069 = vmatpush1.bf16.msra.mxu0 %v2927
    %3070 = vmatprep.subr.bf16.mxu0 %v2932
    %3071 = vmatpush1.bf16.msra.mxu0 %v2931
    %3072 = vmatprep.subr.bf16.mxu0 %v2936
    %3073 = vmatpush1.bf16.msra.mxu0 %v2935
    %3074 = vmatprep.mubr.bf16.mxu0 %v2594
    %3075 = vmatmul.mubr.bf16.gmra.mrb[0].mxu0 %v2593
    %v3076 = vpop.f32.mrb[0].mxu0
    %v3077 = vadd.f32 %v2672, %v3076
    %v3078 = vpop.f32.mrb[0].mxu0
    %v3079 = vadd.f32 %v2676, %v3078
    %v3080 = vpop.f32.mrb[0].mxu0
    %v3081 = vpop.f32.mrb[0].mxu0
    %3082 = vdwg.mxu0
    %v3083 = vmax.f32 %v3036, 0.0
    %v3084 = vmax.f32 %v3038, 0.0
    %v3085 = vmax.f32 %v3077, 0.0
    %v3086 = vmax.f32 %v3079, 0.0
    %v3087 = vpack.c.bf16 %v3083, %v3083
    %v3088 = vpack.c.bf16 %v3084, %v3084
    %v3089 = vpack.c.bf16 %v3085, %v3085
    %v3090 = vpack.c.bf16 %v3086, %v3086
    %v3091 = vld [vmem:[#allocation13] sm:$0xff]
    %v3092 = vld [vmem:[#allocation13 + $0x8] sm:$0xff]
    %v3093 = vld [vmem:[#allocation13 + $0x10] sm:$0xff]
    %v3094 = vld [vmem:[#allocation13 + $0x18] sm:$0xf]
    %v3095 = vld [vmem:[#allocation13 + $0x1c] sm:$0xff]
    %v3096 = vld [vmem:[#allocation13 + $0x24] sm:$0xff]
    %v3097 = vld [vmem:[#allocation13 + $0x2c] sm:$0xff]
    %v3098 = vld [vmem:[#allocation13 + $0x34] sm:$0xf]
    %v3099 = vld [vmem:[#allocation13 + $0x38] sm:$0xff]
    %v3100 = vld [vmem:[#allocation13 + $0x40] sm:$0xff]
    %v3101 = vld [vmem:[#allocation13 + $0x48] sm:$0xff]
    %v3102 = vld [vmem:[#allocation13 + $0x50] sm:$0xf]
    %v3103 = vld [vmem:[#allocation13 + $0x54] sm:$0xff]
    %v3104 = vld [vmem:[#allocation13 + $0x5c] sm:$0xff]
    %v3105 = vld [vmem:[#allocation13 + $0x64] sm:$0xff]
    %v3106 = vld [vmem:[#allocation13 + $0x6c] sm:$0xf]
    %v3107 = vld [vmem:[#allocation13 + $0x70] sm:$0xff]
    %v3108 = vld [vmem:[#allocation13 + $0x78] sm:$0xff]
    %v3109 = vld [vmem:[#allocation13 + $0x80] sm:$0xff]
    %v3110 = vld [vmem:[#allocation13 + $0x88] sm:$0xf]
    %v3111 = vld [vmem:[#allocation13 + $0x8c] sm:$0xff]
    %v3112 = vld [vmem:[#allocation13 + $0x94] sm:$0xff]
    %v3113 = vld [vmem:[#allocation13 + $0x9c] sm:$0xff]
    %v3114 = vld [vmem:[#allocation13 + $0xa4] sm:$0xf]
    %v3115 = vld [vmem:[#allocation13 + $0xa8] sm:$0xff]
    %v3116 = vld [vmem:[#allocation13 + $0xb0] sm:$0xff]
    %v3117 = vld [vmem:[#allocation13 + $0xb8] sm:$0xff]
    %v3118 = vld [vmem:[#allocation13 + $0xc0] sm:$0xf]
    %v3119 = vld [vmem:[#allocation13 + $0xc4] sm:$0xff]
    %v3120 = vld [vmem:[#allocation13 + $0xcc] sm:$0xff]
    %v3121 = vld [vmem:[#allocation13 + $0xd4] sm:$0xff]
    %v3122 = vld [vmem:[#allocation13 + $0xdc] sm:$0xf]
    %v3123 = vld [vmem:[#allocation13 + $0xe0] sm:$0xff]
    %v3124 = vld [vmem:[#allocation13 + $0xe8] sm:$0xff]
    %v3125 = vld [vmem:[#allocation13 + $0xf0] sm:$0xff]
    %v3126 = vld [vmem:[#allocation13 + $0xf8] sm:$0xf]
    %v3127 = vld [vmem:[#allocation13 + $0xfc] sm:$0xff]
    %v3128 = vld [vmem:[#allocation13 + $0x104] sm:$0xff]
    %v3129 = vld [vmem:[#allocation13 + $0x10c] sm:$0xff]
    %v3130 = vld [vmem:[#allocation13 + $0x114] sm:$0xf]
    %v3131 = vld [vmem:[#allocation13 + $0x118] sm:$0xff]
    %v3132 = vld [vmem:[#allocation13 + $0x120] sm:$0xff]
    %v3133 = vld [vmem:[#allocation13 + $0x128] sm:$0xff]
    %v3134 = vld [vmem:[#allocation13 + $0x130] sm:$0xf]
    %v3135 = vld [vmem:[#allocation13 + $0x134] sm:$0xff]
    %v3136 = vld [vmem:[#allocation13 + $0x13c] sm:$0xff]
    %v3137 = vld [vmem:[#allocation13 + $0x144] sm:$0xff]
    %v3138 = vld [vmem:[#allocation13 + $0x14c] sm:$0xf]
    %v3139 = vld [vmem:[#allocation13 + $0x150] sm:$0xff]
    %v3140 = vld [vmem:[#allocation13 + $0x158] sm:$0xff]
    %v3141 = vld [vmem:[#allocation13 + $0x160] sm:$0xff]
    %v3142 = vld [vmem:[#allocation13 + $0x168] sm:$0xf]
    %v3143 = vld [vmem:[#allocation13 + $0x16c] sm:$0xff]
    %v3144 = vld [vmem:[#allocation13 + $0x174] sm:$0xff]
    %v3145 = vld [vmem:[#allocation13 + $0x17c] sm:$0xff]
    %v3146 = vld [vmem:[#allocation13 + $0x184] sm:$0xf]
    %v3147 = vld [vmem:[#allocation13 + $0x188] sm:$0xff]
    %v3148 = vld [vmem:[#allocation13 + $0x190] sm:$0xff]
    %v3149 = vld [vmem:[#allocation13 + $0x198] sm:$0xff]
    %v3150 = vld [vmem:[#allocation13 + $0x1a0] sm:$0xf]
    %v3151 = vld [vmem:[#allocation13 + $0x1a4] sm:$0xff]
    %v3152 = vld [vmem:[#allocation13 + $0x1ac] sm:$0xff]
    %v3153 = vld [vmem:[#allocation13 + $0x1b4] sm:$0xff]
    %v3154 = vld [vmem:[#allocation13 + $0x1bc] sm:$0xf]
    %v3155 = vld [vmem:[#allocation13 + $0x1c0] sm:$0xff]
    %v3156 = vld [vmem:[#allocation13 + $0x1c8] sm:$0xff]
    %v3157 = vld [vmem:[#allocation13 + $0x1d0] sm:$0xff]
    %v3158 = vld [vmem:[#allocation13 + $0x1d8] sm:$0xf]
    %v3159 = vld [vmem:[#allocation13 + $0x1dc] sm:$0xff]
    %v3160 = vld [vmem:[#allocation13 + $0x1e4] sm:$0xff]
    %v3161 = vld [vmem:[#allocation13 + $0x1ec] sm:$0xff]
    %v3162 = vld [vmem:[#allocation13 + $0x1f4] sm:$0xf]
    %v3163 = vld [vmem:[#allocation13 + $0x1f8] sm:$0xff]
    %v3164 = vld [vmem:[#allocation13 + $0x200] sm:$0xff]
    %v3165 = vld [vmem:[#allocation13 + $0x208] sm:$0xff]
    %v3166 = vld [vmem:[#allocation13 + $0x210] sm:$0xf]
    %v3167 = vld [vmem:[#allocation13 + $0x214] sm:$0xff]
    %v3168 = vld [vmem:[#allocation13 + $0x21c] sm:$0xff]
    %v3169 = vld [vmem:[#allocation13 + $0x224] sm:$0xff]
    %v3170 = vld [vmem:[#allocation13 + $0x22c] sm:$0xf]
    %v3171 = vld [vmem:[#allocation13 + $0x230] sm:$0xff]
    %v3172 = vld [vmem:[#allocation13 + $0x238] sm:$0xff]
    %v3173 = vld [vmem:[#allocation13 + $0x240] sm:$0xff]
    %v3174 = vld [vmem:[#allocation13 + $0x248] sm:$0xf]
    %v3175 = vld [vmem:[#allocation13 + $0x24c] sm:$0xff]
    %v3176 = vld [vmem:[#allocation13 + $0x254] sm:$0xff]
    %v3177 = vld [vmem:[#allocation13 + $0x25c] sm:$0xff]
    %v3178 = vld [vmem:[#allocation13 + $0x264] sm:$0xf]
    %v3179 = vld [vmem:[#allocation13 + $0x268] sm:$0xff]
    %v3180 = vld [vmem:[#allocation13 + $0x270] sm:$0xff]
    %v3181 = vld [vmem:[#allocation13 + $0x278] sm:$0xff]
    %v3182 = vld [vmem:[#allocation13 + $0x280] sm:$0xf]
    %v3183 = vld [vmem:[#allocation13 + $0x284] sm:$0xff]
    %v3184 = vld [vmem:[#allocation13 + $0x28c] sm:$0xff]
    %v3185 = vld [vmem:[#allocation13 + $0x294] sm:$0xff]
    %v3186 = vld [vmem:[#allocation13 + $0x29c] sm:$0xf]
    %v3187 = vld [vmem:[#allocation13 + $0x2a0] sm:$0xff]
    %v3188 = vld [vmem:[#allocation13 + $0x2a8] sm:$0xff]
    %v3189 = vld [vmem:[#allocation13 + $0x2b0] sm:$0xff]
    %v3190 = vld [vmem:[#allocation13 + $0x2b8] sm:$0xf]
    %v3191 = vld [vmem:[#allocation13 + $0x2bc] sm:$0xff]
    %v3192 = vld [vmem:[#allocation13 + $0x2c4] sm:$0xff]
    %v3193 = vld [vmem:[#allocation13 + $0x2cc] sm:$0xff]
    %v3194 = vld [vmem:[#allocation13 + $0x2d4] sm:$0xf]
    %v3195 = vld [vmem:[#allocation13 + $0x2d8] sm:$0xff]
    %v3196 = vld [vmem:[#allocation13 + $0x2e0] sm:$0xff]
    %v3197 = vld [vmem:[#allocation13 + $0x2e8] sm:$0xff]
    %v3198 = vld [vmem:[#allocation13 + $0x2f0] sm:$0xf]
    %v3199 = vld [vmem:[#allocation13 + $0x2f4] sm:$0xff]
    %v3200 = vld [vmem:[#allocation13 + $0x2fc] sm:$0xff]
    %v3201 = vld [vmem:[#allocation13 + $0x304] sm:$0xff]
    %v3202 = vld [vmem:[#allocation13 + $0x30c] sm:$0xf]
    %v3203 = vld [vmem:[#allocation13 + $0x310] sm:$0xff]
    %v3204 = vld [vmem:[#allocation13 + $0x318] sm:$0xff]
    %v3205 = vld [vmem:[#allocation13 + $0x320] sm:$0xff]
    %v3206 = vld [vmem:[#allocation13 + $0x328] sm:$0xf]
    %v3207 = vld [vmem:[#allocation13 + $0x32c] sm:$0xff]
    %v3208 = vld [vmem:[#allocation13 + $0x334] sm:$0xff]
    %v3209 = vld [vmem:[#allocation13 + $0x33c] sm:$0xff]
    %v3210 = vld [vmem:[#allocation13 + $0x344] sm:$0xf]
    %v3211 = vld [vmem:[#allocation13 + $0x348] sm:$0xff]
    %v3212 = vld [vmem:[#allocation13 + $0x350] sm:$0xff]
    %v3213 = vld [vmem:[#allocation13 + $0x358] sm:$0xff]
    %v3214 = vld [vmem:[#allocation13 + $0x360] sm:$0xf]
    %v3215 = vld [vmem:[#allocation13 + $0x364] sm:$0xff]
    %v3216 = vld [vmem:[#allocation13 + $0x36c] sm:$0xff]
    %v3217 = vld [vmem:[#allocation13 + $0x374] sm:$0xff]
    %v3218 = vld [vmem:[#allocation13 + $0x37c] sm:$0xf]
    %v3219 = vld [vmem:[#allocation13 + $0x380] sm:$0xff]
    %v3220 = vld [vmem:[#allocation13 + $0x388] sm:$0xff]
    %v3221 = vld [vmem:[#allocation13 + $0x390] sm:$0xff]
    %v3222 = vld [vmem:[#allocation13 + $0x398] sm:$0xf]
    %v3223 = vld [vmem:[#allocation13 + $0x39c] sm:$0xff]
    %v3224 = vld [vmem:[#allocation13 + $0x3a4] sm:$0xff]
    %v3225 = vld [vmem:[#allocation13 + $0x3ac] sm:$0xff]
    %v3226 = vld [vmem:[#allocation13 + $0x3b4] sm:$0xf]
    %v3227 = vld [vmem:[#allocation13 + $0x3b8] sm:$0xff]
    %v3228 = vld [vmem:[#allocation13 + $0x3c0] sm:$0xff]
    %v3229 = vld [vmem:[#allocation13 + $0x3c8] sm:$0xff]
    %v3230 = vld [vmem:[#allocation13 + $0x3d0] sm:$0xf]
    %v3231 = vld [vmem:[#allocation13 + $0x3d4] sm:$0xff]
    %v3232 = vld [vmem:[#allocation13 + $0x3dc] sm:$0xff]
    %v3233 = vld [vmem:[#allocation13 + $0x3e4] sm:$0xff]
    %v3234 = vld [vmem:[#allocation13 + $0x3ec] sm:$0xf]
    %v3235 = vld [vmem:[#allocation13 + $0x3f0] sm:$0xff]
    %v3236 = vld [vmem:[#allocation13 + $0x3f8] sm:$0xff]
    %v3237 = vld [vmem:[#allocation13 + $0x400] sm:$0xff]
    %v3238 = vld [vmem:[#allocation13 + $0x408] sm:$0xf]
    %v3239 = vld [vmem:[#allocation13 + $0x40c] sm:$0xff]
    %v3240 = vld [vmem:[#allocation13 + $0x414] sm:$0xff]
    %v3241 = vld [vmem:[#allocation13 + $0x41c] sm:$0xff]
    %v3242 = vld [vmem:[#allocation13 + $0x424] sm:$0xf]
    %v3243 = vld [vmem:[#allocation13 + $0x428] sm:$0xff]
    %v3244 = vld [vmem:[#allocation13 + $0x430] sm:$0xff]
    %v3245 = vld [vmem:[#allocation13 + $0x438] sm:$0xff]
    %v3246 = vld [vmem:[#allocation13 + $0x440] sm:$0xf]
    %v3247 = vld [vmem:[#allocation13 + $0x444] sm:$0xff]
    %v3248 = vld [vmem:[#allocation13 + $0x44c] sm:$0xff]
    %v3249 = vld [vmem:[#allocation13 + $0x454] sm:$0xff]
    %v3250 = vld [vmem:[#allocation13 + $0x45c] sm:$0xf]
    %v3251 = vld [vmem:[#allocation13 + $0x460] sm:$0xff]
    %v3252 = vld [vmem:[#allocation13 + $0x468] sm:$0xff]
    %v3253 = vld [vmem:[#allocation13 + $0x470] sm:$0xff]
    %v3254 = vld [vmem:[#allocation13 + $0x478] sm:$0xf]
    %v3255 = vld [vmem:[#allocation13 + $0x47c] sm:$0xff]
    %v3256 = vld [vmem:[#allocation13 + $0x484] sm:$0xff]
    %v3257 = vld [vmem:[#allocation13 + $0x48c] sm:$0xff]
    %v3258 = vld [vmem:[#allocation13 + $0x494] sm:$0xf]
    %v3259 = vld [vmem:[#allocation13 + $0x498] sm:$0xff]
    %v3260 = vld [vmem:[#allocation13 + $0x4a0] sm:$0xff]
    %v3261 = vld [vmem:[#allocation13 + $0x4a8] sm:$0xff]
    %v3262 = vld [vmem:[#allocation13 + $0x4b0] sm:$0xf]
    %v3263 = vld [vmem:[#allocation13 + $0x4b4] sm:$0xff]
    %v3264 = vld [vmem:[#allocation13 + $0x4bc] sm:$0xff]
    %v3265 = vld [vmem:[#allocation13 + $0x4c4] sm:$0xff]
    %v3266 = vld [vmem:[#allocation13 + $0x4cc] sm:$0xf]
    %v3267 = vld [vmem:[#allocation13 + $0x4d0] sm:$0xff]
    %v3268 = vld [vmem:[#allocation13 + $0x4d8] sm:$0xff]
    %v3269 = vld [vmem:[#allocation13 + $0x4e0] sm:$0xff]
    %v3270 = vld [vmem:[#allocation13 + $0x4e8] sm:$0xf]
    %v3271 = vld [vmem:[#allocation13 + $0x4ec] sm:$0xff]
    %v3272 = vld [vmem:[#allocation13 + $0x4f4] sm:$0xff]
    %v3273 = vld [vmem:[#allocation13 + $0x4fc] sm:$0xff]
    %v3274 = vld [vmem:[#allocation13 + $0x504] sm:$0xf]
    %v3275 = vld [vmem:[#allocation13 + $0x508] sm:$0xff]
    %v3276 = vld [vmem:[#allocation13 + $0x510] sm:$0xff]
    %v3277 = vld [vmem:[#allocation13 + $0x518] sm:$0xff]
    %v3278 = vld [vmem:[#allocation13 + $0x520] sm:$0xf]
    %v3279 = vld [vmem:[#allocation13 + $0x524] sm:$0xff]
    %v3280 = vld [vmem:[#allocation13 + $0x52c] sm:$0xff]
    %v3281 = vld [vmem:[#allocation13 + $0x534] sm:$0xff]
    %v3282 = vld [vmem:[#allocation13 + $0x53c] sm:$0xf]
    %v3283 = vld [vmem:[#allocation13 + $0x540] sm:$0xff]
    %v3284 = vld [vmem:[#allocation13 + $0x548] sm:$0xff]
    %v3285 = vld [vmem:[#allocation13 + $0x550] sm:$0xff]
    %v3286 = vld [vmem:[#allocation13 + $0x558] sm:$0xf]
    %v3287 = vld [vmem:[#allocation13 + $0x55c] sm:$0xff]
    %v3288 = vld [vmem:[#allocation13 + $0x564] sm:$0xff]
    %v3289 = vld [vmem:[#allocation13 + $0x56c] sm:$0xff]
    %v3290 = vld [vmem:[#allocation13 + $0x574] sm:$0xf]
    %v3291 = vld [vmem:[#allocation13 + $0x578] sm:$0xff]
    %v3292 = vld [vmem:[#allocation13 + $0x580] sm:$0xff]
    %v3293 = vld [vmem:[#allocation13 + $0x588] sm:$0xff]
    %v3294 = vld [vmem:[#allocation13 + $0x590] sm:$0xf]
    %v3295 = vld [vmem:[#allocation13 + $0x594] sm:$0xff]
    %v3296 = vld [vmem:[#allocation13 + $0x59c] sm:$0xff]
    %v3297 = vld [vmem:[#allocation13 + $0x5a4] sm:$0xff]
    %v3298 = vld [vmem:[#allocation13 + $0x5ac] sm:$0xf]
    %v3299 = vld [vmem:[#allocation13 + $0x5b0] sm:$0xff]
    %v3300 = vld [vmem:[#allocation13 + $0x5b8] sm:$0xff]
    %v3301 = vld [vmem:[#allocation13 + $0x5c0] sm:$0xff]
    %v3302 = vld [vmem:[#allocation13 + $0x5c8] sm:$0xf]
    %v3303 = vld [vmem:[#allocation13 + $0x5cc] sm:$0xff]
    %v3304 = vld [vmem:[#allocation13 + $0x5d4] sm:$0xff]
    %v3305 = vld [vmem:[#allocation13 + $0x5dc] sm:$0xff]
    %v3306 = vld [vmem:[#allocation13 + $0x5e4] sm:$0xf]
    %v3307 = vld [vmem:[#allocation13 + $0x5e8] sm:$0xff]
    %v3308 = vld [vmem:[#allocation13 + $0x5f0] sm:$0xff]
    %v3309 = vld [vmem:[#allocation13 + $0x5f8] sm:$0xff]
    %v3310 = vld [vmem:[#allocation13 + $0x600] sm:$0xf]
    %v3311 = vld [vmem:[#allocation13 + $0x604] sm:$0xff]
    %v3312 = vld [vmem:[#allocation13 + $0x60c] sm:$0xff]
    %v3313 = vld [vmem:[#allocation13 + $0x614] sm:$0xff]
    %v3314 = vld [vmem:[#allocation13 + $0x61c] sm:$0xf]
    %v3315 = vld [vmem:[#allocation13 + $0x620] sm:$0xff]
    %v3316 = vld [vmem:[#allocation13 + $0x628] sm:$0xff]
    %v3317 = vld [vmem:[#allocation13 + $0x630] sm:$0xff]
    %v3318 = vld [vmem:[#allocation13 + $0x638] sm:$0xf]
    %v3319 = vld [vmem:[#allocation13 + $0x63c] sm:$0xff]
    %v3320 = vld [vmem:[#allocation13 + $0x644] sm:$0xff]
    %v3321 = vld [vmem:[#allocation13 + $0x64c] sm:$0xff]
    %v3322 = vld [vmem:[#allocation13 + $0x654] sm:$0xf]
    %v3323 = vld [vmem:[#allocation13 + $0x658] sm:$0xff]
    %v3324 = vld [vmem:[#allocation13 + $0x660] sm:$0xff]
    %v3325 = vld [vmem:[#allocation13 + $0x668] sm:$0xff]
    %v3326 = vld [vmem:[#allocation13 + $0x670] sm:$0xf]
    %v3327 = vld [vmem:[#allocation13 + $0x674] sm:$0xff]
    %v3328 = vld [vmem:[#allocation13 + $0x67c] sm:$0xff]
    %v3329 = vld [vmem:[#allocation13 + $0x684] sm:$0xff]
    %v3330 = vld [vmem:[#allocation13 + $0x68c] sm:$0xf]
    %v3331 = vld [vmem:[#allocation13 + $0x690] sm:$0xff]
    %v3332 = vld [vmem:[#allocation13 + $0x698] sm:$0xff]
    %v3333 = vld [vmem:[#allocation13 + $0x6a0] sm:$0xff]
    %v3334 = vld [vmem:[#allocation13 + $0x6a8] sm:$0xf]
    %v3335 = vld [vmem:[#allocation13 + $0x6ac] sm:$0xff]
    %v3336 = vld [vmem:[#allocation13 + $0x6b4] sm:$0xff]
    %v3337 = vld [vmem:[#allocation13 + $0x6bc] sm:$0xff]
    %v3338 = vld [vmem:[#allocation13 + $0x6c4] sm:$0xf]
    %v3339 = vld [vmem:[#allocation13 + $0x6c8] sm:$0xff]
    %v3340 = vld [vmem:[#allocation13 + $0x6d0] sm:$0xff]
    %v3341 = vld [vmem:[#allocation13 + $0x6d8] sm:$0xff]
    %v3342 = vld [vmem:[#allocation13 + $0x6e0] sm:$0xf]
    %v3343 = vld [vmem:[#allocation13 + $0x6e4] sm:$0xff]
    %v3344 = vld [vmem:[#allocation13 + $0x6ec] sm:$0xff]
    %v3345 = vld [vmem:[#allocation13 + $0x6f4] sm:$0xff]
    %v3346 = vld [vmem:[#allocation13 + $0x6fc] sm:$0xf]
    %v3347 = vld [vmem:[%s11] sm:$0xff]
    %v3349 = vlaneseq
    %v3350 = vshrl.u32 %v3349, 7
    %v3351 = vsub.s32 0, %v3350
    %v3352 = vrot.slane %v3347, %v3351
    %v3353 = vlaneseq
    %v3354 = vshrl.u32 %v3353, 7
    %v3355 = vsub.s32 1, %v3354
    %v3356 = vrot.slane %v3347, %v3355
    %v3357 = vlaneseq
    %v3358 = vshrl.u32 %v3357, 7
    %v3359 = vsub.s32 2, %v3358
    %v3360 = vrot.slane %v3347, %v3359
    %v3361 = vlaneseq
    %v3362 = vshrl.u32 %v3361, 7
    %v3363 = vsub.s32 3, %v3362
    %v3364 = vrot.slane %v3347, %v3363
    %v3365 = vlaneseq
    %v3366 = vshrl.u32 %v3365, 7
    %v3367 = vsub.s32 4, %v3366
    %v3368 = vrot.slane %v3347, %v3367
    %v3369 = vlaneseq
    %v3370 = vshrl.u32 %v3369, 7
    %v3371 = vsub.s32 5, %v3370
    %v3372 = vrot.slane %v3347, %v3371
    %v3373 = vlaneseq
    %v3374 = vshrl.u32 %v3373, 7
    %v3375 = vsub.s32 6, %v3374
    %v3376 = vrot.slane %v3347, %v3375
    %v3640 = vunpack.c.l.b16 %v3091
    %v3641 = vunpack.c.h.b16 %v3091
    %v3642 = vunpack.c.l.b16 %v3092
    %v3643 = vunpack.c.h.b16 %v3092
    %v3644 = vunpack.c.l.b16 %v3093
    %v3645 = vunpack.c.h.b16 %v3093
    %v3646 = vunpack.c.l.b16 %v3094
    %v3647 = vunpack.c.l.b16 %v3095
    %v3648 = vunpack.c.h.b16 %v3095
    %v3649 = vunpack.c.l.b16 %v3096
    %v3650 = vunpack.c.h.b16 %v3096
    %v3651 = vunpack.c.l.b16 %v3097
    %v3652 = vunpack.c.h.b16 %v3097
    %v3653 = vunpack.c.l.b16 %v3098
    %v3654 = vunpack.c.l.b16 %v3099
    %v3655 = vunpack.c.h.b16 %v3099
    %v3656 = vunpack.c.l.b16 %v3100
    %v3657 = vunpack.c.h.b16 %v3100
    %v3658 = vunpack.c.l.b16 %v3101
    %v3659 = vunpack.c.h.b16 %v3101
    %v3660 = vunpack.c.l.b16 %v3102
    %v3661 = vunpack.c.l.b16 %v3103
    %v3662 = vunpack.c.h.b16 %v3103
    %v3663 = vunpack.c.l.b16 %v3104
    %v3664 = vunpack.c.h.b16 %v3104
    %v3665 = vunpack.c.l.b16 %v3105
    %v3666 = vunpack.c.h.b16 %v3105
    %v3667 = vunpack.c.l.b16 %v3106
    %v3668 = vunpack.c.l.b16 %v3107
    %v3669 = vunpack.c.h.b16 %v3107
    %v3670 = vunpack.c.l.b16 %v3108
    %v3671 = vunpack.c.h.b16 %v3108
    %v3672 = vunpack.c.l.b16 %v3109
    %v3673 = vunpack.c.h.b16 %v3109
    %v3674 = vunpack.c.l.b16 %v3110
    %v3675 = vunpack.c.l.b16 %v3111
    %v3676 = vunpack.c.h.b16 %v3111
    %v3677 = vunpack.c.l.b16 %v3112
    %v3678 = vunpack.c.h.b16 %v3112
    %v3679 = vunpack.c.l.b16 %v3113
    %v3680 = vunpack.c.h.b16 %v3113
    %v3681 = vunpack.c.l.b16 %v3114
    %v3682 = vunpack.c.l.b16 %v3115
    %v3683 = vunpack.c.h.b16 %v3115
    %v3684 = vunpack.c.l.b16 %v3116
    %v3685 = vunpack.c.h.b16 %v3116
    %v3686 = vunpack.c.l.b16 %v3117
    %v3687 = vunpack.c.h.b16 %v3117
    %v3688 = vunpack.c.l.b16 %v3118
    %v3689 = vunpack.c.l.b16 %v3119
    %v3690 = vunpack.c.h.b16 %v3119
    %v3691 = vunpack.c.l.b16 %v3120
    %v3692 = vunpack.c.h.b16 %v3120
    %v3693 = vunpack.c.l.b16 %v3121
    %v3694 = vunpack.c.h.b16 %v3121
    %v3695 = vunpack.c.l.b16 %v3122
    %v3696 = vunpack.c.l.b16 %v3123
    %v3697 = vunpack.c.h.b16 %v3123
    %v3698 = vunpack.c.l.b16 %v3124
    %v3699 = vunpack.c.h.b16 %v3124
    %v3700 = vunpack.c.l.b16 %v3125
    %v3701 = vunpack.c.h.b16 %v3125
    %v3702 = vunpack.c.l.b16 %v3126
    %v3703 = vunpack.c.l.b16 %v3127
    %v3704 = vunpack.c.h.b16 %v3127
    %v3705 = vunpack.c.l.b16 %v3128
    %v3706 = vunpack.c.h.b16 %v3128
    %v3707 = vunpack.c.l.b16 %v3129
    %v3708 = vunpack.c.h.b16 %v3129
    %v3709 = vunpack.c.l.b16 %v3130
    %v3710 = vunpack.c.l.b16 %v3131
    %v3711 = vunpack.c.h.b16 %v3131
    %v3712 = vunpack.c.l.b16 %v3132
    %v3713 = vunpack.c.h.b16 %v3132
    %v3714 = vunpack.c.l.b16 %v3133
    %v3715 = vunpack.c.h.b16 %v3133
    %v3716 = vunpack.c.l.b16 %v3134
    %v3717 = vunpack.c.l.b16 %v3135
    %v3718 = vunpack.c.h.b16 %v3135
    %v3719 = vunpack.c.l.b16 %v3136
    %v3720 = vunpack.c.h.b16 %v3136
    %v3721 = vunpack.c.l.b16 %v3137
    %v3722 = vunpack.c.h.b16 %v3137
    %v3723 = vunpack.c.l.b16 %v3138
    %v3724 = vunpack.c.l.b16 %v3139
    %v3725 = vunpack.c.h.b16 %v3139
    %v3726 = vunpack.c.l.b16 %v3140
    %v3727 = vunpack.c.h.b16 %v3140
    %v3728 = vunpack.c.l.b16 %v3141
    %v3729 = vunpack.c.h.b16 %v3141
    %v3730 = vunpack.c.l.b16 %v3142
    %v3731 = vunpack.c.l.b16 %v3143
    %v3732 = vunpack.c.h.b16 %v3143
    %v3733 = vunpack.c.l.b16 %v3144
    %v3734 = vunpack.c.h.b16 %v3144
    %v3735 = vunpack.c.l.b16 %v3145
    %v3736 = vunpack.c.h.b16 %v3145
    %v3737 = vunpack.c.l.b16 %v3146
    %v3738 = vunpack.c.l.b16 %v3147
    %v3739 = vunpack.c.h.b16 %v3147
    %v3740 = vunpack.c.l.b16 %v3148
    %v3741 = vunpack.c.h.b16 %v3148
    %v3742 = vunpack.c.l.b16 %v3149
    %v3743 = vunpack.c.h.b16 %v3149
    %v3744 = vunpack.c.l.b16 %v3150
    %v3745 = vunpack.c.l.b16 %v3151
    %v3746 = vunpack.c.h.b16 %v3151
    %v3747 = vunpack.c.l.b16 %v3152
    %v3748 = vunpack.c.h.b16 %v3152
    %v3749 = vunpack.c.l.b16 %v3153
    %v3750 = vunpack.c.h.b16 %v3153
    %v3751 = vunpack.c.l.b16 %v3154
    %v3752 = vunpack.c.l.b16 %v3155
    %v3753 = vunpack.c.h.b16 %v3155
    %v3754 = vunpack.c.l.b16 %v3156
    %v3755 = vunpack.c.h.b16 %v3156
    %v3756 = vunpack.c.l.b16 %v3157
    %v3757 = vunpack.c.h.b16 %v3157
    %v3758 = vunpack.c.l.b16 %v3158
    %v3759 = vunpack.c.l.b16 %v3159
    %v3760 = vunpack.c.h.b16 %v3159
    %v3761 = vunpack.c.l.b16 %v3160
    %v3762 = vunpack.c.h.b16 %v3160
    %v3763 = vunpack.c.l.b16 %v3161
    %v3764 = vunpack.c.h.b16 %v3161
    %v3765 = vunpack.c.l.b16 %v3162
    %v3766 = vunpack.c.l.b16 %v3163
    %v3767 = vunpack.c.h.b16 %v3163
    %v3768 = vunpack.c.l.b16 %v3164
    %v3769 = vunpack.c.h.b16 %v3164
    %v3770 = vunpack.c.l.b16 %v3165
    %v3771 = vunpack.c.h.b16 %v3165
    %v3772 = vunpack.c.l.b16 %v3166
    %v3773 = vunpack.c.l.b16 %v3167
    %v3774 = vunpack.c.h.b16 %v3167
    %v3775 = vunpack.c.l.b16 %v3168
    %v3776 = vunpack.c.h.b16 %v3168
    %v3777 = vunpack.c.l.b16 %v3169
    %v3778 = vunpack.c.h.b16 %v3169
    %v3779 = vunpack.c.l.b16 %v3170
    %v3780 = vunpack.c.l.b16 %v3171
    %v3781 = vunpack.c.h.b16 %v3171
    %v3782 = vunpack.c.l.b16 %v3172
    %v3783 = vunpack.c.h.b16 %v3172
    %v3784 = vunpack.c.l.b16 %v3173
    %v3785 = vunpack.c.h.b16 %v3173
    %v3786 = vunpack.c.l.b16 %v3174
    %v3787 = vunpack.c.l.b16 %v3175
    %v3788 = vunpack.c.h.b16 %v3175
    %v3789 = vunpack.c.l.b16 %v3176
    %v3790 = vunpack.c.h.b16 %v3176
    %v3791 = vunpack.c.l.b16 %v3177
    %v3792 = vunpack.c.h.b16 %v3177
    %v3793 = vunpack.c.l.b16 %v3178
    %v3794 = vunpack.c.l.b16 %v3179
    %v3795 = vunpack.c.h.b16 %v3179
    %v3796 = vunpack.c.l.b16 %v3180
    %v3797 = vunpack.c.h.b16 %v3180
    %v3798 = vunpack.c.l.b16 %v3181
    %v3799 = vunpack.c.h.b16 %v3181
    %v3800 = vunpack.c.l.b16 %v3182
    %v3801 = vunpack.c.l.b16 %v3183
    %v3802 = vunpack.c.h.b16 %v3183
    %v3803 = vunpack.c.l.b16 %v3184
    %v3804 = vunpack.c.h.b16 %v3184
    %v3805 = vunpack.c.l.b16 %v3185
    %v3806 = vunpack.c.h.b16 %v3185
    %v3807 = vunpack.c.l.b16 %v3186
    %v3808 = vunpack.c.l.b16 %v3187
    %v3809 = vunpack.c.h.b16 %v3187
    %v3810 = vunpack.c.l.b16 %v3188
    %v3811 = vunpack.c.h.b16 %v3188
    %v3812 = vunpack.c.l.b16 %v3189
    %v3813 = vunpack.c.h.b16 %v3189
    %v3814 = vunpack.c.l.b16 %v3190
    %v3815 = vunpack.c.l.b16 %v3191
    %v3816 = vunpack.c.h.b16 %v3191
    %v3817 = vunpack.c.l.b16 %v3192
    %v3818 = vunpack.c.h.b16 %v3192
    %v3819 = vunpack.c.l.b16 %v3193
    %v3820 = vunpack.c.h.b16 %v3193
    %v3821 = vunpack.c.l.b16 %v3194
    %v3822 = vunpack.c.l.b16 %v3195
    %v3823 = vunpack.c.h.b16 %v3195
    %v3824 = vunpack.c.l.b16 %v3196
    %v3825 = vunpack.c.h.b16 %v3196
    %v3826 = vunpack.c.l.b16 %v3197
    %v3827 = vunpack.c.h.b16 %v3197
    %v3828 = vunpack.c.l.b16 %v3198
    %v3829 = vunpack.c.l.b16 %v3199
    %v3830 = vunpack.c.h.b16 %v3199
    %v3831 = vunpack.c.l.b16 %v3200
    %v3832 = vunpack.c.h.b16 %v3200
    %v3833 = vunpack.c.l.b16 %v3201
    %v3834 = vunpack.c.h.b16 %v3201
    %v3835 = vunpack.c.l.b16 %v3202
    %v3836 = vunpack.c.l.b16 %v3203
    %v3837 = vunpack.c.h.b16 %v3203
    %v3838 = vunpack.c.l.b16 %v3204
    %v3839 = vunpack.c.h.b16 %v3204
    %v3840 = vunpack.c.l.b16 %v3205
    %v3841 = vunpack.c.h.b16 %v3205
    %v3842 = vunpack.c.l.b16 %v3206
    %v3843 = vunpack.c.l.b16 %v3207
    %v3844 = vunpack.c.h.b16 %v3207
    %v3845 = vunpack.c.l.b16 %v3208
    %v3846 = vunpack.c.h.b16 %v3208
    %v3847 = vunpack.c.l.b16 %v3209
    %v3848 = vunpack.c.h.b16 %v3209
    %v3849 = vunpack.c.l.b16 %v3210
    %v3850 = vunpack.c.l.b16 %v3211
    %v3851 = vunpack.c.h.b16 %v3211
    %v3852 = vunpack.c.l.b16 %v3212
    %v3853 = vunpack.c.h.b16 %v3212
    %v3854 = vunpack.c.l.b16 %v3213
    %v3855 = vunpack.c.h.b16 %v3213
    %v3856 = vunpack.c.l.b16 %v3214
    %v3857 = vunpack.c.l.b16 %v3215
    %v3858 = vunpack.c.h.b16 %v3215
    %v3859 = vunpack.c.l.b16 %v3216
    %v3860 = vunpack.c.h.b16 %v3216
    %v3861 = vunpack.c.l.b16 %v3217
    %v3862 = vunpack.c.h.b16 %v3217
    %v3863 = vunpack.c.l.b16 %v3218
    %v3864 = vunpack.c.l.b16 %v3219
    %v3865 = vunpack.c.h.b16 %v3219
    %v3866 = vunpack.c.l.b16 %v3220
    %v3867 = vunpack.c.h.b16 %v3220
    %v3868 = vunpack.c.l.b16 %v3221
    %v3869 = vunpack.c.h.b16 %v3221
    %v3870 = vunpack.c.l.b16 %v3222
    %v3871 = vunpack.c.l.b16 %v3223
    %v3872 = vunpack.c.h.b16 %v3223
    %v3873 = vunpack.c.l.b16 %v3224
    %v3874 = vunpack.c.h.b16 %v3224
    %v3875 = vunpack.c.l.b16 %v3225
    %v3876 = vunpack.c.h.b16 %v3225
    %v3877 = vunpack.c.l.b16 %v3226
    %v3878 = vunpack.c.l.b16 %v3227
    %v3879 = vunpack.c.h.b16 %v3227
    %v3880 = vunpack.c.l.b16 %v3228
    %v3881 = vunpack.c.h.b16 %v3228
    %v3882 = vunpack.c.l.b16 %v3229
    %v3883 = vunpack.c.h.b16 %v3229
    %v3884 = vunpack.c.l.b16 %v3230
    %v3885 = vunpack.c.l.b16 %v3231
    %v3886 = vunpack.c.h.b16 %v3231
    %v3887 = vunpack.c.l.b16 %v3232
    %v3888 = vunpack.c.h.b16 %v3232
    %v3889 = vunpack.c.l.b16 %v3233
    %v3890 = vunpack.c.h.b16 %v3233
    %v3891 = vunpack.c.l.b16 %v3234
    %v3892 = vunpack.c.l.b16 %v3235
    %v3893 = vunpack.c.h.b16 %v3235
    %v3894 = vunpack.c.l.b16 %v3236
    %v3895 = vunpack.c.h.b16 %v3236
    %v3896 = vunpack.c.l.b16 %v3237
    %v3897 = vunpack.c.h.b16 %v3237
    %v3898 = vunpack.c.l.b16 %v3238
    %v3899 = vunpack.c.l.b16 %v3239
    %v3900 = vunpack.c.h.b16 %v3239
    %v3901 = vunpack.c.l.b16 %v3240
    %v3902 = vunpack.c.h.b16 %v3240
    %v3903 = vunpack.c.l.b16 %v3241
    %v3904 = vunpack.c.h.b16 %v3241
    %v3905 = vunpack.c.l.b16 %v3242
    %v3906 = vunpack.c.l.b16 %v3243
    %v3907 = vunpack.c.h.b16 %v3243
    %v3908 = vunpack.c.l.b16 %v3244
    %v3909 = vunpack.c.h.b16 %v3244
    %v3910 = vunpack.c.l.b16 %v3245
    %v3911 = vunpack.c.h.b16 %v3245
    %v3912 = vunpack.c.l.b16 %v3246
    %v3913 = vunpack.c.l.b16 %v3247
    %v3914 = vunpack.c.h.b16 %v3247
    %v3915 = vunpack.c.l.b16 %v3248
    %v3916 = vunpack.c.h.b16 %v3248
    %v3917 = vunpack.c.l.b16 %v3249
    %v3918 = vunpack.c.h.b16 %v3249
    %v3919 = vunpack.c.l.b16 %v3250
    %v3920 = vunpack.c.l.b16 %v3251
    %v3921 = vunpack.c.h.b16 %v3251
    %v3922 = vunpack.c.l.b16 %v3252
    %v3923 = vunpack.c.h.b16 %v3252
    %v3924 = vunpack.c.l.b16 %v3253
    %v3925 = vunpack.c.h.b16 %v3253
    %v3926 = vunpack.c.l.b16 %v3254
    %v3927 = vunpack.c.l.b16 %v3255
    %v3928 = vunpack.c.h.b16 %v3255
    %v3929 = vunpack.c.l.b16 %v3256
    %v3930 = vunpack.c.h.b16 %v3256
    %v3931 = vunpack.c.l.b16 %v3257
    %v3932 = vunpack.c.h.b16 %v3257
    %v3933 = vunpack.c.l.b16 %v3258
    %v3934 = vunpack.c.l.b16 %v3259
    %v3935 = vunpack.c.h.b16 %v3259
    %v3936 = vunpack.c.l.b16 %v3260
    %v3937 = vunpack.c.h.b16 %v3260
    %v3938 = vunpack.c.l.b16 %v3261
    %v3939 = vunpack.c.h.b16 %v3261
    %v3940 = vunpack.c.l.b16 %v3262
    %v3941 = vunpack.c.l.b16 %v3263
    %v3942 = vunpack.c.h.b16 %v3263
    %v3943 = vunpack.c.l.b16 %v3264
    %v3944 = vunpack.c.h.b16 %v3264
    %v3945 = vunpack.c.l.b16 %v3265
    %v3946 = vunpack.c.h.b16 %v3265
    %v3947 = vunpack.c.l.b16 %v3266
    %v3948 = vunpack.c.l.b16 %v3267
    %v3949 = vunpack.c.h.b16 %v3267
    %v3950 = vunpack.c.l.b16 %v3268
    %v3951 = vunpack.c.h.b16 %v3268
    %v3952 = vunpack.c.l.b16 %v3269
    %v3953 = vunpack.c.h.b16 %v3269
    %v3954 = vunpack.c.l.b16 %v3270
    %v3955 = vunpack.c.l.b16 %v3271
    %v3956 = vunpack.c.h.b16 %v3271
    %v3957 = vunpack.c.l.b16 %v3272
    %v3958 = vunpack.c.h.b16 %v3272
    %v3959 = vunpack.c.l.b16 %v3273
    %v3960 = vunpack.c.h.b16 %v3273
    %v3961 = vunpack.c.l.b16 %v3274
    %v3962 = vunpack.c.l.b16 %v3275
    %v3963 = vunpack.c.h.b16 %v3275
    %v3964 = vunpack.c.l.b16 %v3276
    %v3965 = vunpack.c.h.b16 %v3276
    %v3966 = vunpack.c.l.b16 %v3277
    %v3967 = vunpack.c.h.b16 %v3277
    %v3968 = vunpack.c.l.b16 %v3278
    %v3969 = vunpack.c.l.b16 %v3279
    %v3970 = vunpack.c.h.b16 %v3279
    %v3971 = vunpack.c.l.b16 %v3280
    %v3972 = vunpack.c.h.b16 %v3280
    %v3973 = vunpack.c.l.b16 %v3281
    %v3974 = vunpack.c.h.b16 %v3281
    %v3975 = vunpack.c.l.b16 %v3282
    %v3976 = vunpack.c.l.b16 %v3283
    %v3977 = vunpack.c.h.b16 %v3283
    %v3978 = vunpack.c.l.b16 %v3284
    %v3979 = vunpack.c.h.b16 %v3284
    %v3980 = vunpack.c.l.b16 %v3285
    %v3981 = vunpack.c.h.b16 %v3285
    %v3982 = vunpack.c.l.b16 %v3286
    %v3983 = vunpack.c.l.b16 %v3287
    %v3984 = vunpack.c.h.b16 %v3287
    %v3985 = vunpack.c.l.b16 %v3288
    %v3986 = vunpack.c.h.b16 %v3288
    %v3987 = vunpack.c.l.b16 %v3289
    %v3988 = vunpack.c.h.b16 %v3289
    %v3989 = vunpack.c.l.b16 %v3290
    %v3990 = vunpack.c.l.b16 %v3291
    %v3991 = vunpack.c.h.b16 %v3291
    %v3992 = vunpack.c.l.b16 %v3292
    %v3993 = vunpack.c.h.b16 %v3292
    %v3994 = vunpack.c.l.b16 %v3293
    %v3995 = vunpack.c.h.b16 %v3293
    %v3996 = vunpack.c.l.b16 %v3294
    %v3997 = vunpack.c.l.b16 %v3295
    %v3998 = vunpack.c.h.b16 %v3295
    %v3999 = vunpack.c.l.b16 %v3296
    %v4000 = vunpack.c.h.b16 %v3296
    %v4001 = vunpack.c.l.b16 %v3297
    %v4002 = vunpack.c.h.b16 %v3297
    %v4003 = vunpack.c.l.b16 %v3298
    %v4004 = vunpack.c.l.b16 %v3299
    %v4005 = vunpack.c.h.b16 %v3299
    %v4006 = vunpack.c.l.b16 %v3300
    %v4007 = vunpack.c.h.b16 %v3300
    %v4008 = vunpack.c.l.b16 %v3301
    %v4009 = vunpack.c.h.b16 %v3301
    %v4010 = vunpack.c.l.b16 %v3302
    %v4011 = vunpack.c.l.b16 %v3303
    %v4012 = vunpack.c.h.b16 %v3303
    %v4013 = vunpack.c.l.b16 %v3304
    %v4014 = vunpack.c.h.b16 %v3304
    %v4015 = vunpack.c.l.b16 %v3305
    %v4016 = vunpack.c.h.b16 %v3305
    %v4017 = vunpack.c.l.b16 %v3306
    %v4018 = vunpack.c.l.b16 %v3307
    %v4019 = vunpack.c.h.b16 %v3307
    %v4020 = vunpack.c.l.b16 %v3308
    %v4021 = vunpack.c.h.b16 %v3308
    %v4022 = vunpack.c.l.b16 %v3309
    %v4023 = vunpack.c.h.b16 %v3309
    %v4024 = vunpack.c.l.b16 %v3310
    %v4025 = vunpack.c.l.b16 %v3311
    %v4026 = vunpack.c.h.b16 %v3311
    %v4027 = vunpack.c.l.b16 %v3312
    %v4028 = vunpack.c.h.b16 %v3312
    %v4029 = vunpack.c.l.b16 %v3313
    %v4030 = vunpack.c.h.b16 %v3313
    %v4031 = vunpack.c.l.b16 %v3314
    %v4032 = vunpack.c.l.b16 %v3315
    %v4033 = vunpack.c.h.b16 %v3315
    %v4034 = vunpack.c.l.b16 %v3316
    %v4035 = vunpack.c.h.b16 %v3316
    %v4036 = vunpack.c.l.b16 %v3317
    %v4037 = vunpack.c.h.b16 %v3317
    %v4038 = vunpack.c.l.b16 %v3318
    %v4039 = vunpack.c.l.b16 %v3319
    %v4040 = vunpack.c.h.b16 %v3319
    %v4041 = vunpack.c.l.b16 %v3320
    %v4042 = vunpack.c.h.b16 %v3320
    %v4043 = vunpack.c.l.b16 %v3321
    %v4044 = vunpack.c.h.b16 %v3321
    %v4045 = vunpack.c.l.b16 %v3322
    %v4046 = vunpack.c.l.b16 %v3323
    %v4047 = vunpack.c.h.b16 %v3323
    %v4048 = vunpack.c.l.b16 %v3324
    %v4049 = vunpack.c.h.b16 %v3324
    %v4050 = vunpack.c.l.b16 %v3325
    %v4051 = vunpack.c.h.b16 %v3325
    %v4052 = vunpack.c.l.b16 %v3326
    %v4053 = vunpack.c.l.b16 %v3327
    %v4054 = vunpack.c.h.b16 %v3327
    %v4055 = vunpack.c.l.b16 %v3328
    %v4056 = vunpack.c.h.b16 %v3328
    %v4057 = vunpack.c.l.b16 %v3329
    %v4058 = vunpack.c.h.b16 %v3329
    %v4059 = vunpack.c.l.b16 %v3330
    %v4060 = vunpack.c.l.b16 %v3331
    %v4061 = vunpack.c.h.b16 %v3331
    %v4062 = vunpack.c.l.b16 %v3332
    %v4063 = vunpack.c.h.b16 %v3332
    %v4064 = vunpack.c.l.b16 %v3333
    %v4065 = vunpack.c.h.b16 %v3333
    %v4066 = vunpack.c.l.b16 %v3334
    %v4067 = vunpack.c.l.b16 %v3335
    %v4068 = vunpack.c.h.b16 %v3335
    %v4069 = vunpack.c.l.b16 %v3336
    %v4070 = vunpack.c.h.b16 %v3336
    %v4071 = vunpack.c.l.b16 %v3337
    %v4072 = vunpack.c.h.b16 %v3337
    %v4073 = vunpack.c.l.b16 %v3338
    %v4074 = vunpack.c.l.b16 %v3339
    %v4075 = vunpack.c.h.b16 %v3339
    %v4076 = vunpack.c.l.b16 %v3340
    %v4077 = vunpack.c.h.b16 %v3340
    %v4078 = vunpack.c.l.b16 %v3341
    %v4079 = vunpack.c.h.b16 %v3341
    %v4080 = vunpack.c.l.b16 %v3342
    %v4081 = vunpack.c.l.b16 %v3343
    %v4082 = vunpack.c.h.b16 %v3343
    %v4083 = vunpack.c.l.b16 %v3344
    %v4084 = vunpack.c.h.b16 %v3344
    %v4085 = vunpack.c.l.b16 %v3345
    %v4086 = vunpack.c.h.b16 %v3345
    %v4087 = vunpack.c.l.b16 %v3346
    %v4088 = vpack.c.b16 %v3647, %v3640
    %v4089 = vpack.c.b16 %v3648, %v3641
    %v4090 = vpack.c.b16 %v3649, %v3642
    %v4091 = vpack.c.b16 %v3650, %v3643
    %v4092 = vpack.c.b16 %v3651, %v3644
    %v4093 = vpack.c.b16 %v3652, %v3645
    %v4094 = vpack.c.b16 %v3653, %v3646
    %v4095 = vpack.c.b16 %v3661, %v3654
    %v4096 = vpack.c.b16 %v3662, %v3655
    %v4097 = vpack.c.b16 %v3663, %v3656
    %v4098 = vpack.c.b16 %v3664, %v3657
    %v4099 = vpack.c.b16 %v3665, %v3658
    %v4100 = vpack.c.b16 %v3666, %v3659
    %v4101 = vpack.c.b16 %v3667, %v3660
    %v4102 = vpack.c.b16 %v3675, %v3668
    %v4103 = vpack.c.b16 %v3676, %v3669
    %v4104 = vpack.c.b16 %v3677, %v3670
    %v4105 = vpack.c.b16 %v3678, %v3671
    %v4106 = vpack.c.b16 %v3679, %v3672
    %v4107 = vpack.c.b16 %v3680, %v3673
    %v4108 = vpack.c.b16 %v3681, %v3674
    %v4109 = vpack.c.b16 %v3689, %v3682
    %v4110 = vpack.c.b16 %v3690, %v3683
    %v4111 = vpack.c.b16 %v3691, %v3684
    %v4112 = vpack.c.b16 %v3692, %v3685
    %v4113 = vpack.c.b16 %v3693, %v3686
    %v4114 = vpack.c.b16 %v3694, %v3687
    %v4115 = vpack.c.b16 %v3695, %v3688
    %v4116 = vpack.c.b16 %v3703, %v3696
    %v4117 = vpack.c.b16 %v3704, %v3697
    %v4118 = vpack.c.b16 %v3705, %v3698
    %v4119 = vpack.c.b16 %v3706, %v3699
    %v4120 = vpack.c.b16 %v3707, %v3700
    %v4121 = vpack.c.b16 %v3708, %v3701
    %v4122 = vpack.c.b16 %v3709, %v3702
    %v4123 = vpack.c.b16 %v3717, %v3710
    %v4124 = vpack.c.b16 %v3718, %v3711
    %v4125 = vpack.c.b16 %v3719, %v3712
    %v4126 = vpack.c.b16 %v3720, %v3713
    %v4127 = vpack.c.b16 %v3721, %v3714
    %v4128 = vpack.c.b16 %v3722, %v3715
    %v4129 = vpack.c.b16 %v3723, %v3716
    %v4130 = vpack.c.b16 %v3731, %v3724
    %v4131 = vpack.c.b16 %v3732, %v3725
    %v4132 = vpack.c.b16 %v3733, %v3726
    %v4133 = vpack.c.b16 %v3734, %v3727
    %v4134 = vpack.c.b16 %v3735, %v3728
    %v4135 = vpack.c.b16 %v3736, %v3729
    %v4136 = vpack.c.b16 %v3737, %v3730
    %v4137 = vpack.c.b16 %v3745, %v3738
    %v4138 = vpack.c.b16 %v3746, %v3739
    %v4139 = vpack.c.b16 %v3747, %v3740
    %v4140 = vpack.c.b16 %v3748, %v3741
    %v4141 = vpack.c.b16 %v3749, %v3742
    %v4142 = vpack.c.b16 %v3750, %v3743
    %v4143 = vpack.c.b16 %v3751, %v3744
    %v4144 = vpack.c.b16 %v3759, %v3752
    %v4145 = vpack.c.b16 %v3760, %v3753
    %v4146 = vpack.c.b16 %v3761, %v3754
    %v4147 = vpack.c.b16 %v3762, %v3755
    %v4148 = vpack.c.b16 %v3763, %v3756
    %v4149 = vpack.c.b16 %v3764, %v3757
    %v4150 = vpack.c.b16 %v3765, %v3758
    %v4151 = vpack.c.b16 %v3773, %v3766
    %v4152 = vpack.c.b16 %v3774, %v3767
    %v4153 = vpack.c.b16 %v3775, %v3768
    %v4154 = vpack.c.b16 %v3776, %v3769
    %v4155 = vpack.c.b16 %v3777, %v3770
    %v4156 = vpack.c.b16 %v3778, %v3771
    %v4157 = vpack.c.b16 %v3779, %v3772
    %v4158 = vpack.c.b16 %v3787, %v3780
    %v4159 = vpack.c.b16 %v3788, %v3781
    %v4160 = vpack.c.b16 %v3789, %v3782
    %v4161 = vpack.c.b16 %v3790, %v3783
    %v4162 = vpack.c.b16 %v3791, %v3784
    %v4163 = vpack.c.b16 %v3792, %v3785
    %v4164 = vpack.c.b16 %v3793, %v3786
    %v4165 = vpack.c.b16 %v3801, %v3794
    %v4166 = vpack.c.b16 %v3802, %v3795
    %v4167 = vpack.c.b16 %v3803, %v3796
    %v4168 = vpack.c.b16 %v3804, %v3797
    %v4169 = vpack.c.b16 %v3805, %v3798
    %v4170 = vpack.c.b16 %v3806, %v3799
    %v4171 = vpack.c.b16 %v3807, %v3800
    %v4172 = vpack.c.b16 %v3815, %v3808
    %v4173 = vpack.c.b16 %v3816, %v3809
    %v4174 = vpack.c.b16 %v3817, %v3810
    %v4175 = vpack.c.b16 %v3818, %v3811
    %v4176 = vpack.c.b16 %v3819, %v3812
    %v4177 = vpack.c.b16 %v3820, %v3813
    %v4178 = vpack.c.b16 %v3821, %v3814
    %v4179 = vpack.c.b16 %v3829, %v3822
    %v4180 = vpack.c.b16 %v3830, %v3823
    %v4181 = vpack.c.b16 %v3831, %v3824
    %v4182 = vpack.c.b16 %v3832, %v3825
    %v4183 = vpack.c.b16 %v3833, %v3826
    %v4184 = vpack.c.b16 %v3834, %v3827
    %v4185 = vpack.c.b16 %v3835, %v3828
    %v4186 = vpack.c.b16 %v3843, %v3836
    %v4187 = vpack.c.b16 %v3844, %v3837
    %v4188 = vpack.c.b16 %v3845, %v3838
    %v4189 = vpack.c.b16 %v3846, %v3839
    %v4190 = vpack.c.b16 %v3847, %v3840
    %v4191 = vpack.c.b16 %v3848, %v3841
    %v4192 = vpack.c.b16 %v3849, %v3842
    %v4193 = vpack.c.b16 %v3857, %v3850
    %v4194 = vpack.c.b16 %v3858, %v3851
    %v4195 = vpack.c.b16 %v3859, %v3852
    %v4196 = vpack.c.b16 %v3860, %v3853
    %v4197 = vpack.c.b16 %v3861, %v3854
    %v4198 = vpack.c.b16 %v3862, %v3855
    %v4199 = vpack.c.b16 %v3863, %v3856
    %v4200 = vpack.c.b16 %v3871, %v3864
    %v4201 = vpack.c.b16 %v3872, %v3865
    %v4202 = vpack.c.b16 %v3873, %v3866
    %v4203 = vpack.c.b16 %v3874, %v3867
    %v4204 = vpack.c.b16 %v3875, %v3868
    %v4205 = vpack.c.b16 %v3876, %v3869
    %v4206 = vpack.c.b16 %v3877, %v3870
    %v4207 = vpack.c.b16 %v3885, %v3878
    %v4208 = vpack.c.b16 %v3886, %v3879
    %v4209 = vpack.c.b16 %v3887, %v3880
    %v4210 = vpack.c.b16 %v3888, %v3881
    %v4211 = vpack.c.b16 %v3889, %v3882
    %v4212 = vpack.c.b16 %v3890, %v3883
    %v4213 = vpack.c.b16 %v3891, %v3884
    %v4214 = vpack.c.b16 %v3899, %v3892
    %v4215 = vpack.c.b16 %v3900, %v3893
    %v4216 = vpack.c.b16 %v3901, %v3894
    %v4217 = vpack.c.b16 %v3902, %v3895
    %v4218 = vpack.c.b16 %v3903, %v3896
    %v4219 = vpack.c.b16 %v3904, %v3897
    %v4220 = vpack.c.b16 %v3905, %v3898
    %v4221 = vpack.c.b16 %v3913, %v3906
    %v4222 = vpack.c.b16 %v3914, %v3907
    %v4223 = vpack.c.b16 %v3915, %v3908
    %v4224 = vpack.c.b16 %v3916, %v3909
    %v4225 = vpack.c.b16 %v3917, %v3910
    %v4226 = vpack.c.b16 %v3918, %v3911
    %v4227 = vpack.c.b16 %v3919, %v3912
    %v4228 = vpack.c.b16 %v3927, %v3920
    %v4229 = vpack.c.b16 %v3928, %v3921
    %v4230 = vpack.c.b16 %v3929, %v3922
    %v4231 = vpack.c.b16 %v3930, %v3923
    %v4232 = vpack.c.b16 %v3931, %v3924
    %v4233 = vpack.c.b16 %v3932, %v3925
    %v4234 = vpack.c.b16 %v3933, %v3926
    %v4235 = vpack.c.b16 %v3941, %v3934
    %v4236 = vpack.c.b16 %v3942, %v3935
    %v4237 = vpack.c.b16 %v3943, %v3936
    %v4238 = vpack.c.b16 %v3944, %v3937
    %v4239 = vpack.c.b16 %v3945, %v3938
    %v4240 = vpack.c.b16 %v3946, %v3939
    %v4241 = vpack.c.b16 %v3947, %v3940
    %v4242 = vpack.c.b16 %v3955, %v3948
    %v4243 = vpack.c.b16 %v3956, %v3949
    %v4244 = vpack.c.b16 %v3957, %v3950
    %v4245 = vpack.c.b16 %v3958, %v3951
    %v4246 = vpack.c.b16 %v3959, %v3952
    %v4247 = vpack.c.b16 %v3960, %v3953
    %v4248 = vpack.c.b16 %v3961, %v3954
    %v4249 = vpack.c.b16 %v3969, %v3962
    %v4250 = vpack.c.b16 %v3970, %v3963
    %v4251 = vpack.c.b16 %v3971, %v3964
    %v4252 = vpack.c.b16 %v3972, %v3965
    %v4253 = vpack.c.b16 %v3973, %v3966
    %v4254 = vpack.c.b16 %v3974, %v3967
    %v4255 = vpack.c.b16 %v3975, %v3968
    %v4256 = vpack.c.b16 %v3983, %v3976
    %v4257 = vpack.c.b16 %v3984, %v3977
    %v4258 = vpack.c.b16 %v3985, %v3978
    %v4259 = vpack.c.b16 %v3986, %v3979
    %v4260 = vpack.c.b16 %v3987, %v3980
    %v4261 = vpack.c.b16 %v3988, %v3981
    %v4262 = vpack.c.b16 %v3989, %v3982
    %v4263 = vpack.c.b16 %v3997, %v3990
    %v4264 = vpack.c.b16 %v3998, %v3991
    %v4265 = vpack.c.b16 %v3999, %v3992
    %v4266 = vpack.c.b16 %v4000, %v3993
    %v4267 = vpack.c.b16 %v4001, %v3994
    %v4268 = vpack.c.b16 %v4002, %v3995
    %v4269 = vpack.c.b16 %v4003, %v3996
    %v4270 = vpack.c.b16 %v4011, %v4004
    %v4271 = vpack.c.b16 %v4012, %v4005
    %v4272 = vpack.c.b16 %v4013, %v4006
    %v4273 = vpack.c.b16 %v4014, %v4007
    %v4274 = vpack.c.b16 %v4015, %v4008
    %v4275 = vpack.c.b16 %v4016, %v4009
    %v4276 = vpack.c.b16 %v4017, %v4010
    %v4277 = vpack.c.b16 %v4025, %v4018
    %v4278 = vpack.c.b16 %v4026, %v4019
    %v4279 = vpack.c.b16 %v4027, %v4020
    %v4280 = vpack.c.b16 %v4028, %v4021
    %v4281 = vpack.c.b16 %v4029, %v4022
    %v4282 = vpack.c.b16 %v4030, %v4023
    %v4283 = vpack.c.b16 %v4031, %v4024
    %v4284 = vpack.c.b16 %v4039, %v4032
    %v4285 = vpack.c.b16 %v4040, %v4033
    %v4286 = vpack.c.b16 %v4041, %v4034
    %v4287 = vpack.c.b16 %v4042, %v4035
    %v4288 = vpack.c.b16 %v4043, %v4036
    %v4289 = vpack.c.b16 %v4044, %v4037
    %v4290 = vpack.c.b16 %v4045, %v4038
    %v4291 = vpack.c.b16 %v4053, %v4046
    %v4292 = vpack.c.b16 %v4054, %v4047
    %v4293 = vpack.c.b16 %v4055, %v4048
    %v4294 = vpack.c.b16 %v4056, %v4049
    %v4295 = vpack.c.b16 %v4057, %v4050
    %v4296 = vpack.c.b16 %v4058, %v4051
    %v4297 = vpack.c.b16 %v4059, %v4052
    %v4298 = vpack.c.b16 %v4067, %v4060
    %v4299 = vpack.c.b16 %v4068, %v4061
    %v4300 = vpack.c.b16 %v4069, %v4062
    %v4301 = vpack.c.b16 %v4070, %v4063
    %v4302 = vpack.c.b16 %v4071, %v4064
    %v4303 = vpack.c.b16 %v4072, %v4065
    %v4304 = vpack.c.b16 %v4073, %v4066
    %v4305 = vpack.c.b16 %v4081, %v4074
    %v4306 = vpack.c.b16 %v4082, %v4075
    %v4307 = vpack.c.b16 %v4083, %v4076
    %v4308 = vpack.c.b16 %v4084, %v4077
    %v4309 = vpack.c.b16 %v4085, %v4078
    %v4310 = vpack.c.b16 %v4086, %v4079
    %v4311 = vpack.c.b16 %v4087, %v4080
    %4536 = vmatprep.subr.bf16.mxu0 %v4089
    %4537 = vmatpush1.bf16.msra.mxu0 %v4088
    %4538 = vmatprep.subr.bf16.mxu0 %v4096
    %4539 = vmatpush1.bf16.msra.mxu0 %v4095
    %4540 = vmatprep.subr.bf16.mxu0 %v4103
    %4541 = vmatpush1.bf16.msra.mxu0 %v4102
    %4542 = vmatprep.subr.bf16.mxu0 %v4110
    %4543 = vmatpush1.bf16.msra.mxu0 %v4109
    %4544 = vmatprep.subr.bf16.mxu0 %v4117
    %4545 = vmatpush1.bf16.msra.mxu0 %v4116
    %4546 = vmatprep.subr.bf16.mxu0 %v4124
    %4547 = vmatpush1.bf16.msra.mxu0 %v4123
    %4548 = vmatprep.subr.bf16.mxu0 %v4131
    %4549 = vmatpush1.bf16.msra.mxu0 %v4130
    %4550 = vmatprep.subr.bf16.mxu0 %v4138
    %4551 = vmatpush1.bf16.msra.mxu0 %v4137
    %4552 = vmatprep.subr.bf16.mxu0 %v4145
    %4553 = vmatpush1.bf16.msra.mxu0 %v4144
    %4554 = vmatprep.subr.bf16.mxu0 %v4152
    %4555 = vmatpush1.bf16.msra.mxu0 %v4151
    %4556 = vmatprep.subr.bf16.mxu0 %v4159
    %4557 = vmatpush1.bf16.msra.mxu0 %v4158
    %4558 = vmatprep.subr.bf16.mxu0 %v4166
    %4559 = vmatpush1.bf16.msra.mxu0 %v4165
    %4560 = vmatprep.subr.bf16.mxu0 %v4173
    %4561 = vmatpush1.bf16.msra.mxu0 %v4172
    %4562 = vmatprep.subr.bf16.mxu0 %v4180
    %4563 = vmatpush1.bf16.msra.mxu0 %v4179
    %4564 = vmatprep.subr.bf16.mxu0 %v4187
    %4565 = vmatpush1.bf16.msra.mxu0 %v4186
    %4566 = vmatprep.subr.bf16.mxu0 %v4194
    %4567 = vmatpush1.bf16.msra.mxu0 %v4193
    %4568 = vmatprep.mubr.bf16.mxu0 %v3088
    %4569 = vmatmul.mubr.bf16.gmra.mrb[0].mxu0 %v3087
    %v4570 = vpop.f32.mrb[0].mxu0
    %v4571 = vadd.f32 %v3352, %v4570
    %v4572 = vpop.f32.mrb[0].mxu0
    %v4573 = vadd.f32 %v3356, %v4572
    %v4574 = vpop.f32.mrb[0].mxu0
    %v4575 = vpop.f32.mrb[0].mxu0
    %4576 = vdwg.mxu0
    %4577 = vmatprep.subr.bf16.mxu0 %v4201
    %4578 = vmatpush1.bf16.msra.mxu0 %v4200
    %4579 = vmatprep.subr.bf16.mxu0 %v4208
    %4580 = vmatpush1.bf16.msra.mxu0 %v4207
    %4581 = vmatprep.subr.bf16.mxu0 %v4215
    %4582 = vmatpush1.bf16.msra.mxu0 %v4214
    %4583 = vmatprep.subr.bf16.mxu0 %v4222
    %4584 = vmatpush1.bf16.msra.mxu0 %v4221
    %4585 = vmatprep.subr.bf16.mxu0 %v4229
    %4586 = vmatpush1.bf16.msra.mxu0 %v4228
    %4587 = vmatprep.subr.bf16.mxu0 %v4236
    %4588 = vmatpush1.bf16.msra.mxu0 %v4235
    %4589 = vmatprep.subr.bf16.mxu0 %v4243
    %4590 = vmatpush1.bf16.msra.mxu0 %v4242
    %4591 = vmatprep.subr.bf16.mxu0 %v4250
    %4592 = vmatpush1.bf16.msra.mxu0 %v4249
    %4593 = vmatprep.subr.bf16.mxu0 %v4257
    %4594 = vmatpush1.bf16.msra.mxu0 %v4256
    %4595 = vmatprep.subr.bf16.mxu0 %v4264
    %4596 = vmatpush1.bf16.msra.mxu0 %v4263
    %4597 = vmatprep.subr.bf16.mxu0 %v4271
    %4598 = vmatpush1.bf16.msra.mxu0 %v4270
    %4599 = vmatprep.subr.bf16.mxu0 %v4278
    %4600 = vmatpush1.bf16.msra.mxu0 %v4277
    %4601 = vmatprep.subr.bf16.mxu0 %v4285
    %4602 = vmatpush1.bf16.msra.mxu0 %v4284
    %4603 = vmatprep.subr.bf16.mxu0 %v4292
    %4604 = vmatpush1.bf16.msra.mxu0 %v4291
    %4605 = vmatprep.subr.bf16.mxu0 %v4299
    %4606 = vmatpush1.bf16.msra.mxu0 %v4298
    %4607 = vmatprep.subr.bf16.mxu0 %v4306
    %4608 = vmatpush1.bf16.msra.mxu0 %v4305
    %4609 = vmatprep.mubr.bf16.mxu0 %v3090
    %4610 = vmatmul.mubr.bf16.gmra.mrb[0].mxu0 %v3089
    %v4611 = vpop.f32.mrb[0].mxu0
    %v4612 = vadd.f32 %v4571, %v4611
    %v4613 = vpop.f32.mrb[0].mxu0
    %v4614 = vadd.f32 %v4573, %v4613
    %v4615 = vpop.f32.mrb[0].mxu0
    %v4616 = vpop.f32.mrb[0].mxu0
    %4617 = vdwg.mxu0
    %4618 = vmatprep.subr.bf16.mxu0 %v4091
    %4619 = vmatpush1.bf16.msra.mxu0 %v4090
    %4620 = vmatprep.subr.bf16.mxu0 %v4098
    %4621 = vmatpush1.bf16.msra.mxu0 %v4097
    %4622 = vmatprep.subr.bf16.mxu0 %v4105
    %4623 = vmatpush1.bf16.msra.mxu0 %v4104
    %4624 = vmatprep.subr.bf16.mxu0 %v4112
    %4625 = vmatpush1.bf16.msra.mxu0 %v4111
    %4626 = vmatprep.subr.bf16.mxu0 %v4119
    %4627 = vmatpush1.bf16.msra.mxu0 %v4118
    %4628 = vmatprep.subr.bf16.mxu0 %v4126
    %4629 = vmatpush1.bf16.msra.mxu0 %v4125
    %4630 = vmatprep.subr.bf16.mxu0 %v4133
    %4631 = vmatpush1.bf16.msra.mxu0 %v4132
    %4632 = vmatprep.subr.bf16.mxu0 %v4140
    %4633 = vmatpush1.bf16.msra.mxu0 %v4139
    %4634 = vmatprep.subr.bf16.mxu0 %v4147
    %4635 = vmatpush1.bf16.msra.mxu0 %v4146
    %4636 = vmatprep.subr.bf16.mxu0 %v4154
    %4637 = vmatpush1.bf16.msra.mxu0 %v4153
    %4638 = vmatprep.subr.bf16.mxu0 %v4161
    %4639 = vmatpush1.bf16.msra.mxu0 %v4160
    %4640 = vmatprep.subr.bf16.mxu0 %v4168
    %4641 = vmatpush1.bf16.msra.mxu0 %v4167
    %4642 = vmatprep.subr.bf16.mxu0 %v4175
    %4643 = vmatpush1.bf16.msra.mxu0 %v4174
    %4644 = vmatprep.subr.bf16.mxu0 %v4182
    %4645 = vmatpush1.bf16.msra.mxu0 %v4181
    %4646 = vmatprep.subr.bf16.mxu0 %v4189
    %4647 = vmatpush1.bf16.msra.mxu0 %v4188
    %4648 = vmatprep.subr.bf16.mxu0 %v4196
    %4649 = vmatpush1.bf16.msra.mxu0 %v4195
    %4650 = vmatprep.mubr.bf16.mxu0 %v3088
    %4651 = vmatmul.mubr.bf16.gmra.mrb[0].mxu0 %v3087
    %v4652 = vpop.f32.mrb[0].mxu0
    %v4653 = vadd.f32 %v3360, %v4652
    %v4654 = vpop.f32.mrb[0].mxu0
    %v4655 = vadd.f32 %v3364, %v4654
    %v4656 = vpop.f32.mrb[0].mxu0
    %v4657 = vpop.f32.mrb[0].mxu0
    %4658 = vdwg.mxu0
    %4659 = vmatprep.subr.bf16.mxu0 %v4203
    %4660 = vmatpush1.bf16.msra.mxu0 %v4202
    %4661 = vmatprep.subr.bf16.mxu0 %v4210
    %4662 = vmatpush1.bf16.msra.mxu0 %v4209
    %4663 = vmatprep.subr.bf16.mxu0 %v4217
    %4664 = vmatpush1.bf16.msra.mxu0 %v4216
    %4665 = vmatprep.subr.bf16.mxu0 %v4224
    %4666 = vmatpush1.bf16.msra.mxu0 %v4223
    %4667 = vmatprep.subr.bf16.mxu0 %v4231
    %4668 = vmatpush1.bf16.msra.mxu0 %v4230
    %4669 = vmatprep.subr.bf16.mxu0 %v4238
    %4670 = vmatpush1.bf16.msra.mxu0 %v4237
    %4671 = vmatprep.subr.bf16.mxu0 %v4245
    %4672 = vmatpush1.bf16.msra.mxu0 %v4244
    %4673 = vmatprep.subr.bf16.mxu0 %v4252
    %4674 = vmatpush1.bf16.msra.mxu0 %v4251
    %4675 = vmatprep.subr.bf16.mxu0 %v4259
    %4676 = vmatpush1.bf16.msra.mxu0 %v4258
    %4677 = vmatprep.subr.bf16.mxu0 %v4266
    %4678 = vmatpush1.bf16.msra.mxu0 %v4265
    %4679 = vmatprep.subr.bf16.mxu0 %v4273
    %4680 = vmatpush1.bf16.msra.mxu0 %v4272
    %4681 = vmatprep.subr.bf16.mxu0 %v4280
    %4682 = vmatpush1.bf16.msra.mxu0 %v4279
    %4683 = vmatprep.subr.bf16.mxu0 %v4287
    %4684 = vmatpush1.bf16.msra.mxu0 %v4286
    %4685 = vmatprep.subr.bf16.mxu0 %v4294
    %4686 = vmatpush1.bf16.msra.mxu0 %v4293
    %4687 = vmatprep.subr.bf16.mxu0 %v4301
    %4688 = vmatpush1.bf16.msra.mxu0 %v4300
    %4689 = vmatprep.subr.bf16.mxu0 %v4308
    %4690 = vmatpush1.bf16.msra.mxu0 %v4307
    %4691 = vmatprep.mubr.bf16.mxu0 %v3090
    %4692 = vmatmul.mubr.bf16.gmra.mrb[0].mxu0 %v3089
    %v4693 = vpop.f32.mrb[0].mxu0
    %v4694 = vadd.f32 %v4653, %v4693
    %v4695 = vpop.f32.mrb[0].mxu0
    %v4696 = vadd.f32 %v4655, %v4695
    %v4697 = vpop.f32.mrb[0].mxu0
    %v4698 = vpop.f32.mrb[0].mxu0
    %4699 = vdwg.mxu0
    %4700 = vmatprep.subr.bf16.mxu0 %v4093
    %4701 = vmatpush1.bf16.msra.mxu0 %v4092
    %4702 = vmatprep.subr.bf16.mxu0 %v4100
    %4703 = vmatpush1.bf16.msra.mxu0 %v4099
    %4704 = vmatprep.subr.bf16.mxu0 %v4107
    %4705 = vmatpush1.bf16.msra.mxu0 %v4106
    %4706 = vmatprep.subr.bf16.mxu0 %v4114
    %4707 = vmatpush1.bf16.msra.mxu0 %v4113
    %4708 = vmatprep.subr.bf16.mxu0 %v4121
    %4709 = vmatpush1.bf16.msra.mxu0 %v4120
    %4710 = vmatprep.subr.bf16.mxu0 %v4128
    %4711 = vmatpush1.bf16.msra.mxu0 %v4127
    %4712 = vmatprep.subr.bf16.mxu0 %v4135
    %4713 = vmatpush1.bf16.msra.mxu0 %v4134
    %4714 = vmatprep.subr.bf16.mxu0 %v4142
    %4715 = vmatpush1.bf16.msra.mxu0 %v4141
    %4716 = vmatprep.subr.bf16.mxu0 %v4149
    %4717 = vmatpush1.bf16.msra.mxu0 %v4148
    %4718 = vmatprep.subr.bf16.mxu0 %v4156
    %4719 = vmatpush1.bf16.msra.mxu0 %v4155
    %4720 = vmatprep.subr.bf16.mxu0 %v4163
    %4721 = vmatpush1.bf16.msra.mxu0 %v4162
    %4722 = vmatprep.subr.bf16.mxu0 %v4170
    %4723 = vmatpush1.bf16.msra.mxu0 %v4169
    %4724 = vmatprep.subr.bf16.mxu0 %v4177
    %4725 = vmatpush1.bf16.msra.mxu0 %v4176
    %4726 = vmatprep.subr.bf16.mxu0 %v4184
    %4727 = vmatpush1.bf16.msra.mxu0 %v4183
    %4728 = vmatprep.subr.bf16.mxu0 %v4191
    %4729 = vmatpush1.bf16.msra.mxu0 %v4190
    %4730 = vmatprep.subr.bf16.mxu0 %v4198
    %4731 = vmatpush1.bf16.msra.mxu0 %v4197
    %4732 = vmatprep.mubr.bf16.mxu0 %v3088
    %4733 = vmatmul.mubr.bf16.gmra.mrb[0].mxu0 %v3087
    %v4734 = vpop.f32.mrb[0].mxu0
    %v4735 = vadd.f32 %v3368, %v4734
    %v4736 = vpop.f32.mrb[0].mxu0
    %v4737 = vadd.f32 %v3372, %v4736
    %v4738 = vpop.f32.mrb[0].mxu0
    %v4739 = vpop.f32.mrb[0].mxu0
    %4740 = vdwg.mxu0
    %4741 = vmatprep.subr.bf16.mxu0 %v4205
    %4742 = vmatpush1.bf16.msra.mxu0 %v4204
    %4743 = vmatprep.subr.bf16.mxu0 %v4212
    %4744 = vmatpush1.bf16.msra.mxu0 %v4211
    %4745 = vmatprep.subr.bf16.mxu0 %v4219
    %4746 = vmatpush1.bf16.msra.mxu0 %v4218
    %4747 = vmatprep.subr.bf16.mxu0 %v4226
    %4748 = vmatpush1.bf16.msra.mxu0 %v4225
    %4749 = vmatprep.subr.bf16.mxu0 %v4233
    %4750 = vmatpush1.bf16.msra.mxu0 %v4232
    %4751 = vmatprep.subr.bf16.mxu0 %v4240
    %4752 = vmatpush1.bf16.msra.mxu0 %v4239
    %4753 = vmatprep.subr.bf16.mxu0 %v4247
    %4754 = vmatpush1.bf16.msra.mxu0 %v4246
    %4755 = vmatprep.subr.bf16.mxu0 %v4254
    %4756 = vmatpush1.bf16.msra.mxu0 %v4253
    %4757 = vmatprep.subr.bf16.mxu0 %v4261
    %4758 = vmatpush1.bf16.msra.mxu0 %v4260
    %4759 = vmatprep.subr.bf16.mxu0 %v4268
    %4760 = vmatpush1.bf16.msra.mxu0 %v4267
    %4761 = vmatprep.subr.bf16.mxu0 %v4275
    %4762 = vmatpush1.bf16.msra.mxu0 %v4274
    %4763 = vmatprep.subr.bf16.mxu0 %v4282
    %4764 = vmatpush1.bf16.msra.mxu0 %v4281
    %4765 = vmatprep.subr.bf16.mxu0 %v4289
    %4766 = vmatpush1.bf16.msra.mxu0 %v4288
    %4767 = vmatprep.subr.bf16.mxu0 %v4296
    %4768 = vmatpush1.bf16.msra.mxu0 %v4295
    %4769 = vmatprep.subr.bf16.mxu0 %v4303
    %4770 = vmatpush1.bf16.msra.mxu0 %v4302
    %4771 = vmatprep.subr.bf16.mxu0 %v4310
    %4772 = vmatpush1.bf16.msra.mxu0 %v4309
    %4773 = vmatprep.mubr.bf16.mxu0 %v3090
    %4774 = vmatmul.mubr.bf16.gmra.mrb[0].mxu0 %v3089
    %v4775 = vpop.f32.mrb[0].mxu0
    %v4776 = vadd.f32 %v4735, %v4775
    %v4777 = vpop.f32.mrb[0].mxu0
    %v4778 = vadd.f32 %v4737, %v4777
    %v4779 = vpop.f32.mrb[0].mxu0
    %v4780 = vpop.f32.mrb[0].mxu0
    %4781 = vdwg.mxu0
    %4782 = vmatprep.subr.bf16.mxu0 0
    %4783 = vmatpush1.bf16.msra.mxu0 %v4094
    %4784 = vmatprep.subr.bf16.mxu0 0
    %4785 = vmatpush1.bf16.msra.mxu0 %v4101
    %4786 = vmatprep.subr.bf16.mxu0 0
    %4787 = vmatpush1.bf16.msra.mxu0 %v4108
    %4788 = vmatprep.subr.bf16.mxu0 0
    %4789 = vmatpush1.bf16.msra.mxu0 %v4115
    %4790 = vmatprep.subr.bf16.mxu0 0
    %4791 = vmatpush1.bf16.msra.mxu0 %v4122
    %4792 = vmatprep.subr.bf16.mxu0 0
    %4793 = vmatpush1.bf16.msra.mxu0 %v4129
    %4794 = vmatprep.subr.bf16.mxu0 0
    %4795 = vmatpush1.bf16.msra.mxu0 %v4136
    %4796 = vmatprep.subr.bf16.mxu0 0
    %4797 = vmatpush1.bf16.msra.mxu0 %v4143
    %4798 = vmatprep.subr.bf16.mxu0 0
    %4799 = vmatpush1.bf16.msra.mxu0 %v4150
    %4800 = vmatprep.subr.bf16.mxu0 0
    %4801 = vmatpush1.bf16.msra.mxu0 %v4157
    %4802 = vmatprep.subr.bf16.mxu0 0
    %4803 = vmatpush1.bf16.msra.mxu0 %v4164
    %4804 = vmatprep.subr.bf16.mxu0 0
    %4805 = vmatpush1.bf16.msra.mxu0 %v4171
    %4806 = vmatprep.subr.bf16.mxu0 0
    %4807 = vmatpush1.bf16.msra.mxu0 %v4178
    %4808 = vmatprep.subr.bf16.mxu0 0
    %4809 = vmatpush1.bf16.msra.mxu0 %v4185
    %4810 = vmatprep.subr.bf16.mxu0 0
    %4811 = vmatpush1.bf16.msra.mxu0 %v4192
    %4812 = vmatprep.subr.bf16.mxu0 0
    %4813 = vmatpush1.bf16.msra.mxu0 %v4199
    %4814 = vmatprep.mubr.bf16.mxu0 %v3088
    %4815 = vmatmul.mubr.bf16.gmra.mrb[0].mxu0 %v3087
    %v4816 = vpop.f32.mrb[0].mxu0
    %v4817 = vadd.f32 %v3376, %v4816
    %v4818 = vpop.f32.mrb[0].mxu0
    %v4819 = vpop.f32.mrb[0].mxu0
    %v4820 = vpop.f32.mrb[0].mxu0
    %4821 = vdwg.mxu0
    %4822 = vmatprep.subr.bf16.mxu0 0
    %4823 = vmatpush1.bf16.msra.mxu0 %v4206
    %4824 = vmatprep.subr.bf16.mxu0 0
    %4825 = vmatpush1.bf16.msra.mxu0 %v4213
    %4826 = vmatprep.subr.bf16.mxu0 0
    %4827 = vmatpush1.bf16.msra.mxu0 %v4220
    %4828 = vmatprep.subr.bf16.mxu0 0
    %4829 = vmatpush1.bf16.msra.mxu0 %v4227
    %4830 = vmatprep.subr.bf16.mxu0 0
    %4831 = vmatpush1.bf16.msra.mxu0 %v4234
    %4832 = vmatprep.subr.bf16.mxu0 0
    %4833 = vmatpush1.bf16.msra.mxu0 %v4241
    %4834 = vmatprep.subr.bf16.mxu0 0
    %4835 = vmatpush1.bf16.msra.mxu0 %v4248
    %4836 = vmatprep.subr.bf16.mxu0 0
    %4837 = vmatpush1.bf16.msra.mxu0 %v4255
    %4838 = vmatprep.subr.bf16.mxu0 0
    %4839 = vmatpush1.bf16.msra.mxu0 %v4262
    %4840 = vmatprep.subr.bf16.mxu0 0
    %4841 = vmatpush1.bf16.msra.mxu0 %v4269
    %4842 = vmatprep.subr.bf16.mxu0 0
    %4843 = vmatpush1.bf16.msra.mxu0 %v4276
    %4844 = vmatprep.subr.bf16.mxu0 0
    %4845 = vmatpush1.bf16.msra.mxu0 %v4283
    %4846 = vmatprep.subr.bf16.mxu0 0
    %4847 = vmatpush1.bf16.msra.mxu0 %v4290
    %4848 = vmatprep.subr.bf16.mxu0 0
    %4849 = vmatpush1.bf16.msra.mxu0 %v4297
    %4850 = vmatprep.subr.bf16.mxu0 0
    %4851 = vmatpush1.bf16.msra.mxu0 %v4304
    %4852 = vmatprep.subr.bf16.mxu0 0
    %4853 = vmatpush1.bf16.msra.mxu0 %v4311
    %4854 = vmatprep.mubr.bf16.mxu0 %v3090
    %4855 = vmatmul.mubr.bf16.gmra.mrb[0].mxu0 %v3089
    %v4856 = vpop.f32.mrb[0].mxu0
    %v4857 = vadd.f32 %v4817, %v4856
    %v4858 = vpop.f32.mrb[0].mxu0
    %v4859 = vpop.f32.mrb[0].mxu0
    %v4860 = vpop.f32.mrb[0].mxu0
    %4861 = vdwg.mxu0
    %4862 = vst [vmem:[#allocation14] sm:$0xff] %v4612
    %4863 = vst [vmem:[#allocation14 + $0x8] sm:$0xff] %v4614
    %4864 = vst [vmem:[#allocation14 + $0x10] sm:$0xff] %v4694
    %4865 = vst [vmem:[#allocation14 + $0x18] sm:$0xff] %v4696
    %4866 = vst [vmem:[#allocation14 + $0x20] sm:$0xff] %v4776
    %4867 = vst [vmem:[#allocation14 + $0x28] sm:$0xff] %v4778
    %4868 = vst [vmem:[#allocation14 + $0x30] sm:$0xff] %v4857
    // Predicated region
    $region78: #{tpu_custom_call.1} parent=1 // pred_check
      _
    $region79: #{tpu_custom_call.1} parent=1 // pred_check_branch
      %4870 = sbr.rel (0) target = $region81
    $region80: #{tpu_custom_call.1} parent=1 // pred_region
      %s4872 = ssub.s32 896, 896
      %4873 = vsyncadd [#allocation4], %s4872
      %s4875 = sshll.u32 [#allocation14], 4
      %s4876 = int_to_ptr.vmem [resolvable:$true] %s4875
      %4878 = dma.vmem_to_hbm [thread:$0]  %s4876, 896, %s12, [#allocation4]
    $region81: #{tpu_custom_call.1} parent=1 // pred_fallthru
      _
    // Predicated region
    $region82: #{tpu_custom_call.1} parent=1 // pred_check
      _
    $region83: #{tpu_custom_call.1} parent=1 // pred_check_branch
      %4880 = sbr.rel (0) target = $region85
    $region84: #{tpu_custom_call.1} parent=1 // pred_region
      %4881 = dma.done [#allocation4], 896
    $region85: #{tpu_custom_call.1} parent=1 // pred_fallthru
      _
    %4882 = vsyncpa [#allocation3], 1
    %4883 = vsyncpa [#allocation6], 1
    %4884 = vsyncpa [#allocation9], 1
    %4885 = vsyncpa [#allocation12], 1
    %4886 = vsyncpa [#allocation4], 1

// kernel: tpu_custom_call.1
$region0: #{tpu_custom_call.1}
  #allocation0 [shape = 'u32[]', space=smem, size = 0x4, offset = 0x4, fixed_abs, tag = 'smem constant byte address 0x4 - core index']
  #allocation1 [shape = 'u32[144,128]{1,0:T(1,128)}', space=vmem, size = 0x12000, scoped, tag = 'internal scratch']
  %s0 = inlined_call_operand.hbm [shape: f32[8,896], index: 0, kind: input, shape index: {}]
  %s1 = inlined_call_operand.hbm [shape: f32[8,896], index: 1, kind: input, shape index: {}]
  %s2 = inlined_call_operand.hbm [shape: bf16[896,512], index: 2, kind: input, shape index: {}]
  %s3 = inlined_call_operand.vmem [shape: f32[1,512], index: 3, kind: input, shape index: {}]
  %s4 = inlined_call_operand.hbm [shape: bf16[512,256], index: 4, kind: input, shape index: {}]
  %s5 = inlined_call_operand.vmem [shape: f32[1,256], index: 5, kind: input, shape index: {}]
  %s6 = inlined_call_operand.hbm [shape: bf16[256,256], index: 6, kind: input, shape index: {}]
  %s7 = inlined_call_operand.vmem [shape: f32[1,256], index: 7, kind: input, shape index: {}]
  %s8 = inlined_call_operand.hbm [shape: bf16[256,512], index: 8, kind: input, shape index: {}]
  %s9 = inlined_call_operand.vmem [shape: f32[1,512], index: 9, kind: input, shape index: {}]
  %s10 = inlined_call_operand.hbm [shape: bf16[512,896], index: 10, kind: input, shape index: {}]
  %s11 = inlined_call_operand.vmem [shape: f32[1,896], index: 11, kind: input, shape index: {}]
  %s12 = inlined_call_operand.hbm [shape: f32[8,896], index: 12, kind: output, shape index: {}]
  %s13 = sld [smem:[#allocation0]]
  $region86: #{tpu_custom_call.1} parent=0
    _
  %s15 = ssub.s32 1, %s13
  %s16 = scalar_select 0, %s15, %s13
  $region1: #{tpu_custom_call.1} parent=0
    #allocation2 [shape = 'u8[28672]{0}', space=vmem, size = 0x7000, scoped, tag = 'input window, operand 0, single buffered']
    #allocation3 [shape = 's32[1]{0}', space=sflag, size = 0x4, scoped, tag = 'scoped memory for tpu_custom_call.1']
    #allocation4 [shape = 's32[1]{0}', space=sflag, size = 0x4, scoped, tag = 'scoped memory for tpu_custom_call.1']
    #allocation5 [shape = 'u8[28672]{0}', space=vmem, size = 0x7000, scoped, tag = 'input window, operand 1, single buffered']
    #allocation6 [shape = 's32[1]{0}', space=sflag, size = 0x4, scoped, tag = 'scoped memory for tpu_custom_call.1']
    #allocation7 [shape = 'u8[917504]{0}', space=vmem, size = 0xe0000, scoped, tag = 'input window, operand 2, single buffered']
    #allocation8 [shape = 'u8[262144]{0}', space=vmem, size = 0x40000, scoped, tag = 'input window, operand 4, single buffered']
    #allocation9 [shape = 's32[1]{0}', space=sflag, size = 0x4, scoped, tag = 'scoped memory for tpu_custom_call.1']
    #allocation10 [shape = 'u8[131072]{0}', space=vmem, size = 0x20000, scoped, tag = 'input window, operand 6, single buffered']
    #allocation11 [shape = 'u8[262144]{0}', space=vmem, size = 0x40000, scoped, tag = 'input window, operand 8, single buffered']
    #allocation12 [shape = 's32[1]{0}', space=sflag, size = 0x4, scoped, tag = 'scoped memory for tpu_custom_call.1']
    #allocation13 [shape = 'u8[917504]{0}', space=vmem, size = 0xe0000, scoped, tag = 'input window, operand 10, single buffered']
    #allocation14 [shape = 'u8[28672]{0}', space=vmem, size = 0x7000, scoped, tag = 'output window, operand 0, single buffered']
    %17 = vsyncpa [#allocation3], 0
    %18 = vsyncpa [#allocation6], 0
    %19 = vsyncpa [#allocation9], 0
    %20 = vsyncpa [#allocation12], 0
    %21 = vsyncpa [#allocation4], 0
    // Predicated region
    $region2: #{tpu_custom_call.1} parent=1 // pred_check
      _
    $region3: #{tpu_custom_call.1} parent=1 // pred_check_branch
      %23 = sbr.rel (0) target = $region5
    $region4: #{tpu_custom_call.1} parent=1 // pred_region
      %s25 = ssub.s32 896, 896
      %26 = vsyncadd [#allocation3], %s25
      %s28 = sshll.u32 [#allocation2], 4
      %s29 = int_to_ptr.vmem [resolvable:$true] %s28
      %31 = dma.hbm_to_vmem [thread:$0]  %s0, 896, %s29, [#allocation3]
    $region5: #{tpu_custom_call.1} parent=1 // pred_fallthru
      _
    // Predicated region
    $region6: #{tpu_custom_call.1} parent=1 // pred_check
      _
    $region7: #{tpu_custom_call.1} parent=1 // pred_check_branch
      %33 = sbr.rel (0) target = $region9
    $region8: #{tpu_custom_call.1} parent=1 // pred_region
      %s35 = ssub.s32 896, 896
      %36 = vsyncadd [#allocation6], %s35
      %s38 = sshll.u32 [#allocation5], 4
      %s39 = int_to_ptr.vmem [resolvable:$true] %s38
      %41 = dma.hbm_to_vmem [thread:$0]  %s1, 896, %s39, [#allocation6]
    $region9: #{tpu_custom_call.1} parent=1 // pred_fallthru
      _
    // Predicated region
    $region10: #{tpu_custom_call.1} parent=1 // pred_check
      _
    $region11: #{tpu_custom_call.1} parent=1 // pred_check_branch
      %43 = sbr.rel (0) target = $region13
    $region12: #{tpu_custom_call.1} parent=1 // pred_region
      %s45 = ssub.s32 28672, 28672
      %46 = vsyncadd [#allocation6], %s45
      %s47 = sshll.u32 [#allocation7], 4
      %s48 = int_to_ptr.vmem [resolvable:$true] %s47
      %53 = dma.hbm_to_vmem [thread:$0]  %s2, 28672, %s48, [#allocation6], 256, 256, 16
    $region13: #{tpu_custom_call.1} parent=1 // pred_fallthru
      _
    // Predicated region
    $region14: #{tpu_custom_call.1} parent=1 // pred_check
      _
    $region15: #{tpu_custom_call.1} parent=1 // pred_check_branch
      %55 = sbr.rel (0) target = $region17
    $region16: #{tpu_custom_call.1} parent=1 // pred_region
      _
    $region17: #{tpu_custom_call.1} parent=1 // pred_fallthru
      _
    // Predicated region
    $region18: #{tpu_custom_call.1} parent=1 // pred_check
      _
    $region19: #{tpu_custom_call.1} parent=1 // pred_check_branch
      %57 = sbr.rel (0) target = $region21
    $region20: #{tpu_custom_call.1} parent=1 // pred_region
      %s59 = ssub.s32 8192, 8192
      %60 = vsyncadd [#allocation9], %s59
      %s61 = sshll.u32 [#allocation8], 4
      %s62 = int_to_ptr.vmem [resolvable:$true] %s61
      %67 = dma.hbm_to_vmem [thread:$0]  %s4, 8192, %s62, [#allocation9], 128, 128, 8
    $region21: #{tpu_custom_call.1} parent=1 // pred_fallthru
      _
    // Predicated region
    $region22: #{tpu_custom_call.1} parent=1 // pred_check
      _
    $region23: #{tpu_custom_call.1} parent=1 // pred_check_branch
      %69 = sbr.rel (0) target = $region25
    $region24: #{tpu_custom_call.1} parent=1 // pred_region
      _
    $region25: #{tpu_custom_call.1} parent=1 // pred_fallthru
      _
    // Predicated region
    $region26: #{tpu_custom_call.1} parent=1 // pred_check
      _
    $region27: #{tpu_custom_call.1} parent=1 // pred_check_branch
      %71 = sbr.rel (0) target = $region29
    $region28: #{tpu_custom_call.1} parent=1 // pred_region
      %s73 = ssub.s32 4096, 4096
      %74 = vsyncadd [#allocation9], %s73
      %s75 = sshll.u32 [#allocation10], 4
      %s76 = int_to_ptr.vmem [resolvable:$true] %s75
      %81 = dma.hbm_to_vmem [thread:$0]  %s6, 4096, %s76, [#allocation9], 128, 128, 8
    $region29: #{tpu_custom_call.1} parent=1 // pred_fallthru
      _
    // Predicated region
    $region30: #{tpu_custom_call.1} parent=1 // pred_check
      _
    $region31: #{tpu_custom_call.1} parent=1 // pred_check_branch
      %83 = sbr.rel (0) target = $region33
    $region32: #{tpu_custom_call.1} parent=1 // pred_region
      _
    $region33: #{tpu_custom_call.1} parent=1 // pred_fallthru
      _
    // Predicated region
    $region34: #{tpu_custom_call.1} parent=1 // pred_check
      _
    $region35: #{tpu_custom_call.1} parent=1 // pred_check_branch
      %85 = sbr.rel (0) target = $region37
    $region36: #{tpu_custom_call.1} parent=1 // pred_region
      %s87 = ssub.s32 8192, 8192
      %88 = vsyncadd [#allocation12], %s87
      %s89 = sshll.u32 [#allocation11], 4
      %s90 = int_to_ptr.vmem [resolvable:$true] %s89
      %95 = dma.hbm_to_vmem [thread:$0]  %s8, 8192, %s90, [#allocation12], 256, 256, 16
    $region37: #{tpu_custom_call.1} parent=1 // pred_fallthru
      _
    // Predicated region
    $region38: #{tpu_custom_call.1} parent=1 // pred_check
      _
    $region39: #{tpu_custom_call.1} parent=1 // pred_check_branch
      %97 = sbr.rel (0) target = $region41
    $region40: #{tpu_custom_call.1} parent=1 // pred_region
      _
    $region41: #{tpu_custom_call.1} parent=1 // pred_fallthru
      _
    // Predicated region
    $region42: #{tpu_custom_call.1} parent=1 // pred_check
      _
    $region43: #{tpu_custom_call.1} parent=1 // pred_check_branch
      %99 = sbr.rel (0) target = $region45
    $region44: #{tpu_custom_call.1} parent=1 // pred_region
      %s101 = ssub.s32 28672, 28672
      %102 = vsyncadd [#allocation12], %s101
      %s103 = sshll.u32 [#allocation13], 4
      %s104 = int_to_ptr.vmem [resolvable:$true] %s103
      %109 = dma.hbm_to_vmem [thread:$0]  %s10, 28672, %s104, [#allocation12], 448, 448, 28
    $region45: #{tpu_custom_call.1} parent=1 // pred_fallthru
      _
    // Predicated region
    $region46: #{tpu_custom_call.1} parent=1 // pred_check
      _
    $region47: #{tpu_custom_call.1} parent=1 // pred_check_branch
      %111 = sbr.rel (0) target = $region49
    $region48: #{tpu_custom_call.1} parent=1 // pred_region
      _
    $region49: #{tpu_custom_call.1} parent=1 // pred_fallthru
      _
    // Predicated region
    $region50: #{tpu_custom_call.1} parent=1 // pred_check
      _
    $region51: #{tpu_custom_call.1} parent=1 // pred_check_branch
      %113 = sbr.rel (0) target = $region53
    $region52: #{tpu_custom_call.1} parent=1 // pred_region
      %114 = dma.done [#allocation3], 896
    $region53: #{tpu_custom_call.1} parent=1 // pred_fallthru
      _
    // Predicated region
    $region54: #{tpu_custom_call.1} parent=1 // pred_check
      _
    $region55: #{tpu_custom_call.1} parent=1 // pred_check_branch
      %116 = sbr.rel (0) target = $region57
    $region56: #{tpu_custom_call.1} parent=1 // pred_region
      %117 = dma.done [#allocation6], 896
    $region57: #{tpu_custom_call.1} parent=1 // pred_fallthru
      _
    // Predicated region
    $region58: #{tpu_custom_call.1} parent=1 // pred_check
      _
    $region59: #{tpu_custom_call.1} parent=1 // pred_check_branch
      %119 = sbr.rel (0) target = $region61
    $region60: #{tpu_custom_call.1} parent=1 // pred_region
      %120 = dma.done [#allocation6], 28672
    $region61: #{tpu_custom_call.1} parent=1 // pred_fallthru
      _
    // Predicated region
    $region62: #{tpu_custom_call.1} parent=1 // pred_check
      _
    $region63: #{tpu_custom_call.1} parent=1 // pred_check_branch
      %122 = sbr.rel (0) target = $region65
    $region64: #{tpu_custom_call.1} parent=1 // pred_region
      %123 = dma.done [#allocation9], 8192
    $region65: #{tpu_custom_call.1} parent=1 // pred_fallthru
      _
    // Predicated region
    $region66: #{tpu_custom_call.1} parent=1 // pred_check
      _
    $region67: #{tpu_custom_call.1} parent=1 // pred_check_branch
      %125 = sbr.rel (0) target = $region69
    $region68: #{tpu_custom_call.1} parent=1 // pred_region
      %126 = dma.done [#allocation9], 4096
    $region69: #{tpu_custom_call.1} parent=1 // pred_fallthru
      _
    // Predicated region
    $region70: #{tpu_custom_call.1} parent=1 // pred_check
      _
    $region71: #{tpu_custom_call.1} parent=1 // pred_check_branch
      %128 = sbr.rel (0) target = $region73
    $region72: #{tpu_custom_call.1} parent=1 // pred_region
      %129 = dma.done [#allocation12], 8192
    $region73: #{tpu_custom_call.1} parent=1 // pred_fallthru
      _
    // Predicated region
    $region74: #{tpu_custom_call.1} parent=1 // pred_check
      _
    $region75: #{tpu_custom_call.1} parent=1 // pred_check_branch
      %131 = sbr.rel (0) target = $region77
    $region76: #{tpu_custom_call.1} parent=1 // pred_region
      %132 = dma.done [#allocation12], 28672
    $region77: #{tpu_custom_call.1} parent=1 // pred_fallthru
      _
    %v134 = vld [vmem:[#allocation2] sm:$0xff]
    %v135 = vld [vmem:[#allocation2 + $0x8] sm:$0xff]
    %v136 = vld [vmem:[#allocation2 + $0x10] sm:$0xff]
    %v137 = vld [vmem:[#allocation2 + $0x18] sm:$0xff]
    %v138 = vld [vmem:[#allocation2 + $0x20] sm:$0xff]
    %v139 = vld [vmem:[#allocation2 + $0x28] sm:$0xff]
    %v140 = vld [vmem:[#allocation2 + $0x30] sm:$0xff]
    %v141 = vld [vmem:[#allocation5] sm:$0xff]
    %v142 = vld [vmem:[#allocation5 + $0x8] sm:$0xff]
    %v143 = vld [vmem:[#allocation5 + $0x10] sm:$0xff]
    %v144 = vld [vmem:[#allocation5 + $0x18] sm:$0xff]
    %v145 = vld [vmem:[#allocation5 + $0x20] sm:$0xff]
    %v146 = vld [vmem:[#allocation5 + $0x28] sm:$0xff]
    %v147 = vld [vmem:[#allocation5 + $0x30] sm:$0xff]
    %v148 = vadd.f32 %v134, %v141
    %v149 = vadd.f32 %v135, %v142
    %v150 = vadd.f32 %v136, %v143
    %v151 = vadd.f32 %v137, %v144
    %v152 = vadd.f32 %v138, %v145
    %v153 = vadd.f32 %v139, %v146
    %v154 = vadd.f32 %v140, %v147
    %v155 = vpack.c.bf16 %v148, %v148
    %v156 = vpack.c.bf16 %v149, %v149
    %v157 = vpack.c.bf16 %v150, %v150
    %v158 = vpack.c.bf16 %v151, %v151
    %v159 = vpack.c.bf16 %v152, %v152
    %v160 = vpack.c.bf16 %v153, %v153
    %v161 = vpack.c.bf16 %v154, %v154
    %v162 = vld [vmem:[#allocation7] sm:$0xff]
    %v163 = vld [vmem:[#allocation7 + $0x8] sm:$0xff]
    %v164 = vld [vmem:[#allocation7 + $0x10] sm:$0xff]
    %v165 = vld [vmem:[#allocation7 + $0x18] sm:$0xff]
    %v166 = vld [vmem:[#allocation7 + $0x20] sm:$0xff]
    %v167 = vld [vmem:[#allocation7 + $0x28] sm:$0xff]
    %v168 = vld [vmem:[#allocation7 + $0x30] sm:$0xff]
    %v169 = vld [vmem:[#allocation7 + $0x38] sm:$0xff]
    %v170 = vld [vmem:[#allocation7 + $0x40] sm:$0xff]
    %v171 = vld [vmem:[#allocation7 + $0x48] sm:$0xff]
    %v172 = vld [vmem:[#allocation7 + $0x50] sm:$0xff]
    %v173 = vld [vmem:[#allocation7 + $0x58] sm:$0xff]
    %v174 = vld [vmem:[#allocation7 + $0x60] sm:$0xff]
    %v175 = vld [vmem:[#allocation7 + $0x68] sm:$0xff]
    %v176 = vld [vmem:[#allocation7 + $0x70] sm:$0xff]
    %v177 = vld [vmem:[#allocation7 + $0x78] sm:$0xff]
    %v178 = vld [vmem:[#allocation7 + $0x80] sm:$0xff]
    %v179 = vld [vmem:[#allocation7 + $0x88] sm:$0xff]
    %v180 = vld [vmem:[#allocation7 + $0x90] sm:$0xff]
    %v181 = vld [vmem:[#allocation7 + $0x98] sm:$0xff]
    %v182 = vld [vmem:[#allocation7 + $0xa0] sm:$0xff]
    %v183 = vld [vmem:[#allocation7 + $0xa8] sm:$0xff]
    %v184 = vld [vmem:[#allocation7 + $0xb0] sm:$0xff]
    %v185 = vld [vmem:[#allocation7 + $0xb8] sm:$0xff]
    %v186 = vld [vmem:[#allocation7 + $0xc0] sm:$0xff]
    %v187 = vld [vmem:[#allocation7 + $0xc8] sm:$0xff]
    %v188 = vld [vmem:[#allocation7 + $0xd0] sm:$0xff]
    %v189 = vld [vmem:[#allocation7 + $0xd8] sm:$0xff]
    %v190 = vld [vmem:[#allocation7 + $0xe0] sm:$0xff]
    %v191 = vld [vmem:[#allocation7 + $0xe8] sm:$0xff]
    %v192 = vld [vmem:[#allocation7 + $0xf0] sm:$0xff]
    %v193 = vld [vmem:[#allocation7 + $0xf8] sm:$0xff]
    %v194 = vld [vmem:[#allocation7 + $0x100] sm:$0xff]
    %v195 = vld [vmem:[#allocation7 + $0x108] sm:$0xff]
    %v196 = vld [vmem:[#allocation7 + $0x110] sm:$0xff]
    %v197 = vld [vmem:[#allocation7 + $0x118] sm:$0xff]
    %v198 = vld [vmem:[#allocation7 + $0x120] sm:$0xff]
    %v199 = vld [vmem:[#allocation7 + $0x128] sm:$0xff]
    %v200 = vld [vmem:[#allocation7 + $0x130] sm:$0xff]
    %v201 = vld [vmem:[#allocation7 + $0x138] sm:$0xff]
    %v202 = vld [vmem:[#allocation7 + $0x140] sm:$0xff]
    %v203 = vld [vmem:[#allocation7 + $0x148] sm:$0xff]
    %v204 = vld [vmem:[#allocation7 + $0x150] sm:$0xff]
    %v205 = vld [vmem:[#allocation7 + $0x158] sm:$0xff]
    %v206 = vld [vmem:[#allocation7 + $0x160] sm:$0xff]
    %v207 = vld [vmem:[#allocation7 + $0x168] sm:$0xff]
    %v208 = vld [vmem:[#allocation7 + $0x170] sm:$0xff]
    %v209 = vld [vmem:[#allocation7 + $0x178] sm:$0xff]
    %v210 = vld [vmem:[#allocation7 + $0x180] sm:$0xff]
    %v211 = vld [vmem:[#allocation7 + $0x188] sm:$0xff]
    %v212 = vld [vmem:[#allocation7 + $0x190] sm:$0xff]
    %v213 = vld [vmem:[#allocation7 + $0x198] sm:$0xff]
    %v214 = vld [vmem:[#allocation7 + $0x1a0] sm:$0xff]
    %v215 = vld [vmem:[#allocation7 + $0x1a8] sm:$0xff]
    %v216 = vld [vmem:[#allocation7 + $0x1b0] sm:$0xff]
    %v217 = vld [vmem:[#allocation7 + $0x1b8] sm:$0xff]
    %v218 = vld [vmem:[#allocation7 + $0x1c0] sm:$0xff]
    %v219 = vld [vmem:[#allocation7 + $0x1c8] sm:$0xff]
    %v220 = vld [vmem:[#allocation7 + $0x1d0] sm:$0xff]
    %v221 = vld [vmem:[#allocation7 + $0x1d8] sm:$0xff]
    %v222 = vld [vmem:[#allocation7 + $0x1e0] sm:$0xff]
    %v223 = vld [vmem:[#allocation7 + $0x1e8] sm:$0xff]
    %v224 = vld [vmem:[#allocation7 + $0x1f0] sm:$0xff]
    %v225 = vld [vmem:[#allocation7 + $0x1f8] sm:$0xff]
    %v226 = vld [vmem:[#allocation7 + $0x200] sm:$0xff]
    %v227 = vld [vmem:[#allocation7 + $0x208] sm:$0xff]
    %v228 = vld [vmem:[#allocation7 + $0x210] sm:$0xff]
    %v229 = vld [vmem:[#allocation7 + $0x218] sm:$0xff]
    %v230 = vld [vmem:[#allocation7 + $0x220] sm:$0xff]
    %v231 = vld [vmem:[#allocation7 + $0x228] sm:$0xff]
    %v232 = vld [vmem:[#allocation7 + $0x230] sm:$0xff]
    %v233 = vld [vmem:[#allocation7 + $0x238] sm:$0xff]
    %v234 = vld [vmem:[#allocation7 + $0x240] sm:$0xff]
    %v235 = vld [vmem:[#allocation7 + $0x248] sm:$0xff]
    %v236 = vld [vmem:[#allocation7 + $0x250] sm:$0xff]
    %v237 = vld [vmem:[#allocation7 + $0x258] sm:$0xff]
    %v238 = vld [vmem:[#allocation7 + $0x260] sm:$0xff]
    %v239 = vld [vmem:[#allocation7 + $0x268] sm:$0xff]
    %v240 = vld [vmem:[#allocation7 + $0x270] sm:$0xff]
    %v241 = vld [vmem:[#allocation7 + $0x278] sm:$0xff]
    %v242 = vld [vmem:[#allocation7 + $0x280] sm:$0xff]
    %v243 = vld [vmem:[#allocation7 + $0x288] sm:$0xff]
    %v244 = vld [vmem:[#allocation7 + $0x290] sm:$0xff]
    %v245 = vld [vmem:[#allocation7 + $0x298] sm:$0xff]
    %v246 = vld [vmem:[#allocation7 + $0x2a0] sm:$0xff]
    %v247 = vld [vmem:[#allocation7 + $0x2a8] sm:$0xff]
    %v248 = vld [vmem:[#allocation7 + $0x2b0] sm:$0xff]
    %v249 = vld [vmem:[#allocation7 + $0x2b8] sm:$0xff]
    %v250 = vld [vmem:[#allocation7 + $0x2c0] sm:$0xff]
    %v251 = vld [vmem:[#allocation7 + $0x2c8] sm:$0xff]
    %v252 = vld [vmem:[#allocation7 + $0x2d0] sm:$0xff]
    %v253 = vld [vmem:[#allocation7 + $0x2d8] sm:$0xff]
    %v254 = vld [vmem:[#allocation7 + $0x2e0] sm:$0xff]
    %v255 = vld [vmem:[#allocation7 + $0x2e8] sm:$0xff]
    %v256 = vld [vmem:[#allocation7 + $0x2f0] sm:$0xff]
    %v257 = vld [vmem:[#allocation7 + $0x2f8] sm:$0xff]
    %v258 = vld [vmem:[#allocation7 + $0x300] sm:$0xff]
    %v259 = vld [vmem:[#allocation7 + $0x308] sm:$0xff]
    %v260 = vld [vmem:[#allocation7 + $0x310] sm:$0xff]
    %v261 = vld [vmem:[#allocation7 + $0x318] sm:$0xff]
    %v262 = vld [vmem:[#allocation7 + $0x320] sm:$0xff]
    %v263 = vld [vmem:[#allocation7 + $0x328] sm:$0xff]
    %v264 = vld [vmem:[#allocation7 + $0x330] sm:$0xff]
    %v265 = vld [vmem:[#allocation7 + $0x338] sm:$0xff]
    %v266 = vld [vmem:[#allocation7 + $0x340] sm:$0xff]
    %v267 = vld [vmem:[#allocation7 + $0x348] sm:$0xff]
    %v268 = vld [vmem:[#allocation7 + $0x350] sm:$0xff]
    %v269 = vld [vmem:[#allocation7 + $0x358] sm:$0xff]
    %v270 = vld [vmem:[#allocation7 + $0x360] sm:$0xff]
    %v271 = vld [vmem:[#allocation7 + $0x368] sm:$0xff]
    %v272 = vld [vmem:[#allocation7 + $0x370] sm:$0xff]
    %v273 = vld [vmem:[#allocation7 + $0x378] sm:$0xff]
    %v274 = vld [vmem:[#allocation7 + $0x380] sm:$0xff]
    %v275 = vld [vmem:[#allocation7 + $0x388] sm:$0xff]
    %v276 = vld [vmem:[#allocation7 + $0x390] sm:$0xff]
    %v277 = vld [vmem:[#allocation7 + $0x398] sm:$0xff]
    %v278 = vld [vmem:[#allocation7 + $0x3a0] sm:$0xff]
    %v279 = vld [vmem:[#allocation7 + $0x3a8] sm:$0xff]
    %v280 = vld [vmem:[#allocation7 + $0x3b0] sm:$0xff]
    %v281 = vld [vmem:[#allocation7 + $0x3b8] sm:$0xff]
    %v282 = vld [vmem:[#allocation7 + $0x3c0] sm:$0xff]
    %v283 = vld [vmem:[#allocation7 + $0x3c8] sm:$0xff]
    %v284 = vld [vmem:[#allocation7 + $0x3d0] sm:$0xff]
    %v285 = vld [vmem:[#allocation7 + $0x3d8] sm:$0xff]
    %v286 = vld [vmem:[#allocation7 + $0x3e0] sm:$0xff]
    %v287 = vld [vmem:[#allocation7 + $0x3e8] sm:$0xff]
    %v288 = vld [vmem:[#allocation7 + $0x3f0] sm:$0xff]
    %v289 = vld [vmem:[#allocation7 + $0x3f8] sm:$0xff]
    %v290 = vld [vmem:[#allocation7 + $0x400] sm:$0xff]
    %v291 = vld [vmem:[#allocation7 + $0x408] sm:$0xff]
    %v292 = vld [vmem:[#allocation7 + $0x410] sm:$0xff]
    %v293 = vld [vmem:[#allocation7 + $0x418] sm:$0xff]
    %v294 = vld [vmem:[#allocation7 + $0x420] sm:$0xff]
    %v295 = vld [vmem:[#allocation7 + $0x428] sm:$0xff]
    %v296 = vld [vmem:[#allocation7 + $0x430] sm:$0xff]
    %v297 = vld [vmem:[#allocation7 + $0x438] sm:$0xff]
    %v298 = vld [vmem:[#allocation7 + $0x440] sm:$0xff]
    %v299 = vld [vmem:[#allocation7 + $0x448] sm:$0xff]
    %v300 = vld [vmem:[#allocation7 + $0x450] sm:$0xff]
    %v301 = vld [vmem:[#allocation7 + $0x458] sm:$0xff]
    %v302 = vld [vmem:[#allocation7 + $0x460] sm:$0xff]
    %v303 = vld [vmem:[#allocation7 + $0x468] sm:$0xff]
    %v304 = vld [vmem:[#allocation7 + $0x470] sm:$0xff]
    %v305 = vld [vmem:[#allocation7 + $0x478] sm:$0xff]
    %v306 = vld [vmem:[#allocation7 + $0x480] sm:$0xff]
    %v307 = vld [vmem:[#allocation7 + $0x488] sm:$0xff]
    %v308 = vld [vmem:[#allocation7 + $0x490] sm:$0xff]
    %v309 = vld [vmem:[#allocation7 + $0x498] sm:$0xff]
    %v310 = vld [vmem:[#allocation7 + $0x4a0] sm:$0xff]
    %v311 = vld [vmem:[#allocation7 + $0x4a8] sm:$0xff]
    %v312 = vld [vmem:[#allocation7 + $0x4b0] sm:$0xff]
    %v313 = vld [vmem:[#allocation7 + $0x4b8] sm:$0xff]
    %v314 = vld [vmem:[#allocation7 + $0x4c0] sm:$0xff]
    %v315 = vld [vmem:[#allocation7 + $0x4c8] sm:$0xff]
    %v316 = vld [vmem:[#allocation7 + $0x4d0] sm:$0xff]
    %v317 = vld [vmem:[#allocation7 + $0x4d8] sm:$0xff]
    %v318 = vld [vmem:[#allocation7 + $0x4e0] sm:$0xff]
    %v319 = vld [vmem:[#allocation7 + $0x4e8] sm:$0xff]
    %v320 = vld [vmem:[#allocation7 + $0x4f0] sm:$0xff]
    %v321 = vld [vmem:[#allocation7 + $0x4f8] sm:$0xff]
    %v322 = vld [vmem:[#allocation7 + $0x500] sm:$0xff]
    %v323 = vld [vmem:[#allocation7 + $0x508] sm:$0xff]
    %v324 = vld [vmem:[#allocation7 + $0x510] sm:$0xff]
    %v325 = vld [vmem:[#allocation7 + $0x518] sm:$0xff]
    %v326 = vld [vmem:[#allocation7 + $0x520] sm:$0xff]
    %v327 = vld [vmem:[#allocation7 + $0x528] sm:$0xff]
    %v328 = vld [vmem:[#allocation7 + $0x530] sm:$0xff]
    %v329 = vld [vmem:[#allocation7 + $0x538] sm:$0xff]
    %v330 = vld [vmem:[#allocation7 + $0x540] sm:$0xff]
    %v331 = vld [vmem:[#allocation7 + $0x548] sm:$0xff]
    %v332 = vld [vmem:[#allocation7 + $0x550] sm:$0xff]
    %v333 = vld [vmem:[#allocation7 + $0x558] sm:$0xff]
    %v334 = vld [vmem:[#allocation7 + $0x560] sm:$0xff]
    %v335 = vld [vmem:[#allocation7 + $0x568] sm:$0xff]
    %v336 = vld [vmem:[#allocation7 + $0x570] sm:$0xff]
    %v337 = vld [vmem:[#allocation7 + $0x578] sm:$0xff]
    %v338 = vld [vmem:[#allocation7 + $0x580] sm:$0xff]
    %v339 = vld [vmem:[#allocation7 + $0x588] sm:$0xff]
    %v340 = vld [vmem:[#allocation7 + $0x590] sm:$0xff]
    %v341 = vld [vmem:[#allocation7 + $0x598] sm:$0xff]
    %v342 = vld [vmem:[#allocation7 + $0x5a0] sm:$0xff]
    %v343 = vld [vmem:[#allocation7 + $0x5a8] sm:$0xff]
    %v344 = vld [vmem:[#allocation7 + $0x5b0] sm:$0xff]
    %v345 = vld [vmem:[#allocation7 + $0x5b8] sm:$0xff]
    %v346 = vld [vmem:[#allocation7 + $0x5c0] sm:$0xff]
    %v347 = vld [vmem:[#allocation7 + $0x5c8] sm:$0xff]
    %v348 = vld [vmem:[#allocation7 + $0x5d0] sm:$0xff]
    %v349 = vld [vmem:[#allocation7 + $0x5d8] sm:$0xff]
    %v350 = vld [vmem:[#allocation7 + $0x5e0] sm:$0xff]
    %v351 = vld [vmem:[#allocation7 + $0x5e8] sm:$0xff]
    %v352 = vld [vmem:[#allocation7 + $0x5f0] sm:$0xff]
    %v353 = vld [vmem:[#allocation7 + $0x5f8] sm:$0xff]
    %v354 = vld [vmem:[#allocation7 + $0x600] sm:$0xff]
    %v355 = vld [vmem:[#allocation7 + $0x608] sm:$0xff]
    %v356 = vld [vmem:[#allocation7 + $0x610] sm:$0xff]
    %v357 = vld [vmem:[#allocation7 + $0x618] sm:$0xff]
    %v358 = vld [vmem:[#allocation7 + $0x620] sm:$0xff]
    %v359 = vld [vmem:[#allocation7 + $0x628] sm:$0xff]
    %v360 = vld [vmem:[#allocation7 + $0x630] sm:$0xff]
    %v361 = vld [vmem:[#allocation7 + $0x638] sm:$0xff]
    %v362 = vld [vmem:[#allocation7 + $0x640] sm:$0xff]
    %v363 = vld [vmem:[#allocation7 + $0x648] sm:$0xff]
    %v364 = vld [vmem:[#allocation7 + $0x650] sm:$0xff]
    %v365 = vld [vmem:[#allocation7 + $0x658] sm:$0xff]
    %v366 = vld [vmem:[#allocation7 + $0x660] sm:$0xff]
    %v367 = vld [vmem:[#allocation7 + $0x668] sm:$0xff]
    %v368 = vld [vmem:[#allocation7 + $0x670] sm:$0xff]
    %v369 = vld [vmem:[#allocation7 + $0x678] sm:$0xff]
    %v370 = vld [vmem:[#allocation7 + $0x680] sm:$0xff]
    %v371 = vld [vmem:[#allocation7 + $0x688] sm:$0xff]
    %v372 = vld [vmem:[#allocation7 + $0x690] sm:$0xff]
    %v373 = vld [vmem:[#allocation7 + $0x698] sm:$0xff]
    %v374 = vld [vmem:[#allocation7 + $0x6a0] sm:$0xff]
    %v375 = vld [vmem:[#allocation7 + $0x6a8] sm:$0xff]
    %v376 = vld [vmem:[#allocation7 + $0x6b0] sm:$0xff]
    %v377 = vld [vmem:[#allocation7 + $0x6b8] sm:$0xff]
    %v378 = vld [vmem:[#allocation7 + $0x6c0] sm:$0xff]
    %v379 = vld [vmem:[#allocation7 + $0x6c8] sm:$0xff]
    %v380 = vld [vmem:[#allocation7 + $0x6d0] sm:$0xff]
    %v381 = vld [vmem:[#allocation7 + $0x6d8] sm:$0xff]
    %v382 = vld [vmem:[#allocation7 + $0x6e0] sm:$0xff]
    %v383 = vld [vmem:[#allocation7 + $0x6e8] sm:$0xff]
    %v384 = vld [vmem:[#allocation7 + $0x6f0] sm:$0xff]
    %v385 = vld [vmem:[#allocation7 + $0x6f8] sm:$0xff]
    %v386 = vld [vmem:[%s3] sm:$0xf]
    %v388 = vlaneseq
    %v389 = vshrl.u32 %v388, 7
    %v390 = vsub.s32 0, %v389
    %v391 = vrot.slane %v386, %v390
    %v392 = vlaneseq
    %v393 = vshrl.u32 %v392, 7
    %v394 = vsub.s32 1, %v393
    %v395 = vrot.slane %v386, %v394
    %v396 = vlaneseq
    %v397 = vshrl.u32 %v396, 7
    %v398 = vsub.s32 2, %v397
    %v399 = vrot.slane %v386, %v398
    %v400 = vlaneseq
    %v401 = vshrl.u32 %v400, 7
    %v402 = vsub.s32 3, %v401
    %v403 = vrot.slane %v386, %v402
    %v632 = vunpack.c.l.b16 %v162
    %v633 = vunpack.c.h.b16 %v162
    %v634 = vunpack.c.l.b16 %v163
    %v635 = vunpack.c.h.b16 %v163
    %v636 = vunpack.c.l.b16 %v164
    %v637 = vunpack.c.h.b16 %v164
    %v638 = vunpack.c.l.b16 %v165
    %v639 = vunpack.c.h.b16 %v165
    %v640 = vunpack.c.l.b16 %v166
    %v641 = vunpack.c.h.b16 %v166
    %v642 = vunpack.c.l.b16 %v167
    %v643 = vunpack.c.h.b16 %v167
    %v644 = vunpack.c.l.b16 %v168
    %v645 = vunpack.c.h.b16 %v168
    %v646 = vunpack.c.l.b16 %v169
    %v647 = vunpack.c.h.b16 %v169
    %v648 = vunpack.c.l.b16 %v170
    %v649 = vunpack.c.h.b16 %v170
    %v650 = vunpack.c.l.b16 %v171
    %v651 = vunpack.c.h.b16 %v171
    %v652 = vunpack.c.l.b16 %v172
    %v653 = vunpack.c.h.b16 %v172
    %v654 = vunpack.c.l.b16 %v173
    %v655 = vunpack.c.h.b16 %v173
    %v656 = vunpack.c.l.b16 %v174
    %v657 = vunpack.c.h.b16 %v174
    %v658 = vunpack.c.l.b16 %v175
    %v659 = vunpack.c.h.b16 %v175
    %v660 = vunpack.c.l.b16 %v176
    %v661 = vunpack.c.h.b16 %v176
    %v662 = vunpack.c.l.b16 %v177
    %v663 = vunpack.c.h.b16 %v177
    %v664 = vunpack.c.l.b16 %v178
    %v665 = vunpack.c.h.b16 %v178
    %v666 = vunpack.c.l.b16 %v179
    %v667 = vunpack.c.h.b16 %v179
    %v668 = vunpack.c.l.b16 %v180
    %v669 = vunpack.c.h.b16 %v180
    %v670 = vunpack.c.l.b16 %v181
    %v671 = vunpack.c.h.b16 %v181
    %v672 = vunpack.c.l.b16 %v182
    %v673 = vunpack.c.h.b16 %v182
    %v674 = vunpack.c.l.b16 %v183
    %v675 = vunpack.c.h.b16 %v183
    %v676 = vunpack.c.l.b16 %v184
    %v677 = vunpack.c.h.b16 %v184
    %v678 = vunpack.c.l.b16 %v185
    %v679 = vunpack.c.h.b16 %v185
    %v680 = vunpack.c.l.b16 %v186
    %v681 = vunpack.c.h.b16 %v186
    %v682 = vunpack.c.l.b16 %v187
    %v683 = vunpack.c.h.b16 %v187
    %v684 = vunpack.c.l.b16 %v188
    %v685 = vunpack.c.h.b16 %v188
    %v686 = vunpack.c.l.b16 %v189
    %v687 = vunpack.c.h.b16 %v189
    %v688 = vunpack.c.l.b16 %v190
    %v689 = vunpack.c.h.b16 %v190
    %v690 = vunpack.c.l.b16 %v191
    %v691 = vunpack.c.h.b16 %v191
    %v692 = vunpack.c.l.b16 %v192
    %v693 = vunpack.c.h.b16 %v192
    %v694 = vunpack.c.l.b16 %v193
    %v695 = vunpack.c.h.b16 %v193
    %v696 = vunpack.c.l.b16 %v194
    %v697 = vunpack.c.h.b16 %v194
    %v698 = vunpack.c.l.b16 %v195
    %v699 = vunpack.c.h.b16 %v195
    %v700 = vunpack.c.l.b16 %v196
    %v701 = vunpack.c.h.b16 %v196
    %v702 = vunpack.c.l.b16 %v197
    %v703 = vunpack.c.h.b16 %v197
    %v704 = vunpack.c.l.b16 %v198
    %v705 = vunpack.c.h.b16 %v198
    %v706 = vunpack.c.l.b16 %v199
    %v707 = vunpack.c.h.b16 %v199
    %v708 = vunpack.c.l.b16 %v200
    %v709 = vunpack.c.h.b16 %v200
    %v710 = vunpack.c.l.b16 %v201
    %v711 = vunpack.c.h.b16 %v201
    %v712 = vunpack.c.l.b16 %v202
    %v713 = vunpack.c.h.b16 %v202
    %v714 = vunpack.c.l.b16 %v203
    %v715 = vunpack.c.h.b16 %v203
    %v716 = vunpack.c.l.b16 %v204
    %v717 = vunpack.c.h.b16 %v204
    %v718 = vunpack.c.l.b16 %v205
    %v719 = vunpack.c.h.b16 %v205
    %v720 = vunpack.c.l.b16 %v206
    %v721 = vunpack.c.h.b16 %v206
    %v722 = vunpack.c.l.b16 %v207
    %v723 = vunpack.c.h.b16 %v207
    %v724 = vunpack.c.l.b16 %v208
    %v725 = vunpack.c.h.b16 %v208
    %v726 = vunpack.c.l.b16 %v209
    %v727 = vunpack.c.h.b16 %v209
    %v728 = vunpack.c.l.b16 %v210
    %v729 = vunpack.c.h.b16 %v210
    %v730 = vunpack.c.l.b16 %v211
    %v731 = vunpack.c.h.b16 %v211
    %v732 = vunpack.c.l.b16 %v212
    %v733 = vunpack.c.h.b16 %v212
    %v734 = vunpack.c.l.b16 %v213
    %v735 = vunpack.c.h.b16 %v213
    %v736 = vunpack.c.l.b16 %v214
    %v737 = vunpack.c.h.b16 %v214
    %v738 = vunpack.c.l.b16 %v215
    %v739 = vunpack.c.h.b16 %v215
    %v740 = vunpack.c.l.b16 %v216
    %v741 = vunpack.c.h.b16 %v216
    %v742 = vunpack.c.l.b16 %v217
    %v743 = vunpack.c.h.b16 %v217
    %v744 = vunpack.c.l.b16 %v218
    %v745 = vunpack.c.h.b16 %v218
    %v746 = vunpack.c.l.b16 %v219
    %v747 = vunpack.c.h.b16 %v219
    %v748 = vunpack.c.l.b16 %v220
    %v749 = vunpack.c.h.b16 %v220
    %v750 = vunpack.c.l.b16 %v221
    %v751 = vunpack.c.h.b16 %v221
    %v752 = vunpack.c.l.b16 %v222
    %v753 = vunpack.c.h.b16 %v222
    %v754 = vunpack.c.l.b16 %v223
    %v755 = vunpack.c.h.b16 %v223
    %v756 = vunpack.c.l.b16 %v224
    %v757 = vunpack.c.h.b16 %v224
    %v758 = vunpack.c.l.b16 %v225
    %v759 = vunpack.c.h.b16 %v225
    %v760 = vunpack.c.l.b16 %v226
    %v761 = vunpack.c.h.b16 %v226
    %v762 = vunpack.c.l.b16 %v227
    %v763 = vunpack.c.h.b16 %v227
    %v764 = vunpack.c.l.b16 %v228
    %v765 = vunpack.c.h.b16 %v228
    %v766 = vunpack.c.l.b16 %v229
    %v767 = vunpack.c.h.b16 %v229
    %v768 = vunpack.c.l.b16 %v230
    %v769 = vunpack.c.h.b16 %v230
    %v770 = vunpack.c.l.b16 %v231
    %v771 = vunpack.c.h.b16 %v231
    %v772 = vunpack.c.l.b16 %v232
    %v773 = vunpack.c.h.b16 %v232
    %v774 = vunpack.c.l.b16 %v233
    %v775 = vunpack.c.h.b16 %v233
    %v776 = vunpack.c.l.b16 %v234
    %v777 = vunpack.c.h.b16 %v234
    %v778 = vunpack.c.l.b16 %v235
    %v779 = vunpack.c.h.b16 %v235
    %v780 = vunpack.c.l.b16 %v236
    %v781 = vunpack.c.h.b16 %v236
    %v782 = vunpack.c.l.b16 %v237
    %v783 = vunpack.c.h.b16 %v237
    %v784 = vunpack.c.l.b16 %v238
    %v785 = vunpack.c.h.b16 %v238
    %v786 = vunpack.c.l.b16 %v239
    %v787 = vunpack.c.h.b16 %v239
    %v788 = vunpack.c.l.b16 %v240
    %v789 = vunpack.c.h.b16 %v240
    %v790 = vunpack.c.l.b16 %v241
    %v791 = vunpack.c.h.b16 %v241
    %v792 = vunpack.c.l.b16 %v242
    %v793 = vunpack.c.h.b16 %v242
    %v794 = vunpack.c.l.b16 %v243
    %v795 = vunpack.c.h.b16 %v243
    %v796 = vunpack.c.l.b16 %v244
    %v797 = vunpack.c.h.b16 %v244
    %v798 = vunpack.c.l.b16 %v245
    %v799 = vunpack.c.h.b16 %v245
    %v800 = vunpack.c.l.b16 %v246
    %v801 = vunpack.c.h.b16 %v246
    %v802 = vunpack.c.l.b16 %v247
    %v803 = vunpack.c.h.b16 %v247
    %v804 = vunpack.c.l.b16 %v248
    %v805 = vunpack.c.h.b16 %v248
    %v806 = vunpack.c.l.b16 %v249
    %v807 = vunpack.c.h.b16 %v249
    %v808 = vunpack.c.l.b16 %v250
    %v809 = vunpack.c.h.b16 %v250
    %v810 = vunpack.c.l.b16 %v251
    %v811 = vunpack.c.h.b16 %v251
    %v812 = vunpack.c.l.b16 %v252
    %v813 = vunpack.c.h.b16 %v252
    %v814 = vunpack.c.l.b16 %v253
    %v815 = vunpack.c.h.b16 %v253
    %v816 = vunpack.c.l.b16 %v254
    %v817 = vunpack.c.h.b16 %v254
    %v818 = vunpack.c.l.b16 %v255
    %v819 = vunpack.c.h.b16 %v255
    %v820 = vunpack.c.l.b16 %v256
    %v821 = vunpack.c.h.b16 %v256
    %v822 = vunpack.c.l.b16 %v257
    %v823 = vunpack.c.h.b16 %v257
    %v824 = vunpack.c.l.b16 %v258
    %v825 = vunpack.c.h.b16 %v258
    %v826 = vunpack.c.l.b16 %v259
    %v827 = vunpack.c.h.b16 %v259
    %v828 = vunpack.c.l.b16 %v260
    %v829 = vunpack.c.h.b16 %v260
    %v830 = vunpack.c.l.b16 %v261
    %v831 = vunpack.c.h.b16 %v261
    %v832 = vunpack.c.l.b16 %v262
    %v833 = vunpack.c.h.b16 %v262
    %v834 = vunpack.c.l.b16 %v263
    %v835 = vunpack.c.h.b16 %v263
    %v836 = vunpack.c.l.b16 %v264
    %v837 = vunpack.c.h.b16 %v264
    %v838 = vunpack.c.l.b16 %v265
    %v839 = vunpack.c.h.b16 %v265
    %v840 = vunpack.c.l.b16 %v266
    %v841 = vunpack.c.h.b16 %v266
    %v842 = vunpack.c.l.b16 %v267
    %v843 = vunpack.c.h.b16 %v267
    %v844 = vunpack.c.l.b16 %v268
    %v845 = vunpack.c.h.b16 %v268
    %v846 = vunpack.c.l.b16 %v269
    %v847 = vunpack.c.h.b16 %v269
    %v848 = vunpack.c.l.b16 %v270
    %v849 = vunpack.c.h.b16 %v270
    %v850 = vunpack.c.l.b16 %v271
    %v851 = vunpack.c.h.b16 %v271
    %v852 = vunpack.c.l.b16 %v272
    %v853 = vunpack.c.h.b16 %v272
    %v854 = vunpack.c.l.b16 %v273
    %v855 = vunpack.c.h.b16 %v273
    %v856 = vunpack.c.l.b16 %v274
    %v857 = vunpack.c.h.b16 %v274
    %v858 = vunpack.c.l.b16 %v275
    %v859 = vunpack.c.h.b16 %v275
    %v860 = vunpack.c.l.b16 %v276
    %v861 = vunpack.c.h.b16 %v276
    %v862 = vunpack.c.l.b16 %v277
    %v863 = vunpack.c.h.b16 %v277
    %v864 = vunpack.c.l.b16 %v278
    %v865 = vunpack.c.h.b16 %v278
    %v866 = vunpack.c.l.b16 %v279
    %v867 = vunpack.c.h.b16 %v279
    %v868 = vunpack.c.l.b16 %v280
    %v869 = vunpack.c.h.b16 %v280
    %v870 = vunpack.c.l.b16 %v281
    %v871 = vunpack.c.h.b16 %v281
    %v872 = vunpack.c.l.b16 %v282
    %v873 = vunpack.c.h.b16 %v282
    %v874 = vunpack.c.l.b16 %v283
    %v875 = vunpack.c.h.b16 %v283
    %v876 = vunpack.c.l.b16 %v284
    %v877 = vunpack.c.h.b16 %v284
    %v878 = vunpack.c.l.b16 %v285
    %v879 = vunpack.c.h.b16 %v285
    %v880 = vunpack.c.l.b16 %v286
    %v881 = vunpack.c.h.b16 %v286
    %v882 = vunpack.c.l.b16 %v287
    %v883 = vunpack.c.h.b16 %v287
    %v884 = vunpack.c.l.b16 %v288
    %v885 = vunpack.c.h.b16 %v288
    %v886 = vunpack.c.l.b16 %v289
    %v887 = vunpack.c.h.b16 %v289
    %v888 = vunpack.c.l.b16 %v290
    %v889 = vunpack.c.h.b16 %v290
    %v890 = vunpack.c.l.b16 %v291
    %v891 = vunpack.c.h.b16 %v291
    %v892 = vunpack.c.l.b16 %v292
    %v893 = vunpack.c.h.b16 %v292
    %v894 = vunpack.c.l.b16 %v293
    %v895 = vunpack.c.h.b16 %v293
    %v896 = vunpack.c.l.b16 %v294
    %v897 = vunpack.c.h.b16 %v294
    %v898 = vunpack.c.l.b16 %v295
    %v899 = vunpack.c.h.b16 %v295
    %v900 = vunpack.c.l.b16 %v296
    %v901 = vunpack.c.h.b16 %v296
    %v902 = vunpack.c.l.b16 %v297
    %v903 = vunpack.c.h.b16 %v297
    %v904 = vunpack.c.l.b16 %v298
    %v905 = vunpack.c.h.b16 %v298
    %v906 = vunpack.c.l.b16 %v299
    %v907 = vunpack.c.h.b16 %v299
    %v908 = vunpack.c.l.b16 %v300
    %v909 = vunpack.c.h.b16 %v300
    %v910 = vunpack.c.l.b16 %v301
    %v911 = vunpack.c.h.b16 %v301
    %v912 = vunpack.c.l.b16 %v302
    %v913 = vunpack.c.h.b16 %v302
    %v914 = vunpack.c.l.b16 %v303
    %v915 = vunpack.c.h.b16 %v303
    %v916 = vunpack.c.l.b16 %v304
    %v917 = vunpack.c.h.b16 %v304
    %v918 = vunpack.c.l.b16 %v305
    %v919 = vunpack.c.h.b16 %v305
    %v920 = vunpack.c.l.b16 %v306
    %v921 = vunpack.c.h.b16 %v306
    %v922 = vunpack.c.l.b16 %v307
    %v923 = vunpack.c.h.b16 %v307
    %v924 = vunpack.c.l.b16 %v308
    %v925 = vunpack.c.h.b16 %v308
    %v926 = vunpack.c.l.b16 %v309
    %v927 = vunpack.c.h.b16 %v309
    %v928 = vunpack.c.l.b16 %v310
    %v929 = vunpack.c.h.b16 %v310
    %v930 = vunpack.c.l.b16 %v311
    %v931 = vunpack.c.h.b16 %v311
    %v932 = vunpack.c.l.b16 %v312
    %v933 = vunpack.c.h.b16 %v312
    %v934 = vunpack.c.l.b16 %v313
    %v935 = vunpack.c.h.b16 %v313
    %v936 = vunpack.c.l.b16 %v314
    %v937 = vunpack.c.h.b16 %v314
    %v938 = vunpack.c.l.b16 %v315
    %v939 = vunpack.c.h.b16 %v315
    %v940 = vunpack.c.l.b16 %v316
    %v941 = vunpack.c.h.b16 %v316
    %v942 = vunpack.c.l.b16 %v317
    %v943 = vunpack.c.h.b16 %v317
    %v944 = vunpack.c.l.b16 %v318
    %v945 = vunpack.c.h.b16 %v318
    %v946 = vunpack.c.l.b16 %v319
    %v947 = vunpack.c.h.b16 %v319
    %v948 = vunpack.c.l.b16 %v320
    %v949 = vunpack.c.h.b16 %v320
    %v950 = vunpack.c.l.b16 %v321
    %v951 = vunpack.c.h.b16 %v321
    %v952 = vunpack.c.l.b16 %v322
    %v953 = vunpack.c.h.b16 %v322
    %v954 = vunpack.c.l.b16 %v323
    %v955 = vunpack.c.h.b16 %v323
    %v956 = vunpack.c.l.b16 %v324
    %v957 = vunpack.c.h.b16 %v324
    %v958 = vunpack.c.l.b16 %v325
    %v959 = vunpack.c.h.b16 %v325
    %v960 = vunpack.c.l.b16 %v326
    %v961 = vunpack.c.h.b16 %v326
    %v962 = vunpack.c.l.b16 %v327
    %v963 = vunpack.c.h.b16 %v327
    %v964 = vunpack.c.l.b16 %v328
    %v965 = vunpack.c.h.b16 %v328
    %v966 = vunpack.c.l.b16 %v329
    %v967 = vunpack.c.h.b16 %v329
    %v968 = vunpack.c.l.b16 %v330
    %v969 = vunpack.c.h.b16 %v330
    %v970 = vunpack.c.l.b16 %v331
    %v971 = vunpack.c.h.b16 %v331
    %v972 = vunpack.c.l.b16 %v332
    %v973 = vunpack.c.h.b16 %v332
    %v974 = vunpack.c.l.b16 %v333
    %v975 = vunpack.c.h.b16 %v333
    %v976 = vunpack.c.l.b16 %v334
    %v977 = vunpack.c.h.b16 %v334
    %v978 = vunpack.c.l.b16 %v335
    %v979 = vunpack.c.h.b16 %v335
    %v980 = vunpack.c.l.b16 %v336
    %v981 = vunpack.c.h.b16 %v336
    %v982 = vunpack.c.l.b16 %v337
    %v983 = vunpack.c.h.b16 %v337
    %v984 = vunpack.c.l.b16 %v338
    %v985 = vunpack.c.h.b16 %v338
    %v986 = vunpack.c.l.b16 %v339
    %v987 = vunpack.c.h.b16 %v339
    %v988 = vunpack.c.l.b16 %v340
    %v989 = vunpack.c.h.b16 %v340
    %v990 = vunpack.c.l.b16 %v341
    %v991 = vunpack.c.h.b16 %v341
    %v992 = vunpack.c.l.b16 %v342
    %v993 = vunpack.c.h.b16 %v342
    %v994 = vunpack.c.l.b16 %v343
    %v995 = vunpack.c.h.b16 %v343
    %v996 = vunpack.c.l.b16 %v344
    %v997 = vunpack.c.h.b16 %v344
    %v998 = vunpack.c.l.b16 %v345
    %v999 = vunpack.c.h.b16 %v345
    %v1000 = vunpack.c.l.b16 %v346
    %v1001 = vunpack.c.h.b16 %v346
    %v1002 = vunpack.c.l.b16 %v347
    %v1003 = vunpack.c.h.b16 %v347
    %v1004 = vunpack.c.l.b16 %v348
    %v1005 = vunpack.c.h.b16 %v348
    %v1006 = vunpack.c.l.b16 %v349
    %v1007 = vunpack.c.h.b16 %v349
    %v1008 = vunpack.c.l.b16 %v350
    %v1009 = vunpack.c.h.b16 %v350
    %v1010 = vunpack.c.l.b16 %v351
    %v1011 = vunpack.c.h.b16 %v351
    %v1012 = vunpack.c.l.b16 %v352
    %v1013 = vunpack.c.h.b16 %v352
    %v1014 = vunpack.c.l.b16 %v353
    %v1015 = vunpack.c.h.b16 %v353
    %v1016 = vunpack.c.l.b16 %v354
    %v1017 = vunpack.c.h.b16 %v354
    %v1018 = vunpack.c.l.b16 %v355
    %v1019 = vunpack.c.h.b16 %v355
    %v1020 = vunpack.c.l.b16 %v356
    %v1021 = vunpack.c.h.b16 %v356
    %v1022 = vunpack.c.l.b16 %v357
    %v1023 = vunpack.c.h.b16 %v357
    %v1024 = vunpack.c.l.b16 %v358
    %v1025 = vunpack.c.h.b16 %v358
    %v1026 = vunpack.c.l.b16 %v359
    %v1027 = vunpack.c.h.b16 %v359
    %v1028 = vunpack.c.l.b16 %v360
    %v1029 = vunpack.c.h.b16 %v360
    %v1030 = vunpack.c.l.b16 %v361
    %v1031 = vunpack.c.h.b16 %v361
    %v1032 = vunpack.c.l.b16 %v362
    %v1033 = vunpack.c.h.b16 %v362
    %v1034 = vunpack.c.l.b16 %v363
    %v1035 = vunpack.c.h.b16 %v363
    %v1036 = vunpack.c.l.b16 %v364
    %v1037 = vunpack.c.h.b16 %v364
    %v1038 = vunpack.c.l.b16 %v365
    %v1039 = vunpack.c.h.b16 %v365
    %v1040 = vunpack.c.l.b16 %v366
    %v1041 = vunpack.c.h.b16 %v366
    %v1042 = vunpack.c.l.b16 %v367
    %v1043 = vunpack.c.h.b16 %v367
    %v1044 = vunpack.c.l.b16 %v368
    %v1045 = vunpack.c.h.b16 %v368
    %v1046 = vunpack.c.l.b16 %v369
    %v1047 = vunpack.c.h.b16 %v369
    %v1048 = vunpack.c.l.b16 %v370
    %v1049 = vunpack.c.h.b16 %v370
    %v1050 = vunpack.c.l.b16 %v371
    %v1051 = vunpack.c.h.b16 %v371
    %v1052 = vunpack.c.l.b16 %v372
    %v1053 = vunpack.c.h.b16 %v372
    %v1054 = vunpack.c.l.b16 %v373
    %v1055 = vunpack.c.h.b16 %v373
    %v1056 = vunpack.c.l.b16 %v374
    %v1057 = vunpack.c.h.b16 %v374
    %v1058 = vunpack.c.l.b16 %v375
    %v1059 = vunpack.c.h.b16 %v375
    %v1060 = vunpack.c.l.b16 %v376
    %v1061 = vunpack.c.h.b16 %v376
    %v1062 = vunpack.c.l.b16 %v377
    %v1063 = vunpack.c.h.b16 %v377
    %v1064 = vunpack.c.l.b16 %v378
    %v1065 = vunpack.c.h.b16 %v378
    %v1066 = vunpack.c.l.b16 %v379
    %v1067 = vunpack.c.h.b16 %v379
    %v1068 = vunpack.c.l.b16 %v380
    %v1069 = vunpack.c.h.b16 %v380
    %v1070 = vunpack.c.l.b16 %v381
    %v1071 = vunpack.c.h.b16 %v381
    %v1072 = vunpack.c.l.b16 %v382
    %v1073 = vunpack.c.h.b16 %v382
    %v1074 = vunpack.c.l.b16 %v383
    %v1075 = vunpack.c.h.b16 %v383
    %v1076 = vunpack.c.l.b16 %v384
    %v1077 = vunpack.c.h.b16 %v384
    %v1078 = vunpack.c.l.b16 %v385
    %v1079 = vunpack.c.h.b16 %v385
    %v1080 = vpack.c.b16 %v636, %v632
    %v1081 = vpack.c.b16 %v637, %v633
    %v1082 = vpack.c.b16 %v638, %v634
    %v1083 = vpack.c.b16 %v639, %v635
    %v1084 = vpack.c.b16 %v644, %v640
    %v1085 = vpack.c.b16 %v645, %v641
    %v1086 = vpack.c.b16 %v646, %v642
    %v1087 = vpack.c.b16 %v647, %v643
    %v1088 = vpack.c.b16 %v652, %v648
    %v1089 = vpack.c.b16 %v653, %v649
    %v1090 = vpack.c.b16 %v654, %v650
    %v1091 = vpack.c.b16 %v655, %v651
    %v1092 = vpack.c.b16 %v660, %v656
    %v1093 = vpack.c.b16 %v661, %v657
    %v1094 = vpack.c.b16 %v662, %v658
    %v1095 = vpack.c.b16 %v663, %v659
    %v1096 = vpack.c.b16 %v668, %v664
    %v1097 = vpack.c.b16 %v669, %v665
    %v1098 = vpack.c.b16 %v670, %v666
    %v1099 = vpack.c.b16 %v671, %v667
    %v1100 = vpack.c.b16 %v676, %v672
    %v1101 = vpack.c.b16 %v677, %v673
    %v1102 = vpack.c.b16 %v678, %v674
    %v1103 = vpack.c.b16 %v679, %v675
    %v1104 = vpack.c.b16 %v684, %v680
    %v1105 = vpack.c.b16 %v685, %v681
    %v1106 = vpack.c.b16 %v686, %v682
    %v1107 = vpack.c.b16 %v687, %v683
    %v1108 = vpack.c.b16 %v692, %v688
    %v1109 = vpack.c.b16 %v693, %v689
    %v1110 = vpack.c.b16 %v694, %v690
    %v1111 = vpack.c.b16 %v695, %v691
    %v1112 = vpack.c.b16 %v700, %v696
    %v1113 = vpack.c.b16 %v701, %v697
    %v1114 = vpack.c.b16 %v702, %v698
    %v1115 = vpack.c.b16 %v703, %v699
    %v1116 = vpack.c.b16 %v708, %v704
    %v1117 = vpack.c.b16 %v709, %v705
    %v1118 = vpack.c.b16 %v710, %v706
    %v1119 = vpack.c.b16 %v711, %v707
    %v1120 = vpack.c.b16 %v716, %v712
    %v1121 = vpack.c.b16 %v717, %v713
    %v1122 = vpack.c.b16 %v718, %v714
    %v1123 = vpack.c.b16 %v719, %v715
    %v1124 = vpack.c.b16 %v724, %v720
    %v1125 = vpack.c.b16 %v725, %v721
    %v1126 = vpack.c.b16 %v726, %v722
    %v1127 = vpack.c.b16 %v727, %v723
    %v1128 = vpack.c.b16 %v732, %v728
    %v1129 = vpack.c.b16 %v733, %v729
    %v1130 = vpack.c.b16 %v734, %v730
    %v1131 = vpack.c.b16 %v735, %v731
    %v1132 = vpack.c.b16 %v740, %v736
    %v1133 = vpack.c.b16 %v741, %v737
    %v1134 = vpack.c.b16 %v742, %v738
    %v1135 = vpack.c.b16 %v743, %v739
    %v1136 = vpack.c.b16 %v748, %v744
    %v1137 = vpack.c.b16 %v749, %v745
    %v1138 = vpack.c.b16 %v750, %v746
    %v1139 = vpack.c.b16 %v751, %v747
    %v1140 = vpack.c.b16 %v756, %v752
    %v1141 = vpack.c.b16 %v757, %v753
    %v1142 = vpack.c.b16 %v758, %v754
    %v1143 = vpack.c.b16 %v759, %v755
    %v1144 = vpack.c.b16 %v764, %v760
    %v1145 = vpack.c.b16 %v765, %v761
    %v1146 = vpack.c.b16 %v766, %v762
    %v1147 = vpack.c.b16 %v767, %v763
    %v1148 = vpack.c.b16 %v772, %v768
    %v1149 = vpack.c.b16 %v773, %v769
    %v1150 = vpack.c.b16 %v774, %v770
    %v1151 = vpack.c.b16 %v775, %v771
    %v1152 = vpack.c.b16 %v780, %v776
    %v1153 = vpack.c.b16 %v781, %v777
    %v1154 = vpack.c.b16 %v782, %v778
    %v1155 = vpack.c.b16 %v783, %v779
    %v1156 = vpack.c.b16 %v788, %v784
    %v1157 = vpack.c.b16 %v789, %v785
    %v1158 = vpack.c.b16 %v790, %v786
    %v1159 = vpack.c.b16 %v791, %v787
    %v1160 = vpack.c.b16 %v796, %v792
    %v1161 = vpack.c.b16 %v797, %v793
    %v1162 = vpack.c.b16 %v798, %v794
    %v1163 = vpack.c.b16 %v799, %v795
    %v1164 = vpack.c.b16 %v804, %v800
    %v1165 = vpack.c.b16 %v805, %v801
    %v1166 = vpack.c.b16 %v806, %v802
    %v1167 = vpack.c.b16 %v807, %v803
    %v1168 = vpack.c.b16 %v812, %v808
    %v1169 = vpack.c.b16 %v813, %v809
    %v1170 = vpack.c.b16 %v814, %v810
    %v1171 = vpack.c.b16 %v815, %v811
    %v1172 = vpack.c.b16 %v820, %v816
    %v1173 = vpack.c.b16 %v821, %v817
    %v1174 = vpack.c.b16 %v822, %v818
    %v1175 = vpack.c.b16 %v823, %v819
    %v1176 = vpack.c.b16 %v828, %v824
    %v1177 = vpack.c.b16 %v829, %v825
    %v1178 = vpack.c.b16 %v830, %v826
    %v1179 = vpack.c.b16 %v831, %v827
    %v1180 = vpack.c.b16 %v836, %v832
    %v1181 = vpack.c.b16 %v837, %v833
    %v1182 = vpack.c.b16 %v838, %v834
    %v1183 = vpack.c.b16 %v839, %v835
    %v1184 = vpack.c.b16 %v844, %v840
    %v1185 = vpack.c.b16 %v845, %v841
    %v1186 = vpack.c.b16 %v846, %v842
    %v1187 = vpack.c.b16 %v847, %v843
    %v1188 = vpack.c.b16 %v852, %v848
    %v1189 = vpack.c.b16 %v853, %v849
    %v1190 = vpack.c.b16 %v854, %v850
    %v1191 = vpack.c.b16 %v855, %v851
    %v1192 = vpack.c.b16 %v860, %v856
    %v1193 = vpack.c.b16 %v861, %v857
    %v1194 = vpack.c.b16 %v862, %v858
    %v1195 = vpack.c.b16 %v863, %v859
    %v1196 = vpack.c.b16 %v868, %v864
    %v1197 = vpack.c.b16 %v869, %v865
    %v1198 = vpack.c.b16 %v870, %v866
    %v1199 = vpack.c.b16 %v871, %v867
    %v1200 = vpack.c.b16 %v876, %v872
    %v1201 = vpack.c.b16 %v877, %v873
    %v1202 = vpack.c.b16 %v878, %v874
    %v1203 = vpack.c.b16 %v879, %v875
    %v1204 = vpack.c.b16 %v884, %v880
    %v1205 = vpack.c.b16 %v885, %v881
    %v1206 = vpack.c.b16 %v886, %v882
    %v1207 = vpack.c.b16 %v887, %v883
    %v1208 = vpack.c.b16 %v892, %v888
    %v1209 = vpack.c.b16 %v893, %v889
    %v1210 = vpack.c.b16 %v894, %v890
    %v1211 = vpack.c.b16 %v895, %v891
    %v1212 = vpack.c.b16 %v900, %v896
    %v1213 = vpack.c.b16 %v901, %v897
    %v1214 = vpack.c.b16 %v902, %v898
    %v1215 = vpack.c.b16 %v903, %v899
    %v1216 = vpack.c.b16 %v908, %v904
    %v1217 = vpack.c.b16 %v909, %v905
    %v1218 = vpack.c.b16 %v910, %v906
    %v1219 = vpack.c.b16 %v911, %v907
    %v1220 = vpack.c.b16 %v916, %v912
    %v1221 = vpack.c.b16 %v917, %v913
    %v1222 = vpack.c.b16 %v918, %v914
    %v1223 = vpack.c.b16 %v919, %v915
    %v1224 = vpack.c.b16 %v924, %v920
    %v1225 = vpack.c.b16 %v925, %v921
    %v1226 = vpack.c.b16 %v926, %v922
    %v1227 = vpack.c.b16 %v927, %v923
    %v1228 = vpack.c.b16 %v932, %v928
    %v1229 = vpack.c.b16 %v933, %v929
    %v1230 = vpack.c.b16 %v934, %v930
    %v1231 = vpack.c.b16 %v935, %v931
    %v1232 = vpack.c.b16 %v940, %v936
    %v1233 = vpack.c.b16 %v941, %v937
    %v1234 = vpack.c.b16 %v942, %v938
    %v1235 = vpack.c.b16 %v943, %v939
    %v1236 = vpack.c.b16 %v948, %v944
    %v1237 = vpack.c.b16 %v949, %v945
    %v1238 = vpack.c.b16 %v950, %v946
    %v1239 = vpack.c.b16 %v951, %v947
    %v1240 = vpack.c.b16 %v956, %v952
    %v1241 = vpack.c.b16 %v957, %v953
    %v1242 = vpack.c.b16 %v958, %v954
    %v1243 = vpack.c.b16 %v959, %v955
    %v1244 = vpack.c.b16 %v964, %v960
    %v1245 = vpack.c.b16 %v965, %v961
    %v1246 = vpack.c.b16 %v966, %v962
    %v1247 = vpack.c.b16 %v967, %v963
    %v1248 = vpack.c.b16 %v972, %v968
    %v1249 = vpack.c.b16 %v973, %v969
    %v1250 = vpack.c.b16 %v974, %v970
    %v1251 = vpack.c.b16 %v975, %v971
    %v1252 = vpack.c.b16 %v980, %v976
    %v1253 = vpack.c.b16 %v981, %v977
    %v1254 = vpack.c.b16 %v982, %v978
    %v1255 = vpack.c.b16 %v983, %v979
    %v1256 = vpack.c.b16 %v988, %v984
    %v1257 = vpack.c.b16 %v989, %v985
    %v1258 = vpack.c.b16 %v990, %v986
    %v1259 = vpack.c.b16 %v991, %v987
    %v1260 = vpack.c.b16 %v996, %v992
    %v1261 = vpack.c.b16 %v997, %v993
    %v1262 = vpack.c.b16 %v998, %v994
    %v1263 = vpack.c.b16 %v999, %v995
    %v1264 = vpack.c.b16 %v1004, %v1000
    %v1265 = vpack.c.b16 %v1005, %v1001
    %v1266 = vpack.c.b16 %v1006, %v1002
    %v1267 = vpack.c.b16 %v1007, %v1003
    %v1268 = vpack.c.b16 %v1012, %v1008
    %v1269 = vpack.c.b16 %v1013, %v1009
    %v1270 = vpack.c.b16 %v1014, %v1010
    %v1271 = vpack.c.b16 %v1015, %v1011
    %v1272 = vpack.c.b16 %v1020, %v1016
    %v1273 = vpack.c.b16 %v1021, %v1017
    %v1274 = vpack.c.b16 %v1022, %v1018
    %v1275 = vpack.c.b16 %v1023, %v1019
    %v1276 = vpack.c.b16 %v1028, %v1024
    %v1277 = vpack.c.b16 %v1029, %v1025
    %v1278 = vpack.c.b16 %v1030, %v1026
    %v1279 = vpack.c.b16 %v1031, %v1027
    %v1280 = vpack.c.b16 %v1036, %v1032
    %v1281 = vpack.c.b16 %v1037, %v1033
    %v1282 = vpack.c.b16 %v1038, %v1034
    %v1283 = vpack.c.b16 %v1039, %v1035
    %v1284 = vpack.c.b16 %v1044, %v1040
    %v1285 = vpack.c.b16 %v1045, %v1041
    %v1286 = vpack.c.b16 %v1046, %v1042
    %v1287 = vpack.c.b16 %v1047, %v1043
    %v1288 = vpack.c.b16 %v1052, %v1048
    %v1289 = vpack.c.b16 %v1053, %v1049
    %v1290 = vpack.c.b16 %v1054, %v1050
    %v1291 = vpack.c.b16 %v1055, %v1051
    %v1292 = vpack.c.b16 %v1060, %v1056
    %v1293 = vpack.c.b16 %v1061, %v1057
    %v1294 = vpack.c.b16 %v1062, %v1058
    %v1295 = vpack.c.b16 %v1063, %v1059
    %v1296 = vpack.c.b16 %v1068, %v1064
    %v1297 = vpack.c.b16 %v1069, %v1065
    %v1298 = vpack.c.b16 %v1070, %v1066
    %v1299 = vpack.c.b16 %v1071, %v1067
    %v1300 = vpack.c.b16 %v1076, %v1072
    %v1301 = vpack.c.b16 %v1077, %v1073
    %v1302 = vpack.c.b16 %v1078, %v1074
    %v1303 = vpack.c.b16 %v1079, %v1075
    %1528 = vmatprep.subr.bf16.mxu0 %v1081
    %1529 = vmatpush1.bf16.msra.mxu0 %v1080
    %1530 = vmatprep.subr.bf16.mxu0 %v1085
    %1531 = vmatpush1.bf16.msra.mxu0 %v1084
    %1532 = vmatprep.subr.bf16.mxu0 %v1089
    %1533 = vmatpush1.bf16.msra.mxu0 %v1088
    %1534 = vmatprep.subr.bf16.mxu0 %v1093
    %1535 = vmatpush1.bf16.msra.mxu0 %v1092
    %1536 = vmatprep.subr.bf16.mxu0 %v1097
    %1537 = vmatpush1.bf16.msra.mxu0 %v1096
    %1538 = vmatprep.subr.bf16.mxu0 %v1101
    %1539 = vmatpush1.bf16.msra.mxu0 %v1100
    %1540 = vmatprep.subr.bf16.mxu0 %v1105
    %1541 = vmatpush1.bf16.msra.mxu0 %v1104
    %1542 = vmatprep.subr.bf16.mxu0 %v1109
    %1543 = vmatpush1.bf16.msra.mxu0 %v1108
    %1544 = vmatprep.subr.bf16.mxu0 %v1113
    %1545 = vmatpush1.bf16.msra.mxu0 %v1112
    %1546 = vmatprep.subr.bf16.mxu0 %v1117
    %1547 = vmatpush1.bf16.msra.mxu0 %v1116
    %1548 = vmatprep.subr.bf16.mxu0 %v1121
    %1549 = vmatpush1.bf16.msra.mxu0 %v1120
    %1550 = vmatprep.subr.bf16.mxu0 %v1125
    %1551 = vmatpush1.bf16.msra.mxu0 %v1124
    %1552 = vmatprep.subr.bf16.mxu0 %v1129
    %1553 = vmatpush1.bf16.msra.mxu0 %v1128
    %1554 = vmatprep.subr.bf16.mxu0 %v1133
    %1555 = vmatpush1.bf16.msra.mxu0 %v1132
    %1556 = vmatprep.subr.bf16.mxu0 %v1137
    %1557 = vmatpush1.bf16.msra.mxu0 %v1136
    %1558 = vmatprep.subr.bf16.mxu0 %v1141
    %1559 = vmatpush1.bf16.msra.mxu0 %v1140
    %1560 = vmatprep.mubr.bf16.mxu0 %v156
    %1561 = vmatmul.mubr.bf16.gmra.mrb[0].mxu0 %v155
    %v1562 = vpop.f32.mrb[0].mxu0
    %v1563 = vadd.f32 %v391, %v1562
    %v1564 = vpop.f32.mrb[0].mxu0
    %v1565 = vadd.f32 %v395, %v1564
    %v1566 = vpop.f32.mrb[0].mxu0
    %v1567 = vpop.f32.mrb[0].mxu0
    %1568 = vdwg.mxu0
    %1569 = vmatprep.subr.bf16.mxu0 %v1145
    %1570 = vmatpush1.bf16.msra.mxu0 %v1144
    %1571 = vmatprep.subr.bf16.mxu0 %v1149
    %1572 = vmatpush1.bf16.msra.mxu0 %v1148
    %1573 = vmatprep.subr.bf16.mxu0 %v1153
    %1574 = vmatpush1.bf16.msra.mxu0 %v1152
    %1575 = vmatprep.subr.bf16.mxu0 %v1157
    %1576 = vmatpush1.bf16.msra.mxu0 %v1156
    %1577 = vmatprep.subr.bf16.mxu0 %v1161
    %1578 = vmatpush1.bf16.msra.mxu0 %v1160
    %1579 = vmatprep.subr.bf16.mxu0 %v1165
    %1580 = vmatpush1.bf16.msra.mxu0 %v1164
    %1581 = vmatprep.subr.bf16.mxu0 %v1169
    %1582 = vmatpush1.bf16.msra.mxu0 %v1168
    %1583 = vmatprep.subr.bf16.mxu0 %v1173
    %1584 = vmatpush1.bf16.msra.mxu0 %v1172
    %1585 = vmatprep.subr.bf16.mxu0 %v1177
    %1586 = vmatpush1.bf16.msra.mxu0 %v1176
    %1587 = vmatprep.subr.bf16.mxu0 %v1181
    %1588 = vmatpush1.bf16.msra.mxu0 %v1180
    %1589 = vmatprep.subr.bf16.mxu0 %v1185
    %1590 = vmatpush1.bf16.msra.mxu0 %v1184
    %1591 = vmatprep.subr.bf16.mxu0 %v1189
    %1592 = vmatpush1.bf16.msra.mxu0 %v1188
    %1593 = vmatprep.subr.bf16.mxu0 %v1193
    %1594 = vmatpush1.bf16.msra.mxu0 %v1192
    %1595 = vmatprep.subr.bf16.mxu0 %v1197
    %1596 = vmatpush1.bf16.msra.mxu0 %v1196
    %1597 = vmatprep.subr.bf16.mxu0 %v1201
    %1598 = vmatpush1.bf16.msra.mxu0 %v1200
    %1599 = vmatprep.subr.bf16.mxu0 %v1205
    %1600 = vmatpush1.bf16.msra.mxu0 %v1204
    %1601 = vmatprep.mubr.bf16.mxu0 %v158
    %1602 = vmatmul.mubr.bf16.gmra.mrb[0].mxu0 %v157
    %v1603 = vpop.f32.mrb[0].mxu0
    %v1604 = vadd.f32 %v1563, %v1603
    %v1605 = vpop.f32.mrb[0].mxu0
    %v1606 = vadd.f32 %v1565, %v1605
    %v1607 = vpop.f32.mrb[0].mxu0
    %v1608 = vpop.f32.mrb[0].mxu0
    %1609 = vdwg.mxu0
    %1610 = vmatprep.subr.bf16.mxu0 %v1209
    %1611 = vmatpush1.bf16.msra.mxu0 %v1208
    %1612 = vmatprep.subr.bf16.mxu0 %v1213
    %1613 = vmatpush1.bf16.msra.mxu0 %v1212
    %1614 = vmatprep.subr.bf16.mxu0 %v1217
    %1615 = vmatpush1.bf16.msra.mxu0 %v1216
    %1616 = vmatprep.subr.bf16.mxu0 %v1221
    %1617 = vmatpush1.bf16.msra.mxu0 %v1220
    %1618 = vmatprep.subr.bf16.mxu0 %v1225
    %1619 = vmatpush1.bf16.msra.mxu0 %v1224
    %1620 = vmatprep.subr.bf16.mxu0 %v1229
    %1621 = vmatpush1.bf16.msra.mxu0 %v1228
    %1622 = vmatprep.subr.bf16.mxu0 %v1233
    %1623 = vmatpush1.bf16.msra.mxu0 %v1232
    %1624 = vmatprep.subr.bf16.mxu0 %v1237
    %1625 = vmatpush1.bf16.msra.mxu0 %v1236
    %1626 = vmatprep.subr.bf16.mxu0 %v1241
    %1627 = vmatpush1.bf16.msra.mxu0 %v1240
    %1628 = vmatprep.subr.bf16.mxu0 %v1245
    %1629 = vmatpush1.bf16.msra.mxu0 %v1244
    %1630 = vmatprep.subr.bf16.mxu0 %v1249
    %1631 = vmatpush1.bf16.msra.mxu0 %v1248
    %1632 = vmatprep.subr.bf16.mxu0 %v1253
    %1633 = vmatpush1.bf16.msra.mxu0 %v1252
    %1634 = vmatprep.subr.bf16.mxu0 %v1257
    %1635 = vmatpush1.bf16.msra.mxu0 %v1256
    %1636 = vmatprep.subr.bf16.mxu0 %v1261
    %1637 = vmatpush1.bf16.msra.mxu0 %v1260
    %1638 = vmatprep.subr.bf16.mxu0 %v1265
    %1639 = vmatpush1.bf16.msra.mxu0 %v1264
    %1640 = vmatprep.subr.bf16.mxu0 %v1269
    %1641 = vmatpush1.bf16.msra.mxu0 %v1268
    %1642 = vmatprep.mubr.bf16.mxu0 %v160
    %1643 = vmatmul.mubr.bf16.gmra.mrb[0].mxu0 %v159
    %v1644 = vpop.f32.mrb[0].mxu0
    %v1645 = vadd.f32 %v1604, %v1644
    %v1646 = vpop.f32.mrb[0].mxu0
    %v1647 = vadd.f32 %v1606, %v1646
    %v1648 = vpop.f32.mrb[0].mxu0
    %v1649 = vpop.f32.mrb[0].mxu0
    %1650 = vdwg.mxu0
    %1651 = vmatprep.subr.bf16.mxu0 %v1273
    %1652 = vmatpush1.bf16.msra.mxu0 %v1272
    %1653 = vmatprep.subr.bf16.mxu0 %v1277
    %1654 = vmatpush1.bf16.msra.mxu0 %v1276
    %1655 = vmatprep.subr.bf16.mxu0 %v1281
    %1656 = vmatpush1.bf16.msra.mxu0 %v1280
    %1657 = vmatprep.subr.bf16.mxu0 %v1285
    %1658 = vmatpush1.bf16.msra.mxu0 %v1284
    %1659 = vmatprep.subr.bf16.mxu0 %v1289
    %1660 = vmatpush1.bf16.msra.mxu0 %v1288
    %1661 = vmatprep.subr.bf16.mxu0 %v1293
    %1662 = vmatpush1.bf16.msra.mxu0 %v1292
    %1663 = vmatprep.subr.bf16.mxu0 %v1297
    %1664 = vmatpush1.bf16.msra.mxu0 %v1296
    %1665 = vmatprep.subr.bf16.mxu0 %v1301
    %1666 = vmatpush1.bf16.msra.mxu0 %v1300
    %1667 = vmatprep.subr.bf16.mxu0 0
    %1668 = vmatpush1.bf16.msra.mxu0 0
    %1669 = vmatprep.subr.bf16.mxu0 0
    %1670 = vmatpush1.bf16.msra.mxu0 0
    %1671 = vmatprep.subr.bf16.mxu0 0
    %1672 = vmatpush1.bf16.msra.mxu0 0
    %1673 = vmatprep.subr.bf16.mxu0 0
    %1674 = vmatpush1.bf16.msra.mxu0 0
    %1675 = vmatprep.subr.bf16.mxu0 0
    %1676 = vmatpush1.bf16.msra.mxu0 0
    %1677 = vmatprep.subr.bf16.mxu0 0
    %1678 = vmatpush1.bf16.msra.mxu0 0
    %1679 = vmatprep.subr.bf16.mxu0 0
    %1680 = vmatpush1.bf16.msra.mxu0 0
    %1681 = vmatprep.subr.bf16.mxu0 0
    %1682 = vmatpush1.bf16.msra.mxu0 0
    %1683 = vmatprep.mubr.bf16.mxu0 0
    %1684 = vmatmul.mubr.bf16.gmra.mrb[0].mxu0 %v161
    %v1685 = vpop.f32.mrb[0].mxu0
    %v1686 = vadd.f32 %v1645, %v1685
    %v1687 = vpop.f32.mrb[0].mxu0
    %v1688 = vadd.f32 %v1647, %v1687
    %v1689 = vpop.f32.mrb[0].mxu0
    %v1690 = vpop.f32.mrb[0].mxu0
    %1691 = vdwg.mxu0
    %1692 = vmatprep.subr.bf16.mxu0 %v1083
    %1693 = vmatpush1.bf16.msra.mxu0 %v1082
    %1694 = vmatprep.subr.bf16.mxu0 %v1087
    %1695 = vmatpush1.bf16.msra.mxu0 %v1086
    %1696 = vmatprep.subr.bf16.mxu0 %v1091
    %1697 = vmatpush1.bf16.msra.mxu0 %v1090
    %1698 = vmatprep.subr.bf16.mxu0 %v1095
    %1699 = vmatpush1.bf16.msra.mxu0 %v1094
    %1700 = vmatprep.subr.bf16.mxu0 %v1099
    %1701 = vmatpush1.bf16.msra.mxu0 %v1098
    %1702 = vmatprep.subr.bf16.mxu0 %v1103
    %1703 = vmatpush1.bf16.msra.mxu0 %v1102
    %1704 = vmatprep.subr.bf16.mxu0 %v1107
    %1705 = vmatpush1.bf16.msra.mxu0 %v1106
    %1706 = vmatprep.subr.bf16.mxu0 %v1111
    %1707 = vmatpush1.bf16.msra.mxu0 %v1110
    %1708 = vmatprep.subr.bf16.mxu0 %v1115
    %1709 = vmatpush1.bf16.msra.mxu0 %v1114
    %1710 = vmatprep.subr.bf16.mxu0 %v1119
    %1711 = vmatpush1.bf16.msra.mxu0 %v1118
    %1712 = vmatprep.subr.bf16.mxu0 %v1123
    %1713 = vmatpush1.bf16.msra.mxu0 %v1122
    %1714 = vmatprep.subr.bf16.mxu0 %v1127
    %1715 = vmatpush1.bf16.msra.mxu0 %v1126
    %1716 = vmatprep.subr.bf16.mxu0 %v1131
    %1717 = vmatpush1.bf16.msra.mxu0 %v1130
    %1718 = vmatprep.subr.bf16.mxu0 %v1135
    %1719 = vmatpush1.bf16.msra.mxu0 %v1134
    %1720 = vmatprep.subr.bf16.mxu0 %v1139
    %1721 = vmatpush1.bf16.msra.mxu0 %v1138
    %1722 = vmatprep.subr.bf16.mxu0 %v1143
    %1723 = vmatpush1.bf16.msra.mxu0 %v1142
    %1724 = vmatprep.mubr.bf16.mxu0 %v156
    %1725 = vmatmul.mubr.bf16.gmra.mrb[0].mxu0 %v155
    %v1726 = vpop.f32.mrb[0].mxu0
    %v1727 = vadd.f32 %v399, %v1726
    %v1728 = vpop.f32.mrb[0].mxu0
    %v1729 = vadd.f32 %v403, %v1728
    %v1730 = vpop.f32.mrb[0].mxu0
    %v1731 = vpop.f32.mrb[0].mxu0
    %1732 = vdwg.mxu0
    %1733 = vmatprep.subr.bf16.mxu0 %v1147
    %1734 = vmatpush1.bf16.msra.mxu0 %v1146
    %1735 = vmatprep.subr.bf16.mxu0 %v1151
    %1736 = vmatpush1.bf16.msra.mxu0 %v1150
    %1737 = vmatprep.subr.bf16.mxu0 %v1155
    %1738 = vmatpush1.bf16.msra.mxu0 %v1154
    %1739 = vmatprep.subr.bf16.mxu0 %v1159
    %1740 = vmatpush1.bf16.msra.mxu0 %v1158
    %1741 = vmatprep.subr.bf16.mxu0 %v1163
    %1742 = vmatpush1.bf16.msra.mxu0 %v1162
    %1743 = vmatprep.subr.bf16.mxu0 %v1167
    %1744 = vmatpush1.bf16.msra.mxu0 %v1166
    %1745 = vmatprep.subr.bf16.mxu0 %v1171
    %1746 = vmatpush1.bf16.msra.mxu0 %v1170
    %1747 = vmatprep.subr.bf16.mxu0 %v1175
    %1748 = vmatpush1.bf16.msra.mxu0 %v1174
    %1749 = vmatprep.subr.bf16.mxu0 %v1179
    %1750 = vmatpush1.bf16.msra.mxu0 %v1178
    %1751 = vmatprep.subr.bf16.mxu0 %v1183
    %1752 = vmatpush1.bf16.msra.mxu0 %v1182
    %1753 = vmatprep.subr.bf16.mxu0 %v1187
    %1754 = vmatpush1.bf16.msra.mxu0 %v1186
    %1755 = vmatprep.subr.bf16.mxu0 %v1191
    %1756 = vmatpush1.bf16.msra.mxu0 %v1190
    %1757 = vmatprep.subr.bf16.mxu0 %v1195
    %1758 = vmatpush1.bf16.msra.mxu0 %v1194
    %1759 = vmatprep.subr.bf16.mxu0 %v1199
    %1760 = vmatpush1.bf16.msra.mxu0 %v1198
    %1761 = vmatprep.subr.bf16.mxu0 %v1203
    %1762 = vmatpush1.bf16.msra.mxu0 %v1202
    %1763 = vmatprep.subr.bf16.mxu0 %v1207
    %1764 = vmatpush1.bf16.msra.mxu0 %v1206
    %1765 = vmatprep.mubr.bf16.mxu0 %v158
    %1766 = vmatmul.mubr.bf16.gmra.mrb[0].mxu0 %v157
    %v1767 = vpop.f32.mrb[0].mxu0
    %v1768 = vadd.f32 %v1727, %v1767
    %v1769 = vpop.f32.mrb[0].mxu0
    %v1770 = vadd.f32 %v1729, %v1769
    %v1771 = vpop.f32.mrb[0].mxu0
    %v1772 = vpop.f32.mrb[0].mxu0
    %1773 = vdwg.mxu0
    %1774 = vmatprep.subr.bf16.mxu0 %v1211
    %1775 = vmatpush1.bf16.msra.mxu0 %v1210
    %1776 = vmatprep.subr.bf16.mxu0 %v1215
    %1777 = vmatpush1.bf16.msra.mxu0 %v1214
    %1778 = vmatprep.subr.bf16.mxu0 %v1219
    %1779 = vmatpush1.bf16.msra.mxu0 %v1218
    %1780 = vmatprep.subr.bf16.mxu0 %v1223
    %1781 = vmatpush1.bf16.msra.mxu0 %v1222
    %1782 = vmatprep.subr.bf16.mxu0 %v1227
    %1783 = vmatpush1.bf16.msra.mxu0 %v1226
    %1784 = vmatprep.subr.bf16.mxu0 %v1231
    %1785 = vmatpush1.bf16.msra.mxu0 %v1230
    %1786 = vmatprep.subr.bf16.mxu0 %v1235
    %1787 = vmatpush1.bf16.msra.mxu0 %v1234
    %1788 = vmatprep.subr.bf16.mxu0 %v1239
    %1789 = vmatpush1.bf16.msra.mxu0 %v1238
    %1790 = vmatprep.subr.bf16.mxu0 %v1243
    %1791 = vmatpush1.bf16.msra.mxu0 %v1242
    %1792 = vmatprep.subr.bf16.mxu0 %v1247
    %1793 = vmatpush1.bf16.msra.mxu0 %v1246
    %1794 = vmatprep.subr.bf16.mxu0 %v1251
    %1795 = vmatpush1.bf16.msra.mxu0 %v1250
    %1796 = vmatprep.subr.bf16.mxu0 %v1255
    %1797 = vmatpush1.bf16.msra.mxu0 %v1254
    %1798 = vmatprep.subr.bf16.mxu0 %v1259
    %1799 = vmatpush1.bf16.msra.mxu0 %v1258
    %1800 = vmatprep.subr.bf16.mxu0 %v1263
    %1801 = vmatpush1.bf16.msra.mxu0 %v1262
    %1802 = vmatprep.subr.bf16.mxu0 %v1267
    %1803 = vmatpush1.bf16.msra.mxu0 %v1266
    %1804 = vmatprep.subr.bf16.mxu0 %v1271
    %1805 = vmatpush1.bf16.msra.mxu0 %v1270
    %1806 = vmatprep.mubr.bf16.mxu0 %v160
    %1807 = vmatmul.mubr.bf16.gmra.mrb[0].mxu0 %v159
    %v1808 = vpop.f32.mrb[0].mxu0
    %v1809 = vadd.f32 %v1768, %v1808
    %v1810 = vpop.f32.mrb[0].mxu0
    %v1811 = vadd.f32 %v1770, %v1810
    %v1812 = vpop.f32.mrb[0].mxu0
    %v1813 = vpop.f32.mrb[0].mxu0
    %1814 = vdwg.mxu0
    %1815 = vmatprep.subr.bf16.mxu0 %v1275
    %1816 = vmatpush1.bf16.msra.mxu0 %v1274
    %1817 = vmatprep.subr.bf16.mxu0 %v1279
    %1818 = vmatpush1.bf16.msra.mxu0 %v1278
    %1819 = vmatprep.subr.bf16.mxu0 %v1283
    %1820 = vmatpush1.bf16.msra.mxu0 %v1282
    %1821 = vmatprep.subr.bf16.mxu0 %v1287
    %1822 = vmatpush1.bf16.msra.mxu0 %v1286
    %1823 = vmatprep.subr.bf16.mxu0 %v1291
    %1824 = vmatpush1.bf16.msra.mxu0 %v1290
    %1825 = vmatprep.subr.bf16.mxu0 %v1295
    %1826 = vmatpush1.bf16.msra.mxu0 %v1294
    %1827 = vmatprep.subr.bf16.mxu0 %v1299
    %1828 = vmatpush1.bf16.msra.mxu0 %v1298
    %1829 = vmatprep.subr.bf16.mxu0 %v1303
    %1830 = vmatpush1.bf16.msra.mxu0 %v1302
    %1831 = vmatprep.subr.bf16.mxu0 0
    %1832 = vmatpush1.bf16.msra.mxu0 0
    %1833 = vmatprep.subr.bf16.mxu0 0
    %1834 = vmatpush1.bf16.msra.mxu0 0
    %1835 = vmatprep.subr.bf16.mxu0 0
    %1836 = vmatpush1.bf16.msra.mxu0 0
    %1837 = vmatprep.subr.bf16.mxu0 0
    %1838 = vmatpush1.bf16.msra.mxu0 0
    %1839 = vmatprep.subr.bf16.mxu0 0
    %1840 = vmatpush1.bf16.msra.mxu0 0
    %1841 = vmatprep.subr.bf16.mxu0 0
    %1842 = vmatpush1.bf16.msra.mxu0 0
    %1843 = vmatprep.subr.bf16.mxu0 0
    %1844 = vmatpush1.bf16.msra.mxu0 0
    %1845 = vmatprep.subr.bf16.mxu0 0
    %1846 = vmatpush1.bf16.msra.mxu0 0
    %1847 = vmatprep.mubr.bf16.mxu0 0
    %1848 = vmatmul.mubr.bf16.gmra.mrb[0].mxu0 %v161
    %v1849 = vpop.f32.mrb[0].mxu0
    %v1850 = vadd.f32 %v1809, %v1849
    %v1851 = vpop.f32.mrb[0].mxu0
    %v1852 = vadd.f32 %v1811, %v1851
    %v1853 = vpop.f32.mrb[0].mxu0
    %v1854 = vpop.f32.mrb[0].mxu0
    %1855 = vdwg.mxu0
    %v1856 = vmax.f32 %v1686, 0.0
    %v1857 = vmax.f32 %v1688, 0.0
    %v1858 = vmax.f32 %v1850, 0.0
    %v1859 = vmax.f32 %v1852, 0.0
    %v1860 = vpack.c.bf16 %v1856, %v1856
    %v1861 = vpack.c.bf16 %v1857, %v1857
    %v1862 = vpack.c.bf16 %v1858, %v1858
    %v1863 = vpack.c.bf16 %v1859, %v1859
    %v1864 = vld [vmem:[#allocation8] sm:$0xff]
    %v1865 = vld [vmem:[#allocation8 + $0x8] sm:$0xff]
    %v1866 = vld [vmem:[#allocation8 + $0x10] sm:$0xff]
    %v1867 = vld [vmem:[#allocation8 + $0x18] sm:$0xff]
    %v1868 = vld [vmem:[#allocation8 + $0x20] sm:$0xff]
    %v1869 = vld [vmem:[#allocation8 + $0x28] sm:$0xff]
    %v1870 = vld [vmem:[#allocation8 + $0x30] sm:$0xff]
    %v1871 = vld [vmem:[#allocation8 + $0x38] sm:$0xff]
    %v1872 = vld [vmem:[#allocation8 + $0x40] sm:$0xff]
    %v1873 = vld [vmem:[#allocation8 + $0x48] sm:$0xff]
    %v1874 = vld [vmem:[#allocation8 + $0x50] sm:$0xff]
    %v1875 = vld [vmem:[#allocation8 + $0x58] sm:$0xff]
    %v1876 = vld [vmem:[#allocation8 + $0x60] sm:$0xff]
    %v1877 = vld [vmem:[#allocation8 + $0x68] sm:$0xff]
    %v1878 = vld [vmem:[#allocation8 + $0x70] sm:$0xff]
    %v1879 = vld [vmem:[#allocation8 + $0x78] sm:$0xff]
    %v1880 = vld [vmem:[#allocation8 + $0x80] sm:$0xff]
    %v1881 = vld [vmem:[#allocation8 + $0x88] sm:$0xff]
    %v1882 = vld [vmem:[#allocation8 + $0x90] sm:$0xff]
    %v1883 = vld [vmem:[#allocation8 + $0x98] sm:$0xff]
    %v1884 = vld [vmem:[#allocation8 + $0xa0] sm:$0xff]
    %v1885 = vld [vmem:[#allocation8 + $0xa8] sm:$0xff]
    %v1886 = vld [vmem:[#allocation8 + $0xb0] sm:$0xff]
    %v1887 = vld [vmem:[#allocation8 + $0xb8] sm:$0xff]
    %v1888 = vld [vmem:[#allocation8 + $0xc0] sm:$0xff]
    %v1889 = vld [vmem:[#allocation8 + $0xc8] sm:$0xff]
    %v1890 = vld [vmem:[#allocation8 + $0xd0] sm:$0xff]
    %v1891 = vld [vmem:[#allocation8 + $0xd8] sm:$0xff]
    %v1892 = vld [vmem:[#allocation8 + $0xe0] sm:$0xff]
    %v1893 = vld [vmem:[#allocation8 + $0xe8] sm:$0xff]
    %v1894 = vld [vmem:[#allocation8 + $0xf0] sm:$0xff]
    %v1895 = vld [vmem:[#allocation8 + $0xf8] sm:$0xff]
    %v1896 = vld [vmem:[#allocation8 + $0x100] sm:$0xff]
    %v1897 = vld [vmem:[#allocation8 + $0x108] sm:$0xff]
    %v1898 = vld [vmem:[#allocation8 + $0x110] sm:$0xff]
    %v1899 = vld [vmem:[#allocation8 + $0x118] sm:$0xff]
    %v1900 = vld [vmem:[#allocation8 + $0x120] sm:$0xff]
    %v1901 = vld [vmem:[#allocation8 + $0x128] sm:$0xff]
    %v1902 = vld [vmem:[#allocation8 + $0x130] sm:$0xff]
    %v1903 = vld [vmem:[#allocation8 + $0x138] sm:$0xff]
    %v1904 = vld [vmem:[#allocation8 + $0x140] sm:$0xff]
    %v1905 = vld [vmem:[#allocation8 + $0x148] sm:$0xff]
    %v1906 = vld [vmem:[#allocation8 + $0x150] sm:$0xff]
    %v1907 = vld [vmem:[#allocation8 + $0x158] sm:$0xff]
    %v1908 = vld [vmem:[#allocation8 + $0x160] sm:$0xff]
    %v1909 = vld [vmem:[#allocation8 + $0x168] sm:$0xff]
    %v1910 = vld [vmem:[#allocation8 + $0x170] sm:$0xff]
    %v1911 = vld [vmem:[#allocation8 + $0x178] sm:$0xff]
    %v1912 = vld [vmem:[#allocation8 + $0x180] sm:$0xff]
    %v1913 = vld [vmem:[#allocation8 + $0x188] sm:$0xff]
    %v1914 = vld [vmem:[#allocation8 + $0x190] sm:$0xff]
    %v1915 = vld [vmem:[#allocation8 + $0x198] sm:$0xff]
    %v1916 = vld [vmem:[#allocation8 + $0x1a0] sm:$0xff]
    %v1917 = vld [vmem:[#allocation8 + $0x1a8] sm:$0xff]
    %v1918 = vld [vmem:[#allocation8 + $0x1b0] sm:$0xff]
    %v1919 = vld [vmem:[#allocation8 + $0x1b8] sm:$0xff]
    %v1920 = vld [vmem:[#allocation8 + $0x1c0] sm:$0xff]
    %v1921 = vld [vmem:[#allocation8 + $0x1c8] sm:$0xff]
    %v1922 = vld [vmem:[#allocation8 + $0x1d0] sm:$0xff]
    %v1923 = vld [vmem:[#allocation8 + $0x1d8] sm:$0xff]
    %v1924 = vld [vmem:[#allocation8 + $0x1e0] sm:$0xff]
    %v1925 = vld [vmem:[#allocation8 + $0x1e8] sm:$0xff]
    %v1926 = vld [vmem:[#allocation8 + $0x1f0] sm:$0xff]
    %v1927 = vld [vmem:[#allocation8 + $0x1f8] sm:$0xff]
    %v1928 = vld [vmem:[%s5] sm:$0x3]
    %v1930 = vlaneseq
    %v1931 = vshrl.u32 %v1930, 7
    %v1932 = vsub.s32 0, %v1931
    %v1933 = vrot.slane %v1928, %v1932
    %v1934 = vlaneseq
    %v1935 = vshrl.u32 %v1934, 7
    %v1936 = vsub.s32 1, %v1935
    %v1937 = vrot.slane %v1928, %v1936
    %v2004 = vunpack.c.l.b16 %v1864
    %v2005 = vunpack.c.h.b16 %v1864
    %v2006 = vunpack.c.l.b16 %v1865
    %v2007 = vunpack.c.h.b16 %v1865
    %v2008 = vunpack.c.l.b16 %v1866
    %v2009 = vunpack.c.h.b16 %v1866
    %v2010 = vunpack.c.l.b16 %v1867
    %v2011 = vunpack.c.h.b16 %v1867
    %v2012 = vunpack.c.l.b16 %v1868
    %v2013 = vunpack.c.h.b16 %v1868
    %v2014 = vunpack.c.l.b16 %v1869
    %v2015 = vunpack.c.h.b16 %v1869
    %v2016 = vunpack.c.l.b16 %v1870
    %v2017 = vunpack.c.h.b16 %v1870
    %v2018 = vunpack.c.l.b16 %v1871
    %v2019 = vunpack.c.h.b16 %v1871
    %v2020 = vunpack.c.l.b16 %v1872
    %v2021 = vunpack.c.h.b16 %v1872
    %v2022 = vunpack.c.l.b16 %v1873
    %v2023 = vunpack.c.h.b16 %v1873
    %v2024 = vunpack.c.l.b16 %v1874
    %v2025 = vunpack.c.h.b16 %v1874
    %v2026 = vunpack.c.l.b16 %v1875
    %v2027 = vunpack.c.h.b16 %v1875
    %v2028 = vunpack.c.l.b16 %v1876
    %v2029 = vunpack.c.h.b16 %v1876
    %v2030 = vunpack.c.l.b16 %v1877
    %v2031 = vunpack.c.h.b16 %v1877
    %v2032 = vunpack.c.l.b16 %v1878
    %v2033 = vunpack.c.h.b16 %v1878
    %v2034 = vunpack.c.l.b16 %v1879
    %v2035 = vunpack.c.h.b16 %v1879
    %v2036 = vunpack.c.l.b16 %v1880
    %v2037 = vunpack.c.h.b16 %v1880
    %v2038 = vunpack.c.l.b16 %v1881
    %v2039 = vunpack.c.h.b16 %v1881
    %v2040 = vunpack.c.l.b16 %v1882
    %v2041 = vunpack.c.h.b16 %v1882
    %v2042 = vunpack.c.l.b16 %v1883
    %v2043 = vunpack.c.h.b16 %v1883
    %v2044 = vunpack.c.l.b16 %v1884
    %v2045 = vunpack.c.h.b16 %v1884
    %v2046 = vunpack.c.l.b16 %v1885
    %v2047 = vunpack.c.h.b16 %v1885
    %v2048 = vunpack.c.l.b16 %v1886
    %v2049 = vunpack.c.h.b16 %v1886
    %v2050 = vunpack.c.l.b16 %v1887
    %v2051 = vunpack.c.h.b16 %v1887
    %v2052 = vunpack.c.l.b16 %v1888
    %v2053 = vunpack.c.h.b16 %v1888
    %v2054 = vunpack.c.l.b16 %v1889
    %v2055 = vunpack.c.h.b16 %v1889
    %v2056 = vunpack.c.l.b16 %v1890
    %v2057 = vunpack.c.h.b16 %v1890
    %v2058 = vunpack.c.l.b16 %v1891
    %v2059 = vunpack.c.h.b16 %v1891
    %v2060 = vunpack.c.l.b16 %v1892
    %v2061 = vunpack.c.h.b16 %v1892
    %v2062 = vunpack.c.l.b16 %v1893
    %v2063 = vunpack.c.h.b16 %v1893
    %v2064 = vunpack.c.l.b16 %v1894
    %v2065 = vunpack.c.h.b16 %v1894
    %v2066 = vunpack.c.l.b16 %v1895
    %v2067 = vunpack.c.h.b16 %v1895
    %v2068 = vunpack.c.l.b16 %v1896
    %v2069 = vunpack.c.h.b16 %v1896
    %v2070 = vunpack.c.l.b16 %v1897
    %v2071 = vunpack.c.h.b16 %v1897
    %v2072 = vunpack.c.l.b16 %v1898
    %v2073 = vunpack.c.h.b16 %v1898
    %v2074 = vunpack.c.l.b16 %v1899
    %v2075 = vunpack.c.h.b16 %v1899
    %v2076 = vunpack.c.l.b16 %v1900
    %v2077 = vunpack.c.h.b16 %v1900
    %v2078 = vunpack.c.l.b16 %v1901
    %v2079 = vunpack.c.h.b16 %v1901
    %v2080 = vunpack.c.l.b16 %v1902
    %v2081 = vunpack.c.h.b16 %v1902
    %v2082 = vunpack.c.l.b16 %v1903
    %v2083 = vunpack.c.h.b16 %v1903
    %v2084 = vunpack.c.l.b16 %v1904
    %v2085 = vunpack.c.h.b16 %v1904
    %v2086 = vunpack.c.l.b16 %v1905
    %v2087 = vunpack.c.h.b16 %v1905
    %v2088 = vunpack.c.l.b16 %v1906
    %v2089 = vunpack.c.h.b16 %v1906
    %v2090 = vunpack.c.l.b16 %v1907
    %v2091 = vunpack.c.h.b16 %v1907
    %v2092 = vunpack.c.l.b16 %v1908
    %v2093 = vunpack.c.h.b16 %v1908
    %v2094 = vunpack.c.l.b16 %v1909
    %v2095 = vunpack.c.h.b16 %v1909
    %v2096 = vunpack.c.l.b16 %v1910
    %v2097 = vunpack.c.h.b16 %v1910
    %v2098 = vunpack.c.l.b16 %v1911
    %v2099 = vunpack.c.h.b16 %v1911
    %v2100 = vunpack.c.l.b16 %v1912
    %v2101 = vunpack.c.h.b16 %v1912
    %v2102 = vunpack.c.l.b16 %v1913
    %v2103 = vunpack.c.h.b16 %v1913
    %v2104 = vunpack.c.l.b16 %v1914
    %v2105 = vunpack.c.h.b16 %v1914
    %v2106 = vunpack.c.l.b16 %v1915
    %v2107 = vunpack.c.h.b16 %v1915
    %v2108 = vunpack.c.l.b16 %v1916
    %v2109 = vunpack.c.h.b16 %v1916
    %v2110 = vunpack.c.l.b16 %v1917
    %v2111 = vunpack.c.h.b16 %v1917
    %v2112 = vunpack.c.l.b16 %v1918
    %v2113 = vunpack.c.h.b16 %v1918
    %v2114 = vunpack.c.l.b16 %v1919
    %v2115 = vunpack.c.h.b16 %v1919
    %v2116 = vunpack.c.l.b16 %v1920
    %v2117 = vunpack.c.h.b16 %v1920
    %v2118 = vunpack.c.l.b16 %v1921
    %v2119 = vunpack.c.h.b16 %v1921
    %v2120 = vunpack.c.l.b16 %v1922
    %v2121 = vunpack.c.h.b16 %v1922
    %v2122 = vunpack.c.l.b16 %v1923
    %v2123 = vunpack.c.h.b16 %v1923
    %v2124 = vunpack.c.l.b16 %v1924
    %v2125 = vunpack.c.h.b16 %v1924
    %v2126 = vunpack.c.l.b16 %v1925
    %v2127 = vunpack.c.h.b16 %v1925
    %v2128 = vunpack.c.l.b16 %v1926
    %v2129 = vunpack.c.h.b16 %v1926
    %v2130 = vunpack.c.l.b16 %v1927
    %v2131 = vunpack.c.h.b16 %v1927
    %v2132 = vpack.c.b16 %v2006, %v2004
    %v2133 = vpack.c.b16 %v2007, %v2005
    %v2134 = vpack.c.b16 %v2010, %v2008
    %v2135 = vpack.c.b16 %v2011, %v2009
    %v2136 = vpack.c.b16 %v2014, %v2012
    %v2137 = vpack.c.b16 %v2015, %v2013
    %v2138 = vpack.c.b16 %v2018, %v2016
    %v2139 = vpack.c.b16 %v2019, %v2017
    %v2140 = vpack.c.b16 %v2022, %v2020
    %v2141 = vpack.c.b16 %v2023, %v2021
    %v2142 = vpack.c.b16 %v2026, %v2024
    %v2143 = vpack.c.b16 %v2027, %v2025
    %v2144 = vpack.c.b16 %v2030, %v2028
    %v2145 = vpack.c.b16 %v2031, %v2029
    %v2146 = vpack.c.b16 %v2034, %v2032
    %v2147 = vpack.c.b16 %v2035, %v2033
    %v2148 = vpack.c.b16 %v2038, %v2036
    %v2149 = vpack.c.b16 %v2039, %v2037
    %v2150 = vpack.c.b16 %v2042, %v2040
    %v2151 = vpack.c.b16 %v2043, %v2041
    %v2152 = vpack.c.b16 %v2046, %v2044
    %v2153 = vpack.c.b16 %v2047, %v2045
    %v2154 = vpack.c.b16 %v2050, %v2048
    %v2155 = vpack.c.b16 %v2051, %v2049
    %v2156 = vpack.c.b16 %v2054, %v2052
    %v2157 = vpack.c.b16 %v2055, %v2053
    %v2158 = vpack.c.b16 %v2058, %v2056
    %v2159 = vpack.c.b16 %v2059, %v2057
    %v2160 = vpack.c.b16 %v2062, %v2060
    %v2161 = vpack.c.b16 %v2063, %v2061
    %v2162 = vpack.c.b16 %v2066, %v2064
    %v2163 = vpack.c.b16 %v2067, %v2065
    %v2164 = vpack.c.b16 %v2070, %v2068
    %v2165 = vpack.c.b16 %v2071, %v2069
    %v2166 = vpack.c.b16 %v2074, %v2072
    %v2167 = vpack.c.b16 %v2075, %v2073
    %v2168 = vpack.c.b16 %v2078, %v2076
    %v2169 = vpack.c.b16 %v2079, %v2077
    %v2170 = vpack.c.b16 %v2082, %v2080
    %v2171 = vpack.c.b16 %v2083, %v2081
    %v2172 = vpack.c.b16 %v2086, %v2084
    %v2173 = vpack.c.b16 %v2087, %v2085
    %v2174 = vpack.c.b16 %v2090, %v2088
    %v2175 = vpack.c.b16 %v2091, %v2089
    %v2176 = vpack.c.b16 %v2094, %v2092
    %v2177 = vpack.c.b16 %v2095, %v2093
    %v2178 = vpack.c.b16 %v2098, %v2096
    %v2179 = vpack.c.b16 %v2099, %v2097
    %v2180 = vpack.c.b16 %v2102, %v2100
    %v2181 = vpack.c.b16 %v2103, %v2101
    %v2182 = vpack.c.b16 %v2106, %v2104
    %v2183 = vpack.c.b16 %v2107, %v2105
    %v2184 = vpack.c.b16 %v2110, %v2108
    %v2185 = vpack.c.b16 %v2111, %v2109
    %v2186 = vpack.c.b16 %v2114, %v2112
    %v2187 = vpack.c.b16 %v2115, %v2113
    %v2188 = vpack.c.b16 %v2118, %v2116
    %v2189 = vpack.c.b16 %v2119, %v2117
    %v2190 = vpack.c.b16 %v2122, %v2120
    %v2191 = vpack.c.b16 %v2123, %v2121
    %v2192 = vpack.c.b16 %v2126, %v2124
    %v2193 = vpack.c.b16 %v2127, %v2125
    %v2194 = vpack.c.b16 %v2130, %v2128
    %v2195 = vpack.c.b16 %v2131, %v2129
    %2260 = vmatprep.subr.bf16.mxu0 %v2133
    %2261 = vmatpush1.bf16.msra.mxu0 %v2132
    %2262 = vmatprep.subr.bf16.mxu0 %v2135
    %2263 = vmatpush1.bf16.msra.mxu0 %v2134
    %2264 = vmatprep.subr.bf16.mxu0 %v2137
    %2265 = vmatpush1.bf16.msra.mxu0 %v2136
    %2266 = vmatprep.subr.bf16.mxu0 %v2139
    %2267 = vmatpush1.bf16.msra.mxu0 %v2138
    %2268 = vmatprep.subr.bf16.mxu0 %v2141
    %2269 = vmatpush1.bf16.msra.mxu0 %v2140
    %2270 = vmatprep.subr.bf16.mxu0 %v2143
    %2271 = vmatpush1.bf16.msra.mxu0 %v2142
    %2272 = vmatprep.subr.bf16.mxu0 %v2145
    %2273 = vmatpush1.bf16.msra.mxu0 %v2144
    %2274 = vmatprep.subr.bf16.mxu0 %v2147
    %2275 = vmatpush1.bf16.msra.mxu0 %v2146
    %2276 = vmatprep.subr.bf16.mxu0 %v2149
    %2277 = vmatpush1.bf16.msra.mxu0 %v2148
    %2278 = vmatprep.subr.bf16.mxu0 %v2151
    %2279 = vmatpush1.bf16.msra.mxu0 %v2150
    %2280 = vmatprep.subr.bf16.mxu0 %v2153
    %2281 = vmatpush1.bf16.msra.mxu0 %v2152
    %2282 = vmatprep.subr.bf16.mxu0 %v2155
    %2283 = vmatpush1.bf16.msra.mxu0 %v2154
    %2284 = vmatprep.subr.bf16.mxu0 %v2157
    %2285 = vmatpush1.bf16.msra.mxu0 %v2156
    %2286 = vmatprep.subr.bf16.mxu0 %v2159
    %2287 = vmatpush1.bf16.msra.mxu0 %v2158
    %2288 = vmatprep.subr.bf16.mxu0 %v2161
    %2289 = vmatpush1.bf16.msra.mxu0 %v2160
    %2290 = vmatprep.subr.bf16.mxu0 %v2163
    %2291 = vmatpush1.bf16.msra.mxu0 %v2162
    %2292 = vmatprep.mubr.bf16.mxu0 %v1861
    %2293 = vmatmul.mubr.bf16.gmra.mrb[0].mxu0 %v1860
    %v2294 = vpop.f32.mrb[0].mxu0
    %v2295 = vadd.f32 %v1933, %v2294
    %v2296 = vpop.f32.mrb[0].mxu0
    %v2297 = vadd.f32 %v1937, %v2296
    %v2298 = vpop.f32.mrb[0].mxu0
    %v2299 = vpop.f32.mrb[0].mxu0
    %2300 = vdwg.mxu0
    %2301 = vmatprep.subr.bf16.mxu0 %v2165
    %2302 = vmatpush1.bf16.msra.mxu0 %v2164
    %2303 = vmatprep.subr.bf16.mxu0 %v2167
    %2304 = vmatpush1.bf16.msra.mxu0 %v2166
    %2305 = vmatprep.subr.bf16.mxu0 %v2169
    %2306 = vmatpush1.bf16.msra.mxu0 %v2168
    %2307 = vmatprep.subr.bf16.mxu0 %v2171
    %2308 = vmatpush1.bf16.msra.mxu0 %v2170
    %2309 = vmatprep.subr.bf16.mxu0 %v2173
    %2310 = vmatpush1.bf16.msra.mxu0 %v2172
    %2311 = vmatprep.subr.bf16.mxu0 %v2175
    %2312 = vmatpush1.bf16.msra.mxu0 %v2174
    %2313 = vmatprep.subr.bf16.mxu0 %v2177
    %2314 = vmatpush1.bf16.msra.mxu0 %v2176
    %2315 = vmatprep.subr.bf16.mxu0 %v2179
    %2316 = vmatpush1.bf16.msra.mxu0 %v2178
    %2317 = vmatprep.subr.bf16.mxu0 %v2181
    %2318 = vmatpush1.bf16.msra.mxu0 %v2180
    %2319 = vmatprep.subr.bf16.mxu0 %v2183
    %2320 = vmatpush1.bf16.msra.mxu0 %v2182
    %2321 = vmatprep.subr.bf16.mxu0 %v2185
    %2322 = vmatpush1.bf16.msra.mxu0 %v2184
    %2323 = vmatprep.subr.bf16.mxu0 %v2187
    %2324 = vmatpush1.bf16.msra.mxu0 %v2186
    %2325 = vmatprep.subr.bf16.mxu0 %v2189
    %2326 = vmatpush1.bf16.msra.mxu0 %v2188
    %2327 = vmatprep.subr.bf16.mxu0 %v2191
    %2328 = vmatpush1.bf16.msra.mxu0 %v2190
    %2329 = vmatprep.subr.bf16.mxu0 %v2193
    %2330 = vmatpush1.bf16.msra.mxu0 %v2192
    %2331 = vmatprep.subr.bf16.mxu0 %v2195
    %2332 = vmatpush1.bf16.msra.mxu0 %v2194
    %2333 = vmatprep.mubr.bf16.mxu0 %v1863
    %2334 = vmatmul.mubr.bf16.gmra.mrb[0].mxu0 %v1862
    %v2335 = vpop.f32.mrb[0].mxu0
    %v2336 = vadd.f32 %v2295, %v2335
    %v2337 = vpop.f32.mrb[0].mxu0
    %v2338 = vadd.f32 %v2297, %v2337
    %v2339 = vpop.f32.mrb[0].mxu0
    %v2340 = vpop.f32.mrb[0].mxu0
    %2341 = vdwg.mxu0
    %v2342 = vmax.f32 %v2336, 0.0
    %v2343 = vmax.f32 %v2338, 0.0
    %v2344 = vpack.c.bf16 %v2342, %v2342
    %v2345 = vpack.c.bf16 %v2343, %v2343
    %v2346 = vld [vmem:[#allocation10] sm:$0xff]
    %v2347 = vld [vmem:[#allocation10 + $0x8] sm:$0xff]
    %v2348 = vld [vmem:[#allocation10 + $0x10] sm:$0xff]
    %v2349 = vld [vmem:[#allocation10 + $0x18] sm:$0xff]
    %v2350 = vld [vmem:[#allocation10 + $0x20] sm:$0xff]
    %v2351 = vld [vmem:[#allocation10 + $0x28] sm:$0xff]
    %v2352 = vld [vmem:[#allocation10 + $0x30] sm:$0xff]
    %v2353 = vld [vmem:[#allocation10 + $0x38] sm:$0xff]
    %v2354 = vld [vmem:[#allocation10 + $0x40] sm:$0xff]
    %v2355 = vld [vmem:[#allocation10 + $0x48] sm:$0xff]
    %v2356 = vld [vmem:[#allocation10 + $0x50] sm:$0xff]
    %v2357 = vld [vmem:[#allocation10 + $0x58] sm:$0xff]
    %v2358 = vld [vmem:[#allocation10 + $0x60] sm:$0xff]
    %v2359 = vld [vmem:[#allocation10 + $0x68] sm:$0xff]
    %v2360 = vld [vmem:[#allocation10 + $0x70] sm:$0xff]
    %v2361 = vld [vmem:[#allocation10 + $0x78] sm:$0xff]
    %v2362 = vld [vmem:[#allocation10 + $0x80] sm:$0xff]
    %v2363 = vld [vmem:[#allocation10 + $0x88] sm:$0xff]
    %v2364 = vld [vmem:[#allocation10 + $0x90] sm:$0xff]
    %v2365 = vld [vmem:[#allocation10 + $0x98] sm:$0xff]
    %v2366 = vld [vmem:[#allocation10 + $0xa0] sm:$0xff]
    %v2367 = vld [vmem:[#allocation10 + $0xa8] sm:$0xff]
    %v2368 = vld [vmem:[#allocation10 + $0xb0] sm:$0xff]
    %v2369 = vld [vmem:[#allocation10 + $0xb8] sm:$0xff]
    %v2370 = vld [vmem:[#allocation10 + $0xc0] sm:$0xff]
    %v2371 = vld [vmem:[#allocation10 + $0xc8] sm:$0xff]
    %v2372 = vld [vmem:[#allocation10 + $0xd0] sm:$0xff]
    %v2373 = vld [vmem:[#allocation10 + $0xd8] sm:$0xff]
    %v2374 = vld [vmem:[#allocation10 + $0xe0] sm:$0xff]
    %v2375 = vld [vmem:[#allocation10 + $0xe8] sm:$0xff]
    %v2376 = vld [vmem:[#allocation10 + $0xf0] sm:$0xff]
    %v2377 = vld [vmem:[#allocation10 + $0xf8] sm:$0xff]
    %v2378 = vld [vmem:[%s7] sm:$0x3]
    %v2380 = vlaneseq
    %v2381 = vshrl.u32 %v2380, 7
    %v2382 = vsub.s32 0, %v2381
    %v2383 = vrot.slane %v2378, %v2382
    %v2384 = vlaneseq
    %v2385 = vshrl.u32 %v2384, 7
    %v2386 = vsub.s32 1, %v2385
    %v2387 = vrot.slane %v2378, %v2386
    %v2422 = vunpack.c.l.b16 %v2346
    %v2423 = vunpack.c.h.b16 %v2346
    %v2424 = vunpack.c.l.b16 %v2347
    %v2425 = vunpack.c.h.b16 %v2347
    %v2426 = vunpack.c.l.b16 %v2348
    %v2427 = vunpack.c.h.b16 %v2348
    %v2428 = vunpack.c.l.b16 %v2349
    %v2429 = vunpack.c.h.b16 %v2349
    %v2430 = vunpack.c.l.b16 %v2350
    %v2431 = vunpack.c.h.b16 %v2350
    %v2432 = vunpack.c.l.b16 %v2351
    %v2433 = vunpack.c.h.b16 %v2351
    %v2434 = vunpack.c.l.b16 %v2352
    %v2435 = vunpack.c.h.b16 %v2352
    %v2436 = vunpack.c.l.b16 %v2353
    %v2437 = vunpack.c.h.b16 %v2353
    %v2438 = vunpack.c.l.b16 %v2354
    %v2439 = vunpack.c.h.b16 %v2354
    %v2440 = vunpack.c.l.b16 %v2355
    %v2441 = vunpack.c.h.b16 %v2355
    %v2442 = vunpack.c.l.b16 %v2356
    %v2443 = vunpack.c.h.b16 %v2356
    %v2444 = vunpack.c.l.b16 %v2357
    %v2445 = vunpack.c.h.b16 %v2357
    %v2446 = vunpack.c.l.b16 %v2358
    %v2447 = vunpack.c.h.b16 %v2358
    %v2448 = vunpack.c.l.b16 %v2359
    %v2449 = vunpack.c.h.b16 %v2359
    %v2450 = vunpack.c.l.b16 %v2360
    %v2451 = vunpack.c.h.b16 %v2360
    %v2452 = vunpack.c.l.b16 %v2361
    %v2453 = vunpack.c.h.b16 %v2361
    %v2454 = vunpack.c.l.b16 %v2362
    %v2455 = vunpack.c.h.b16 %v2362
    %v2456 = vunpack.c.l.b16 %v2363
    %v2457 = vunpack.c.h.b16 %v2363
    %v2458 = vunpack.c.l.b16 %v2364
    %v2459 = vunpack.c.h.b16 %v2364
    %v2460 = vunpack.c.l.b16 %v2365
    %v2461 = vunpack.c.h.b16 %v2365
    %v2462 = vunpack.c.l.b16 %v2366
    %v2463 = vunpack.c.h.b16 %v2366
    %v2464 = vunpack.c.l.b16 %v2367
    %v2465 = vunpack.c.h.b16 %v2367
    %v2466 = vunpack.c.l.b16 %v2368
    %v2467 = vunpack.c.h.b16 %v2368
    %v2468 = vunpack.c.l.b16 %v2369
    %v2469 = vunpack.c.h.b16 %v2369
    %v2470 = vunpack.c.l.b16 %v2370
    %v2471 = vunpack.c.h.b16 %v2370
    %v2472 = vunpack.c.l.b16 %v2371
    %v2473 = vunpack.c.h.b16 %v2371
    %v2474 = vunpack.c.l.b16 %v2372
    %v2475 = vunpack.c.h.b16 %v2372
    %v2476 = vunpack.c.l.b16 %v2373
    %v2477 = vunpack.c.h.b16 %v2373
    %v2478 = vunpack.c.l.b16 %v2374
    %v2479 = vunpack.c.h.b16 %v2374
    %v2480 = vunpack.c.l.b16 %v2375
    %v2481 = vunpack.c.h.b16 %v2375
    %v2482 = vunpack.c.l.b16 %v2376
    %v2483 = vunpack.c.h.b16 %v2376
    %v2484 = vunpack.c.l.b16 %v2377
    %v2485 = vunpack.c.h.b16 %v2377
    %v2486 = vpack.c.b16 %v2424, %v2422
    %v2487 = vpack.c.b16 %v2425, %v2423
    %v2488 = vpack.c.b16 %v2428, %v2426
    %v2489 = vpack.c.b16 %v2429, %v2427
    %v2490 = vpack.c.b16 %v2432, %v2430
    %v2491 = vpack.c.b16 %v2433, %v2431
    %v2492 = vpack.c.b16 %v2436, %v2434
    %v2493 = vpack.c.b16 %v2437, %v2435
    %v2494 = vpack.c.b16 %v2440, %v2438
    %v2495 = vpack.c.b16 %v2441, %v2439
    %v2496 = vpack.c.b16 %v2444, %v2442
    %v2497 = vpack.c.b16 %v2445, %v2443
    %v2498 = vpack.c.b16 %v2448, %v2446
    %v2499 = vpack.c.b16 %v2449, %v2447
    %v2500 = vpack.c.b16 %v2452, %v2450
    %v2501 = vpack.c.b16 %v2453, %v2451
    %v2502 = vpack.c.b16 %v2456, %v2454
    %v2503 = vpack.c.b16 %v2457, %v2455
    %v2504 = vpack.c.b16 %v2460, %v2458
    %v2505 = vpack.c.b16 %v2461, %v2459
    %v2506 = vpack.c.b16 %v2464, %v2462
    %v2507 = vpack.c.b16 %v2465, %v2463
    %v2508 = vpack.c.b16 %v2468, %v2466
    %v2509 = vpack.c.b16 %v2469, %v2467
    %v2510 = vpack.c.b16 %v2472, %v2470
    %v2511 = vpack.c.b16 %v2473, %v2471
    %v2512 = vpack.c.b16 %v2476, %v2474
    %v2513 = vpack.c.b16 %v2477, %v2475
    %v2514 = vpack.c.b16 %v2480, %v2478
    %v2515 = vpack.c.b16 %v2481, %v2479
    %v2516 = vpack.c.b16 %v2484, %v2482
    %v2517 = vpack.c.b16 %v2485, %v2483
    %2550 = vmatprep.subr.bf16.mxu0 %v2487
    %2551 = vmatpush1.bf16.msra.mxu0 %v2486
    %2552 = vmatprep.subr.bf16.mxu0 %v2489
    %2553 = vmatpush1.bf16.msra.mxu0 %v2488
    %2554 = vmatprep.subr.bf16.mxu0 %v2491
    %2555 = vmatpush1.bf16.msra.mxu0 %v2490
    %2556 = vmatprep.subr.bf16.mxu0 %v2493
    %2557 = vmatpush1.bf16.msra.mxu0 %v2492
    %2558 = vmatprep.subr.bf16.mxu0 %v2495
    %2559 = vmatpush1.bf16.msra.mxu0 %v2494
    %2560 = vmatprep.subr.bf16.mxu0 %v2497
    %2561 = vmatpush1.bf16.msra.mxu0 %v2496
    %2562 = vmatprep.subr.bf16.mxu0 %v2499
    %2563 = vmatpush1.bf16.msra.mxu0 %v2498
    %2564 = vmatprep.subr.bf16.mxu0 %v2501
    %2565 = vmatpush1.bf16.msra.mxu0 %v2500
    %2566 = vmatprep.subr.bf16.mxu0 %v2503
    %2567 = vmatpush1.bf16.msra.mxu0 %v2502
    %2568 = vmatprep.subr.bf16.mxu0 %v2505
    %2569 = vmatpush1.bf16.msra.mxu0 %v2504
    %2570 = vmatprep.subr.bf16.mxu0 %v2507
    %2571 = vmatpush1.bf16.msra.mxu0 %v2506
    %2572 = vmatprep.subr.bf16.mxu0 %v2509
    %2573 = vmatpush1.bf16.msra.mxu0 %v2508
    %2574 = vmatprep.subr.bf16.mxu0 %v2511
    %2575 = vmatpush1.bf16.msra.mxu0 %v2510
    %2576 = vmatprep.subr.bf16.mxu0 %v2513
    %2577 = vmatpush1.bf16.msra.mxu0 %v2512
    %2578 = vmatprep.subr.bf16.mxu0 %v2515
    %2579 = vmatpush1.bf16.msra.mxu0 %v2514
    %2580 = vmatprep.subr.bf16.mxu0 %v2517
    %2581 = vmatpush1.bf16.msra.mxu0 %v2516
    %2582 = vmatprep.mubr.bf16.mxu0 %v2345
    %2583 = vmatmul.mubr.bf16.gmra.mrb[0].mxu0 %v2344
    %v2584 = vpop.f32.mrb[0].mxu0
    %v2585 = vadd.f32 %v2383, %v2584
    %v2586 = vpop.f32.mrb[0].mxu0
    %v2587 = vadd.f32 %v2387, %v2586
    %v2588 = vpop.f32.mrb[0].mxu0
    %v2589 = vpop.f32.mrb[0].mxu0
    %2590 = vdwg.mxu0
    %v2591 = vmax.f32 %v2585, 0.0
    %v2592 = vmax.f32 %v2587, 0.0
    %v2593 = vpack.c.bf16 %v2591, %v2591
    %v2594 = vpack.c.bf16 %v2592, %v2592
    %v2595 = vld [vmem:[#allocation11] sm:$0xff]
    %v2596 = vld [vmem:[#allocation11 + $0x8] sm:$0xff]
    %v2597 = vld [vmem:[#allocation11 + $0x10] sm:$0xff]
    %v2598 = vld [vmem:[#allocation11 + $0x18] sm:$0xff]
    %v2599 = vld [vmem:[#allocation11 + $0x20] sm:$0xff]
    %v2600 = vld [vmem:[#allocation11 + $0x28] sm:$0xff]
    %v2601 = vld [vmem:[#allocation11 + $0x30] sm:$0xff]
    %v2602 = vld [vmem:[#allocation11 + $0x38] sm:$0xff]
    %v2603 = vld [vmem:[#allocation11 + $0x40] sm:$0xff]
    %v2604 = vld [vmem:[#allocation11 + $0x48] sm:$0xff]
    %v2605 = vld [vmem:[#allocation11 + $0x50] sm:$0xff]
    %v2606 = vld [vmem:[#allocation11 + $0x58] sm:$0xff]
    %v2607 = vld [vmem:[#allocation11 + $0x60] sm:$0xff]
    %v2608 = vld [vmem:[#allocation11 + $0x68] sm:$0xff]
    %v2609 = vld [vmem:[#allocation11 + $0x70] sm:$0xff]
    %v2610 = vld [vmem:[#allocation11 + $0x78] sm:$0xff]
    %v2611 = vld [vmem:[#allocation11 + $0x80] sm:$0xff]
    %v2612 = vld [vmem:[#allocation11 + $0x88] sm:$0xff]
    %v2613 = vld [vmem:[#allocation11 + $0x90] sm:$0xff]
    %v2614 = vld [vmem:[#allocation11 + $0x98] sm:$0xff]
    %v2615 = vld [vmem:[#allocation11 + $0xa0] sm:$0xff]
    %v2616 = vld [vmem:[#allocation11 + $0xa8] sm:$0xff]
    %v2617 = vld [vmem:[#allocation11 + $0xb0] sm:$0xff]
    %v2618 = vld [vmem:[#allocation11 + $0xb8] sm:$0xff]
    %v2619 = vld [vmem:[#allocation11 + $0xc0] sm:$0xff]
    %v2620 = vld [vmem:[#allocation11 + $0xc8] sm:$0xff]
    %v2621 = vld [vmem:[#allocation11 + $0xd0] sm:$0xff]
    %v2622 = vld [vmem:[#allocation11 + $0xd8] sm:$0xff]
    %v2623 = vld [vmem:[#allocation11 + $0xe0] sm:$0xff]
    %v2624 = vld [vmem:[#allocation11 + $0xe8] sm:$0xff]
    %v2625 = vld [vmem:[#allocation11 + $0xf0] sm:$0xff]
    %v2626 = vld [vmem:[#allocation11 + $0xf8] sm:$0xff]
    %v2627 = vld [vmem:[#allocation11 + $0x100] sm:$0xff]
    %v2628 = vld [vmem:[#allocation11 + $0x108] sm:$0xff]
    %v2629 = vld [vmem:[#allocation11 + $0x110] sm:$0xff]
    %v2630 = vld [vmem:[#allocation11 + $0x118] sm:$0xff]
    %v2631 = vld [vmem:[#allocation11 + $0x120] sm:$0xff]
    %v2632 = vld [vmem:[#allocation11 + $0x128] sm:$0xff]
    %v2633 = vld [vmem:[#allocation11 + $0x130] sm:$0xff]
    %v2634 = vld [vmem:[#allocation11 + $0x138] sm:$0xff]
    %v2635 = vld [vmem:[#allocation11 + $0x140] sm:$0xff]
    %v2636 = vld [vmem:[#allocation11 + $0x148] sm:$0xff]
    %v2637 = vld [vmem:[#allocation11 + $0x150] sm:$0xff]
    %v2638 = vld [vmem:[#allocation11 + $0x158] sm:$0xff]
    %v2639 = vld [vmem:[#allocation11 + $0x160] sm:$0xff]
    %v2640 = vld [vmem:[#allocation11 + $0x168] sm:$0xff]
    %v2641 = vld [vmem:[#allocation11 + $0x170] sm:$0xff]
    %v2642 = vld [vmem:[#allocation11 + $0x178] sm:$0xff]
    %v2643 = vld [vmem:[#allocation11 + $0x180] sm:$0xff]
    %v2644 = vld [vmem:[#allocation11 + $0x188] sm:$0xff]
    %v2645 = vld [vmem:[#allocation11 + $0x190] sm:$0xff]
    %v2646 = vld [vmem:[#allocation11 + $0x198] sm:$0xff]
    %v2647 = vld [vmem:[#allocation11 + $0x1a0] sm:$0xff]
    %v2648 = vld [vmem:[#allocation11 + $0x1a8] sm:$0xff]
    %v2649 = vld [vmem:[#allocation11 + $0x1b0] sm:$0xff]
    %v2650 = vld [vmem:[#allocation11 + $0x1b8] sm:$0xff]
    %v2651 = vld [vmem:[#allocation11 + $0x1c0] sm:$0xff]
    %v2652 = vld [vmem:[#allocation11 + $0x1c8] sm:$0xff]
    %v2653 = vld [vmem:[#allocation11 + $0x1d0] sm:$0xff]
    %v2654 = vld [vmem:[#allocation11 + $0x1d8] sm:$0xff]
    %v2655 = vld [vmem:[#allocation11 + $0x1e0] sm:$0xff]
    %v2656 = vld [vmem:[#allocation11 + $0x1e8] sm:$0xff]
    %v2657 = vld [vmem:[#allocation11 + $0x1f0] sm:$0xff]
    %v2658 = vld [vmem:[#allocation11 + $0x1f8] sm:$0xff]
    %v2659 = vld [vmem:[%s9] sm:$0xf]
    %v2661 = vlaneseq
    %v2662 = vshrl.u32 %v2661, 7
    %v2663 = vsub.s32 0, %v2662
    %v2664 = vrot.slane %v2659, %v2663
    %v2665 = vlaneseq
    %v2666 = vshrl.u32 %v2665, 7
    %v2667 = vsub.s32 1, %v2666
    %v2668 = vrot.slane %v2659, %v2667
    %v2669 = vlaneseq
    %v2670 = vshrl.u32 %v2669, 7
    %v2671 = vsub.s32 2, %v2670
    %v2672 = vrot.slane %v2659, %v2671
    %v2673 = vlaneseq
    %v2674 = vshrl.u32 %v2673, 7
    %v2675 = vsub.s32 3, %v2674
    %v2676 = vrot.slane %v2659, %v2675
    %v2745 = vunpack.c.l.b16 %v2595
    %v2746 = vunpack.c.h.b16 %v2595
    %v2747 = vunpack.c.l.b16 %v2596
    %v2748 = vunpack.c.h.b16 %v2596
    %v2749 = vunpack.c.l.b16 %v2597
    %v2750 = vunpack.c.h.b16 %v2597
    %v2751 = vunpack.c.l.b16 %v2598
    %v2752 = vunpack.c.h.b16 %v2598
    %v2753 = vunpack.c.l.b16 %v2599
    %v2754 = vunpack.c.h.b16 %v2599
    %v2755 = vunpack.c.l.b16 %v2600
    %v2756 = vunpack.c.h.b16 %v2600
    %v2757 = vunpack.c.l.b16 %v2601
    %v2758 = vunpack.c.h.b16 %v2601
    %v2759 = vunpack.c.l.b16 %v2602
    %v2760 = vunpack.c.h.b16 %v2602
    %v2761 = vunpack.c.l.b16 %v2603
    %v2762 = vunpack.c.h.b16 %v2603
    %v2763 = vunpack.c.l.b16 %v2604
    %v2764 = vunpack.c.h.b16 %v2604
    %v2765 = vunpack.c.l.b16 %v2605
    %v2766 = vunpack.c.h.b16 %v2605
    %v2767 = vunpack.c.l.b16 %v2606
    %v2768 = vunpack.c.h.b16 %v2606
    %v2769 = vunpack.c.l.b16 %v2607
    %v2770 = vunpack.c.h.b16 %v2607
    %v2771 = vunpack.c.l.b16 %v2608
    %v2772 = vunpack.c.h.b16 %v2608
    %v2773 = vunpack.c.l.b16 %v2609
    %v2774 = vunpack.c.h.b16 %v2609
    %v2775 = vunpack.c.l.b16 %v2610
    %v2776 = vunpack.c.h.b16 %v2610
    %v2777 = vunpack.c.l.b16 %v2611
    %v2778 = vunpack.c.h.b16 %v2611
    %v2779 = vunpack.c.l.b16 %v2612
    %v2780 = vunpack.c.h.b16 %v2612
    %v2781 = vunpack.c.l.b16 %v2613
    %v2782 = vunpack.c.h.b16 %v2613
    %v2783 = vunpack.c.l.b16 %v2614
    %v2784 = vunpack.c.h.b16 %v2614
    %v2785 = vunpack.c.l.b16 %v2615
    %v2786 = vunpack.c.h.b16 %v2615
    %v2787 = vunpack.c.l.b16 %v2616
    %v2788 = vunpack.c.h.b16 %v2616
    %v2789 = vunpack.c.l.b16 %v2617
    %v2790 = vunpack.c.h.b16 %v2617
    %v2791 = vunpack.c.l.b16 %v2618
    %v2792 = vunpack.c.h.b16 %v2618
    %v2793 = vunpack.c.l.b16 %v2619
    %v2794 = vunpack.c.h.b16 %v2619
    %v2795 = vunpack.c.l.b16 %v2620
    %v2796 = vunpack.c.h.b16 %v2620
    %v2797 = vunpack.c.l.b16 %v2621
    %v2798 = vunpack.c.h.b16 %v2621
    %v2799 = vunpack.c.l.b16 %v2622
    %v2800 = vunpack.c.h.b16 %v2622
    %v2801 = vunpack.c.l.b16 %v2623
    %v2802 = vunpack.c.h.b16 %v2623
    %v2803 = vunpack.c.l.b16 %v2624
    %v2804 = vunpack.c.h.b16 %v2624
    %v2805 = vunpack.c.l.b16 %v2625
    %v2806 = vunpack.c.h.b16 %v2625
    %v2807 = vunpack.c.l.b16 %v2626
    %v2808 = vunpack.c.h.b16 %v2626
    %v2809 = vunpack.c.l.b16 %v2627
    %v2810 = vunpack.c.h.b16 %v2627
    %v2811 = vunpack.c.l.b16 %v2628
    %v2812 = vunpack.c.h.b16 %v2628
    %v2813 = vunpack.c.l.b16 %v2629
    %v2814 = vunpack.c.h.b16 %v2629
    %v2815 = vunpack.c.l.b16 %v2630
    %v2816 = vunpack.c.h.b16 %v2630
    %v2817 = vunpack.c.l.b16 %v2631
    %v2818 = vunpack.c.h.b16 %v2631
    %v2819 = vunpack.c.l.b16 %v2632
    %v2820 = vunpack.c.h.b16 %v2632
    %v2821 = vunpack.c.l.b16 %v2633
    %v2822 = vunpack.c.h.b16 %v2633
    %v2823 = vunpack.c.l.b16 %v2634
    %v2824 = vunpack.c.h.b16 %v2634
    %v2825 = vunpack.c.l.b16 %v2635
    %v2826 = vunpack.c.h.b16 %v2635
    %v2827 = vunpack.c.l.b16 %v2636
    %v2828 = vunpack.c.h.b16 %v2636
    %v2829 = vunpack.c.l.b16 %v2637
    %v2830 = vunpack.c.h.b16 %v2637
    %v2831 = vunpack.c.l.b16 %v2638
    %v2832 = vunpack.c.h.b16 %v2638
    %v2833 = vunpack.c.l.b16 %v2639
    %v2834 = vunpack.c.h.b16 %v2639
    %v2835 = vunpack.c.l.b16 %v2640
    %v2836 = vunpack.c.h.b16 %v2640
    %v2837 = vunpack.c.l.b16 %v2641
    %v2838 = vunpack.c.h.b16 %v2641
    %v2839 = vunpack.c.l.b16 %v2642
    %v2840 = vunpack.c.h.b16 %v2642
    %v2841 = vunpack.c.l.b16 %v2643
    %v2842 = vunpack.c.h.b16 %v2643
    %v2843 = vunpack.c.l.b16 %v2644
    %v2844 = vunpack.c.h.b16 %v2644
    %v2845 = vunpack.c.l.b16 %v2645
    %v2846 = vunpack.c.h.b16 %v2645
    %v2847 = vunpack.c.l.b16 %v2646
    %v2848 = vunpack.c.h.b16 %v2646
    %v2849 = vunpack.c.l.b16 %v2647
    %v2850 = vunpack.c.h.b16 %v2647
    %v2851 = vunpack.c.l.b16 %v2648
    %v2852 = vunpack.c.h.b16 %v2648
    %v2853 = vunpack.c.l.b16 %v2649
    %v2854 = vunpack.c.h.b16 %v2649
    %v2855 = vunpack.c.l.b16 %v2650
    %v2856 = vunpack.c.h.b16 %v2650
    %v2857 = vunpack.c.l.b16 %v2651
    %v2858 = vunpack.c.h.b16 %v2651
    %v2859 = vunpack.c.l.b16 %v2652
    %v2860 = vunpack.c.h.b16 %v2652
    %v2861 = vunpack.c.l.b16 %v2653
    %v2862 = vunpack.c.h.b16 %v2653
    %v2863 = vunpack.c.l.b16 %v2654
    %v2864 = vunpack.c.h.b16 %v2654
    %v2865 = vunpack.c.l.b16 %v2655
    %v2866 = vunpack.c.h.b16 %v2655
    %v2867 = vunpack.c.l.b16 %v2656
    %v2868 = vunpack.c.h.b16 %v2656
    %v2869 = vunpack.c.l.b16 %v2657
    %v2870 = vunpack.c.h.b16 %v2657
    %v2871 = vunpack.c.l.b16 %v2658
    %v2872 = vunpack.c.h.b16 %v2658
    %v2873 = vpack.c.b16 %v2749, %v2745
    %v2874 = vpack.c.b16 %v2750, %v2746
    %v2875 = vpack.c.b16 %v2751, %v2747
    %v2876 = vpack.c.b16 %v2752, %v2748
    %v2877 = vpack.c.b16 %v2757, %v2753
    %v2878 = vpack.c.b16 %v2758, %v2754
    %v2879 = vpack.c.b16 %v2759, %v2755
    %v2880 = vpack.c.b16 %v2760, %v2756
    %v2881 = vpack.c.b16 %v2765, %v2761
    %v2882 = vpack.c.b16 %v2766, %v2762
    %v2883 = vpack.c.b16 %v2767, %v2763
    %v2884 = vpack.c.b16 %v2768, %v2764
    %v2885 = vpack.c.b16 %v2773, %v2769
    %v2886 = vpack.c.b16 %v2774, %v2770
    %v2887 = vpack.c.b16 %v2775, %v2771
    %v2888 = vpack.c.b16 %v2776, %v2772
    %v2889 = vpack.c.b16 %v2781, %v2777
    %v2890 = vpack.c.b16 %v2782, %v2778
    %v2891 = vpack.c.b16 %v2783, %v2779
    %v2892 = vpack.c.b16 %v2784, %v2780
    %v2893 = vpack.c.b16 %v2789, %v2785
    %v2894 = vpack.c.b16 %v2790, %v2786
    %v2895 = vpack.c.b16 %v2791, %v2787
    %v2896 = vpack.c.b16 %v2792, %v2788
    %v2897 = vpack.c.b16 %v2797, %v2793
    %v2898 = vpack.c.b16 %v2798, %v2794
    %v2899 = vpack.c.b16 %v2799, %v2795
    %v2900 = vpack.c.b16 %v2800, %v2796
    %v2901 = vpack.c.b16 %v2805, %v2801
    %v2902 = vpack.c.b16 %v2806, %v2802
    %v2903 = vpack.c.b16 %v2807, %v2803
    %v2904 = vpack.c.b16 %v2808, %v2804
    %v2905 = vpack.c.b16 %v2813, %v2809
    %v2906 = vpack.c.b16 %v2814, %v2810
    %v2907 = vpack.c.b16 %v2815, %v2811
    %v2908 = vpack.c.b16 %v2816, %v2812
    %v2909 = vpack.c.b16 %v2821, %v2817
    %v2910 = vpack.c.b16 %v2822, %v2818
    %v2911 = vpack.c.b16 %v2823, %v2819
    %v2912 = vpack.c.b16 %v2824, %v2820
    %v2913 = vpack.c.b16 %v2829, %v2825
    %v2914 = vpack.c.b16 %v2830, %v2826
    %v2915 = vpack.c.b16 %v2831, %v2827
    %v2916 = vpack.c.b16 %v2832, %v2828
    %v2917 = vpack.c.b16 %v2837, %v2833
    %v2918 = vpack.c.b16 %v2838, %v2834
    %v2919 = vpack.c.b16 %v2839, %v2835
    %v2920 = vpack.c.b16 %v2840, %v2836
    %v2921 = vpack.c.b16 %v2845, %v2841
    %v2922 = vpack.c.b16 %v2846, %v2842
    %v2923 = vpack.c.b16 %v2847, %v2843
    %v2924 = vpack.c.b16 %v2848, %v2844
    %v2925 = vpack.c.b16 %v2853, %v2849
    %v2926 = vpack.c.b16 %v2854, %v2850
    %v2927 = vpack.c.b16 %v2855, %v2851
    %v2928 = vpack.c.b16 %v2856, %v2852
    %v2929 = vpack.c.b16 %v2861, %v2857
    %v2930 = vpack.c.b16 %v2862, %v2858
    %v2931 = vpack.c.b16 %v2863, %v2859
    %v2932 = vpack.c.b16 %v2864, %v2860
    %v2933 = vpack.c.b16 %v2869, %v2865
    %v2934 = vpack.c.b16 %v2870, %v2866
    %v2935 = vpack.c.b16 %v2871, %v2867
    %v2936 = vpack.c.b16 %v2872, %v2868
    %3001 = vmatprep.subr.bf16.mxu0 %v2874
    %3002 = vmatpush1.bf16.msra.mxu0 %v2873
    %3003 = vmatprep.subr.bf16.mxu0 %v2878
    %3004 = vmatpush1.bf16.msra.mxu0 %v2877
    %3005 = vmatprep.subr.bf16.mxu0 %v2882
    %3006 = vmatpush1.bf16.msra.mxu0 %v2881
    %3007 = vmatprep.subr.bf16.mxu0 %v2886
    %3008 = vmatpush1.bf16.msra.mxu0 %v2885
    %3009 = vmatprep.subr.bf16.mxu0 %v2890
    %3010 = vmatpush1.bf16.msra.mxu0 %v2889
    %3011 = vmatprep.subr.bf16.mxu0 %v2894
    %3012 = vmatpush1.bf16.msra.mxu0 %v2893
    %3013 = vmatprep.subr.bf16.mxu0 %v2898
    %3014 = vmatpush1.bf16.msra.mxu0 %v2897
    %3015 = vmatprep.subr.bf16.mxu0 %v2902
    %3016 = vmatpush1.bf16.msra.mxu0 %v2901
    %3017 = vmatprep.subr.bf16.mxu0 %v2906
    %3018 = vmatpush1.bf16.msra.mxu0 %v2905
    %3019 = vmatprep.subr.bf16.mxu0 %v2910
    %3020 = vmatpush1.bf16.msra.mxu0 %v2909
    %3021 = vmatprep.subr.bf16.mxu0 %v2914
    %3022 = vmatpush1.bf16.msra.mxu0 %v2913
    %3023 = vmatprep.subr.bf16.mxu0 %v2918
    %3024 = vmatpush1.bf16.msra.mxu0 %v2917
    %3025 = vmatprep.subr.bf16.mxu0 %v2922
    %3026 = vmatpush1.bf16.msra.mxu0 %v2921
    %3027 = vmatprep.subr.bf16.mxu0 %v2926
    %3028 = vmatpush1.bf16.msra.mxu0 %v2925
    %3029 = vmatprep.subr.bf16.mxu0 %v2930
    %3030 = vmatpush1.bf16.msra.mxu0 %v2929
    %3031 = vmatprep.subr.bf16.mxu0 %v2934
    %3032 = vmatpush1.bf16.msra.mxu0 %v2933
    %3033 = vmatprep.mubr.bf16.mxu0 %v2594
    %3034 = vmatmul.mubr.bf16.gmra.mrb[0].mxu0 %v2593
    %v3035 = vpop.f32.mrb[0].mxu0
    %v3036 = vadd.f32 %v2664, %v3035
    %v3037 = vpop.f32.mrb[0].mxu0
    %v3038 = vadd.f32 %v2668, %v3037
    %v3039 = vpop.f32.mrb[0].mxu0
    %v3040 = vpop.f32.mrb[0].mxu0
    %3041 = vdwg.mxu0
    %3042 = vmatprep.subr.bf16.mxu0 %v2876
    %3043 = vmatpush1.bf16.msra.mxu0 %v2875
    %3044 = vmatprep.subr.bf16.mxu0 %v2880
    %3045 = vmatpush1.bf16.msra.mxu0 %v2879
    %3046 = vmatprep.subr.bf16.mxu0 %v2884
    %3047 = vmatpush1.bf16.msra.mxu0 %v2883
    %3048 = vmatprep.subr.bf16.mxu0 %v2888
    %3049 = vmatpush1.bf16.msra.mxu0 %v2887
    %3050 = vmatprep.subr.bf16.mxu0 %v2892
    %3051 = vmatpush1.bf16.msra.mxu0 %v2891
    %3052 = vmatprep.subr.bf16.mxu0 %v2896
    %3053 = vmatpush1.bf16.msra.mxu0 %v2895
    %3054 = vmatprep.subr.bf16.mxu0 %v2900
    %3055 = vmatpush1.bf16.msra.mxu0 %v2899
    %3056 = vmatprep.subr.bf16.mxu0 %v2904
    %3057 = vmatpush1.bf16.msra.mxu0 %v2903
    %3058 = vmatprep.subr.bf16.mxu0 %v2908
    %3059 = vmatpush1.bf16.msra.mxu0 %v2907
    %3060 = vmatprep.subr.bf16.mxu0 %v2912
    %3061 = vmatpush1.bf16.msra.mxu0 %v2911
    %3062 = vmatprep.subr.bf16.mxu0 %v2916
    %3063 = vmatpush1.bf16.msra.mxu0 %v2915
    %3064 = vmatprep.subr.bf16.mxu0 %v2920
    %3065 = vmatpush1.bf16.msra.mxu0 %v2919
    %3066 = vmatprep.subr.bf16.mxu0 %v2924
    %3067 = vmatpush1.bf16.msra.mxu0 %v2923
    %3068 = vmatprep.subr.bf16.mxu0 %v2928
    %3069 = vmatpush1.bf16.msra.mxu0 %v2927
    %3070 = vmatprep.subr.bf16.mxu0 %v2932
    %3071 = vmatpush1.bf16.msra.mxu0 %v2931
    %3072 = vmatprep.subr.bf16.mxu0 %v2936
    %3073 = vmatpush1.bf16.msra.mxu0 %v2935
    %3074 = vmatprep.mubr.bf16.mxu0 %v2594
    %3075 = vmatmul.mubr.bf16.gmra.mrb[0].mxu0 %v2593
    %v3076 = vpop.f32.mrb[0].mxu0
    %v3077 = vadd.f32 %v2672, %v3076
    %v3078 = vpop.f32.mrb[0].mxu0
    %v3079 = vadd.f32 %v2676, %v3078
    %v3080 = vpop.f32.mrb[0].mxu0
    %v3081 = vpop.f32.mrb[0].mxu0
    %3082 = vdwg.mxu0
    %v3083 = vmax.f32 %v3036, 0.0
    %v3084 = vmax.f32 %v3038, 0.0
    %v3085 = vmax.f32 %v3077, 0.0
    %v3086 = vmax.f32 %v3079, 0.0
    %v3087 = vpack.c.bf16 %v3083, %v3083
    %v3088 = vpack.c.bf16 %v3084, %v3084
    %v3089 = vpack.c.bf16 %v3085, %v3085
    %v3090 = vpack.c.bf16 %v3086, %v3086
    %v3091 = vld [vmem:[#allocation13] sm:$0xff]
    %v3092 = vld [vmem:[#allocation13 + $0x8] sm:$0xff]
    %v3093 = vld [vmem:[#allocation13 + $0x10] sm:$0xff]
    %v3094 = vld [vmem:[#allocation13 + $0x18] sm:$0xf]
    %v3095 = vld [vmem:[#allocation13 + $0x1c] sm:$0xff]
    %v3096 = vld [vmem:[#allocation13 + $0x24] sm:$0xff]
    %v3097 = vld [vmem:[#allocation13 + $0x2c] sm:$0xff]
    %v3098 = vld [vmem:[#allocation13 + $0x34] sm:$0xf]
    %v3099 = vld [vmem:[#allocation13 + $0x38] sm:$0xff]
    %v3100 = vld [vmem:[#allocation13 + $0x40] sm:$0xff]
    %v3101 = vld [vmem:[#allocation13 + $0x48] sm:$0xff]
    %v3102 = vld [vmem:[#allocation13 + $0x50] sm:$0xf]
    %v3103 = vld [vmem:[#allocation13 + $0x54] sm:$0xff]
    %v3104 = vld [vmem:[#allocation13 + $0x5c] sm:$0xff]
    %v3105 = vld [vmem:[#allocation13 + $0x64] sm:$0xff]
    %v3106 = vld [vmem:[#allocation13 + $0x6c] sm:$0xf]
    %v3107 = vld [vmem:[#allocation13 + $0x70] sm:$0xff]
    %v3108 = vld [vmem:[#allocation13 + $0x78] sm:$0xff]
    %v3109 = vld [vmem:[#allocation13 + $0x80] sm:$0xff]
    %v3110 = vld [vmem:[#allocation13 + $0x88] sm:$0xf]
    %v3111 = vld [vmem:[#allocation13 + $0x8c] sm:$0xff]
    %v3112 = vld [vmem:[#allocation13 + $0x94] sm:$0xff]
    %v3113 = vld [vmem:[#allocation13 + $0x9c] sm:$0xff]
    %v3114 = vld [vmem:[#allocation13 + $0xa4] sm:$0xf]
    %v3115 = vld [vmem:[#allocation13 + $0xa8] sm:$0xff]
    %v3116 = vld [vmem:[#allocation13 + $0xb0] sm:$0xff]
    %v3117 = vld [vmem:[#allocation13 + $0xb8] sm:$0xff]
    %v3118 = vld [vmem:[#allocation13 + $0xc0] sm:$0xf]
    %v3119 = vld [vmem:[#allocation13 + $0xc4] sm:$0xff]
    %v3120 = vld [vmem:[#allocation13 + $0xcc] sm:$0xff]
    %v3121 = vld [vmem:[#allocation13 + $0xd4] sm:$0xff]
    %v3122 = vld [vmem:[#allocation13 + $0xdc] sm:$0xf]
    %v3123 = vld [vmem:[#allocation13 + $0xe0] sm:$0xff]
    %v3124 = vld [vmem:[#allocation13 + $0xe8] sm:$0xff]
    %v3125 = vld [vmem:[#allocation13 + $0xf0] sm:$0xff]
    %v3126 = vld [vmem:[#allocation13 + $0xf8] sm:$0xf]
    %v3127 = vld [vmem:[#allocation13 + $0xfc] sm:$0xff]
    %v3128 = vld [vmem:[#allocation13 + $0x104] sm:$0xff]
    %v3129 = vld [vmem:[#allocation13 + $0x10c] sm:$0xff]
    %v3130 = vld [vmem:[#allocation13 + $0x114] sm:$0xf]
    %v3131 = vld [vmem:[#allocation13 + $0x118] sm:$0xff]
    %v3132 = vld [vmem:[#allocation13 + $0x120] sm:$0xff]
    %v3133 = vld [vmem:[#allocation13 + $0x128] sm:$0xff]
    %v3134 = vld [vmem:[#allocation13 + $0x130] sm:$0xf]
    %v3135 = vld [vmem:[#allocation13 + $0x134] sm:$0xff]
    %v3136 = vld [vmem:[#allocation13 + $0x13c] sm:$0xff]
    %v3137 = vld [vmem:[#allocation13 + $0x144] sm:$0xff]
    %v3138 = vld [vmem:[#allocation13 + $0x14c] sm:$0xf]
    %v3139 = vld [vmem:[#allocation13 + $0x150] sm:$0xff]
    %v3140 = vld [vmem:[#allocation13 + $0x158] sm:$0xff]
    %v3141 = vld [vmem:[#allocation13 + $0x160] sm:$0xff]
    %v3142 = vld [vmem:[#allocation13 + $0x168] sm:$0xf]
    %v3143 = vld [vmem:[#allocation13 + $0x16c] sm:$0xff]
    %v3144 = vld [vmem:[#allocation13 + $0x174] sm:$0xff]
    %v3145 = vld [vmem:[#allocation13 + $0x17c] sm:$0xff]
    %v3146 = vld [vmem:[#allocation13 + $0x184] sm:$0xf]
    %v3147 = vld [vmem:[#allocation13 + $0x188] sm:$0xff]
    %v3148 = vld [vmem:[#allocation13 + $0x190] sm:$0xff]
    %v3149 = vld [vmem:[#allocation13 + $0x198] sm:$0xff]
    %v3150 = vld [vmem:[#allocation13 + $0x1a0] sm:$0xf]
    %v3151 = vld [vmem:[#allocation13 + $0x1a4] sm:$0xff]
    %v3152 = vld [vmem:[#allocation13 + $0x1ac] sm:$0xff]
    %v3153 = vld [vmem:[#allocation13 + $0x1b4] sm:$0xff]
    %v3154 = vld [vmem:[#allocation13 + $0x1bc] sm:$0xf]
    %v3155 = vld [vmem:[#allocation13 + $0x1c0] sm:$0xff]
    %v3156 = vld [vmem:[#allocation13 + $0x1c8] sm:$0xff]
    %v3157 = vld [vmem:[#allocation13 + $0x1d0] sm:$0xff]
    %v3158 = vld [vmem:[#allocation13 + $0x1d8] sm:$0xf]
    %v3159 = vld [vmem:[#allocation13 + $0x1dc] sm:$0xff]
    %v3160 = vld [vmem:[#allocation13 + $0x1e4] sm:$0xff]
    %v3161 = vld [vmem:[#allocation13 + $0x1ec] sm:$0xff]
    %v3162 = vld [vmem:[#allocation13 + $0x1f4] sm:$0xf]
    %v3163 = vld [vmem:[#allocation13 + $0x1f8] sm:$0xff]
    %v3164 = vld [vmem:[#allocation13 + $0x200] sm:$0xff]
    %v3165 = vld [vmem:[#allocation13 + $0x208] sm:$0xff]
    %v3166 = vld [vmem:[#allocation13 + $0x210] sm:$0xf]
    %v3167 = vld [vmem:[#allocation13 + $0x214] sm:$0xff]
    %v3168 = vld [vmem:[#allocation13 + $0x21c] sm:$0xff]
    %v3169 = vld [vmem:[#allocation13 + $0x224] sm:$0xff]
    %v3170 = vld [vmem:[#allocation13 + $0x22c] sm:$0xf]
    %v3171 = vld [vmem:[#allocation13 + $0x230] sm:$0xff]
    %v3172 = vld [vmem:[#allocation13 + $0x238] sm:$0xff]
    %v3173 = vld [vmem:[#allocation13 + $0x240] sm:$0xff]
    %v3174 = vld [vmem:[#allocation13 + $0x248] sm:$0xf]
    %v3175 = vld [vmem:[#allocation13 + $0x24c] sm:$0xff]
    %v3176 = vld [vmem:[#allocation13 + $0x254] sm:$0xff]
    %v3177 = vld [vmem:[#allocation13 + $0x25c] sm:$0xff]
    %v3178 = vld [vmem:[#allocation13 + $0x264] sm:$0xf]
    %v3179 = vld [vmem:[#allocation13 + $0x268] sm:$0xff]
    %v3180 = vld [vmem:[#allocation13 + $0x270] sm:$0xff]
    %v3181 = vld [vmem:[#allocation13 + $0x278] sm:$0xff]
    %v3182 = vld [vmem:[#allocation13 + $0x280] sm:$0xf]
    %v3183 = vld [vmem:[#allocation13 + $0x284] sm:$0xff]
    %v3184 = vld [vmem:[#allocation13 + $0x28c] sm:$0xff]
    %v3185 = vld [vmem:[#allocation13 + $0x294] sm:$0xff]
    %v3186 = vld [vmem:[#allocation13 + $0x29c] sm:$0xf]
    %v3187 = vld [vmem:[#allocation13 + $0x2a0] sm:$0xff]
    %v3188 = vld [vmem:[#allocation13 + $0x2a8] sm:$0xff]
    %v3189 = vld [vmem:[#allocation13 + $0x2b0] sm:$0xff]
    %v3190 = vld [vmem:[#allocation13 + $0x2b8] sm:$0xf]
    %v3191 = vld [vmem:[#allocation13 + $0x2bc] sm:$0xff]
    %v3192 = vld [vmem:[#allocation13 + $0x2c4] sm:$0xff]
    %v3193 = vld [vmem:[#allocation13 + $0x2cc] sm:$0xff]
    %v3194 = vld [vmem:[#allocation13 + $0x2d4] sm:$0xf]
    %v3195 = vld [vmem:[#allocation13 + $0x2d8] sm:$0xff]
    %v3196 = vld [vmem:[#allocation13 + $0x2e0] sm:$0xff]
    %v3197 = vld [vmem:[#allocation13 + $0x2e8] sm:$0xff]
    %v3198 = vld [vmem:[#allocation13 + $0x2f0] sm:$0xf]
    %v3199 = vld [vmem:[#allocation13 + $0x2f4] sm:$0xff]
    %v3200 = vld [vmem:[#allocation13 + $0x2fc] sm:$0xff]
    %v3201 = vld [vmem:[#allocation13 + $0x304] sm:$0xff]
    %v3202 = vld [vmem:[#allocation13 + $0x30c] sm:$0xf]
    %v3203 = vld [vmem:[#allocation13 + $0x310] sm:$0xff]
    %v3204 = vld [vmem:[#allocation13 + $0x318] sm:$0xff]
    %v3205 = vld [vmem:[#allocation13 + $0x320] sm:$0xff]
    %v3206 = vld [vmem:[#allocation13 + $0x328] sm:$0xf]
    %v3207 = vld [vmem:[#allocation13 + $0x32c] sm:$0xff]
    %v3208 = vld [vmem:[#allocation13 + $0x334] sm:$0xff]
    %v3209 = vld [vmem:[#allocation13 + $0x33c] sm:$0xff]
    %v3210 = vld [vmem:[#allocation13 + $0x344] sm:$0xf]
    %v3211 = vld [vmem:[#allocation13 + $0x348] sm:$0xff]
    %v3212 = vld [vmem:[#allocation13 + $0x350] sm:$0xff]
    %v3213 = vld [vmem:[#allocation13 + $0x358] sm:$0xff]
    %v3214 = vld [vmem:[#allocation13 + $0x360] sm:$0xf]
    %v3215 = vld [vmem:[#allocation13 + $0x364] sm:$0xff]
    %v3216 = vld [vmem:[#allocation13 + $0x36c] sm:$0xff]
    %v3217 = vld [vmem:[#allocation13 + $0x374] sm:$0xff]
    %v3218 = vld [vmem:[#allocation13 + $0x37c] sm:$0xf]
    %v3219 = vld [vmem:[#allocation13 + $0x380] sm:$0xff]
    %v3220 = vld [vmem:[#allocation13 + $0x388] sm:$0xff]
    %v3221 = vld [vmem:[#allocation13 + $0x390] sm:$0xff]
    %v3222 = vld [vmem:[#allocation13 + $0x398] sm:$0xf]
    %v3223 = vld [vmem:[#allocation13 + $0x39c] sm:$0xff]
    %v3224 = vld [vmem:[#allocation13 + $0x3a4] sm:$0xff]
    %v3225 = vld [vmem:[#allocation13 + $0x3ac] sm:$0xff]
    %v3226 = vld [vmem:[#allocation13 + $0x3b4] sm:$0xf]
    %v3227 = vld [vmem:[#allocation13 + $0x3b8] sm:$0xff]
    %v3228 = vld [vmem:[#allocation13 + $0x3c0] sm:$0xff]
    %v3229 = vld [vmem:[#allocation13 + $0x3c8] sm:$0xff]
    %v3230 = vld [vmem:[#allocation13 + $0x3d0] sm:$0xf]
    %v3231 = vld [vmem:[#allocation13 + $0x3d4] sm:$0xff]
    %v3232 = vld [vmem:[#allocation13 + $0x3dc] sm:$0xff]
    %v3233 = vld [vmem:[#allocation13 + $0x3e4] sm:$0xff]
    %v3234 = vld [vmem:[#allocation13 + $0x3ec] sm:$0xf]
    %v3235 = vld [vmem:[#allocation13 + $0x3f0] sm:$0xff]
    %v3236 = vld [vmem:[#allocation13 + $0x3f8] sm:$0xff]
    %v3237 = vld [vmem:[#allocation13 + $0x400] sm:$0xff]
    %v3238 = vld [vmem:[#allocation13 + $0x408] sm:$0xf]
    %v3239 = vld [vmem:[#allocation13 + $0x40c] sm:$0xff]
    %v3240 = vld [vmem:[#allocation13 + $0x414] sm:$0xff]
    %v3241 = vld [vmem:[#allocation13 + $0x41c] sm:$0xff]
    %v3242 = vld [vmem:[#allocation13 + $0x424] sm:$0xf]
    %v3243 = vld [vmem:[#allocation13 + $0x428] sm:$0xff]
    %v3244 = vld [vmem:[#allocation13 + $0x430] sm:$0xff]
    %v3245 = vld [vmem:[#allocation13 + $0x438] sm:$0xff]
    %v3246 = vld [vmem:[#allocation13 + $0x440] sm:$0xf]
    %v3247 = vld [vmem:[#allocation13 + $0x444] sm:$0xff]
    %v3248 = vld [vmem:[#allocation13 + $0x44c] sm:$0xff]
    %v3249 = vld [vmem:[#allocation13 + $0x454] sm:$0xff]
    %v3250 = vld [vmem:[#allocation13 + $0x45c] sm:$0xf]
    %v3251 = vld [vmem:[#allocation13 + $0x460] sm:$0xff]
    %v3252 = vld [vmem:[#allocation13 + $0x468] sm:$0xff]
    %v3253 = vld [vmem:[#allocation13 + $0x470] sm:$0xff]
    %v3254 = vld [vmem:[#allocation13 + $0x478] sm:$0xf]
    %v3255 = vld [vmem:[#allocation13 + $0x47c] sm:$0xff]
    %v3256 = vld [vmem:[#allocation13 + $0x484] sm:$0xff]
    %v3257 = vld [vmem:[#allocation13 + $0x48c] sm:$0xff]
    %v3258 = vld [vmem:[#allocation13 + $0x494] sm:$0xf]
    %v3259 = vld [vmem:[#allocation13 + $0x498] sm:$0xff]
    %v3260 = vld [vmem:[#allocation13 + $0x4a0] sm:$0xff]
    %v3261 = vld [vmem:[#allocation13 + $0x4a8] sm:$0xff]
    %v3262 = vld [vmem:[#allocation13 + $0x4b0] sm:$0xf]
    %v3263 = vld [vmem:[#allocation13 + $0x4b4] sm:$0xff]
    %v3264 = vld [vmem:[#allocation13 + $0x4bc] sm:$0xff]
    %v3265 = vld [vmem:[#allocation13 + $0x4c4] sm:$0xff]
    %v3266 = vld [vmem:[#allocation13 + $0x4cc] sm:$0xf]
    %v3267 = vld [vmem:[#allocation13 + $0x4d0] sm:$0xff]
    %v3268 = vld [vmem:[#allocation13 + $0x4d8] sm:$0xff]
    %v3269 = vld [vmem:[#allocation13 + $0x4e0] sm:$0xff]
    %v3270 = vld [vmem:[#allocation13 + $0x4e8] sm:$0xf]
    %v3271 = vld [vmem:[#allocation13 + $0x4ec] sm:$0xff]
    %v3272 = vld [vmem:[#allocation13 + $0x4f4] sm:$0xff]
    %v3273 = vld [vmem:[#allocation13 + $0x4fc] sm:$0xff]
    %v3274 = vld [vmem:[#allocation13 + $0x504] sm:$0xf]
    %v3275 = vld [vmem:[#allocation13 + $0x508] sm:$0xff]
    %v3276 = vld [vmem:[#allocation13 + $0x510] sm:$0xff]
    %v3277 = vld [vmem:[#allocation13 + $0x518] sm:$0xff]
    %v3278 = vld [vmem:[#allocation13 + $0x520] sm:$0xf]
    %v3279 = vld [vmem:[#allocation13 + $0x524] sm:$0xff]
    %v3280 = vld [vmem:[#allocation13 + $0x52c] sm:$0xff]
    %v3281 = vld [vmem:[#allocation13 + $0x534] sm:$0xff]
    %v3282 = vld [vmem:[#allocation13 + $0x53c] sm:$0xf]
    %v3283 = vld [vmem:[#allocation13 + $0x540] sm:$0xff]
    %v3284 = vld [vmem:[#allocation13 + $0x548] sm:$0xff]
    %v3285 = vld [vmem:[#allocation13 + $0x550] sm:$0xff]
    %v3286 = vld [vmem:[#allocation13 + $0x558] sm:$0xf]
    %v3287 = vld [vmem:[#allocation13 + $0x55c] sm:$0xff]
    %v3288 = vld [vmem:[#allocation13 + $0x564] sm:$0xff]
    %v3289 = vld [vmem:[#allocation13 + $0x56c] sm:$0xff]
    %v3290 = vld [vmem:[#allocation13 + $0x574] sm:$0xf]
    %v3291 = vld [vmem:[#allocation13 + $0x578] sm:$0xff]
    %v3292 = vld [vmem:[#allocation13 + $0x580] sm:$0xff]
    %v3293 = vld [vmem:[#allocation13 + $0x588] sm:$0xff]
    %v3294 = vld [vmem:[#allocation13 + $0x590] sm:$0xf]
    %v3295 = vld [vmem:[#allocation13 + $0x594] sm:$0xff]
    %v3296 = vld [vmem:[#allocation13 + $0x59c] sm:$0xff]
    %v3297 = vld [vmem:[#allocation13 + $0x5a4] sm:$0xff]
    %v3298 = vld [vmem:[#allocation13 + $0x5ac] sm:$0xf]
    %v3299 = vld [vmem:[#allocation13 + $0x5b0] sm:$0xff]
    %v3300 = vld [vmem:[#allocation13 + $0x5b8] sm:$0xff]
    %v3301 = vld [vmem:[#allocation13 + $0x5c0] sm:$0xff]
    %v3302 = vld [vmem:[#allocation13 + $0x5c8] sm:$0xf]
    %v3303 = vld [vmem:[#allocation13 + $0x5cc] sm:$0xff]
    %v3304 = vld [vmem:[#allocation13 + $0x5d4] sm:$0xff]
    %v3305 = vld [vmem:[#allocation13 + $0x5dc] sm:$0xff]
    %v3306 = vld [vmem:[#allocation13 + $0x5e4] sm:$0xf]
    %v3307 = vld [vmem:[#allocation13 + $0x5e8] sm:$0xff]
    %v3308 = vld [vmem:[#allocation13 + $0x5f0] sm:$0xff]
    %v3309 = vld [vmem:[#allocation13 + $0x5f8] sm:$0xff]
    %v3310 = vld [vmem:[#allocation13 + $0x600] sm:$0xf]
    %v3311 = vld [vmem:[#allocation13 + $0x604] sm:$0xff]
    %v3312 = vld [vmem:[#allocation13 + $0x60c] sm:$0xff]
    %v3313 = vld [vmem:[#allocation13 + $0x614] sm:$0xff]
    %v3314 = vld [vmem:[#allocation13 + $0x61c] sm:$0xf]
    %v3315 = vld [vmem:[#allocation13 + $0x620] sm:$0xff]
    %v3316 = vld [vmem:[#allocation13 + $0x628] sm:$0xff]
    %v3317 = vld [vmem:[#allocation13 + $0x630] sm:$0xff]
    %v3318 = vld [vmem:[#allocation13 + $0x638] sm:$0xf]
    %v3319 = vld [vmem:[#allocation13 + $0x63c] sm:$0xff]
    %v3320 = vld [vmem:[#allocation13 + $0x644] sm:$0xff]
    %v3321 = vld [vmem:[#allocation13 + $0x64c] sm:$0xff]
    %v3322 = vld [vmem:[#allocation13 + $0x654] sm:$0xf]
    %v3323 = vld [vmem:[#allocation13 + $0x658] sm:$0xff]
    %v3324 = vld [vmem:[#allocation13 + $0x660] sm:$0xff]
    %v3325 = vld [vmem:[#allocation13 + $0x668] sm:$0xff]
    %v3326 = vld [vmem:[#allocation13 + $0x670] sm:$0xf]
    %v3327 = vld [vmem:[#allocation13 + $0x674] sm:$0xff]
    %v3328 = vld [vmem:[#allocation13 + $0x67c] sm:$0xff]
    %v3329 = vld [vmem:[#allocation13 + $0x684] sm:$0xff]
    %v3330 = vld [vmem:[#allocation13 + $0x68c] sm:$0xf]
    %v3331 = vld [vmem:[#allocation13 + $0x690] sm:$0xff]
    %v3332 = vld [vmem:[#allocation13 + $0x698] sm:$0xff]
    %v3333 = vld [vmem:[#allocation13 + $0x6a0] sm:$0xff]
    %v3334 = vld [vmem:[#allocation13 + $0x6a8] sm:$0xf]
    %v3335 = vld [vmem:[#allocation13 + $0x6ac] sm:$0xff]
    %v3336 = vld [vmem:[#allocation13 + $0x6b4] sm:$0xff]
    %v3337 = vld [vmem:[#allocation13 + $0x6bc] sm:$0xff]
    %v3338 = vld [vmem:[#allocation13 + $0x6c4] sm:$0xf]
    %v3339 = vld [vmem:[#allocation13 + $0x6c8] sm:$0xff]
    %v3340 = vld [vmem:[#allocation13 + $0x6d0] sm:$0xff]
    %v3341 = vld [vmem:[#allocation13 + $0x6d8] sm:$0xff]
    %v3342 = vld [vmem:[#allocation13 + $0x6e0] sm:$0xf]
    %v3343 = vld [vmem:[#allocation13 + $0x6e4] sm:$0xff]
    %v3344 = vld [vmem:[#allocation13 + $0x6ec] sm:$0xff]
    %v3345 = vld [vmem:[#allocation13 + $0x6f4] sm:$0xff]
    %v3346 = vld [vmem:[#allocation13 + $0x6fc] sm:$0xf]
    %v3347 = vld [vmem:[%s11] sm:$0xff]
    %v3349 = vlaneseq
    %v3350 = vshrl.u32 %v3349, 7
    %v3351 = vsub.s32 0, %v3350
    %v3352 = vrot.slane %v3347, %v3351
    %v3353 = vlaneseq
    %v3354 = vshrl.u32 %v3353, 7
    %v3355 = vsub.s32 1, %v3354
    %v3356 = vrot.slane %v3347, %v3355
    %v3357 = vlaneseq
    %v3358 = vshrl.u32 %v3357, 7
    %v3359 = vsub.s32 2, %v3358
    %v3360 = vrot.slane %v3347, %v3359
    %v3361 = vlaneseq
    %v3362 = vshrl.u32 %v3361, 7
    %v3363 = vsub.s32 3, %v3362
    %v3364 = vrot.slane %v3347, %v3363
    %v3365 = vlaneseq
    %v3366 = vshrl.u32 %v3365, 7
    %v3367 = vsub.s32 4, %v3366
    %v3368 = vrot.slane %v3347, %v3367
    %v3369 = vlaneseq
    %v3370 = vshrl.u32 %v3369, 7
    %v3371 = vsub.s32 5, %v3370
    %v3372 = vrot.slane %v3347, %v3371
    %v3373 = vlaneseq
    %v3374 = vshrl.u32 %v3373, 7
    %v3375 = vsub.s32 6, %v3374
    %v3376 = vrot.slane %v3347, %v3375
    %v3640 = vunpack.c.l.b16 %v3091
    %v3641 = vunpack.c.h.b16 %v3091
    %v3642 = vunpack.c.l.b16 %v3092
    %v3643 = vunpack.c.h.b16 %v3092
    %v3644 = vunpack.c.l.b16 %v3093
    %v3645 = vunpack.c.h.b16 %v3093
    %v3646 = vunpack.c.l.b16 %v3094
    %v3647 = vunpack.c.l.b16 %v3095
    %v3648 = vunpack.c.h.b16 %v3095
    %v3649 = vunpack.c.l.b16 %v3096
    %v3650 = vunpack.c.h.b16 %v3096
    %v3651 = vunpack.c.l.b16 %v3097
    %v3652 = vunpack.c.h.b16 %v3097
    %v3653 = vunpack.c.l.b16 %v3098
    %v3654 = vunpack.c.l.b16 %v3099
    %v3655 = vunpack.c.h.b16 %v3099
    %v3656 = vunpack.c.l.b16 %v3100
    %v3657 = vunpack.c.h.b16 %v3100
    %v3658 = vunpack.c.l.b16 %v3101
    %v3659 = vunpack.c.h.b16 %v3101
    %v3660 = vunpack.c.l.b16 %v3102
    %v3661 = vunpack.c.l.b16 %v3103
    %v3662 = vunpack.c.h.b16 %v3103
    %v3663 = vunpack.c.l.b16 %v3104
    %v3664 = vunpack.c.h.b16 %v3104
    %v3665 = vunpack.c.l.b16 %v3105
    %v3666 = vunpack.c.h.b16 %v3105
    %v3667 = vunpack.c.l.b16 %v3106
    %v3668 = vunpack.c.l.b16 %v3107
    %v3669 = vunpack.c.h.b16 %v3107
    %v3670 = vunpack.c.l.b16 %v3108
    %v3671 = vunpack.c.h.b16 %v3108
    %v3672 = vunpack.c.l.b16 %v3109
    %v3673 = vunpack.c.h.b16 %v3109
    %v3674 = vunpack.c.l.b16 %v3110
    %v3675 = vunpack.c.l.b16 %v3111
    %v3676 = vunpack.c.h.b16 %v3111
    %v3677 = vunpack.c.l.b16 %v3112
    %v3678 = vunpack.c.h.b16 %v3112
    %v3679 = vunpack.c.l.b16 %v3113
    %v3680 = vunpack.c.h.b16 %v3113
    %v3681 = vunpack.c.l.b16 %v3114
    %v3682 = vunpack.c.l.b16 %v3115
    %v3683 = vunpack.c.h.b16 %v3115
    %v3684 = vunpack.c.l.b16 %v3116
    %v3685 = vunpack.c.h.b16 %v3116
    %v3686 = vunpack.c.l.b16 %v3117
    %v3687 = vunpack.c.h.b16 %v3117
    %v3688 = vunpack.c.l.b16 %v3118
    %v3689 = vunpack.c.l.b16 %v3119
    %v3690 = vunpack.c.h.b16 %v3119
    %v3691 = vunpack.c.l.b16 %v3120
    %v3692 = vunpack.c.h.b16 %v3120
    %v3693 = vunpack.c.l.b16 %v3121
    %v3694 = vunpack.c.h.b16 %v3121
    %v3695 = vunpack.c.l.b16 %v3122
    %v3696 = vunpack.c.l.b16 %v3123
    %v3697 = vunpack.c.h.b16 %v3123
    %v3698 = vunpack.c.l.b16 %v3124
    %v3699 = vunpack.c.h.b16 %v3124
    %v3700 = vunpack.c.l.b16 %v3125
    %v3701 = vunpack.c.h.b16 %v3125
    %v3702 = vunpack.c.l.b16 %v3126
    %v3703 = vunpack.c.l.b16 %v3127
    %v3704 = vunpack.c.h.b16 %v3127
    %v3705 = vunpack.c.l.b16 %v3128
    %v3706 = vunpack.c.h.b16 %v3128
    %v3707 = vunpack.c.l.b16 %v3129
    %v3708 = vunpack.c.h.b16 %v3129
    %v3709 = vunpack.c.l.b16 %v3130
    %v3710 = vunpack.c.l.b16 %v3131
    %v3711 = vunpack.c.h.b16 %v3131
    %v3712 = vunpack.c.l.b16 %v3132
    %v3713 = vunpack.c.h.b16 %v3132
    %v3714 = vunpack.c.l.b16 %v3133
    %v3715 = vunpack.c.h.b16 %v3133
    %v3716 = vunpack.c.l.b16 %v3134
    %v3717 = vunpack.c.l.b16 %v3135
    %v3718 = vunpack.c.h.b16 %v3135
    %v3719 = vunpack.c.l.b16 %v3136
    %v3720 = vunpack.c.h.b16 %v3136
    %v3721 = vunpack.c.l.b16 %v3137
    %v3722 = vunpack.c.h.b16 %v3137
    %v3723 = vunpack.c.l.b16 %v3138
    %v3724 = vunpack.c.l.b16 %v3139
    %v3725 = vunpack.c.h.b16 %v3139
    %v3726 = vunpack.c.l.b16 %v3140
    %v3727 = vunpack.c.h.b16 %v3140
    %v3728 = vunpack.c.l.b16 %v3141
    %v3729 = vunpack.c.h.b16 %v3141
    %v3730 = vunpack.c.l.b16 %v3142
    %v3731 = vunpack.c.l.b16 %v3143
    %v3732 = vunpack.c.h.b16 %v3143
    %v3733 = vunpack.c.l.b16 %v3144
    %v3734 = vunpack.c.h.b16 %v3144
    %v3735 = vunpack.c.l.b16 %v3145
    %v3736 = vunpack.c.h.b16 %v3145
    %v3737 = vunpack.c.l.b16 %v3146
    %v3738 = vunpack.c.l.b16 %v3147
    %v3739 = vunpack.c.h.b16 %v3147
    %v3740 = vunpack.c.l.b16 %v3148
    %v3741 = vunpack.c.h.b16 %v3148
    %v3742 = vunpack.c.l.b16 %v3149
    %v3743 = vunpack.c.h.b16 %v3149
    %v3744 = vunpack.c.l.b16 %v3150
    %v3745 = vunpack.c.l.b16 %v3151
    %v3746 = vunpack.c.h.b16 %v3151
    %v3747 = vunpack.c.l.b16 %v3152
    %v3748 = vunpack.c.h.b16 %v3152
    %v3749 = vunpack.c.l.b16 %v3153
    %v3750 = vunpack.c.h.b16 %v3153
    %v3751 = vunpack.c.l.b16 %v3154
    %v3752 = vunpack.c.l.b16 %v3155
    %v3753 = vunpack.c.h.b16 %v3155
    %v3754 = vunpack.c.l.b16 %v3156
    %v3755 = vunpack.c.h.b16 %v3156
    %v3756 = vunpack.c.l.b16 %v3157
    %v3757 = vunpack.c.h.b16 %v3157
    %v3758 = vunpack.c.l.b16 %v3158
    %v3759 = vunpack.c.l.b16 %v3159
    %v3760 = vunpack.c.h.b16 %v3159
    %v3761 = vunpack.c.l.b16 %v3160
    %v3762 = vunpack.c.h.b16 %v3160
    %v3763 = vunpack.c.l.b16 %v3161
    %v3764 = vunpack.c.h.b16 %v3161
    %v3765 = vunpack.c.l.b16 %v3162
    %v3766 = vunpack.c.l.b16 %v3163
    %v3767 = vunpack.c.h.b16 %v3163
    %v3768 = vunpack.c.l.b16 %v3164
    %v3769 = vunpack.c.h.b16 %v3164
    %v3770 = vunpack.c.l.b16 %v3165
    %v3771 = vunpack.c.h.b16 %v3165
    %v3772 = vunpack.c.l.b16 %v3166
    %v3773 = vunpack.c.l.b16 %v3167
    %v3774 = vunpack.c.h.b16 %v3167
    %v3775 = vunpack.c.l.b16 %v3168
    %v3776 = vunpack.c.h.b16 %v3168
    %v3777 = vunpack.c.l.b16 %v3169
    %v3778 = vunpack.c.h.b16 %v3169
    %v3779 = vunpack.c.l.b16 %v3170
    %v3780 = vunpack.c.l.b16 %v3171
    %v3781 = vunpack.c.h.b16 %v3171
    %v3782 = vunpack.c.l.b16 %v3172
    %v3783 = vunpack.c.h.b16 %v3172
    %v3784 = vunpack.c.l.b16 %v3173
    %v3785 = vunpack.c.h.b16 %v3173
    %v3786 = vunpack.c.l.b16 %v3174
    %v3787 = vunpack.c.l.b16 %v3175
    %v3788 = vunpack.c.h.b16 %v3175
    %v3789 = vunpack.c.l.b16 %v3176
    %v3790 = vunpack.c.h.b16 %v3176
    %v3791 = vunpack.c.l.b16 %v3177
    %v3792 = vunpack.c.h.b16 %v3177
    %v3793 = vunpack.c.l.b16 %v3178
    %v3794 = vunpack.c.l.b16 %v3179
    %v3795 = vunpack.c.h.b16 %v3179
    %v3796 = vunpack.c.l.b16 %v3180
    %v3797 = vunpack.c.h.b16 %v3180
    %v3798 = vunpack.c.l.b16 %v3181
    %v3799 = vunpack.c.h.b16 %v3181
    %v3800 = vunpack.c.l.b16 %v3182
    %v3801 = vunpack.c.l.b16 %v3183
    %v3802 = vunpack.c.h.b16 %v3183
    %v3803 = vunpack.c.l.b16 %v3184
    %v3804 = vunpack.c.h.b16 %v3184
    %v3805 = vunpack.c.l.b16 %v3185
    %v3806 = vunpack.c.h.b16 %v3185
    %v3807 = vunpack.c.l.b16 %v3186
    %v3808 = vunpack.c.l.b16 %v3187
    %v3809 = vunpack.c.h.b16 %v3187
    %v3810 = vunpack.c.l.b16 %v3188
    %v3811 = vunpack.c.h.b16 %v3188
    %v3812 = vunpack.c.l.b16 %v3189
    %v3813 = vunpack.c.h.b16 %v3189
    %v3814 = vunpack.c.l.b16 %v3190
    %v3815 = vunpack.c.l.b16 %v3191
    %v3816 = vunpack.c.h.b16 %v3191
    %v3817 = vunpack.c.l.b16 %v3192
    %v3818 = vunpack.c.h.b16 %v3192
    %v3819 = vunpack.c.l.b16 %v3193
    %v3820 = vunpack.c.h.b16 %v3193
    %v3821 = vunpack.c.l.b16 %v3194
    %v3822 = vunpack.c.l.b16 %v3195
    %v3823 = vunpack.c.h.b16 %v3195
    %v3824 = vunpack.c.l.b16 %v3196
    %v3825 = vunpack.c.h.b16 %v3196
    %v3826 = vunpack.c.l.b16 %v3197
    %v3827 = vunpack.c.h.b16 %v3197
    %v3828 = vunpack.c.l.b16 %v3198
    %v3829 = vunpack.c.l.b16 %v3199
    %v3830 = vunpack.c.h.b16 %v3199
    %v3831 = vunpack.c.l.b16 %v3200
    %v3832 = vunpack.c.h.b16 %v3200
    %v3833 = vunpack.c.l.b16 %v3201
    %v3834 = vunpack.c.h.b16 %v3201
    %v3835 = vunpack.c.l.b16 %v3202
    %v3836 = vunpack.c.l.b16 %v3203
    %v3837 = vunpack.c.h.b16 %v3203
    %v3838 = vunpack.c.l.b16 %v3204
    %v3839 = vunpack.c.h.b16 %v3204
    %v3840 = vunpack.c.l.b16 %v3205
    %v3841 = vunpack.c.h.b16 %v3205
    %v3842 = vunpack.c.l.b16 %v3206
    %v3843 = vunpack.c.l.b16 %v3207
    %v3844 = vunpack.c.h.b16 %v3207
    %v3845 = vunpack.c.l.b16 %v3208
    %v3846 = vunpack.c.h.b16 %v3208
    %v3847 = vunpack.c.l.b16 %v3209
    %v3848 = vunpack.c.h.b16 %v3209
    %v3849 = vunpack.c.l.b16 %v3210
    %v3850 = vunpack.c.l.b16 %v3211
    %v3851 = vunpack.c.h.b16 %v3211
    %v3852 = vunpack.c.l.b16 %v3212
    %v3853 = vunpack.c.h.b16 %v3212
    %v3854 = vunpack.c.l.b16 %v3213
    %v3855 = vunpack.c.h.b16 %v3213
    %v3856 = vunpack.c.l.b16 %v3214
    %v3857 = vunpack.c.l.b16 %v3215
    %v3858 = vunpack.c.h.b16 %v3215
    %v3859 = vunpack.c.l.b16 %v3216
    %v3860 = vunpack.c.h.b16 %v3216
    %v3861 = vunpack.c.l.b16 %v3217
    %v3862 = vunpack.c.h.b16 %v3217
    %v3863 = vunpack.c.l.b16 %v3218
    %v3864 = vunpack.c.l.b16 %v3219
    %v3865 = vunpack.c.h.b16 %v3219
    %v3866 = vunpack.c.l.b16 %v3220
    %v3867 = vunpack.c.h.b16 %v3220
    %v3868 = vunpack.c.l.b16 %v3221
    %v3869 = vunpack.c.h.b16 %v3221
    %v3870 = vunpack.c.l.b16 %v3222
    %v3871 = vunpack.c.l.b16 %v3223
    %v3872 = vunpack.c.h.b16 %v3223
    %v3873 = vunpack.c.l.b16 %v3224
    %v3874 = vunpack.c.h.b16 %v3224
    %v3875 = vunpack.c.l.b16 %v3225
    %v3876 = vunpack.c.h.b16 %v3225
    %v3877 = vunpack.c.l.b16 %v3226
    %v3878 = vunpack.c.l.b16 %v3227
    %v3879 = vunpack.c.h.b16 %v3227
    %v3880 = vunpack.c.l.b16 %v3228
    %v3881 = vunpack.c.h.b16 %v3228
    %v3882 = vunpack.c.l.b16 %v3229
    %v3883 = vunpack.c.h.b16 %v3229
    %v3884 = vunpack.c.l.b16 %v3230
    %v3885 = vunpack.c.l.b16 %v3231
    %v3886 = vunpack.c.h.b16 %v3231
    %v3887 = vunpack.c.l.b16 %v3232
    %v3888 = vunpack.c.h.b16 %v3232
    %v3889 = vunpack.c.l.b16 %v3233
    %v3890 = vunpack.c.h.b16 %v3233
    %v3891 = vunpack.c.l.b16 %v3234
    %v3892 = vunpack.c.l.b16 %v3235
    %v3893 = vunpack.c.h.b16 %v3235
    %v3894 = vunpack.c.l.b16 %v3236
    %v3895 = vunpack.c.h.b16 %v3236
    %v3896 = vunpack.c.l.b16 %v3237
    %v3897 = vunpack.c.h.b16 %v3237
    %v3898 = vunpack.c.l.b16 %v3238
    %v3899 = vunpack.c.l.b16 %v3239
    %v3900 = vunpack.c.h.b16 %v3239
    %v3901 = vunpack.c.l.b16 %v3240
    %v3902 = vunpack.c.h.b16 %v3240
    %v3903 = vunpack.c.l.b16 %v3241
    %v3904 = vunpack.c.h.b16 %v3241
    %v3905 = vunpack.c.l.b16 %v3242
    %v3906 = vunpack.c.l.b16 %v3243
    %v3907 = vunpack.c.h.b16 %v3243
    %v3908 = vunpack.c.l.b16 %v3244
    %v3909 = vunpack.c.h.b16 %v3244
    %v3910 = vunpack.c.l.b16 %v3245
    %v3911 = vunpack.c.h.b16 %v3245
    %v3912 = vunpack.c.l.b16 %v3246
    %v3913 = vunpack.c.l.b16 %v3247
    %v3914 = vunpack.c.h.b16 %v3247
    %v3915 = vunpack.c.l.b16 %v3248
    %v3916 = vunpack.c.h.b16 %v3248
    %v3917 = vunpack.c.l.b16 %v3249
    %v3918 = vunpack.c.h.b16 %v3249
    %v3919 = vunpack.c.l.b16 %v3250
    %v3920 = vunpack.c.l.b16 %v3251
    %v3921 = vunpack.c.h.b16 %v3251
    %v3922 = vunpack.c.l.b16 %v3252
    %v3923 = vunpack.c.h.b16 %v3252
    %v3924 = vunpack.c.l.b16 %v3253
    %v3925 = vunpack.c.h.b16 %v3253
    %v3926 = vunpack.c.l.b16 %v3254
    %v3927 = vunpack.c.l.b16 %v3255
    %v3928 = vunpack.c.h.b16 %v3255
    %v3929 = vunpack.c.l.b16 %v3256
    %v3930 = vunpack.c.h.b16 %v3256
    %v3931 = vunpack.c.l.b16 %v3257
    %v3932 = vunpack.c.h.b16 %v3257
    %v3933 = vunpack.c.l.b16 %v3258
    %v3934 = vunpack.c.l.b16 %v3259
    %v3935 = vunpack.c.h.b16 %v3259
    %v3936 = vunpack.c.l.b16 %v3260
    %v3937 = vunpack.c.h.b16 %v3260
    %v3938 = vunpack.c.l.b16 %v3261
    %v3939 = vunpack.c.h.b16 %v3261
    %v3940 = vunpack.c.l.b16 %v3262
    %v3941 = vunpack.c.l.b16 %v3263
    %v3942 = vunpack.c.h.b16 %v3263
    %v3943 = vunpack.c.l.b16 %v3264
    %v3944 = vunpack.c.h.b16 %v3264
    %v3945 = vunpack.c.l.b16 %v3265
    %v3946 = vunpack.c.h.b16 %v3265
    %v3947 = vunpack.c.l.b16 %v3266
    %v3948 = vunpack.c.l.b16 %v3267
    %v3949 = vunpack.c.h.b16 %v3267
    %v3950 = vunpack.c.l.b16 %v3268
    %v3951 = vunpack.c.h.b16 %v3268
    %v3952 = vunpack.c.l.b16 %v3269
    %v3953 = vunpack.c.h.b16 %v3269
    %v3954 = vunpack.c.l.b16 %v3270
    %v3955 = vunpack.c.l.b16 %v3271
    %v3956 = vunpack.c.h.b16 %v3271
    %v3957 = vunpack.c.l.b16 %v3272
    %v3958 = vunpack.c.h.b16 %v3272
    %v3959 = vunpack.c.l.b16 %v3273
    %v3960 = vunpack.c.h.b16 %v3273
    %v3961 = vunpack.c.l.b16 %v3274
    %v3962 = vunpack.c.l.b16 %v3275
    %v3963 = vunpack.c.h.b16 %v3275
    %v3964 = vunpack.c.l.b16 %v3276
    %v3965 = vunpack.c.h.b16 %v3276
    %v3966 = vunpack.c.l.b16 %v3277
    %v3967 = vunpack.c.h.b16 %v3277
    %v3968 = vunpack.c.l.b16 %v3278
    %v3969 = vunpack.c.l.b16 %v3279
    %v3970 = vunpack.c.h.b16 %v3279
    %v3971 = vunpack.c.l.b16 %v3280
    %v3972 = vunpack.c.h.b16 %v3280
    %v3973 = vunpack.c.l.b16 %v3281
    %v3974 = vunpack.c.h.b16 %v3281
    %v3975 = vunpack.c.l.b16 %v3282
    %v3976 = vunpack.c.l.b16 %v3283
    %v3977 = vunpack.c.h.b16 %v3283
    %v3978 = vunpack.c.l.b16 %v3284
    %v3979 = vunpack.c.h.b16 %v3284
    %v3980 = vunpack.c.l.b16 %v3285
    %v3981 = vunpack.c.h.b16 %v3285
    %v3982 = vunpack.c.l.b16 %v3286
    %v3983 = vunpack.c.l.b16 %v3287
    %v3984 = vunpack.c.h.b16 %v3287
    %v3985 = vunpack.c.l.b16 %v3288
    %v3986 = vunpack.c.h.b16 %v3288
    %v3987 = vunpack.c.l.b16 %v3289
    %v3988 = vunpack.c.h.b16 %v3289
    %v3989 = vunpack.c.l.b16 %v3290
    %v3990 = vunpack.c.l.b16 %v3291
    %v3991 = vunpack.c.h.b16 %v3291
    %v3992 = vunpack.c.l.b16 %v3292
    %v3993 = vunpack.c.h.b16 %v3292
    %v3994 = vunpack.c.l.b16 %v3293
    %v3995 = vunpack.c.h.b16 %v3293
    %v3996 = vunpack.c.l.b16 %v3294
    %v3997 = vunpack.c.l.b16 %v3295
    %v3998 = vunpack.c.h.b16 %v3295
    %v3999 = vunpack.c.l.b16 %v3296
    %v4000 = vunpack.c.h.b16 %v3296
    %v4001 = vunpack.c.l.b16 %v3297
    %v4002 = vunpack.c.h.b16 %v3297
    %v4003 = vunpack.c.l.b16 %v3298
    %v4004 = vunpack.c.l.b16 %v3299
    %v4005 = vunpack.c.h.b16 %v3299
    %v4006 = vunpack.c.l.b16 %v3300
    %v4007 = vunpack.c.h.b16 %v3300
    %v4008 = vunpack.c.l.b16 %v3301
    %v4009 = vunpack.c.h.b16 %v3301
    %v4010 = vunpack.c.l.b16 %v3302
    %v4011 = vunpack.c.l.b16 %v3303
    %v4012 = vunpack.c.h.b16 %v3303
    %v4013 = vunpack.c.l.b16 %v3304
    %v4014 = vunpack.c.h.b16 %v3304
    %v4015 = vunpack.c.l.b16 %v3305
    %v4016 = vunpack.c.h.b16 %v3305
    %v4017 = vunpack.c.l.b16 %v3306
    %v4018 = vunpack.c.l.b16 %v3307
    %v4019 = vunpack.c.h.b16 %v3307
    %v4020 = vunpack.c.l.b16 %v3308
    %v4021 = vunpack.c.h.b16 %v3308
    %v4022 = vunpack.c.l.b16 %v3309
    %v4023 = vunpack.c.h.b16 %v3309
    %v4024 = vunpack.c.l.b16 %v3310
    %v4025 = vunpack.c.l.b16 %v3311
    %v4026 = vunpack.c.h.b16 %v3311
    %v4027 = vunpack.c.l.b16 %v3312
    %v4028 = vunpack.c.h.b16 %v3312
    %v4029 = vunpack.c.l.b16 %v3313
    %v4030 = vunpack.c.h.b16 %v3313
    %v4031 = vunpack.c.l.b16 %v3314
    %v4032 = vunpack.c.l.b16 %v3315
    %v4033 = vunpack.c.h.b16 %v3315
    %v4034 = vunpack.c.l.b16 %v3316
    %v4035 = vunpack.c.h.b16 %v3316
    %v4036 = vunpack.c.l.b16 %v3317
    %v4037 = vunpack.c.h.b16 %v3317
    %v4038 = vunpack.c.l.b16 %v3318
    %v4039 = vunpack.c.l.b16 %v3319
    %v4040 = vunpack.c.h.b16 %v3319
    %v4041 = vunpack.c.l.b16 %v3320
    %v4042 = vunpack.c.h.b16 %v3320
    %v4043 = vunpack.c.l.b16 %v3321
    %v4044 = vunpack.c.h.b16 %v3321
    %v4045 = vunpack.c.l.b16 %v3322
    %v4046 = vunpack.c.l.b16 %v3323
    %v4047 = vunpack.c.h.b16 %v3323
    %v4048 = vunpack.c.l.b16 %v3324
    %v4049 = vunpack.c.h.b16 %v3324
    %v4050 = vunpack.c.l.b16 %v3325
    %v4051 = vunpack.c.h.b16 %v3325
    %v4052 = vunpack.c.l.b16 %v3326
    %v4053 = vunpack.c.l.b16 %v3327
    %v4054 = vunpack.c.h.b16 %v3327
    %v4055 = vunpack.c.l.b16 %v3328
    %v4056 = vunpack.c.h.b16 %v3328
    %v4057 = vunpack.c.l.b16 %v3329
    %v4058 = vunpack.c.h.b16 %v3329
    %v4059 = vunpack.c.l.b16 %v3330
    %v4060 = vunpack.c.l.b16 %v3331
    %v4061 = vunpack.c.h.b16 %v3331
    %v4062 = vunpack.c.l.b16 %v3332
    %v4063 = vunpack.c.h.b16 %v3332
    %v4064 = vunpack.c.l.b16 %v3333
    %v4065 = vunpack.c.h.b16 %v3333
    %v4066 = vunpack.c.l.b16 %v3334
    %v4067 = vunpack.c.l.b16 %v3335
    %v4068 = vunpack.c.h.b16 %v3335
    %v4069 = vunpack.c.l.b16 %v3336
    %v4070 = vunpack.c.h.b16 %v3336
    %v4071 = vunpack.c.l.b16 %v3337
    %v4072 = vunpack.c.h.b16 %v3337
    %v4073 = vunpack.c.l.b16 %v3338
    %v4074 = vunpack.c.l.b16 %v3339
    %v4075 = vunpack.c.h.b16 %v3339
    %v4076 = vunpack.c.l.b16 %v3340
    %v4077 = vunpack.c.h.b16 %v3340
    %v4078 = vunpack.c.l.b16 %v3341
    %v4079 = vunpack.c.h.b16 %v3341
    %v4080 = vunpack.c.l.b16 %v3342
    %v4081 = vunpack.c.l.b16 %v3343
    %v4082 = vunpack.c.h.b16 %v3343
    %v4083 = vunpack.c.l.b16 %v3344
    %v4084 = vunpack.c.h.b16 %v3344
    %v4085 = vunpack.c.l.b16 %v3345
    %v4086 = vunpack.c.h.b16 %v3345
    %v4087 = vunpack.c.l.b16 %v3346
    %v4088 = vpack.c.b16 %v3647, %v3640
    %v4089 = vpack.c.b16 %v3648, %v3641
    %v4090 = vpack.c.b16 %v3649, %v3642
    %v4091 = vpack.c.b16 %v3650, %v3643
    %v4092 = vpack.c.b16 %v3651, %v3644
    %v4093 = vpack.c.b16 %v3652, %v3645
    %v4094 = vpack.c.b16 %v3653, %v3646
    %v4095 = vpack.c.b16 %v3661, %v3654
    %v4096 = vpack.c.b16 %v3662, %v3655
    %v4097 = vpack.c.b16 %v3663, %v3656
    %v4098 = vpack.c.b16 %v3664, %v3657
    %v4099 = vpack.c.b16 %v3665, %v3658
    %v4100 = vpack.c.b16 %v3666, %v3659
    %v4101 = vpack.c.b16 %v3667, %v3660
    %v4102 = vpack.c.b16 %v3675, %v3668
    %v4103 = vpack.c.b16 %v3676, %v3669
    %v4104 = vpack.c.b16 %v3677, %v3670
    %v4105 = vpack.c.b16 %v3678, %v3671
    %v4106 = vpack.c.b16 %v3679, %v3672
    %v4107 = vpack.c.b16 %v3680, %v3673
    %v4108 = vpack.c.b16 %v3681, %v3674
    %v4109 = vpack.c.b16 %v3689, %v3682
    %v4110 = vpack.c.b16 %v3690, %v3683
    %v4111 = vpack.c.b16 %v3691, %v3684
    %v4112 = vpack.c.b16 %v3692, %v3685
    %v4113 = vpack.c.b16 %v3693, %v3686
    %v4114 = vpack.c.b16 %v3694, %v3687
    %v4115 = vpack.c.b16 %v3695, %v3688
    %v4116 = vpack.c.b16 %v3703, %v3696
    %v4117 = vpack.c.b16 %v3704, %v3697
    %v4118 = vpack.c.b16 %v3705, %v3698
    %v4119 = vpack.c.b16 %v3706, %v3699
    %v4120 = vpack.c.b16 %v3707, %v3700
    %v4121 = vpack.c.b16 %v3708, %v3701
    %v4122 = vpack.c.b16 %v3709, %v3702
    %v4123 = vpack.c.b16 %v3717, %v3710
    %v4124 = vpack.c.b16 %v3718, %v3711
    %v4125 = vpack.c.b16 %v3719, %v3712
    %v4126 = vpack.c.b16 %v3720, %v3713
    %v4127 = vpack.c.b16 %v3721, %v3714
    %v4128 = vpack.c.b16 %v3722, %v3715
    %v4129 = vpack.c.b16 %v3723, %v3716
    %v4130 = vpack.c.b16 %v3731, %v3724
    %v4131 = vpack.c.b16 %v3732, %v3725
    %v4132 = vpack.c.b16 %v3733, %v3726
    %v4133 = vpack.c.b16 %v3734, %v3727
    %v4134 = vpack.c.b16 %v3735, %v3728
    %v4135 = vpack.c.b16 %v3736, %v3729
    %v4136 = vpack.c.b16 %v3737, %v3730
    %v4137 = vpack.c.b16 %v3745, %v3738
    %v4138 = vpack.c.b16 %v3746, %v3739
    %v4139 = vpack.c.b16 %v3747, %v3740
    %v4140 = vpack.c.b16 %v3748, %v3741
    %v4141 = vpack.c.b16 %v3749, %v3742
    %v4142 = vpack.c.b16 %v3750, %v3743
    %v4143 = vpack.c.b16 %v3751, %v3744
    %v4144 = vpack.c.b16 %v3759, %v3752
    %v4145 = vpack.c.b16 %v3760, %v3753
    %v4146 = vpack.c.b16 %v3761, %v3754
    %v4147 = vpack.c.b16 %v3762, %v3755
    %v4148 = vpack.c.b16 %v3763, %v3756
    %v4149 = vpack.c.b16 %v3764, %v3757
    %v4150 = vpack.c.b16 %v3765, %v3758
    %v4151 = vpack.c.b16 %v3773, %v3766
    %v4152 = vpack.c.b16 %v3774, %v3767
    %v4153 = vpack.c.b16 %v3775, %v3768
    %v4154 = vpack.c.b16 %v3776, %v3769
    %v4155 = vpack.c.b16 %v3777, %v3770
    %v4156 = vpack.c.b16 %v3778, %v3771
    %v4157 = vpack.c.b16 %v3779, %v3772
    %v4158 = vpack.c.b16 %v3787, %v3780
    %v4159 = vpack.c.b16 %v3788, %v3781
    %v4160 = vpack.c.b16 %v3789, %v3782
    %v4161 = vpack.c.b16 %v3790, %v3783
    %v4162 = vpack.c.b16 %v3791, %v3784
    %v4163 = vpack.c.b16 %v3792, %v3785
    %v4164 = vpack.c.b16 %v3793, %v3786
    %v4165 = vpack.c.b16 %v3801, %v3794
    %v4166 = vpack.c.b16 %v3802, %v3795
    %v4167 = vpack.c.b16 %v3803, %v3796
    %v4168 = vpack.c.b16 %v3804, %v3797
    %v4169 = vpack.c.b16 %v3805, %v3798
    %v4170 = vpack.c.b16 %v3806, %v3799
    %v4171 = vpack.c.b16 %v3807, %v3800
    %v4172 = vpack.c.b16 %v3815, %v3808
    %v4173 = vpack.c.b16 %v3816, %v3809
    %v4174 = vpack.c.b16 %v3817, %v3810
    %v4175 = vpack.c.b16 %v3818, %v3811
    %v4176 = vpack.c.b16 %v3819, %v3812
    %v4177 = vpack.c.b16 %v3820, %v3813
    %v4178 = vpack.c.b16 %v3821, %v3814
    %v4179 = vpack.c.b16 %v3829, %v3822
    %v4180 = vpack.c.b16 %v3830, %v3823
    %v4181 = vpack.c.b16 %v3831, %v3824
    %v4182 = vpack.c.b16 %v3832, %v3825
    %v4183 = vpack.c.b16 %v3833, %v3826
    %v4184 = vpack.c.b16 %v3834, %v3827
    %v4185 = vpack.c.b16 %v3835, %v3828
    %v4186 = vpack.c.b16 %v3843, %v3836
    %v4187 = vpack.c.b16 %v3844, %v3837
    %v4188 = vpack.c.b16 %v3845, %v3838
    %v4189 = vpack.c.b16 %v3846, %v3839
    %v4190 = vpack.c.b16 %v3847, %v3840
    %v4191 = vpack.c.b16 %v3848, %v3841
    %v4192 = vpack.c.b16 %v3849, %v3842
    %v4193 = vpack.c.b16 %v3857, %v3850
    %v4194 = vpack.c.b16 %v3858, %v3851
    %v4195 = vpack.c.b16 %v3859, %v3852
    %v4196 = vpack.c.b16 %v3860, %v3853
    %v4197 = vpack.c.b16 %v3861, %v3854
    %v4198 = vpack.c.b16 %v3862, %v3855
    %v4199 = vpack.c.b16 %v3863, %v3856
    %v4200 = vpack.c.b16 %v3871, %v3864
    %v4201 = vpack.c.b16 %v3872, %v3865
    %v4202 = vpack.c.b16 %v3873, %v3866
    %v4203 = vpack.c.b16 %v3874, %v3867
    %v4204 = vpack.c.b16 %v3875, %v3868
    %v4205 = vpack.c.b16 %v3876, %v3869
    %v4206 = vpack.c.b16 %v3877, %v3870
    %v4207 = vpack.c.b16 %v3885, %v3878
    %v4208 = vpack.c.b16 %v3886, %v3879
    %v4209 = vpack.c.b16 %v3887, %v3880
    %v4210 = vpack.c.b16 %v3888, %v3881
    %v4211 = vpack.c.b16 %v3889, %v3882
    %v4212 = vpack.c.b16 %v3890, %v3883
    %v4213 = vpack.c.b16 %v3891, %v3884
    %v4214 = vpack.c.b16 %v3899, %v3892
    %v4215 = vpack.c.b16 %v3900, %v3893
    %v4216 = vpack.c.b16 %v3901, %v3894
    %v4217 = vpack.c.b16 %v3902, %v3895
    %v4218 = vpack.c.b16 %v3903, %v3896
    %v4219 = vpack.c.b16 %v3904, %v3897
    %v4220 = vpack.c.b16 %v3905, %v3898
    %v4221 = vpack.c.b16 %v3913, %v3906
    %v4222 = vpack.c.b16 %v3914, %v3907
    %v4223 = vpack.c.b16 %v3915, %v3908
    %v4224 = vpack.c.b16 %v3916, %v3909
    %v4225 = vpack.c.b16 %v3917, %v3910
    %v4226 = vpack.c.b16 %v3918, %v3911
    %v4227 = vpack.c.b16 %v3919, %v3912
    %v4228 = vpack.c.b16 %v3927, %v3920
    %v4229 = vpack.c.b16 %v3928, %v3921
    %v4230 = vpack.c.b16 %v3929, %v3922
    %v4231 = vpack.c.b16 %v3930, %v3923
    %v4232 = vpack.c.b16 %v3931, %v3924
    %v4233 = vpack.c.b16 %v3932, %v3925
    %v4234 = vpack.c.b16 %v3933, %v3926
    %v4235 = vpack.c.b16 %v3941, %v3934
    %v4236 = vpack.c.b16 %v3942, %v3935
    %v4237 = vpack.c.b16 %v3943, %v3936
    %v4238 = vpack.c.b16 %v3944, %v3937
    %v4239 = vpack.c.b16 %v3945, %v3938
    %v4240 = vpack.c.b16 %v3946, %v3939
    %v4241 = vpack.c.b16 %v3947, %v3940
    %v4242 = vpack.c.b16 %v3955, %v3948
    %v4243 = vpack.c.b16 %v3956, %v3949
    %v4244 = vpack.c.b16 %v3957, %v3950
    %v4245 = vpack.c.b16 %v3958, %v3951
    %v4246 = vpack.c.b16 %v3959, %v3952
    %v4247 = vpack.c.b16 %v3960, %v3953
    %v4248 = vpack.c.b16 %v3961, %v3954
    %v4249 = vpack.c.b16 %v3969, %v3962
    %v4250 = vpack.c.b16 %v3970, %v3963
    %v4251 = vpack.c.b16 %v3971, %v3964
    %v4252 = vpack.c.b16 %v3972, %v3965
    %v4253 = vpack.c.b16 %v3973, %v3966
    %v4254 = vpack.c.b16 %v3974, %v3967
    %v4255 = vpack.c.b16 %v3975, %v3968
    %v4256 = vpack.c.b16 %v3983, %v3976
    %v4257 = vpack.c.b16 %v3984, %v3977
    %v4258 = vpack.c.b16 %v3985, %v3978
    %v4259 = vpack.c.b16 %v3986, %v3979
    %v4260 = vpack.c.b16 %v3987, %v3980
    %v4261 = vpack.c.b16 %v3988, %v3981
    %v4262 = vpack.c.b16 %v3989, %v3982
    %v4263 = vpack.c.b16 %v3997, %v3990
    %v4264 = vpack.c.b16 %v3998, %v3991
    %v4265 = vpack.c.b16 %v3999, %v3992
    %v4266 = vpack.c.b16 %v4000, %v3993
    %v4267 = vpack.c.b16 %v4001, %v3994
    %v4268 = vpack.c.b16 %v4002, %v3995
    %v4269 = vpack.c.b16 %v4003, %v3996
    %v4270 = vpack.c.b16 %v4011, %v4004
    %v4271 = vpack.c.b16 %v4012, %v4005
    %v4272 = vpack.c.b16 %v4013, %v4006
    %v4273 = vpack.c.b16 %v4014, %v4007
    %v4274 = vpack.c.b16 %v4015, %v4008
    %v4275 = vpack.c.b16 %v4016, %v4009
    %v4276 = vpack.c.b16 %v4017, %v4010
    %v4277 = vpack.c.b16 %v4025, %v4018
    %v4278 = vpack.c.b16 %v4026, %v4019
    %v4279 = vpack.c.b16 %v4027, %v4020
    %v4280 = vpack.c.b16 %v4028, %v4021
    %v4281 = vpack.c.b16 %v4029, %v4022
    %v4282 = vpack.c.b16 %v4030, %v4023
    %v4283 = vpack.c.b16 %v4031, %v4024
    %v4284 = vpack.c.b16 %v4039, %v4032
    %v4285 = vpack.c.b16 %v4040, %v4033
    %v4286 = vpack.c.b16 %v4041, %v4034
    %v4287 = vpack.c.b16 %v4042, %v4035
    %v4288 = vpack.c.b16 %v4043, %v4036
    %v4289 = vpack.c.b16 %v4044, %v4037
    %v4290 = vpack.c.b16 %v4045, %v4038
    %v4291 = vpack.c.b16 %v4053, %v4046
    %v4292 = vpack.c.b16 %v4054, %v4047
    %v4293 = vpack.c.b16 %v4055, %v4048
    %v4294 = vpack.c.b16 %v4056, %v4049
    %v4295 = vpack.c.b16 %v4057, %v4050
    %v4296 = vpack.c.b16 %v4058, %v4051
    %v4297 = vpack.c.b16 %v4059, %v4052
    %v4298 = vpack.c.b16 %v4067, %v4060
    %v4299 = vpack.c.b16 %v4068, %v4061
    %v4300 = vpack.c.b16 %v4069, %v4062
    %v4301 = vpack.c.b16 %v4070, %v4063
    %v4302 = vpack.c.b16 %v4071, %v4064
    %v4303 = vpack.c.b16 %v4072, %v4065
    %v4304 = vpack.c.b16 %v4073, %v4066
    %v4305 = vpack.c.b16 %v4081, %v4074
    %v4306 = vpack.c.b16 %v4082, %v4075
    %v4307 = vpack.c.b16 %v4083, %v4076
    %v4308 = vpack.c.b16 %v4084, %v4077
    %v4309 = vpack.c.b16 %v4085, %v4078
    %v4310 = vpack.c.b16 %v4086, %v4079
    %v4311 = vpack.c.b16 %v4087, %v4080
    %4536 = vmatprep.subr.bf16.mxu0 %v4089
    %4537 = vmatpush1.bf16.msra.mxu0 %v4088
    %4538 = vmatprep.subr.bf16.mxu0 %v4096
    %4539 = vmatpush1.bf16.msra.mxu0 %v4095
    %4540 = vmatprep.subr.bf16.mxu0 %v4103
    %4541 = vmatpush1.bf16.msra.mxu0 %v4102
    %4542 = vmatprep.subr.bf16.mxu0 %v4110
    %4543 = vmatpush1.bf16.msra.mxu0 %v4109
    %4544 = vmatprep.subr.bf16.mxu0 %v4117
    %4545 = vmatpush1.bf16.msra.mxu0 %v4116
    %4546 = vmatprep.subr.bf16.mxu0 %v4124
    %4547 = vmatpush1.bf16.msra.mxu0 %v4123
    %4548 = vmatprep.subr.bf16.mxu0 %v4131
    %4549 = vmatpush1.bf16.msra.mxu0 %v4130
    %4550 = vmatprep.subr.bf16.mxu0 %v4138
    %4551 = vmatpush1.bf16.msra.mxu0 %v4137
    %4552 = vmatprep.subr.bf16.mxu0 %v4145
    %4553 = vmatpush1.bf16.msra.mxu0 %v4144
    %4554 = vmatprep.subr.bf16.mxu0 %v4152
    %4555 = vmatpush1.bf16.msra.mxu0 %v4151
    %4556 = vmatprep.subr.bf16.mxu0 %v4159
    %4557 = vmatpush1.bf16.msra.mxu0 %v4158
    %4558 = vmatprep.subr.bf16.mxu0 %v4166
    %4559 = vmatpush1.bf16.msra.mxu0 %v4165
    %4560 = vmatprep.subr.bf16.mxu0 %v4173
    %4561 = vmatpush1.bf16.msra.mxu0 %v4172
    %4562 = vmatprep.subr.bf16.mxu0 %v4180
    %4563 = vmatpush1.bf16.msra.mxu0 %v4179
    %4564 = vmatprep.subr.bf16.mxu0 %v4187
    %4565 = vmatpush1.bf16.msra.mxu0 %v4186
    %4566 = vmatprep.subr.bf16.mxu0 %v4194
    %4567 = vmatpush1.bf16.msra.mxu0 %v4193
    %4568 = vmatprep.mubr.bf16.mxu0 %v3088
    %4569 = vmatmul.mubr.bf16.gmra.mrb[0].mxu0 %v3087
    %v4570 = vpop.f32.mrb[0].mxu0
    %v4571 = vadd.f32 %v3352, %v4570
    %v4572 = vpop.f32.mrb[0].mxu0
    %v4573 = vadd.f32 %v3356, %v4572
    %v4574 = vpop.f32.mrb[0].mxu0
    %v4575 = vpop.f32.mrb[0].mxu0
    %4576 = vdwg.mxu0
    %4577 = vmatprep.subr.bf16.mxu0 %v4201
    %4578 = vmatpush1.bf16.msra.mxu0 %v4200
    %4579 = vmatprep.subr.bf16.mxu0 %v4208
    %4580 = vmatpush1.bf16.msra.mxu0 %v4207
    %4581 = vmatprep.subr.bf16.mxu0 %v4215
    %4582 = vmatpush1.bf16.msra.mxu0 %v4214
    %4583 = vmatprep.subr.bf16.mxu0 %v4222
    %4584 = vmatpush1.bf16.msra.mxu0 %v4221
    %4585 = vmatprep.subr.bf16.mxu0 %v4229
    %4586 = vmatpush1.bf16.msra.mxu0 %v4228
    %4587 = vmatprep.subr.bf16.mxu0 %v4236
    %4588 = vmatpush1.bf16.msra.mxu0 %v4235
    %4589 = vmatprep.subr.bf16.mxu0 %v4243
    %4590 = vmatpush1.bf16.msra.mxu0 %v4242
    %4591 = vmatprep.subr.bf16.mxu0 %v4250
    %4592 = vmatpush1.bf16.msra.mxu0 %v4249
    %4593 = vmatprep.subr.bf16.mxu0 %v4257
    %4594 = vmatpush1.bf16.msra.mxu0 %v4256
    %4595 = vmatprep.subr.bf16.mxu0 %v4264
    %4596 = vmatpush1.bf16.msra.mxu0 %v4263
    %4597 = vmatprep.subr.bf16.mxu0 %v4271
    %4598 = vmatpush1.bf16.msra.mxu0 %v4270
    %4599 = vmatprep.subr.bf16.mxu0 %v4278
    %4600 = vmatpush1.bf16.msra.mxu0 %v4277
    %4601 = vmatprep.subr.bf16.mxu0 %v4285
    %4602 = vmatpush1.bf16.msra.mxu0 %v4284
    %4603 = vmatprep.subr.bf16.mxu0 %v4292
    %4604 = vmatpush1.bf16.msra.mxu0 %v4291
    %4605 = vmatprep.subr.bf16.mxu0 %v4299
    %4606 = vmatpush1.bf16.msra.mxu0 %v4298
    %4607 = vmatprep.subr.bf16.mxu0 %v4306
    %4608 = vmatpush1.bf16.msra.mxu0 %v4305
    %4609 = vmatprep.mubr.bf16.mxu0 %v3090
    %4610 = vmatmul.mubr.bf16.gmra.mrb[0].mxu0 %v3089
    %v4611 = vpop.f32.mrb[0].mxu0
    %v4612 = vadd.f32 %v4571, %v4611
    %v4613 = vpop.f32.mrb[0].mxu0
    %v4614 = vadd.f32 %v4573, %v4613
    %v4615 = vpop.f32.mrb[0].mxu0
    %v4616 = vpop.f32.mrb[0].mxu0
    %4617 = vdwg.mxu0
    %4618 = vmatprep.subr.bf16.mxu0 %v4091
    %4619 = vmatpush1.bf16.msra.mxu0 %v4090
    %4620 = vmatprep.subr.bf16.mxu0 %v4098
    %4621 = vmatpush1.bf16.msra.mxu0 %v4097
    %4622 = vmatprep.subr.bf16.mxu0 %v4105
    %4623 = vmatpush1.bf16.msra.mxu0 %v4104
    %4624 = vmatprep.subr.bf16.mxu0 %v4112
    %4625 = vmatpush1.bf16.msra.mxu0 %v4111
    %4626 = vmatprep.subr.bf16.mxu0 %v4119
    %4627 = vmatpush1.bf16.msra.mxu0 %v4118
    %4628 = vmatprep.subr.bf16.mxu0 %v4126
    %4629 = vmatpush1.bf16.msra.mxu0 %v4125
    %4630 = vmatprep.subr.bf16.mxu0 %v4133
    %4631 = vmatpush1.bf16.msra.mxu0 %v4132
    %4632 = vmatprep.subr.bf16.mxu0 %v4140
    %4633 = vmatpush1.bf16.msra.mxu0 %v4139
    %4634 = vmatprep.subr.bf16.mxu0 %v4147
    %4635 = vmatpush1.bf16.msra.mxu0 %v4146
    %4636 = vmatprep.subr.bf16.mxu0 %v4154
    %4637 = vmatpush1.bf16.msra.mxu0 %v4153
    %4638 = vmatprep.subr.bf16.mxu0 %v4161
    %4639 = vmatpush1.bf16.msra.mxu0 %v4160
    %4640 = vmatprep.subr.bf16.mxu0 %v4168
    %4641 = vmatpush1.bf16.msra.mxu0 %v4167
    %4642 = vmatprep.subr.bf16.mxu0 %v4175
    %4643 = vmatpush1.bf16.msra.mxu0 %v4174
    %4644 = vmatprep.subr.bf16.mxu0 %v4182
    %4645 = vmatpush1.bf16.msra.mxu0 %v4181
    %4646 = vmatprep.subr.bf16.mxu0 %v4189
    %4647 = vmatpush1.bf16.msra.mxu0 %v4188
    %4648 = vmatprep.subr.bf16.mxu0 %v4196
    %4649 = vmatpush1.bf16.msra.mxu0 %v4195
    %4650 = vmatprep.mubr.bf16.mxu0 %v3088
    %4651 = vmatmul.mubr.bf16.gmra.mrb[0].mxu0 %v3087
    %v4652 = vpop.f32.mrb[0].mxu0
    %v4653 = vadd.f32 %v3360, %v4652
    %v4654 = vpop.f32.mrb[0].mxu0
    %v4655 = vadd.f32 %v3364, %v4654
    %v4656 = vpop.f32.mrb[0].mxu0
    %v4657 = vpop.f32.mrb[0].mxu0
    %4658 = vdwg.mxu0
    %4659 = vmatprep.subr.bf16.mxu0 %v4203
    %4660 = vmatpush1.bf16.msra.mxu0 %v4202
    %4661 = vmatprep.subr.bf16.mxu0 %v4210
    %4662 = vmatpush1.bf16.msra.mxu0 %v4209
    %4663 = vmatprep.subr.bf16.mxu0 %v4217
    %4664 = vmatpush1.bf16.msra.mxu0 %v4216
    %4665 = vmatprep.subr.bf16.mxu0 %v4224
    %4666 = vmatpush1.bf16.msra.mxu0 %v4223
    %4667 = vmatprep.subr.bf16.mxu0 %v4231
    %4668 = vmatpush1.bf16.msra.mxu0 %v4230
    %4669 = vmatprep.subr.bf16.mxu0 %v4238
    %4670 = vmatpush1.bf16.msra.mxu0 %v4237
    %4671 = vmatprep.subr.bf16.mxu0 %v4245
    %4672 = vmatpush1.bf16.msra.mxu0 %v4244
    %4673 = vmatprep.subr.bf16.mxu0 %v4252
    %4674 = vmatpush1.bf16.msra.mxu0 %v4251
    %4675 = vmatprep.subr.bf16.mxu0 %v4259
    %4676 = vmatpush1.bf16.msra.mxu0 %v4258
    %4677 = vmatprep.subr.bf16.mxu0 %v4266
    %4678 = vmatpush1.bf16.msra.mxu0 %v4265
    %4679 = vmatprep.subr.bf16.mxu0 %v4273
    %4680 = vmatpush1.bf16.msra.mxu0 %v4272
    %4681 = vmatprep.subr.bf16.mxu0 %v4280
    %4682 = vmatpush1.bf16.msra.mxu0 %v4279
    %4683 = vmatprep.subr.bf16.mxu0 %v4287
    %4684 = vmatpush1.bf16.msra.mxu0 %v4286
    %4685 = vmatprep.subr.bf16.mxu0 %v4294
    %4686 = vmatpush1.bf16.msra.mxu0 %v4293
    %4687 = vmatprep.subr.bf16.mxu0 %v4301
    %4688 = vmatpush1.bf16.msra.mxu0 %v4300
    %4689 = vmatprep.subr.bf16.mxu0 %v4308
    %4690 = vmatpush1.bf16.msra.mxu0 %v4307
    %4691 = vmatprep.mubr.bf16.mxu0 %v3090
    %4692 = vmatmul.mubr.bf16.gmra.mrb[0].mxu0 %v3089
    %v4693 = vpop.f32.mrb[0].mxu0
    %v4694 = vadd.f32 %v4653, %v4693
    %v4695 = vpop.f32.mrb[0].mxu0
    %v4696 = vadd.f32 %v4655, %v4695
    %v4697 = vpop.f32.mrb[0].mxu0
    %v4698 = vpop.f32.mrb[0].mxu0
    %4699 = vdwg.mxu0
    %4700 = vmatprep.subr.bf16.mxu0 %v4093
    %4701 = vmatpush1.bf16.msra.mxu0 %v4092
    %4702 = vmatprep.subr.bf16.mxu0 %v4100
    %4703 = vmatpush1.bf16.msra.mxu0 %v4099
    %4704 = vmatprep.subr.bf16.mxu0 %v4107
    %4705 = vmatpush1.bf16.msra.mxu0 %v4106
    %4706 = vmatprep.subr.bf16.mxu0 %v4114
    %4707 = vmatpush1.bf16.msra.mxu0 %v4113
    %4708 = vmatprep.subr.bf16.mxu0 %v4121
    %4709 = vmatpush1.bf16.msra.mxu0 %v4120
    %4710 = vmatprep.subr.bf16.mxu0 %v4128
    %4711 = vmatpush1.bf16.msra.mxu0 %v4127
    %4712 = vmatprep.subr.bf16.mxu0 %v4135
    %4713 = vmatpush1.bf16.msra.mxu0 %v4134
    %4714 = vmatprep.subr.bf16.mxu0 %v4142
    %4715 = vmatpush1.bf16.msra.mxu0 %v4141
    %4716 = vmatprep.subr.bf16.mxu0 %v4149
    %4717 = vmatpush1.bf16.msra.mxu0 %v4148
    %4718 = vmatprep.subr.bf16.mxu0 %v4156
    %4719 = vmatpush1.bf16.msra.mxu0 %v4155
    %4720 = vmatprep.subr.bf16.mxu0 %v4163
    %4721 = vmatpush1.bf16.msra.mxu0 %v4162
    %4722 = vmatprep.subr.bf16.mxu0 %v4170
    %4723 = vmatpush1.bf16.msra.mxu0 %v4169
    %4724 = vmatprep.subr.bf16.mxu0 %v4177
    %4725 = vmatpush1.bf16.msra.mxu0 %v4176
    %4726 = vmatprep.subr.bf16.mxu0 %v4184
    %4727 = vmatpush1.bf16.msra.mxu0 %v4183
    %4728 = vmatprep.subr.bf16.mxu0 %v4191
    %4729 = vmatpush1.bf16.msra.mxu0 %v4190
    %4730 = vmatprep.subr.bf16.mxu0 %v4198
    %4731 = vmatpush1.bf16.msra.mxu0 %v4197
    %4732 = vmatprep.mubr.bf16.mxu0 %v3088
    %4733 = vmatmul.mubr.bf16.gmra.mrb[0].mxu0 %v3087
    %v4734 = vpop.f32.mrb[0].mxu0
    %v4735 = vadd.f32 %v3368, %v4734
    %v4736 = vpop.f32.mrb[0].mxu0
    %v4737 = vadd.f32 %v3372, %v4736
    %v4738 = vpop.f32.mrb[0].mxu0
    %v4739 = vpop.f32.mrb[0].mxu0
    %4740 = vdwg.mxu0
    %4741 = vmatprep.subr.bf16.mxu0 %v4205
    %4742 = vmatpush1.bf16.msra.mxu0 %v4204
    %4743 = vmatprep.subr.bf16.mxu0 %v4212
    %4744 = vmatpush1.bf16.msra.mxu0 %v4211
    %4745 = vmatprep.subr.bf16.mxu0 %v4219
    %4746 = vmatpush1.bf16.msra.mxu0 %v4218
    %4747 = vmatprep.subr.bf16.mxu0 %v4226
    %4748 = vmatpush1.bf16.msra.mxu0 %v4225
    %4749 = vmatprep.subr.bf16.mxu0 %v4233
    %4750 = vmatpush1.bf16.msra.mxu0 %v4232
    %4751 = vmatprep.subr.bf16.mxu0 %v4240
    %4752 = vmatpush1.bf16.msra.mxu0 %v4239
    %4753 = vmatprep.subr.bf16.mxu0 %v4247
    %4754 = vmatpush1.bf16.msra.mxu0 %v4246
    %4755 = vmatprep.subr.bf16.mxu0 %v4254
    %4756 = vmatpush1.bf16.msra.mxu0 %v4253
    %4757 = vmatprep.subr.bf16.mxu0 %v4261
    %4758 = vmatpush1.bf16.msra.mxu0 %v4260
    %4759 = vmatprep.subr.bf16.mxu0 %v4268
    %4760 = vmatpush1.bf16.msra.mxu0 %v4267
    %4761 = vmatprep.subr.bf16.mxu0 %v4275
    %4762 = vmatpush1.bf16.msra.mxu0 %v4274
    %4763 = vmatprep.subr.bf16.mxu0 %v4282
    %4764 = vmatpush1.bf16.msra.mxu0 %v4281
    %4765 = vmatprep.subr.bf16.mxu0 %v4289
    %4766 = vmatpush1.bf16.msra.mxu0 %v4288
    %4767 = vmatprep.subr.bf16.mxu0 %v4296
    %4768 = vmatpush1.bf16.msra.mxu0 %v4295
    %4769 = vmatprep.subr.bf16.mxu0 %v4303
    %4770 = vmatpush1.bf16.msra.mxu0 %v4302
    %4771 = vmatprep.subr.bf16.mxu0 %v4310
    %4772 = vmatpush1.bf16.msra.mxu0 %v4309
    %4773 = vmatprep.mubr.bf16.mxu0 %v3090
    %4774 = vmatmul.mubr.bf16.gmra.mrb[0].mxu0 %v3089
    %v4775 = vpop.f32.mrb[0].mxu0
    %v4776 = vadd.f32 %v4735, %v4775
    %v4777 = vpop.f32.mrb[0].mxu0
    %v4778 = vadd.f32 %v4737, %v4777
    %v4779 = vpop.f32.mrb[0].mxu0
    %v4780 = vpop.f32.mrb[0].mxu0
    %4781 = vdwg.mxu0
    %4782 = vmatprep.subr.bf16.mxu0 0
    %4783 = vmatpush1.bf16.msra.mxu0 %v4094
    %4784 = vmatprep.subr.bf16.mxu0 0
    %4785 = vmatpush1.bf16.msra.mxu0 %v4101
    %4786 = vmatprep.subr.bf16.mxu0 0
    %4787 = vmatpush1.bf16.msra.mxu0 %v4108
    %4788 = vmatprep.subr.bf16.mxu0 0
    %4789 = vmatpush1.bf16.msra.mxu0 %v4115
    %4790 = vmatprep.subr.bf16.mxu0 0
    %4791 = vmatpush1.bf16.msra.mxu0 %v4122
    %4792 = vmatprep.subr.bf16.mxu0 0
    %4793 = vmatpush1.bf16.msra.mxu0 %v4129
    %4794 = vmatprep.subr.bf16.mxu0 0
    %4795 = vmatpush1.bf16.msra.mxu0 %v4136
    %4796 = vmatprep.subr.bf16.mxu0 0
    %4797 = vmatpush1.bf16.msra.mxu0 %v4143
    %4798 = vmatprep.subr.bf16.mxu0 0
    %4799 = vmatpush1.bf16.msra.mxu0 %v4150
    %4800 = vmatprep.subr.bf16.mxu0 0
    %4801 = vmatpush1.bf16.msra.mxu0 %v4157
    %4802 = vmatprep.subr.bf16.mxu0 0
    %4803 = vmatpush1.bf16.msra.mxu0 %v4164
    %4804 = vmatprep.subr.bf16.mxu0 0
    %4805 = vmatpush1.bf16.msra.mxu0 %v4171
    %4806 = vmatprep.subr.bf16.mxu0 0
    %4807 = vmatpush1.bf16.msra.mxu0 %v4178
    %4808 = vmatprep.subr.bf16.mxu0 0
    %4809 = vmatpush1.bf16.msra.mxu0 %v4185
    %4810 = vmatprep.subr.bf16.mxu0 0
    %4811 = vmatpush1.bf16.msra.mxu0 %v4192
    %4812 = vmatprep.subr.bf16.mxu0 0
    %4813 = vmatpush1.bf16.msra.mxu0 %v4199
    %4814 = vmatprep.mubr.bf16.mxu0 %v3088
    %4815 = vmatmul.mubr.bf16.gmra.mrb[0].mxu0 %v3087
    %v4816 = vpop.f32.mrb[0].mxu0
    %v4817 = vadd.f32 %v3376, %v4816
    %v4818 = vpop.f32.mrb[0].mxu0
    %v4819 = vpop.f32.mrb[0].mxu0
    %v4820 = vpop.f32.mrb[0].mxu0
    %4821 = vdwg.mxu0
    %4822 = vmatprep.subr.bf16.mxu0 0
    %4823 = vmatpush1.bf16.msra.mxu0 %v4206
    %4824 = vmatprep.subr.bf16.mxu0 0
    %4825 = vmatpush1.bf16.msra.mxu0 %v4213
    %4826 = vmatprep.subr.bf16.mxu0 0
    %4827 = vmatpush1.bf16.msra.mxu0 %v4220
    %4828 = vmatprep.subr.bf16.mxu0 0
    %4829 = vmatpush1.bf16.msra.mxu0 %v4227
    %4830 = vmatprep.subr.bf16.mxu0 0
    %4831 = vmatpush1.bf16.msra.mxu0 %v4234
    %4832 = vmatprep.subr.bf16.mxu0 0
    %4833 = vmatpush1.bf16.msra.mxu0 %v4241
    %4834 = vmatprep.subr.bf16.mxu0 0
    %4835 = vmatpush1.bf16.msra.mxu0 %v4248
    %4836 = vmatprep.subr.bf16.mxu0 0
    %4837 = vmatpush1.bf16.msra.mxu0 %v4255
    %4838 = vmatprep.subr.bf16.mxu0 0
    %4839 = vmatpush1.bf16.msra.mxu0 %v4262
    %4840 = vmatprep.subr.bf16.mxu0 0
    %4841 = vmatpush1.bf16.msra.mxu0 %v4269
    %4842 = vmatprep.subr.bf16.mxu0 0
    %4843 = vmatpush1.bf16.msra.mxu0 %v4276
    %4844 = vmatprep.subr.bf16.mxu0 0
    %4845 = vmatpush1.bf16.msra.mxu0 %v4283
    %4846 = vmatprep.subr.bf16.mxu0 0
    %4847 = vmatpush1.bf16.msra.mxu0 %v4290
    %4848 = vmatprep.subr.bf16.mxu0 0
    %4849 = vmatpush1.bf16.msra.mxu0 %v4297
    %4850 = vmatprep.subr.bf16.mxu0 0
    %4851 = vmatpush1.bf16.msra.mxu0 %v4304
    %4852 = vmatprep.subr.bf16.mxu0 0
    %4853 = vmatpush1.bf16.msra.mxu0 %v4311
    %4854 = vmatprep.mubr.bf16.mxu0 %v3090
    %4855 = vmatmul.mubr.bf16.gmra.mrb[0].mxu0 %v3089
    %v4856 = vpop.f32.mrb[0].mxu0
    %v4857 = vadd.f32 %v4817, %v4856
    %v4858 = vpop.f32.mrb[0].mxu0
    %v4859 = vpop.f32.mrb[0].mxu0
    %v4860 = vpop.f32.mrb[0].mxu0
    %4861 = vdwg.mxu0
    %4862 = vst [vmem:[#allocation14] sm:$0xff] %v4612
    %4863 = vst [vmem:[#allocation14 + $0x8] sm:$0xff] %v4614
    %4864 = vst [vmem:[#allocation14 + $0x10] sm:$0xff] %v4694
    %4865 = vst [vmem:[#allocation14 + $0x18] sm:$0xff] %v4696
    %4866 = vst [vmem:[#allocation14 + $0x20] sm:$0xff] %v4776
    %4867 = vst [vmem:[#allocation14 + $0x28] sm:$0xff] %v4778
    %4868 = vst [vmem:[#allocation14 + $0x30] sm:$0xff] %v4857
    // Predicated region
    $region78: #{tpu_custom_call.1} parent=1 // pred_check
      _
    $region79: #{tpu_custom_call.1} parent=1 // pred_check_branch
      %4870 = sbr.rel (0) target = $region81
    $region80: #{tpu_custom_call.1} parent=1 // pred_region
      %s4872 = ssub.s32 896, 896
      %4873 = vsyncadd [#allocation4], %s4872
      %s4875 = sshll.u32 [#allocation14], 4
      %s4876 = int_to_ptr.vmem [resolvable:$true] %s4875
      %4878 = dma.vmem_to_hbm [thread:$0]  %s4876, 896, %s12, [#allocation4]
    $region81: #{tpu_custom_call.1} parent=1 // pred_fallthru
      _
    // Predicated region
    $region82: #{tpu_custom_call.1} parent=1 // pred_check
      _
    $region83: #{tpu_custom_call.1} parent=1 // pred_check_branch
      %4880 = sbr.rel (0) target = $region85
    $region84: #{tpu_custom_call.1} parent=1 // pred_region
      %4881 = dma.done [#allocation4], 896
    $region85: #{tpu_custom_call.1} parent=1 // pred_fallthru
      _
    %4882 = vsyncpa [#allocation3], 1
    %4883 = vsyncpa [#allocation6], 1
    %4884 = vsyncpa [#allocation9], 1
    %4885 = vsyncpa [#allocation12], 1
    %4886 = vsyncpa [#allocation4], 1

</llo_original>
